<compile_context>
chip_gen: v6e
topology: v6e:2x2x1
jax: 0.10.0
libtpu: 0.0.40
codegen_flags: <defaults>
</compile_context>

<pallas_src>
import functools

import numpy as np
import jax
import jax.numpy as jnp
from jax.experimental import pallas as pl
from jax.experimental.pallas import tpu as pltpu


# ---------------------------------------------------------------------------
# Architecture constants (fixed by the PyTorch module)
# ---------------------------------------------------------------------------
H = W = 32                  # input spatial size implied by the 16*5*5 flatten
K = 5                       # conv kernel size
C_IN, C1, C2 = 3, 6, 16     # channels: input, conv1 out, conv2 out
HW = H * W                  # image stride in the flattened lane coordinate
P1 = 28                     # conv1 output spatial size (32 - 5 + 1)
P2P = 5                     # spatial size after the second pool
NFEAT = C2 * P2P * P2P      # 400
N_OUT = 10
BN_EPS = 1e-5

# lane-offset spans of each stage (activations live as (C, lanes) with lane
# index p = n*H*W + i*W + j; convs/pools are lane-shifted slices)
MAX_OFF1 = (K - 1) * (W + 1)          # 132  : conv1 taps
POOL1_OFF = W + 1                     # 33   : pool1 window
MAX_OFF2 = (K - 1) * (2 * W + 2)      # 264  : conv2 taps on the dilated grid
POOL2_OFF = 2 * W + 2                 # 66   : pool2 window
MAX_OFF3 = (P2P - 1) * (4 * W + 4)    # 528  : flatten gather anchors


def _lane_sizes(n):
    L0 = n * HW
    L1 = L0 - MAX_OFF1
    L1z = L1 - POOL1_OFF
    L2 = L1z - MAX_OFF2
    L2z = L2 - POOL2_OFF
    Lout = L2z - MAX_OFF3
    return L0, L1, L1z, L2, L2z, Lout


# ---------------------------------------------------------------------------
# The single fused kernel
# ---------------------------------------------------------------------------
def _conv_net_kernel(x_ref, w1s_ref, bn_g_ref, bn_b_ref, w2s_ref, b2_ref,
                     wt_ref, bt_ref, mask_ref,
                     out_ref,
                     s1_ref, s2_ref, s3_ref, z2_ref):
    L1 = s1_ref.shape[1]
    L2 = s2_ref.shape[1]
    L2z = z2_ref.shape[1]
    Lout = s3_ref.shape[1]
    L1z = L1 - POOL1_OFF
    n_batch = x_ref.shape[1] // HW

    x = x_ref[...]                                           # (3, N*HW)

    # ---- conv1: stack the 25 taps along the contraction dim -> ONE deep MXU dot.
    #      conv1 bias intentionally omitted (cancelled by training-mode BN mean).
    for t in range(K * K):
        s = (t // K) * W + (t % K)
        s1_ref[t * C_IN:(t + 1) * C_IN, :] = x[:, s:s + L1]
    acc1 = jnp.dot(w1s_ref[...], s1_ref[...],
                   preferred_element_type=jnp.float32)       # (6, L1)

    # ---- BatchNorm2d (training mode: batch mean, biased variance) + ReLU.
    #      Statistics over the valid conv1 positions only (0/1 constant mask).
    mask = mask_ref[...]                                     # (1, L1)
    inv_cnt = 1.0 / float(n_batch * P1 * P1)
    mean = jnp.sum(acc1 * mask, axis=1, keepdims=True) * inv_cnt
    diff = acc1 - mean
    var = jnp.sum(diff * mask * diff, axis=1, keepdims=True) * inv_cnt
    a1 = jnp.maximum(diff * jax.lax.rsqrt(var + BN_EPS) * bn_g_ref[...]
                     + bn_b_ref[...], 0.0)                   # (6, L1)

    # ---- maxpool 2x2 / stride 2 (dilated lane coords: pooled (n,io,jo) lives at
    #      lane n*HW + 2*io*W + 2*jo)
    z1 = jnp.maximum(jnp.maximum(a1[:, 0:L1z], a1[:, 1:1 + L1z]),
                     jnp.maximum(a1[:, W:W + L1z], a1[:, W + 1:W + 1 + L1z]))

    # ---- conv2: same tap-stacking, ONE dot (16,150)@(150,L2), + bias
    for t in range(K * K):
        s = (t // K) * (2 * W) + (t % K) * 2
        s2_ref[t * C1:(t + 1) * C1, :] = z1[:, s:s + L2]
    y2 = jnp.dot(w2s_ref[...], s2_ref[...],
                 preferred_element_type=jnp.float32) + b2_ref[...]   # (16, L2)

    # ---- second maxpool 2x2 / stride 2 (pooled value at lane n*HW + 4*io*W + 4*jo)
    z2_ref[...] = jnp.maximum(
        jnp.maximum(y2[:, 0:L2z], y2[:, 2:2 + L2z]),
        jnp.maximum(y2[:, 2 * W:2 * W + L2z], y2[:, 2 * W + 2:2 * W + 2 + L2z]))

    # ---- flatten + fc1/fc2/fc3 (folded offline into one (10,400) weight):
    #      stack the 25 pooled positions along the contraction dim, then one dot.
    #      out_plane[o, m] = sum_{q,c} Wt[o, q*16+c] * pooled2[c, m + anchor(q)];
    #      only lanes m = n*HW are picked up afterwards (outside the kernel).
    for q in range(P2P * P2P):
        a = (q // P2P) * (4 * W) + (q % P2P) * 4
        s3_ref[q * C2:(q + 1) * C2, :] = z2_ref[:, a:a + Lout]
    out_ref[...] = (jnp.dot(wt_ref[...], s3_ref[...],
                            preferred_element_type=jnp.float32) + bt_ref[...])


def _full_spec(shape):
    nd = len(shape)
    return pl.BlockSpec(tuple(shape), lambda i, _nd=nd: (0,) * _nd)


# ---------------------------------------------------------------------------
# One-time parameter preparation (PyTorch layouts -> kernel layouts)
# ---------------------------------------------------------------------------
def prepare(params, batch):
    f32 = jnp.float32
    _, L1, _, _, _, _ = _lane_sizes(batch)

    # stacked conv weights: column index = tap*Cin + ci, tap = kh*K + kw
    w1s = jnp.transpose(params["conv1_w"], (0, 2, 3, 1)).reshape(C1, C_IN * K * K)
    w2s = jnp.transpose(params["conv2_w"], (0, 2, 3, 1)).reshape(C2, C1 * K * K)

    # fold fc1 -> fc2 -> fc3 (no activations between them in the module) into one
    # (10, 400) weight + (10,) bias (done in f64 for accuracy), then reorder the
    # columns from PyTorch flatten order f = c*25+q to the kernel's stacked-row
    # order q*16 + c.
    W1 = np.asarray(params["fc1_w"], np.float64); b1 = np.asarray(params["fc1_b"], np.float64)
    W2 = np.asarray(params["fc2_w"], np.float64); b2 = np.asarray(params["fc2_b"], np.float64)
    W3 = np.asarray(params["fc3_w"], np.float64); b3 = np.asarray(params["fc3_b"], np.float64)
    Wf = W3 @ W2 @ W1                                     # (10, 400)
    bf = W3 @ (W2 @ b1) + W3 @ b2 + b3                    # (10,)
    Wt = Wf.reshape(N_OUT, C2, P2P * P2P).transpose(0, 2, 1).reshape(N_OUT, NFEAT)

    # valid conv1 output positions (for the BN batch statistics)
    p = np.arange(L1)
    mask1 = (((p % W) < P1) & (((p // W) % H) < P1)).astype(np.float32)[None, :]

    return {
        "w1s": w1s.astype(f32),
        # NOTE: params["conv1_b"] intentionally unused: a constant per-channel shift
        # before a training-mode BatchNorm cancels exactly (parameter kept for parity).
        "bn_g": params["bn_gamma"].reshape(C1, 1).astype(f32),
        "bn_b": params["bn_beta"].reshape(C1, 1).astype(f32),
        "w2s": w2s.astype(f32),
        "b2": params["conv2_b"].reshape(C2, 1).astype(f32),
        "wt": jnp.asarray(Wt, f32),
        "bt": jnp.asarray(bf.reshape(N_OUT, 1), f32),
        "mask1": jnp.asarray(mask1),
    }


# ---------------------------------------------------------------------------
# Forward pass (single pallas_call)
# ---------------------------------------------------------------------------
def conv_net_forward(prep, x_nchw):
    n = x_nchw.shape[0]
    L0, L1, _, L2, L2z, Lout = _lane_sizes(n)

    # Tiny one-time layout glue (~24 KB): NCHW -> channel-major, flattened lanes.
    x1 = jnp.transpose(x_nchw, (1, 0, 2, 3)).reshape(C_IN, L0)

    args = (x1, prep["w1s"], prep["bn_g"], prep["bn_b"], prep["w2s"], prep["b2"],
            prep["wt"], prep["bt"], prep["mask1"])

    scratch = [pltpu.VMEM((C_IN * K * K, L1), jnp.float32),   # stacked conv1 operand
               pltpu.VMEM((C1 * K * K, L2), jnp.float32),     # stacked conv2 operand
               pltpu.VMEM((NFEAT, Lout), jnp.float32),        # stacked tail operand
               pltpu.VMEM((C2, L2z), jnp.float32)]            # pooled2 staging

    # explicit VMEM budget from actual residency (all batch-linear), with headroom
    resident_bytes = 4 * (C_IN * K * K * L1 + C1 * K * K * L2 + NFEAT * Lout
                          + C2 * L2z + C_IN * L0 + N_OUT * Lout
                          + NFEAT * N_OUT + L1 + 4 * C1 + 2 * C2 + 2 * N_OUT)
    vmem_bytes = int(min(2 * resident_bytes + (8 << 20), 48 << 20))

    flops = 2 * (C1 * (C_IN * K * K) * L1 + C2 * (C1 * K * K) * L2
                 + N_OUT * NFEAT * Lout)
    bytes_accessed = 4 * (C_IN * L0 + N_OUT * Lout + C1 * C_IN * K * K
                          + C2 * C1 * K * K + N_OUT * NFEAT + L1
                          + 2 * C1 + C2 + N_OUT)

    out_plane = pl.pallas_call(
        _conv_net_kernel,
        out_shape=jax.ShapeDtypeStruct((N_OUT, Lout), jnp.float32),
        grid=(1,),
        in_specs=[_full_spec(a.shape) for a in args],
        out_specs=_full_spec((N_OUT, Lout)),
        scratch_shapes=scratch,
        compiler_params=pltpu.CompilerParams(
            dimension_semantics=("arbitrary",),
            vmem_limit_bytes=vmem_bytes),
        cost_estimate=pl.CostEstimate(flops=int(flops), transcendentals=C1,
                                      bytes_accessed=int(bytes_accessed)),
    )(*args)

    # Per-image logits sit HW lanes apart in the lane-dense output plane: tiny
    # (~40 KB) strided pick + transpose in XLA.
    return out_plane[:, ::HW].T                               # (N, 10)


# ---------------------------------------------------------------------------
# Parameters (PyTorch layouts, PyTorch-style fan-in uniform init, deterministic)
# ---------------------------------------------------------------------------
def init_params(key):
    ks = jax.random.split(key, 10)

    def u(k, shape, fan_in):
        b = 1.0 / float(np.sqrt(fan_in))
        return jax.random.uniform(k, shape, jnp.float32, -b, b)

    return {
        "conv1_w": u(ks[0], (C1, C_IN, K, K), C_IN * K * K),
        "conv1_b": u(ks[1], (C1,), C_IN * K * K),
        "bn_gamma": jnp.ones((C1,), jnp.float32),
        "bn_beta": jnp.zeros((C1,), jnp.float32),
        "conv2_w": u(ks[2], (C2, C1, K, K), C1 * K * K),
        "conv2_b": u(ks[3], (C2,), C1 * K * K),
        "fc1_w": u(ks[4], (120, NFEAT), NFEAT),
        "fc1_b": u(ks[5], (120,), NFEAT),
        "fc2_w": u(ks[6], (84, 120), 120),
        "fc2_b": u(ks[7], (84,), 120),
        "fc3_w": u(ks[8], (10, 84), 84),
        "fc3_b": u(ks[9], (10,), 84),
    }


# ---------------------------------------------------------------------------
# Plain-XLA reference of the same module (numerical self-check)
# ---------------------------------------------------------------------------
def reference_forward(params, x):
    y = jax.lax.conv_general_dilated(x, params["conv1_w"], (1, 1), "VALID",
                                     dimension_numbers=("NCHW", "OIHW", "NCHW"))
    y = y + params["conv1_b"].reshape(1, C1, 1, 1)
    mean = jnp.mean(y, axis=(0, 2, 3), keepdims=True)
    var = jnp.mean((y - mean) ** 2, axis=(0, 2, 3), keepdims=True)
    y = (y - mean) * jax.lax.rsqrt(var + BN_EPS)
    y = y * params["bn_gamma"].reshape(1, C1, 1, 1) + params["bn_beta"].reshape(1, C1, 1, 1)
    y = jnp.maximum(y, 0.0)
    y = jnp.maximum(jnp.maximum(y[:, :, 0::2, 0::2], y[:, :, 0::2, 1::2]),
                    jnp.maximum(y[:, :, 1::2, 0::2], y[:, :, 1::2, 1::2]))
    y = jax.lax.conv_general_dilated(y, params["conv2_w"], (1, 1), "VALID",
                                     dimension_numbers=("NCHW", "OIHW", "NCHW"))
    y = y + params["conv2_b"].reshape(1, C2, 1, 1)
    y = jnp.maximum(jnp.maximum(y[:, :, 0::2, 0::2], y[:, :, 0::2, 1::2]),
                    jnp.maximum(y[:, :, 1::2, 0::2], y[:, :, 1::2, 1::2]))
    y = y.reshape(y.shape[0], -1)
    y = y @ params["fc1_w"].T + params["fc1_b"]
    y = y @ params["fc2_w"].T + params["fc2_b"]
    y = y @ params["fc3_w"].T + params["fc3_b"]
    return y


if __name__ == "__main__":
    key = jax.random.PRNGKey(0)
    k_x, k_p = jax.random.split(key)
    # Input must be 32x32 so the flatten yields 16*5*5 features, as the module implies.
    x = jax.random.normal(k_x, (2, 3, H, W), jnp.float32)
    params = init_params(k_p)
    prep = prepare(params, batch=x.shape[0])

    fwd = jax.jit(functools.partial(conv_net_forward, prep))
    out = jax.block_until_ready(fwd(x))
    assert out.shape == (2, 10) and out.dtype == jnp.float32

    # Numerical self-check (tolerance absorbs default TPU matmul precision on both sides).
    ref = jax.block_until_ready(jax.jit(reference_forward)(params, x))
    max_err = float(jnp.max(jnp.abs(out - ref)))
    if not np.allclose(np.asarray(out), np.asarray(ref), rtol=2e-2, atol=2e-2):
        raise AssertionError(f"Pallas output mismatch vs reference (max abs err={max_err:.3e})")
    print("KERNEL_OK")
</pallas_src>

<mosaic_0001>
module attributes {stable_mosaic.version = 11 : i64} {
  func.func @_conv_net_kernel(%arg0: i32, %arg1: memref<3x2048xf32, #tpu.memory_space<vmem>>, %arg2: memref<6x75xf32, #tpu.memory_space<vmem>>, %arg3: memref<6x1xf32, #tpu.memory_space<vmem>>, %arg4: memref<6x1xf32, #tpu.memory_space<vmem>>, %arg5: memref<16x150xf32, #tpu.memory_space<vmem>>, %arg6: memref<16x1xf32, #tpu.memory_space<vmem>>, %arg7: memref<10x400xf32, #tpu.memory_space<vmem>>, %arg8: memref<10x1xf32, #tpu.memory_space<vmem>>, %arg9: memref<1x1916xf32, #tpu.memory_space<vmem>>, %arg10: memref<10x1025xf32, #tpu.memory_space<vmem>>, %arg11: memref<75x1916xf32, #tpu.memory_space<vmem>>, %arg12: memref<150x1619xf32, #tpu.memory_space<vmem>>, %arg13: memref<400x1025xf32, #tpu.memory_space<vmem>>, %arg14: memref<16x1553xf32, #tpu.memory_space<vmem>>) attributes {dimension_semantics = [#tpu.dimension_semantics<arbitrary>], iteration_bounds = array<i64: 1>, scalar_prefetch = 0 : i64, scratch_operands = 4 : i64, tpu.core_type = #tpu.core_type<tc>, window_params = [{pipeline_mode = #tpu.pipeline_mode<synchronous>, transform_indices = @transform_0, window_bounds = array<i64: 3, 2048>}, {pipeline_mode = #tpu.pipeline_mode<synchronous>, transform_indices = @transform_1, window_bounds = array<i64: 6, 75>}, {pipeline_mode = #tpu.pipeline_mode<synchronous>, transform_indices = @transform_2, window_bounds = array<i64: 6, 1>}, {pipeline_mode = #tpu.pipeline_mode<synchronous>, transform_indices = @transform_3, window_bounds = array<i64: 6, 1>}, {pipeline_mode = #tpu.pipeline_mode<synchronous>, transform_indices = @transform_4, window_bounds = array<i64: 16, 150>}, {pipeline_mode = #tpu.pipeline_mode<synchronous>, transform_indices = @transform_5, window_bounds = array<i64: 16, 1>}, {pipeline_mode = #tpu.pipeline_mode<synchronous>, transform_indices = @transform_6, window_bounds = array<i64: 10, 400>}, {pipeline_mode = #tpu.pipeline_mode<synchronous>, transform_indices = @transform_7, window_bounds = array<i64: 10, 1>}, {pipeline_mode = #tpu.pipeline_mode<synchronous>, transform_indices = @transform_8, window_bounds = array<i64: 1, 1916>}, {pipeline_mode = #tpu.pipeline_mode<synchronous>, transform_indices = @transform_9, window_bounds = array<i64: 10, 1025>}]} {
    %c0 = arith.constant 0 : index
    %c0_0 = arith.constant 0 : index
    %0 = vector.load %arg1[%c0, %c0_0] : memref<3x2048xf32, #tpu.memory_space<vmem>>, vector<3x2048xf32>
    %1 = vector.extract_strided_slice %0 {offsets = [0, 0], sizes = [3, 1916], strides = [1, 1]} : vector<3x2048xf32> to vector<3x1916xf32>
    %c0_1 = arith.constant 0 : index
    %c0_2 = arith.constant 0 : index
    %2 = vector.load %arg11[%c0_1, %c0_2] : memref<75x1916xf32, #tpu.memory_space<vmem>>, vector<3x1916xf32>
    tpu.vector_store %arg11[%c0_1, %c0_2], %1 {strides = array<i32>} : memref<75x1916xf32, #tpu.memory_space<vmem>>, vector<3x1916xf32>,
    %3 = vector.extract_strided_slice %0 {offsets = [0, 1], sizes = [3, 1916], strides = [1, 1]} : vector<3x2048xf32> to vector<3x1916xf32>
    %c3 = arith.constant 3 : index
    %c0_3 = arith.constant 0 : index
    %4 = vector.load %arg11[%c3, %c0_3] : memref<75x1916xf32, #tpu.memory_space<vmem>>, vector<3x1916xf32>
    tpu.vector_store %arg11[%c3, %c0_3], %3 {strides = array<i32>} : memref<75x1916xf32, #tpu.memory_space<vmem>>, vector<3x1916xf32>,
    %5 = vector.extract_strided_slice %0 {offsets = [0, 2], sizes = [3, 1916], strides = [1, 1]} : vector<3x2048xf32> to vector<3x1916xf32>
    %c6 = arith.constant 6 : index
    %c0_4 = arith.constant 0 : index
    %6 = vector.load %arg11[%c6, %c0_4] : memref<75x1916xf32, #tpu.memory_space<vmem>>, vector<3x1916xf32>
    tpu.vector_store %arg11[%c6, %c0_4], %5 {strides = array<i32>} : memref<75x1916xf32, #tpu.memory_space<vmem>>, vector<3x1916xf32>,
    %7 = vector.extract_strided_slice %0 {offsets = [0, 3], sizes = [3, 1916], strides = [1, 1]} : vector<3x2048xf32> to vector<3x1916xf32>
    %c9 = arith.constant 9 : index
    %c0_5 = arith.constant 0 : index
    %8 = vector.load %arg11[%c9, %c0_5] : memref<75x1916xf32, #tpu.memory_space<vmem>>, vector<3x1916xf32>
    tpu.vector_store %arg11[%c9, %c0_5], %7 {strides = array<i32>} : memref<75x1916xf32, #tpu.memory_space<vmem>>, vector<3x1916xf32>,
    %9 = vector.extract_strided_slice %0 {offsets = [0, 4], sizes = [3, 1916], strides = [1, 1]} : vector<3x2048xf32> to vector<3x1916xf32>
    %c12 = arith.constant 12 : index
    %c0_6 = arith.constant 0 : index
    %10 = vector.load %arg11[%c12, %c0_6] : memref<75x1916xf32, #tpu.memory_space<vmem>>, vector<3x1916xf32>
    tpu.vector_store %arg11[%c12, %c0_6], %9 {strides = array<i32>} : memref<75x1916xf32, #tpu.memory_space<vmem>>, vector<3x1916xf32>,
    %11 = vector.extract_strided_slice %0 {offsets = [0, 32], sizes = [3, 1916], strides = [1, 1]} : vector<3x2048xf32> to vector<3x1916xf32>
    %c15 = arith.constant 15 : index
    %c0_7 = arith.constant 0 : index
    %12 = vector.load %arg11[%c15, %c0_7] : memref<75x1916xf32, #tpu.memory_space<vmem>>, vector<3x1916xf32>
    tpu.vector_store %arg11[%c15, %c0_7], %11 {strides = array<i32>} : memref<75x1916xf32, #tpu.memory_space<vmem>>, vector<3x1916xf32>,
    %13 = vector.extract_strided_slice %0 {offsets = [0, 33], sizes = [3, 1916], strides = [1, 1]} : vector<3x2048xf32> to vector<3x1916xf32>
    %c18 = arith.constant 18 : index
    %c0_8 = arith.constant 0 : index
    %14 = vector.load %arg11[%c18, %c0_8] : memref<75x1916xf32, #tpu.memory_space<vmem>>, vector<3x1916xf32>
    tpu.vector_store %arg11[%c18, %c0_8], %13 {strides = array<i32>} : memref<75x1916xf32, #tpu.memory_space<vmem>>, vector<3x1916xf32>,
    %15 = vector.extract_strided_slice %0 {offsets = [0, 34], sizes = [3, 1916], strides = [1, 1]} : vector<3x2048xf32> to vector<3x1916xf32>
    %c21 = arith.constant 21 : index
    %c0_9 = arith.constant 0 : index
    %16 = vector.load %arg11[%c21, %c0_9] : memref<75x1916xf32, #tpu.memory_space<vmem>>, vector<3x1916xf32>
    tpu.vector_store %arg11[%c21, %c0_9], %15 {strides = array<i32>} : memref<75x1916xf32, #tpu.memory_space<vmem>>, vector<3x1916xf32>,
    %17 = vector.extract_strided_slice %0 {offsets = [0, 35], sizes = [3, 1916], strides = [1, 1]} : vector<3x2048xf32> to vector<3x1916xf32>
    %c24 = arith.constant 24 : index
    %c0_10 = arith.constant 0 : index
    %18 = vector.load %arg11[%c24, %c0_10] : memref<75x1916xf32, #tpu.memory_space<vmem>>, vector<3x1916xf32>
    tpu.vector_store %arg11[%c24, %c0_10], %17 {strides = array<i32>} : memref<75x1916xf32, #tpu.memory_space<vmem>>, vector<3x1916xf32>,
    %19 = vector.extract_strided_slice %0 {offsets = [0, 36], sizes = [3, 1916], strides = [1, 1]} : vector<3x2048xf32> to vector<3x1916xf32>
    %c27 = arith.constant 27 : index
    %c0_11 = arith.constant 0 : index
    %20 = vector.load %arg11[%c27, %c0_11] : memref<75x1916xf32, #tpu.memory_space<vmem>>, vector<3x1916xf32>
    tpu.vector_store %arg11[%c27, %c0_11], %19 {strides = array<i32>} : memref<75x1916xf32, #tpu.memory_space<vmem>>, vector<3x1916xf32>,
    %21 = vector.extract_strided_slice %0 {offsets = [0, 64], sizes = [3, 1916], strides = [1, 1]} : vector<3x2048xf32> to vector<3x1916xf32>
    %c30 = arith.constant 30 : index
    %c0_12 = arith.constant 0 : index
    %22 = vector.load %arg11[%c30, %c0_12] : memref<75x1916xf32, #tpu.memory_space<vmem>>, vector<3x1916xf32>
    tpu.vector_store %arg11[%c30, %c0_12], %21 {strides = array<i32>} : memref<75x1916xf32, #tpu.memory_space<vmem>>, vector<3x1916xf32>,
    %23 = vector.extract_strided_slice %0 {offsets = [0, 65], sizes = [3, 1916], strides = [1, 1]} : vector<3x2048xf32> to vector<3x1916xf32>
    %c33 = arith.constant 33 : index
    %c0_13 = arith.constant 0 : index
    %24 = vector.load %arg11[%c33, %c0_13] : memref<75x1916xf32, #tpu.memory_space<vmem>>, vector<3x1916xf32>
    tpu.vector_store %arg11[%c33, %c0_13], %23 {strides = array<i32>} : memref<75x1916xf32, #tpu.memory_space<vmem>>, vector<3x1916xf32>,
    %25 = vector.extract_strided_slice %0 {offsets = [0, 66], sizes = [3, 1916], strides = [1, 1]} : vector<3x2048xf32> to vector<3x1916xf32>
    %c36 = arith.constant 36 : index
    %c0_14 = arith.constant 0 : index
    %26 = vector.load %arg11[%c36, %c0_14] : memref<75x1916xf32, #tpu.memory_space<vmem>>, vector<3x1916xf32>
    tpu.vector_store %arg11[%c36, %c0_14], %25 {strides = array<i32>} : memref<75x1916xf32, #tpu.memory_space<vmem>>, vector<3x1916xf32>,
    %27 = vector.extract_strided_slice %0 {offsets = [0, 67], sizes = [3, 1916], strides = [1, 1]} : vector<3x2048xf32> to vector<3x1916xf32>
    %c39 = arith.constant 39 : index
    %c0_15 = arith.constant 0 : index
    %28 = vector.load %arg11[%c39, %c0_15] : memref<75x1916xf32, #tpu.memory_space<vmem>>, vector<3x1916xf32>
    tpu.vector_store %arg11[%c39, %c0_15], %27 {strides = array<i32>} : memref<75x1916xf32, #tpu.memory_space<vmem>>, vector<3x1916xf32>,
    %29 = vector.extract_strided_slice %0 {offsets = [0, 68], sizes = [3, 1916], strides = [1, 1]} : vector<3x2048xf32> to vector<3x1916xf32>
    %c42 = arith.constant 42 : index
    %c0_16 = arith.constant 0 : index
    %30 = vector.load %arg11[%c42, %c0_16] : memref<75x1916xf32, #tpu.memory_space<vmem>>, vector<3x1916xf32>
    tpu.vector_store %arg11[%c42, %c0_16], %29 {strides = array<i32>} : memref<75x1916xf32, #tpu.memory_space<vmem>>, vector<3x1916xf32>,
    %31 = vector.extract_strided_slice %0 {offsets = [0, 96], sizes = [3, 1916], strides = [1, 1]} : vector<3x2048xf32> to vector<3x1916xf32>
    %c45 = arith.constant 45 : index
    %c0_17 = arith.constant 0 : index
    %32 = vector.load %arg11[%c45, %c0_17] : memref<75x1916xf32, #tpu.memory_space<vmem>>, vector<3x1916xf32>
    tpu.vector_store %arg11[%c45, %c0_17], %31 {strides = array<i32>} : memref<75x1916xf32, #tpu.memory_space<vmem>>, vector<3x1916xf32>,
    %33 = vector.extract_strided_slice %0 {offsets = [0, 97], sizes = [3, 1916], strides = [1, 1]} : vector<3x2048xf32> to vector<3x1916xf32>
    %c48 = arith.constant 48 : index
    %c0_18 = arith.constant 0 : index
    %34 = vector.load %arg11[%c48, %c0_18] : memref<75x1916xf32, #tpu.memory_space<vmem>>, vector<3x1916xf32>
    tpu.vector_store %arg11[%c48, %c0_18], %33 {strides = array<i32>} : memref<75x1916xf32, #tpu.memory_space<vmem>>, vector<3x1916xf32>,
    %35 = vector.extract_strided_slice %0 {offsets = [0, 98], sizes = [3, 1916], strides = [1, 1]} : vector<3x2048xf32> to vector<3x1916xf32>
    %c51 = arith.constant 51 : index
    %c0_19 = arith.constant 0 : index
    %36 = vector.load %arg11[%c51, %c0_19] : memref<75x1916xf32, #tpu.memory_space<vmem>>, vector<3x1916xf32>
    tpu.vector_store %arg11[%c51, %c0_19], %35 {strides = array<i32>} : memref<75x1916xf32, #tpu.memory_space<vmem>>, vector<3x1916xf32>,
    %37 = vector.extract_strided_slice %0 {offsets = [0, 99], sizes = [3, 1916], strides = [1, 1]} : vector<3x2048xf32> to vector<3x1916xf32>
    %c54 = arith.constant 54 : index
    %c0_20 = arith.constant 0 : index
    %38 = vector.load %arg11[%c54, %c0_20] : memref<75x1916xf32, #tpu.memory_space<vmem>>, vector<3x1916xf32>
    tpu.vector_store %arg11[%c54, %c0_20], %37 {strides = array<i32>} : memref<75x1916xf32, #tpu.memory_space<vmem>>, vector<3x1916xf32>,
    %39 = vector.extract_strided_slice %0 {offsets = [0, 100], sizes = [3, 1916], strides = [1, 1]} : vector<3x2048xf32> to vector<3x1916xf32>
    %c57 = arith.constant 57 : index
    %c0_21 = arith.constant 0 : index
    %40 = vector.load %arg11[%c57, %c0_21] : memref<75x1916xf32, #tpu.memory_space<vmem>>, vector<3x1916xf32>
    tpu.vector_store %arg11[%c57, %c0_21], %39 {strides = array<i32>} : memref<75x1916xf32, #tpu.memory_space<vmem>>, vector<3x1916xf32>,
    %41 = vector.extract_strided_slice %0 {offsets = [0, 128], sizes = [3, 1916], strides = [1, 1]} : vector<3x2048xf32> to vector<3x1916xf32>
    %c60 = arith.constant 60 : index
    %c0_22 = arith.constant 0 : index
    %42 = vector.load %arg11[%c60, %c0_22] : memref<75x1916xf32, #tpu.memory_space<vmem>>, vector<3x1916xf32>
    tpu.vector_store %arg11[%c60, %c0_22], %41 {strides = array<i32>} : memref<75x1916xf32, #tpu.memory_space<vmem>>, vector<3x1916xf32>,
    %43 = vector.extract_strided_slice %0 {offsets = [0, 129], sizes = [3, 1916], strides = [1, 1]} : vector<3x2048xf32> to vector<3x1916xf32>
    %c63 = arith.constant 63 : index
    %c0_23 = arith.constant 0 : index
    %44 = vector.load %arg11[%c63, %c0_23] : memref<75x1916xf32, #tpu.memory_space<vmem>>, vector<3x1916xf32>
    tpu.vector_store %arg11[%c63, %c0_23], %43 {strides = array<i32>} : memref<75x1916xf32, #tpu.memory_space<vmem>>, vector<3x1916xf32>,
    %45 = vector.extract_strided_slice %0 {offsets = [0, 130], sizes = [3, 1916], strides = [1, 1]} : vector<3x2048xf32> to vector<3x1916xf32>
    %c66 = arith.constant 66 : index
    %c0_24 = arith.constant 0 : index
    %46 = vector.load %arg11[%c66, %c0_24] : memref<75x1916xf32, #tpu.memory_space<vmem>>, vector<3x1916xf32>
    tpu.vector_store %arg11[%c66, %c0_24], %45 {strides = array<i32>} : memref<75x1916xf32, #tpu.memory_space<vmem>>, vector<3x1916xf32>,
    %47 = vector.extract_strided_slice %0 {offsets = [0, 131], sizes = [3, 1916], strides = [1, 1]} : vector<3x2048xf32> to vector<3x1916xf32>
    %c69 = arith.constant 69 : index
    %c0_25 = arith.constant 0 : index
    %48 = vector.load %arg11[%c69, %c0_25] : memref<75x1916xf32, #tpu.memory_space<vmem>>, vector<3x1916xf32>
    tpu.vector_store %arg11[%c69, %c0_25], %47 {strides = array<i32>} : memref<75x1916xf32, #tpu.memory_space<vmem>>, vector<3x1916xf32>,
    %49 = vector.extract_strided_slice %0 {offsets = [0, 132], sizes = [3, 1916], strides = [1, 1]} : vector<3x2048xf32> to vector<3x1916xf32>
    %c72 = arith.constant 72 : index
    %c0_26 = arith.constant 0 : index
    %50 = vector.load %arg11[%c72, %c0_26] : memref<75x1916xf32, #tpu.memory_space<vmem>>, vector<3x1916xf32>
    tpu.vector_store %arg11[%c72, %c0_26], %49 {strides = array<i32>} : memref<75x1916xf32, #tpu.memory_space<vmem>>, vector<3x1916xf32>,
    %c0_27 = arith.constant 0 : index
    %c0_28 = arith.constant 0 : index
    %51 = vector.load %arg2[%c0_27, %c0_28] : memref<6x75xf32, #tpu.memory_space<vmem>>, vector<6x75xf32>
    %c0_29 = arith.constant 0 : index
    %c0_30 = arith.constant 0 : index
    %52 = vector.load %arg11[%c0_29, %c0_30] : memref<75x1916xf32, #tpu.memory_space<vmem>>, vector<75x1916xf32>
    %cst = arith.constant dense<0.000000e+00> : vector<6x1916xf32>
    %53 = tpu.matmul %51, %52, %cst {dimension_numbers = #tpu.dot_dimension_numbers<[1], [0], [0], [1], [0, 0, 1, 1], [], []>} : vector<6x75xf32>, vector<75x1916xf32>, vector<6x1916xf32> -> vector<6x1916xf32>
    %c0_31 = arith.constant 0 : index
    %c0_32 = arith.constant 0 : index
    %54 = vector.load %arg9[%c0_31, %c0_32] : memref<1x1916xf32, #tpu.memory_space<vmem>>, vector<1x1916xf32>
    %55 = vector.broadcast %54 : vector<1x1916xf32> to vector<6x1916xf32>
    %56 = arith.mulf %53, %55 : vector<6x1916xf32>
    %cst_33 = arith.constant dense<0.000000e+00> : vector<6xf32>
    %57 = vector.multi_reduction <add>, %56, %cst_33 [1] : vector<6x1916xf32> to vector<6xf32>
    %58 = vector.shape_cast %57 : vector<6xf32> to vector<6x1xf32>
    %cst_34 = arith.constant 6.37755089E-4 : f32
    %59 = vector.broadcast %cst_34 : f32 to vector<6x1xf32>
    %60 = arith.mulf %58, %59 : vector<6x1xf32>
    %61 = vector.broadcast %60 : vector<6x1xf32> to vector<6x1916xf32>
    %62 = arith.subf %53, %61 : vector<6x1916xf32>
    %63 = vector.broadcast %54 : vector<1x1916xf32> to vector<6x1916xf32>
    %64 = arith.mulf %62, %63 : vector<6x1916xf32>
    %65 = arith.mulf %64, %62 : vector<6x1916xf32>
    %cst_35 = arith.constant dense<0.000000e+00> : vector<6xf32>
    %66 = vector.multi_reduction <add>, %65, %cst_35 [1] : vector<6x1916xf32> to vector<6xf32>
    %67 = vector.shape_cast %66 : vector<6xf32> to vector<6x1xf32>
    %cst_36 = arith.constant 6.37755089E-4 : f32
    %68 = vector.broadcast %cst_36 : f32 to vector<6x1xf32>
    %69 = arith.mulf %67, %68 : vector<6x1xf32>
    %cst_37 = arith.constant 9.99999974E-6 : f32
    %70 = vector.broadcast %cst_37 : f32 to vector<6x1xf32>
    %71 = arith.addf %69, %70 : vector<6x1xf32>
    %72 = math.rsqrt %71 : vector<6x1xf32>
    %73 = vector.broadcast %72 : vector<6x1xf32> to vector<6x1916xf32>
    %74 = arith.mulf %62, %73 : vector<6x1916xf32>
    %c0_38 = arith.constant 0 : index
    %c0_39 = arith.constant 0 : index
    %75 = vector.load %arg3[%c0_38, %c0_39] : memref<6x1xf32, #tpu.memory_space<vmem>>, vector<6x1xf32>
    %76 = vector.broadcast %75 : vector<6x1xf32> to vector<6x1916xf32>
    %77 = arith.mulf %74, %76 : vector<6x1916xf32>
    %c0_40 = arith.constant 0 : index
    %c0_41 = arith.constant 0 : index
    %78 = vector.load %arg4[%c0_40, %c0_41] : memref<6x1xf32, #tpu.memory_space<vmem>>, vector<6x1xf32>
    %79 = vector.broadcast %78 : vector<6x1xf32> to vector<6x1916xf32>
    %80 = arith.addf %77, %79 : vector<6x1916xf32>
    %cst_42 = arith.constant 0.000000e+00 : f32
    %81 = vector.broadcast %cst_42 : f32 to vector<6x1916xf32>
    %82 = arith.maximumf %80, %81 : vector<6x1916xf32>
    %83 = vector.extract_strided_slice %82 {offsets = [0, 0], sizes = [6, 1883], strides = [1, 1]} : vector<6x1916xf32> to vector<6x1883xf32>
    %84 = vector.extract_strided_slice %82 {offsets = [0, 1], sizes = [6, 1883], strides = [1, 1]} : vector<6x1916xf32> to vector<6x1883xf32>
    %85 = arith.maximumf %83, %84 : vector<6x1883xf32>
    %86 = vector.extract_strided_slice %82 {offsets = [0, 32], sizes = [6, 1883], strides = [1, 1]} : vector<6x1916xf32> to vector<6x1883xf32>
    %87 = vector.extract_strided_slice %82 {offsets = [0, 33], sizes = [6, 1883], strides = [1, 1]} : vector<6x1916xf32> to vector<6x1883xf32>
    %88 = arith.maximumf %86, %87 : vector<6x1883xf32>
    %89 = arith.maximumf %85, %88 : vector<6x1883xf32>
    %90 = vector.extract_strided_slice %89 {offsets = [0, 0], sizes = [6, 1619], strides = [1, 1]} : vector<6x1883xf32> to vector<6x1619xf32>
    %c0_43 = arith.constant 0 : index
    %c0_44 = arith.constant 0 : index
    %91 = vector.load %arg12[%c0_43, %c0_44] : memref<150x1619xf32, #tpu.memory_space<vmem>>, vector<6x1619xf32>
    tpu.vector_store %arg12[%c0_43, %c0_44], %90 {strides = array<i32>} : memref<150x1619xf32, #tpu.memory_space<vmem>>, vector<6x1619xf32>,
    %92 = vector.extract_strided_slice %89 {offsets = [0, 2], sizes = [6, 1619], strides = [1, 1]} : vector<6x1883xf32> to vector<6x1619xf32>
    %c6_45 = arith.constant 6 : index
    %c0_46 = arith.constant 0 : index
    %93 = vector.load %arg12[%c6_45, %c0_46] : memref<150x1619xf32, #tpu.memory_space<vmem>>, vector<6x1619xf32>
    tpu.vector_store %arg12[%c6_45, %c0_46], %92 {strides = array<i32>} : memref<150x1619xf32, #tpu.memory_space<vmem>>, vector<6x1619xf32>,
    %94 = vector.extract_strided_slice %89 {offsets = [0, 4], sizes = [6, 1619], strides = [1, 1]} : vector<6x1883xf32> to vector<6x1619xf32>
    %c12_47 = arith.constant 12 : index
    %c0_48 = arith.constant 0 : index
    %95 = vector.load %arg12[%c12_47, %c0_48] : memref<150x1619xf32, #tpu.memory_space<vmem>>, vector<6x1619xf32>
    tpu.vector_store %arg12[%c12_47, %c0_48], %94 {strides = array<i32>} : memref<150x1619xf32, #tpu.memory_space<vmem>>, vector<6x1619xf32>,
    %96 = vector.extract_strided_slice %89 {offsets = [0, 6], sizes = [6, 1619], strides = [1, 1]} : vector<6x1883xf32> to vector<6x1619xf32>
    %c18_49 = arith.constant 18 : index
    %c0_50 = arith.constant 0 : index
    %97 = vector.load %arg12[%c18_49, %c0_50] : memref<150x1619xf32, #tpu.memory_space<vmem>>, vector<6x1619xf32>
    tpu.vector_store %arg12[%c18_49, %c0_50], %96 {strides = array<i32>} : memref<150x1619xf32, #tpu.memory_space<vmem>>, vector<6x1619xf32>,
    %98 = vector.extract_strided_slice %89 {offsets = [0, 8], sizes = [6, 1619], strides = [1, 1]} : vector<6x1883xf32> to vector<6x1619xf32>
    %c24_51 = arith.constant 24 : index
    %c0_52 = arith.constant 0 : index
    %99 = vector.load %arg12[%c24_51, %c0_52] : memref<150x1619xf32, #tpu.memory_space<vmem>>, vector<6x1619xf32>
    tpu.vector_store %arg12[%c24_51, %c0_52], %98 {strides = array<i32>} : memref<150x1619xf32, #tpu.memory_space<vmem>>, vector<6x1619xf32>,
    %100 = vector.extract_strided_slice %89 {offsets = [0, 64], sizes = [6, 1619], strides = [1, 1]} : vector<6x1883xf32> to vector<6x1619xf32>
    %c30_53 = arith.constant 30 : index
    %c0_54 = arith.constant 0 : index
    %101 = vector.load %arg12[%c30_53, %c0_54] : memref<150x1619xf32, #tpu.memory_space<vmem>>, vector<6x1619xf32>
    tpu.vector_store %arg12[%c30_53, %c0_54], %100 {strides = array<i32>} : memref<150x1619xf32, #tpu.memory_space<vmem>>, vector<6x1619xf32>,
    %102 = vector.extract_strided_slice %89 {offsets = [0, 66], sizes = [6, 1619], strides = [1, 1]} : vector<6x1883xf32> to vector<6x1619xf32>
    %c36_55 = arith.constant 36 : index
    %c0_56 = arith.constant 0 : index
    %103 = vector.load %arg12[%c36_55, %c0_56] : memref<150x1619xf32, #tpu.memory_space<vmem>>, vector<6x1619xf32>
    tpu.vector_store %arg12[%c36_55, %c0_56], %102 {strides = array<i32>} : memref<150x1619xf32, #tpu.memory_space<vmem>>, vector<6x1619xf32>,
    %104 = vector.extract_strided_slice %89 {offsets = [0, 68], sizes = [6, 1619], strides = [1, 1]} : vector<6x1883xf32> to vector<6x1619xf32>
    %c42_57 = arith.constant 42 : index
    %c0_58 = arith.constant 0 : index
    %105 = vector.load %arg12[%c42_57, %c0_58] : memref<150x1619xf32, #tpu.memory_space<vmem>>, vector<6x1619xf32>
    tpu.vector_store %arg12[%c42_57, %c0_58], %104 {strides = array<i32>} : memref<150x1619xf32, #tpu.memory_space<vmem>>, vector<6x1619xf32>,
    %106 = vector.extract_strided_slice %89 {offsets = [0, 70], sizes = [6, 1619], strides = [1, 1]} : vector<6x1883xf32> to vector<6x1619xf32>
    %c48_59 = arith.constant 48 : index
    %c0_60 = arith.constant 0 : index
    %107 = vector.load %arg12[%c48_59, %c0_60] : memref<150x1619xf32, #tpu.memory_space<vmem>>, vector<6x1619xf32>
    tpu.vector_store %arg12[%c48_59, %c0_60], %106 {strides = array<i32>} : memref<150x1619xf32, #tpu.memory_space<vmem>>, vector<6x1619xf32>,
    %108 = vector.extract_strided_slice %89 {offsets = [0, 72], sizes = [6, 1619], strides = [1, 1]} : vector<6x1883xf32> to vector<6x1619xf32>
    %c54_61 = arith.constant 54 : index
    %c0_62 = arith.constant 0 : index
    %109 = vector.load %arg12[%c54_61, %c0_62] : memref<150x1619xf32, #tpu.memory_space<vmem>>, vector<6x1619xf32>
    tpu.vector_store %arg12[%c54_61, %c0_62], %108 {strides = array<i32>} : memref<150x1619xf32, #tpu.memory_space<vmem>>, vector<6x1619xf32>,
    %110 = vector.extract_strided_slice %89 {offsets = [0, 128], sizes = [6, 1619], strides = [1, 1]} : vector<6x1883xf32> to vector<6x1619xf32>
    %c60_63 = arith.constant 60 : index
    %c0_64 = arith.constant 0 : index
    %111 = vector.load %arg12[%c60_63, %c0_64] : memref<150x1619xf32, #tpu.memory_space<vmem>>, vector<6x1619xf32>
    tpu.vector_store %arg12[%c60_63, %c0_64], %110 {strides = array<i32>} : memref<150x1619xf32, #tpu.memory_space<vmem>>, vector<6x1619xf32>,
    %112 = vector.extract_strided_slice %89 {offsets = [0, 130], sizes = [6, 1619], strides = [1, 1]} : vector<6x1883xf32> to vector<6x1619xf32>
    %c66_65 = arith.constant 66 : index
    %c0_66 = arith.constant 0 : index
    %113 = vector.load %arg12[%c66_65, %c0_66] : memref<150x1619xf32, #tpu.memory_space<vmem>>, vector<6x1619xf32>
    tpu.vector_store %arg12[%c66_65, %c0_66], %112 {strides = array<i32>} : memref<150x1619xf32, #tpu.memory_space<vmem>>, vector<6x1619xf32>,
    %114 = vector.extract_strided_slice %89 {offsets = [0, 132], sizes = [6, 1619], strides = [1, 1]} : vector<6x1883xf32> to vector<6x1619xf32>
    %c72_67 = arith.constant 72 : index
    %c0_68 = arith.constant 0 : index
    %115 = vector.load %arg12[%c72_67, %c0_68] : memref<150x1619xf32, #tpu.memory_space<vmem>>, vector<6x1619xf32>
    tpu.vector_store %arg12[%c72_67, %c0_68], %114 {strides = array<i32>} : memref<150x1619xf32, #tpu.memory_space<vmem>>, vector<6x1619xf32>,
    %116 = vector.extract_strided_slice %89 {offsets = [0, 134], sizes = [6, 1619], strides = [1, 1]} : vector<6x1883xf32> to vector<6x1619xf32>
    %c78 = arith.constant 78 : index
    %c0_69 = arith.constant 0 : index
    %117 = vector.load %arg12[%c78, %c0_69] : memref<150x1619xf32, #tpu.memory_space<vmem>>, vector<6x1619xf32>
    tpu.vector_store %arg12[%c78, %c0_69], %116 {strides = array<i32>} : memref<150x1619xf32, #tpu.memory_space<vmem>>, vector<6x1619xf32>,
    %118 = vector.extract_strided_slice %89 {offsets = [0, 136], sizes = [6, 1619], strides = [1, 1]} : vector<6x1883xf32> to vector<6x1619xf32>
    %c84 = arith.constant 84 : index
    %c0_70 = arith.constant 0 : index
    %119 = vector.load %arg12[%c84, %c0_70] : memref<150x1619xf32, #tpu.memory_space<vmem>>, vector<6x1619xf32>
    tpu.vector_store %arg12[%c84, %c0_70], %118 {strides = array<i32>} : memref<150x1619xf32, #tpu.memory_space<vmem>>, vector<6x1619xf32>,
    %120 = vector.extract_strided_slice %89 {offsets = [0, 192], sizes = [6, 1619], strides = [1, 1]} : vector<6x1883xf32> to vector<6x1619xf32>
    %c90 = arith.constant 90 : index
    %c0_71 = arith.constant 0 : index
    %121 = vector.load %arg12[%c90, %c0_71] : memref<150x1619xf32, #tpu.memory_space<vmem>>, vector<6x1619xf32>
    tpu.vector_store %arg12[%c90, %c0_71], %120 {strides = array<i32>} : memref<150x1619xf32, #tpu.memory_space<vmem>>, vector<6x1619xf32>,
    %122 = vector.extract_strided_slice %89 {offsets = [0, 194], sizes = [6, 1619], strides = [1, 1]} : vector<6x1883xf32> to vector<6x1619xf32>
    %c96 = arith.constant 96 : index
    %c0_72 = arith.constant 0 : index
    %123 = vector.load %arg12[%c96, %c0_72] : memref<150x1619xf32, #tpu.memory_space<vmem>>, vector<6x1619xf32>
    tpu.vector_store %arg12[%c96, %c0_72], %122 {strides = array<i32>} : memref<150x1619xf32, #tpu.memory_space<vmem>>, vector<6x1619xf32>,
    %124 = vector.extract_strided_slice %89 {offsets = [0, 196], sizes = [6, 1619], strides = [1, 1]} : vector<6x1883xf32> to vector<6x1619xf32>
    %c102 = arith.constant 102 : index
    %c0_73 = arith.constant 0 : index
    %125 = vector.load %arg12[%c102, %c0_73] : memref<150x1619xf32, #tpu.memory_space<vmem>>, vector<6x1619xf32>
    tpu.vector_store %arg12[%c102, %c0_73], %124 {strides = array<i32>} : memref<150x1619xf32, #tpu.memory_space<vmem>>, vector<6x1619xf32>,
    %126 = vector.extract_strided_slice %89 {offsets = [0, 198], sizes = [6, 1619], strides = [1, 1]} : vector<6x1883xf32> to vector<6x1619xf32>
    %c108 = arith.constant 108 : index
    %c0_74 = arith.constant 0 : index
    %127 = vector.load %arg12[%c108, %c0_74] : memref<150x1619xf32, #tpu.memory_space<vmem>>, vector<6x1619xf32>
    tpu.vector_store %arg12[%c108, %c0_74], %126 {strides = array<i32>} : memref<150x1619xf32, #tpu.memory_space<vmem>>, vector<6x1619xf32>,
    %128 = vector.extract_strided_slice %89 {offsets = [0, 200], sizes = [6, 1619], strides = [1, 1]} : vector<6x1883xf32> to vector<6x1619xf32>
    %c114 = arith.constant 114 : index
    %c0_75 = arith.constant 0 : index
    %129 = vector.load %arg12[%c114, %c0_75] : memref<150x1619xf32, #tpu.memory_space<vmem>>, vector<6x1619xf32>
    tpu.vector_store %arg12[%c114, %c0_75], %128 {strides = array<i32>} : memref<150x1619xf32, #tpu.memory_space<vmem>>, vector<6x1619xf32>,
    %130 = vector.extract_strided_slice %89 {offsets = [0, 256], sizes = [6, 1619], strides = [1, 1]} : vector<6x1883xf32> to vector<6x1619xf32>
    %c120 = arith.constant 120 : index
    %c0_76 = arith.constant 0 : index
    %131 = vector.load %arg12[%c120, %c0_76] : memref<150x1619xf32, #tpu.memory_space<vmem>>, vector<6x1619xf32>
    tpu.vector_store %arg12[%c120, %c0_76], %130 {strides = array<i32>} : memref<150x1619xf32, #tpu.memory_space<vmem>>, vector<6x1619xf32>,
    %132 = vector.extract_strided_slice %89 {offsets = [0, 258], sizes = [6, 1619], strides = [1, 1]} : vector<6x1883xf32> to vector<6x1619xf32>
    %c126 = arith.constant 126 : index
    %c0_77 = arith.constant 0 : index
    %133 = vector.load %arg12[%c126, %c0_77] : memref<150x1619xf32, #tpu.memory_space<vmem>>, vector<6x1619xf32>
    tpu.vector_store %arg12[%c126, %c0_77], %132 {strides = array<i32>} : memref<150x1619xf32, #tpu.memory_space<vmem>>, vector<6x1619xf32>,
    %134 = vector.extract_strided_slice %89 {offsets = [0, 260], sizes = [6, 1619], strides = [1, 1]} : vector<6x1883xf32> to vector<6x1619xf32>
    %c132 = arith.constant 132 : index
    %c0_78 = arith.constant 0 : index
    %135 = vector.load %arg12[%c132, %c0_78] : memref<150x1619xf32, #tpu.memory_space<vmem>>, vector<6x1619xf32>
    tpu.vector_store %arg12[%c132, %c0_78], %134 {strides = array<i32>} : memref<150x1619xf32, #tpu.memory_space<vmem>>, vector<6x1619xf32>,
    %136 = vector.extract_strided_slice %89 {offsets = [0, 262], sizes = [6, 1619], strides = [1, 1]} : vector<6x1883xf32> to vector<6x1619xf32>
    %c138 = arith.constant 138 : index
    %c0_79 = arith.constant 0 : index
    %137 = vector.load %arg12[%c138, %c0_79] : memref<150x1619xf32, #tpu.memory_space<vmem>>, vector<6x1619xf32>
    tpu.vector_store %arg12[%c138, %c0_79], %136 {strides = array<i32>} : memref<150x1619xf32, #tpu.memory_space<vmem>>, vector<6x1619xf32>,
    %138 = vector.extract_strided_slice %89 {offsets = [0, 264], sizes = [6, 1619], strides = [1, 1]} : vector<6x1883xf32> to vector<6x1619xf32>
    %c144 = arith.constant 144 : index
    %c0_80 = arith.constant 0 : index
    %139 = vector.load %arg12[%c144, %c0_80] : memref<150x1619xf32, #tpu.memory_space<vmem>>, vector<6x1619xf32>
    tpu.vector_store %arg12[%c144, %c0_80], %138 {strides = array<i32>} : memref<150x1619xf32, #tpu.memory_space<vmem>>, vector<6x1619xf32>,
    %c0_81 = arith.constant 0 : index
    %c0_82 = arith.constant 0 : index
    %140 = vector.load %arg5[%c0_81, %c0_82] : memref<16x150xf32, #tpu.memory_space<vmem>>, vector<16x150xf32>
    %c0_83 = arith.constant 0 : index
    %c0_84 = arith.constant 0 : index
    %141 = vector.load %arg12[%c0_83, %c0_84] : memref<150x1619xf32, #tpu.memory_space<vmem>>, vector<150x1619xf32>
    %cst_85 = arith.constant dense<0.000000e+00> : vector<16x1619xf32>
    %142 = tpu.matmul %140, %141, %cst_85 {dimension_numbers = #tpu.dot_dimension_numbers<[1], [0], [0], [1], [0, 0, 1, 1], [], []>} : vector<16x150xf32>, vector<150x1619xf32>, vector<16x1619xf32> -> vector<16x1619xf32>
    %c0_86 = arith.constant 0 : index
    %c0_87 = arith.constant 0 : index
    %143 = vector.load %arg6[%c0_86, %c0_87] : memref<16x1xf32, #tpu.memory_space<vmem>>, vector<16x1xf32>
    %144 = vector.broadcast %143 : vector<16x1xf32> to vector<16x1619xf32>
    %145 = arith.addf %142, %144 : vector<16x1619xf32>
    %146 = vector.extract_strided_slice %145 {offsets = [0, 0], sizes = [16, 1553], strides = [1, 1]} : vector<16x1619xf32> to vector<16x1553xf32>
    %147 = vector.extract_strided_slice %145 {offsets = [0, 2], sizes = [16, 1553], strides = [1, 1]} : vector<16x1619xf32> to vector<16x1553xf32>
    %148 = arith.maximumf %146, %147 : vector<16x1553xf32>
    %149 = vector.extract_strided_slice %145 {offsets = [0, 64], sizes = [16, 1553], strides = [1, 1]} : vector<16x1619xf32> to vector<16x1553xf32>
    %150 = vector.extract_strided_slice %145 {offsets = [0, 66], sizes = [16, 1553], strides = [1, 1]} : vector<16x1619xf32> to vector<16x1553xf32>
    %151 = arith.maximumf %149, %150 : vector<16x1553xf32>
    %152 = arith.maximumf %148, %151 : vector<16x1553xf32>
    %c0_88 = arith.constant 0 : index
    %c0_89 = arith.constant 0 : index
    %153 = vector.load %arg14[%c0_88, %c0_89] : memref<16x1553xf32, #tpu.memory_space<vmem>>, vector<16x1553xf32>
    tpu.vector_store %arg14[%c0_88, %c0_89], %152 {strides = array<i32>} : memref<16x1553xf32, #tpu.memory_space<vmem>>, vector<16x1553xf32>,
    %c0_90 = arith.constant 0 : index
    %c0_91 = arith.constant 0 : index
    %154 = vector.load %arg14[%c0_90, %c0_91] : memref<16x1553xf32, #tpu.memory_space<vmem>>, vector<16x1025xf32>
    %c0_92 = arith.constant 0 : index
    %c0_93 = arith.constant 0 : index
    %155 = vector.load %arg13[%c0_92, %c0_93] : memref<400x1025xf32, #tpu.memory_space<vmem>>, vector<16x1025xf32>
    tpu.vector_store %arg13[%c0_92, %c0_93], %154 {strides = array<i32>} : memref<400x1025xf32, #tpu.memory_space<vmem>>, vector<16x1025xf32>,
    %c0_94 = arith.constant 0 : index
    %c4 = arith.constant 4 : index
    %156 = vector.load %arg14[%c0_94, %c4] : memref<16x1553xf32, #tpu.memory_space<vmem>>, vector<16x1025xf32>
    %c16 = arith.constant 16 : index
    %c0_95 = arith.constant 0 : index
    %157 = vector.load %arg13[%c16, %c0_95] : memref<400x1025xf32, #tpu.memory_space<vmem>>, vector<16x1025xf32>
    tpu.vector_store %arg13[%c16, %c0_95], %156 {strides = array<i32>} : memref<400x1025xf32, #tpu.memory_space<vmem>>, vector<16x1025xf32>,
    %c0_96 = arith.constant 0 : index
    %c8 = arith.constant 8 : index
    %158 = vector.load %arg14[%c0_96, %c8] : memref<16x1553xf32, #tpu.memory_space<vmem>>, vector<16x1025xf32>
    %c32 = arith.constant 32 : index
    %c0_97 = arith.constant 0 : index
    %159 = vector.load %arg13[%c32, %c0_97] : memref<400x1025xf32, #tpu.memory_space<vmem>>, vector<16x1025xf32>
    tpu.vector_store %arg13[%c32, %c0_97], %158 {strides = array<i32>} : memref<400x1025xf32, #tpu.memory_space<vmem>>, vector<16x1025xf32>,
    %c0_98 = arith.constant 0 : index
    %c12_99 = arith.constant 12 : index
    %160 = vector.load %arg14[%c0_98, %c12_99] : memref<16x1553xf32, #tpu.memory_space<vmem>>, vector<16x1025xf32>
    %c48_100 = arith.constant 48 : index
    %c0_101 = arith.constant 0 : index
    %161 = vector.load %arg13[%c48_100, %c0_101] : memref<400x1025xf32, #tpu.memory_space<vmem>>, vector<16x1025xf32>
    tpu.vector_store %arg13[%c48_100, %c0_101], %160 {strides = array<i32>} : memref<400x1025xf32, #tpu.memory_space<vmem>>, vector<16x1025xf32>,
    %c0_102 = arith.constant 0 : index
    %c16_103 = arith.constant 16 : index
    %162 = vector.load %arg14[%c0_102, %c16_103] : memref<16x1553xf32, #tpu.memory_space<vmem>>, vector<16x1025xf32>
    %c64 = arith.constant 64 : index
    %c0_104 = arith.constant 0 : index
    %163 = vector.load %arg13[%c64, %c0_104] : memref<400x1025xf32, #tpu.memory_space<vmem>>, vector<16x1025xf32>
    tpu.vector_store %arg13[%c64, %c0_104], %162 {strides = array<i32>} : memref<400x1025xf32, #tpu.memory_space<vmem>>, vector<16x1025xf32>,
    %c0_105 = arith.constant 0 : index
    %c128 = arith.constant 128 : index
    %164 = vector.load %arg14[%c0_105, %c128] : memref<16x1553xf32, #tpu.memory_space<vmem>>, vector<16x1025xf32>
    %c80 = arith.constant 80 : index
    %c0_106 = arith.constant 0 : index
    %165 = vector.load %arg13[%c80, %c0_106] : memref<400x1025xf32, #tpu.memory_space<vmem>>, vector<16x1025xf32>
    tpu.vector_store %arg13[%c80, %c0_106], %164 {strides = array<i32>} : memref<400x1025xf32, #tpu.memory_space<vmem>>, vector<16x1025xf32>,
    %c0_107 = arith.constant 0 : index
    %c132_108 = arith.constant 132 : index
    %166 = vector.load %arg14[%c0_107, %c132_108] : memref<16x1553xf32, #tpu.memory_space<vmem>>, vector<16x1025xf32>
    %c96_109 = arith.constant 96 : index
    %c0_110 = arith.constant 0 : index
    %167 = vector.load %arg13[%c96_109, %c0_110] : memref<400x1025xf32, #tpu.memory_space<vmem>>, vector<16x1025xf32>
    tpu.vector_store %arg13[%c96_109, %c0_110], %166 {strides = array<i32>} : memref<400x1025xf32, #tpu.memory_space<vmem>>, vector<16x1025xf32>,
    %c0_111 = arith.constant 0 : index
    %c136 = arith.constant 136 : index
    %168 = vector.load %arg14[%c0_111, %c136] : memref<16x1553xf32, #tpu.memory_space<vmem>>, vector<16x1025xf32>
    %c112 = arith.constant 112 : index
    %c0_112 = arith.constant 0 : index
    %169 = vector.load %arg13[%c112, %c0_112] : memref<400x1025xf32, #tpu.memory_space<vmem>>, vector<16x1025xf32>
    tpu.vector_store %arg13[%c112, %c0_112], %168 {strides = array<i32>} : memref<400x1025xf32, #tpu.memory_space<vmem>>, vector<16x1025xf32>,
    %c0_113 = arith.constant 0 : index
    %c140 = arith.constant 140 : index
    %170 = vector.load %arg14[%c0_113, %c140] : memref<16x1553xf32, #tpu.memory_space<vmem>>, vector<16x1025xf32>
    %c128_114 = arith.constant 128 : index
    %c0_115 = arith.constant 0 : index
    %171 = vector.load %arg13[%c128_114, %c0_115] : memref<400x1025xf32, #tpu.memory_space<vmem>>, vector<16x1025xf32>
    tpu.vector_store %arg13[%c128_114, %c0_115], %170 {strides = array<i32>} : memref<400x1025xf32, #tpu.memory_space<vmem>>, vector<16x1025xf32>,
    %c0_116 = arith.constant 0 : index
    %c144_117 = arith.constant 144 : index
    %172 = vector.load %arg14[%c0_116, %c144_117] : memref<16x1553xf32, #tpu.memory_space<vmem>>, vector<16x1025xf32>
    %c144_118 = arith.constant 144 : index
    %c0_119 = arith.constant 0 : index
    %173 = vector.load %arg13[%c144_118, %c0_119] : memref<400x1025xf32, #tpu.memory_space<vmem>>, vector<16x1025xf32>
    tpu.vector_store %arg13[%c144_118, %c0_119], %172 {strides = array<i32>} : memref<400x1025xf32, #tpu.memory_space<vmem>>, vector<16x1025xf32>,
    %c0_120 = arith.constant 0 : index
    %c256 = arith.constant 256 : index
    %174 = vector.load %arg14[%c0_120, %c256] : memref<16x1553xf32, #tpu.memory_space<vmem>>, vector<16x1025xf32>
    %c160 = arith.constant 160 : index
    %c0_121 = arith.constant 0 : index
    %175 = vector.load %arg13[%c160, %c0_121] : memref<400x1025xf32, #tpu.memory_space<vmem>>, vector<16x1025xf32>
    tpu.vector_store %arg13[%c160, %c0_121], %174 {strides = array<i32>} : memref<400x1025xf32, #tpu.memory_space<vmem>>, vector<16x1025xf32>,
    %c0_122 = arith.constant 0 : index
    %c260 = arith.constant 260 : index
    %176 = vector.load %arg14[%c0_122, %c260] : memref<16x1553xf32, #tpu.memory_space<vmem>>, vector<16x1025xf32>
    %c176 = arith.constant 176 : index
    %c0_123 = arith.constant 0 : index
    %177 = vector.load %arg13[%c176, %c0_123] : memref<400x1025xf32, #tpu.memory_space<vmem>>, vector<16x1025xf32>
    tpu.vector_store %arg13[%c176, %c0_123], %176 {strides = array<i32>} : memref<400x1025xf32, #tpu.memory_space<vmem>>, vector<16x1025xf32>,
    %c0_124 = arith.constant 0 : index
    %c264 = arith.constant 264 : index
    %178 = vector.load %arg14[%c0_124, %c264] : memref<16x1553xf32, #tpu.memory_space<vmem>>, vector<16x1025xf32>
    %c192 = arith.constant 192 : index
    %c0_125 = arith.constant 0 : index
    %179 = vector.load %arg13[%c192, %c0_125] : memref<400x1025xf32, #tpu.memory_space<vmem>>, vector<16x1025xf32>
    tpu.vector_store %arg13[%c192, %c0_125], %178 {strides = array<i32>} : memref<400x1025xf32, #tpu.memory_space<vmem>>, vector<16x1025xf32>,
    %c0_126 = arith.constant 0 : index
    %c268 = arith.constant 268 : index
    %180 = vector.load %arg14[%c0_126, %c268] : memref<16x1553xf32, #tpu.memory_space<vmem>>, vector<16x1025xf32>
    %c208 = arith.constant 208 : index
    %c0_127 = arith.constant 0 : index
    %181 = vector.load %arg13[%c208, %c0_127] : memref<400x1025xf32, #tpu.memory_space<vmem>>, vector<16x1025xf32>
    tpu.vector_store %arg13[%c208, %c0_127], %180 {strides = array<i32>} : memref<400x1025xf32, #tpu.memory_space<vmem>>, vector<16x1025xf32>,
    %c0_128 = arith.constant 0 : index
    %c272 = arith.constant 272 : index
    %182 = vector.load %arg14[%c0_128, %c272] : memref<16x1553xf32, #tpu.memory_space<vmem>>, vector<16x1025xf32>
    %c224 = arith.constant 224 : index
    %c0_129 = arith.constant 0 : index
    %183 = vector.load %arg13[%c224, %c0_129] : memref<400x1025xf32, #tpu.memory_space<vmem>>, vector<16x1025xf32>
    tpu.vector_store %arg13[%c224, %c0_129], %182 {strides = array<i32>} : memref<400x1025xf32, #tpu.memory_space<vmem>>, vector<16x1025xf32>,
    %c0_130 = arith.constant 0 : index
    %c384 = arith.constant 384 : index
    %184 = vector.load %arg14[%c0_130, %c384] : memref<16x1553xf32, #tpu.memory_space<vmem>>, vector<16x1025xf32>
    %c240 = arith.constant 240 : index
    %c0_131 = arith.constant 0 : index
    %185 = vector.load %arg13[%c240, %c0_131] : memref<400x1025xf32, #tpu.memory_space<vmem>>, vector<16x1025xf32>
    tpu.vector_store %arg13[%c240, %c0_131], %184 {strides = array<i32>} : memref<400x1025xf32, #tpu.memory_space<vmem>>, vector<16x1025xf32>,
    %c0_132 = arith.constant 0 : index
    %c388 = arith.constant 388 : index
    %186 = vector.load %arg14[%c0_132, %c388] : memref<16x1553xf32, #tpu.memory_space<vmem>>, vector<16x1025xf32>
    %c256_133 = arith.constant 256 : index
    %c0_134 = arith.constant 0 : index
    %187 = vector.load %arg13[%c256_133, %c0_134] : memref<400x1025xf32, #tpu.memory_space<vmem>>, vector<16x1025xf32>
    tpu.vector_store %arg13[%c256_133, %c0_134], %186 {strides = array<i32>} : memref<400x1025xf32, #tpu.memory_space<vmem>>, vector<16x1025xf32>,
    %c0_135 = arith.constant 0 : index
    %c392 = arith.constant 392 : index
    %188 = vector.load %arg14[%c0_135, %c392] : memref<16x1553xf32, #tpu.memory_space<vmem>>, vector<16x1025xf32>
    %c272_136 = arith.constant 272 : index
    %c0_137 = arith.constant 0 : index
    %189 = vector.load %arg13[%c272_136, %c0_137] : memref<400x1025xf32, #tpu.memory_space<vmem>>, vector<16x1025xf32>
    tpu.vector_store %arg13[%c272_136, %c0_137], %188 {strides = array<i32>} : memref<400x1025xf32, #tpu.memory_space<vmem>>, vector<16x1025xf32>,
    %c0_138 = arith.constant 0 : index
    %c396 = arith.constant 396 : index
    %190 = vector.load %arg14[%c0_138, %c396] : memref<16x1553xf32, #tpu.memory_space<vmem>>, vector<16x1025xf32>
    %c288 = arith.constant 288 : index
    %c0_139 = arith.constant 0 : index
    %191 = vector.load %arg13[%c288, %c0_139] : memref<400x1025xf32, #tpu.memory_space<vmem>>, vector<16x1025xf32>
    tpu.vector_store %arg13[%c288, %c0_139], %190 {strides = array<i32>} : memref<400x1025xf32, #tpu.memory_space<vmem>>, vector<16x1025xf32>,
    %c0_140 = arith.constant 0 : index
    %c400 = arith.constant 400 : index
    %192 = vector.load %arg14[%c0_140, %c400] : memref<16x1553xf32, #tpu.memory_space<vmem>>, vector<16x1025xf32>
    %c304 = arith.constant 304 : index
    %c0_141 = arith.constant 0 : index
    %193 = vector.load %arg13[%c304, %c0_141] : memref<400x1025xf32, #tpu.memory_space<vmem>>, vector<16x1025xf32>
    tpu.vector_store %arg13[%c304, %c0_141], %192 {strides = array<i32>} : memref<400x1025xf32, #tpu.memory_space<vmem>>, vector<16x1025xf32>,
    %c0_142 = arith.constant 0 : index
    %c512 = arith.constant 512 : index
    %194 = vector.load %arg14[%c0_142, %c512] : memref<16x1553xf32, #tpu.memory_space<vmem>>, vector<16x1025xf32>
    %c320 = arith.constant 320 : index
    %c0_143 = arith.constant 0 : index
    %195 = vector.load %arg13[%c320, %c0_143] : memref<400x1025xf32, #tpu.memory_space<vmem>>, vector<16x1025xf32>
    tpu.vector_store %arg13[%c320, %c0_143], %194 {strides = array<i32>} : memref<400x1025xf32, #tpu.memory_space<vmem>>, vector<16x1025xf32>,
    %c0_144 = arith.constant 0 : index
    %c516 = arith.constant 516 : index
    %196 = vector.load %arg14[%c0_144, %c516] : memref<16x1553xf32, #tpu.memory_space<vmem>>, vector<16x1025xf32>
    %c336 = arith.constant 336 : index
    %c0_145 = arith.constant 0 : index
    %197 = vector.load %arg13[%c336, %c0_145] : memref<400x1025xf32, #tpu.memory_space<vmem>>, vector<16x1025xf32>
    tpu.vector_store %arg13[%c336, %c0_145], %196 {strides = array<i32>} : memref<400x1025xf32, #tpu.memory_space<vmem>>, vector<16x1025xf32>,
    %c0_146 = arith.constant 0 : index
    %c520 = arith.constant 520 : index
    %198 = vector.load %arg14[%c0_146, %c520] : memref<16x1553xf32, #tpu.memory_space<vmem>>, vector<16x1025xf32>
    %c352 = arith.constant 352 : index
    %c0_147 = arith.constant 0 : index
    %199 = vector.load %arg13[%c352, %c0_147] : memref<400x1025xf32, #tpu.memory_space<vmem>>, vector<16x1025xf32>
    tpu.vector_store %arg13[%c352, %c0_147], %198 {strides = array<i32>} : memref<400x1025xf32, #tpu.memory_space<vmem>>, vector<16x1025xf32>,
    %c0_148 = arith.constant 0 : index
    %c524 = arith.constant 524 : index
    %200 = vector.load %arg14[%c0_148, %c524] : memref<16x1553xf32, #tpu.memory_space<vmem>>, vector<16x1025xf32>
    %c368 = arith.constant 368 : index
    %c0_149 = arith.constant 0 : index
    %201 = vector.load %arg13[%c368, %c0_149] : memref<400x1025xf32, #tpu.memory_space<vmem>>, vector<16x1025xf32>
    tpu.vector_store %arg13[%c368, %c0_149], %200 {strides = array<i32>} : memref<400x1025xf32, #tpu.memory_space<vmem>>, vector<16x1025xf32>,
    %c0_150 = arith.constant 0 : index
    %c528 = arith.constant 528 : index
    %202 = vector.load %arg14[%c0_150, %c528] : memref<16x1553xf32, #tpu.memory_space<vmem>>, vector<16x1025xf32>
    %c384_151 = arith.constant 384 : index
    %c0_152 = arith.constant 0 : index
    %203 = vector.load %arg13[%c384_151, %c0_152] : memref<400x1025xf32, #tpu.memory_space<vmem>>, vector<16x1025xf32>
    tpu.vector_store %arg13[%c384_151, %c0_152], %202 {strides = array<i32>} : memref<400x1025xf32, #tpu.memory_space<vmem>>, vector<16x1025xf32>,
    %c0_153 = arith.constant 0 : index
    %c0_154 = arith.constant 0 : index
    %204 = vector.load %arg7[%c0_153, %c0_154] : memref<10x400xf32, #tpu.memory_space<vmem>>, vector<10x400xf32>
    %c0_155 = arith.constant 0 : index
    %c0_156 = arith.constant 0 : index
    %205 = vector.load %arg13[%c0_155, %c0_156] : memref<400x1025xf32, #tpu.memory_space<vmem>>, vector<400x1025xf32>
    %cst_157 = arith.constant dense<0.000000e+00> : vector<10x1025xf32>
    %206 = tpu.matmul %204, %205, %cst_157 {dimension_numbers = #tpu.dot_dimension_numbers<[1], [0], [0], [1], [0, 0, 1, 1], [], []>} : vector<10x400xf32>, vector<400x1025xf32>, vector<10x1025xf32> -> vector<10x1025xf32>
    %c0_158 = arith.constant 0 : index
    %c0_159 = arith.constant 0 : index
    %207 = vector.load %arg8[%c0_158, %c0_159] : memref<10x1xf32, #tpu.memory_space<vmem>>, vector<10x1xf32>
    %208 = vector.broadcast %207 : vector<10x1xf32> to vector<10x1025xf32>
    %209 = arith.addf %206, %208 : vector<10x1025xf32>
    %c0_160 = arith.constant 0 : index
    %c0_161 = arith.constant 0 : index
    %210 = vector.load %arg10[%c0_160, %c0_161] : memref<10x1025xf32, #tpu.memory_space<vmem>>, vector<10x1025xf32>
    tpu.vector_store %arg10[%c0_160, %c0_161], %209 {strides = array<i32>} : memref<10x1025xf32, #tpu.memory_space<vmem>>, vector<10x1025xf32>,
    return
  }
  func.func @transform_0(%arg0: i32) -> (i32, i32) {
    %c0_i32 = arith.constant 0 : i32
    %c0_i32_0 = arith.constant 0 : i32
    %c0_i32_1 = arith.constant 0 : i32
    return %c0_i32, %c0_i32_0 : i32, i32
  }
  func.func @transform_1(%arg0: i32) -> (i32, i32) {
    %c0_i32 = arith.constant 0 : i32
    %c0_i32_0 = arith.constant 0 : i32
    %c0_i32_1 = arith.constant 0 : i32
    return %c0_i32, %c0_i32_0 : i32, i32
  }
  func.func @transform_2(%arg0: i32) -> (i32, i32) {
    %c0_i32 = arith.constant 0 : i32
    %c0_i32_0 = arith.constant 0 : i32
    %c0_i32_1 = arith.constant 0 : i32
    return %c0_i32, %c0_i32_0 : i32, i32
  }
  func.func @transform_3(%arg0: i32) -> (i32, i32) {
    %c0_i32 = arith.constant 0 : i32
    %c0_i32_0 = arith.constant 0 : i32
    %c0_i32_1 = arith.constant 0 : i32
    return %c0_i32, %c0_i32_0 : i32, i32
  }
  func.func @transform_4(%arg0: i32) -> (i32, i32) {
    %c0_i32 = arith.constant 0 : i32
    %c0_i32_0 = arith.constant 0 : i32
    %c0_i32_1 = arith.constant 0 : i32
    return %c0_i32, %c0_i32_0 : i32, i32
  }
  func.func @transform_5(%arg0: i32) -> (i32, i32) {
    %c0_i32 = arith.constant 0 : i32
    %c0_i32_0 = arith.constant 0 : i32
    %c0_i32_1 = arith.constant 0 : i32
    return %c0_i32, %c0_i32_0 : i32, i32
  }
  func.func @transform_6(%arg0: i32) -> (i32, i32) {
    %c0_i32 = arith.constant 0 : i32
    %c0_i32_0 = arith.constant 0 : i32
    %c0_i32_1 = arith.constant 0 : i32
    return %c0_i32, %c0_i32_0 : i32, i32
  }
  func.func @transform_7(%arg0: i32) -> (i32, i32) {
    %c0_i32 = arith.constant 0 : i32
    %c0_i32_0 = arith.constant 0 : i32
    %c0_i32_1 = arith.constant 0 : i32
    return %c0_i32, %c0_i32_0 : i32, i32
  }
  func.func @transform_8(%arg0: i32) -> (i32, i32) {
    %c0_i32 = arith.constant 0 : i32
    %c0_i32_0 = arith.constant 0 : i32
    %c0_i32_1 = arith.constant 0 : i32
    return %c0_i32, %c0_i32_0 : i32, i32
  }
  func.func @transform_9(%arg0: i32) -> (i32, i32) {
    %c0_i32 = arith.constant 0 : i32
    %c0_i32_0 = arith.constant 0 : i32
    %c0_i32_1 = arith.constant 0 : i32
    return %c0_i32, %c0_i32_0 : i32, i32
  }
}

</mosaic_0001>

<llo_original>
// kernel: conv_net_forward.1
$region0: #{conv_net_forward.1}
  #allocation0 [shape = 'u32[]', space=smem, size = 0x4, offset = 0x4, fixed_abs, tag = 'smem constant byte address 0x4 - core index']
  #allocation1 [shape = 'u32[144,128]{1,0:T(1,128)}', space=vmem, size = 0x12000, scoped, tag = 'internal scratch']
  #allocation2 [shape = 'f32[75,1916]{1,0:T(8,128)}', space=vmem, size = 0x96000, scoped, tag = 'scratch operand']
  #allocation3 [shape = 'f32[150,1619]{1,0:T(8,128)}', space=vmem, size = 0xf7000, scoped, tag = 'scratch operand']
  #allocation4 [shape = 'f32[400,1025]{1,0:T(8,128)}', space=vmem, size = 0x1c2000, scoped, tag = 'scratch operand']
  #allocation5 [shape = 'f32[16,1553]{1,0:T(8,128)}', space=vmem, size = 0x1a000, scoped, tag = 'scratch operand']
  %s0 = inlined_call_operand.vmem [shape: f32[3,2048], index: 0, kind: input, shape index: {}]
  %s1 = inlined_call_operand.vmem [shape: f32[6,75], index: 1, kind: input, shape index: {}]
  %s2 = inlined_call_operand.vmem [shape: f32[6,1], index: 2, kind: input, shape index: {}]
  %s3 = inlined_call_operand.vmem [shape: f32[6,1], index: 3, kind: input, shape index: {}]
  %s4 = inlined_call_operand.vmem [shape: f32[16,150], index: 4, kind: input, shape index: {}]
  %s5 = inlined_call_operand.vmem [shape: f32[16,1], index: 5, kind: input, shape index: {}]
  %s6 = inlined_call_operand.vmem [shape: f32[10,400], index: 6, kind: input, shape index: {}]
  %s7 = inlined_call_operand.vmem [shape: f32[10,1], index: 7, kind: input, shape index: {}]
  %s8 = inlined_call_operand.vmem [shape: f32[1,1916], index: 8, kind: input, shape index: {}]
  %s9 = inlined_call_operand.vmem [shape: f32[10,1025], index: 9, kind: output, shape index: {}]
  %s10 = sld [smem:[#allocation0]]
  $region46: #{conv_net_forward.1} parent=0
    _
  %s12 = ssub.s32 1, %s10
  %s13 = scalar_select 0, %s12, %s10
  // Predicated region
  $region2: #{conv_net_forward.1} parent=0 // pred_check
    _
  $region3: #{conv_net_forward.1} parent=0 // pred_check_branch
    %15 = sbr.rel (0) target = $region5
  $region4: #{conv_net_forward.1} parent=0 // pred_region
    _
  $region5: #{conv_net_forward.1} parent=0 // pred_fallthru
    _
  // Predicated region
  $region6: #{conv_net_forward.1} parent=0 // pred_check
    _
  $region7: #{conv_net_forward.1} parent=0 // pred_check_branch
    %17 = sbr.rel (0) target = $region9
  $region8: #{conv_net_forward.1} parent=0 // pred_region
    _
  $region9: #{conv_net_forward.1} parent=0 // pred_fallthru
    _
  // Predicated region
  $region10: #{conv_net_forward.1} parent=0 // pred_check
    _
  $region11: #{conv_net_forward.1} parent=0 // pred_check_branch
    %19 = sbr.rel (0) target = $region13
  $region12: #{conv_net_forward.1} parent=0 // pred_region
    _
  $region13: #{conv_net_forward.1} parent=0 // pred_fallthru
    _
  // Predicated region
  $region14: #{conv_net_forward.1} parent=0 // pred_check
    _
  $region15: #{conv_net_forward.1} parent=0 // pred_check_branch
    %21 = sbr.rel (0) target = $region17
  $region16: #{conv_net_forward.1} parent=0 // pred_region
    _
  $region17: #{conv_net_forward.1} parent=0 // pred_fallthru
    _
  // Predicated region
  $region18: #{conv_net_forward.1} parent=0 // pred_check
    _
  $region19: #{conv_net_forward.1} parent=0 // pred_check_branch
    %23 = sbr.rel (0) target = $region21
  $region20: #{conv_net_forward.1} parent=0 // pred_region
    _
  $region21: #{conv_net_forward.1} parent=0 // pred_fallthru
    _
  // Predicated region
  $region22: #{conv_net_forward.1} parent=0 // pred_check
    _
  $region23: #{conv_net_forward.1} parent=0 // pred_check_branch
    %25 = sbr.rel (0) target = $region25
  $region24: #{conv_net_forward.1} parent=0 // pred_region
    _
  $region25: #{conv_net_forward.1} parent=0 // pred_fallthru
    _
  // Predicated region
  $region26: #{conv_net_forward.1} parent=0 // pred_check
    _
  $region27: #{conv_net_forward.1} parent=0 // pred_check_branch
    %27 = sbr.rel (0) target = $region29
  $region28: #{conv_net_forward.1} parent=0 // pred_region
    _
  $region29: #{conv_net_forward.1} parent=0 // pred_fallthru
    _
  // Predicated region
  $region30: #{conv_net_forward.1} parent=0 // pred_check
    _
  $region31: #{conv_net_forward.1} parent=0 // pred_check_branch
    %29 = sbr.rel (0) target = $region33
  $region32: #{conv_net_forward.1} parent=0 // pred_region
    _
  $region33: #{conv_net_forward.1} parent=0 // pred_fallthru
    _
  // Predicated region
  $region34: #{conv_net_forward.1} parent=0 // pred_check
    _
  $region35: #{conv_net_forward.1} parent=0 // pred_check_branch
    %31 = sbr.rel (0) target = $region37
  $region36: #{conv_net_forward.1} parent=0 // pred_region
    _
  $region37: #{conv_net_forward.1} parent=0 // pred_fallthru
    _
  %v32 = vld [vmem:[%s0] sm:$0x77]
  %v33 = vld [vmem:[%s0 + $0x8] sm:$0x77]
  %v34 = vld [vmem:[%s0 + $0x10] sm:$0x77]
  %v35 = vld [vmem:[%s0 + $0x18] sm:$0x77]
  %v36 = vld [vmem:[%s0 + $0x20] sm:$0x77]
  %v37 = vld [vmem:[%s0 + $0x28] sm:$0x77]
  %v38 = vld [vmem:[%s0 + $0x30] sm:$0x77]
  %v39 = vld [vmem:[%s0 + $0x38] sm:$0x77]
  %v48 = vcombine.high %v32, %v32
  %v49 = vcombine.high %v33, %v33
  %v50 = vcombine.high %v34, %v34
  %v51 = vcombine.high %v35, %v35
  %v52 = vcombine.high %v36, %v36
  %v53 = vcombine.high %v37, %v37
  %v54 = vcombine.high %v38, %v38
  %62 = vst [vmem:[#allocation2] sm:$0x7] %v32
  %63 = vst [vmem:[#allocation2 + $0x8] sm:$0x7] %v48
  %64 = vst [vmem:[#allocation2 + $0x10] sm:$0x7] %v33
  %65 = vst [vmem:[#allocation2 + $0x18] sm:$0x7] %v49
  %66 = vst [vmem:[#allocation2 + $0x20] sm:$0x7] %v34
  %67 = vst [vmem:[#allocation2 + $0x28] sm:$0x7] %v50
  %68 = vst [vmem:[#allocation2 + $0x30] sm:$0x7] %v35
  %69 = vst [vmem:[#allocation2 + $0x38] sm:$0x7] %v51
  %70 = vst [vmem:[#allocation2 + $0x40] sm:$0x7] %v36
  %71 = vst [vmem:[#allocation2 + $0x48] sm:$0x7] %v52
  %72 = vst [vmem:[#allocation2 + $0x50] sm:$0x7] %v37
  %73 = vst [vmem:[#allocation2 + $0x58] sm:$0x7] %v53
  %74 = vst [vmem:[#allocation2 + $0x60] sm:$0x7] %v38
  %75 = vst [vmem:[#allocation2 + $0x68] sm:$0x7] %v54
  %vm76 = vcmask 1009664
  %77 = vst.msk [vmem:[#allocation2 + $0x70] sm:$0x7] %vm76, %v39
  %v78 = vrot.slane %v32, 5
  %v79 = vrot.slane %v48, 5
  %v80 = vrot.slane %v33, 5
  %v81 = vrot.slane %v49, 5
  %v82 = vrot.slane %v34, 5
  %v83 = vrot.slane %v50, 5
  %v84 = vrot.slane %v35, 5
  %v85 = vrot.slane %v51, 5
  %v86 = vrot.slane %v36, 5
  %v87 = vrot.slane %v52, 5
  %v88 = vrot.slane %v37, 5
  %v89 = vrot.slane %v53, 5
  %v90 = vrot.slane %v38, 5
  %v91 = vrot.slane %v54, 5
  %v92 = vrot.slane %v39, 5
  %93 = vrot.lane.b32.xlu0 %v78, 127
  %v94 = vpop.permute.xlu0 %93
  %95 = vrot.lane.b32.xlu0 %v79, 127
  %v96 = vpop.permute.xlu0 %95
  %97 = vrot.lane.b32.xlu0 %v80, 127
  %v98 = vpop.permute.xlu0 %97
  %99 = vrot.lane.b32.xlu0 %v81, 127
  %v100 = vpop.permute.xlu0 %99
  %101 = vrot.lane.b32.xlu0 %v82, 127
  %v102 = vpop.permute.xlu0 %101
  %103 = vrot.lane.b32.xlu0 %v83, 127
  %v104 = vpop.permute.xlu0 %103
  %105 = vrot.lane.b32.xlu0 %v84, 127
  %v106 = vpop.permute.xlu0 %105
  %107 = vrot.lane.b32.xlu0 %v85, 127
  %v108 = vpop.permute.xlu0 %107
  %109 = vrot.lane.b32.xlu0 %v86, 127
  %v110 = vpop.permute.xlu0 %109
  %111 = vrot.lane.b32.xlu0 %v87, 127
  %v112 = vpop.permute.xlu0 %111
  %113 = vrot.lane.b32.xlu0 %v88, 127
  %v114 = vpop.permute.xlu0 %113
  %115 = vrot.lane.b32.xlu0 %v89, 127
  %v116 = vpop.permute.xlu0 %115
  %117 = vrot.lane.b32.xlu0 %v90, 127
  %v118 = vpop.permute.xlu0 %117
  %119 = vrot.lane.b32.xlu0 %v91, 127
  %v120 = vpop.permute.xlu0 %119
  %121 = vrot.lane.b32.xlu0 %v92, 127
  %v122 = vpop.permute.xlu0 %121
  %vm123 = vcmask 1039360
  %v124 = vsel %vm123, %v94, %v96
  %v125 = vsel %vm123, %v96, %v98
  %v126 = vsel %vm123, %v98, %v100
  %v127 = vsel %vm123, %v100, %v102
  %v128 = vsel %vm123, %v102, %v104
  %v129 = vsel %vm123, %v104, %v106
  %v130 = vsel %vm123, %v106, %v108
  %v131 = vsel %vm123, %v108, %v110
  %v132 = vsel %vm123, %v110, %v112
  %v133 = vsel %vm123, %v112, %v114
  %v134 = vsel %vm123, %v114, %v116
  %v135 = vsel %vm123, %v116, %v118
  %v136 = vsel %vm123, %v118, %v120
  %v137 = vsel %vm123, %v120, %v122
  %153 = vst [vmem:[#allocation2] sm:$0x38] %v124
  %154 = vst [vmem:[#allocation2 + $0x8] sm:$0x38] %v125
  %155 = vst [vmem:[#allocation2 + $0x10] sm:$0x38] %v126
  %156 = vst [vmem:[#allocation2 + $0x18] sm:$0x38] %v127
  %157 = vst [vmem:[#allocation2 + $0x20] sm:$0x38] %v128
  %158 = vst [vmem:[#allocation2 + $0x28] sm:$0x38] %v129
  %159 = vst [vmem:[#allocation2 + $0x30] sm:$0x38] %v130
  %160 = vst [vmem:[#allocation2 + $0x38] sm:$0x38] %v131
  %161 = vst [vmem:[#allocation2 + $0x40] sm:$0x38] %v132
  %162 = vst [vmem:[#allocation2 + $0x48] sm:$0x38] %v133
  %163 = vst [vmem:[#allocation2 + $0x50] sm:$0x38] %v134
  %164 = vst [vmem:[#allocation2 + $0x58] sm:$0x38] %v135
  %165 = vst [vmem:[#allocation2 + $0x60] sm:$0x38] %v136
  %166 = vst [vmem:[#allocation2 + $0x68] sm:$0x38] %v137
  %vm167 = vcmask 1012739
  %168 = vst.msk [vmem:[#allocation2 + $0x70] sm:$0x38] %vm167, %v122
  %v169 = vrot.slane %v32, 2
  %v170 = vrot.slane %v48, 2
  %v171 = vrot.slane %v33, 2
  %v172 = vrot.slane %v49, 2
  %v173 = vrot.slane %v34, 2
  %v174 = vrot.slane %v50, 2
  %v175 = vrot.slane %v35, 2
  %v176 = vrot.slane %v51, 2
  %v177 = vrot.slane %v36, 2
  %v178 = vrot.slane %v52, 2
  %v179 = vrot.slane %v37, 2
  %v180 = vrot.slane %v53, 2
  %v181 = vrot.slane %v38, 2
  %v182 = vrot.slane %v54, 2
  %v183 = vrot.slane %v39, 2
  %184 = vrot.lane.b32.xlu0 %v169, 126
  %v185 = vpop.permute.xlu0 %184
  %186 = vrot.lane.b32.xlu0 %v170, 126
  %v187 = vpop.permute.xlu0 %186
  %188 = vrot.lane.b32.xlu0 %v171, 126
  %v189 = vpop.permute.xlu0 %188
  %190 = vrot.lane.b32.xlu0 %v172, 126
  %v191 = vpop.permute.xlu0 %190
  %192 = vrot.lane.b32.xlu0 %v173, 126
  %v193 = vpop.permute.xlu0 %192
  %194 = vrot.lane.b32.xlu0 %v174, 126
  %v195 = vpop.permute.xlu0 %194
  %196 = vrot.lane.b32.xlu0 %v175, 126
  %v197 = vpop.permute.xlu0 %196
  %198 = vrot.lane.b32.xlu0 %v176, 126
  %v199 = vpop.permute.xlu0 %198
  %200 = vrot.lane.b32.xlu0 %v177, 126
  %v201 = vpop.permute.xlu0 %200
  %202 = vrot.lane.b32.xlu0 %v178, 126
  %v203 = vpop.permute.xlu0 %202
  %204 = vrot.lane.b32.xlu0 %v179, 126
  %v205 = vpop.permute.xlu0 %204
  %206 = vrot.lane.b32.xlu0 %v180, 126
  %v207 = vpop.permute.xlu0 %206
  %208 = vrot.lane.b32.xlu0 %v181, 126
  %v209 = vpop.permute.xlu0 %208
  %210 = vrot.lane.b32.xlu0 %v182, 126
  %v211 = vpop.permute.xlu0 %210
  %212 = vrot.lane.b32.xlu0 %v183, 126
  %v213 = vpop.permute.xlu0 %212
  %vm214 = vcmask 1031168
  %v215 = vsel %vm214, %v185, %v187
  %v216 = vsel %vm214, %v187, %v189
  %v217 = vsel %vm214, %v189, %v191
  %v218 = vsel %vm214, %v191, %v193
  %v219 = vsel %vm214, %v193, %v195
  %v220 = vsel %vm214, %v195, %v197
  %v221 = vsel %vm214, %v197, %v199
  %v222 = vsel %vm214, %v199, %v201
  %v223 = vsel %vm214, %v201, %v203
  %v224 = vsel %vm214, %v203, %v205
  %v225 = vsel %vm214, %v205, %v207
  %v226 = vsel %vm214, %v207, %v209
  %v227 = vsel %vm214, %v209, %v211
  %v228 = vsel %vm214, %v211, %v213
  %244 = vst [vmem:[#allocation2] sm:$0xc0] %v215
  %245 = vst [vmem:[#allocation2 + $0x8] sm:$0xc0] %v216
  %246 = vst [vmem:[#allocation2 + $0x10] sm:$0xc0] %v217
  %247 = vst [vmem:[#allocation2 + $0x18] sm:$0xc0] %v218
  %248 = vst [vmem:[#allocation2 + $0x20] sm:$0xc0] %v219
  %249 = vst [vmem:[#allocation2 + $0x28] sm:$0xc0] %v220
  %250 = vst [vmem:[#allocation2 + $0x30] sm:$0xc0] %v221
  %251 = vst [vmem:[#allocation2 + $0x38] sm:$0xc0] %v222
  %252 = vst [vmem:[#allocation2 + $0x40] sm:$0xc0] %v223
  %253 = vst [vmem:[#allocation2 + $0x48] sm:$0xc0] %v224
  %254 = vst [vmem:[#allocation2 + $0x50] sm:$0xc0] %v225
  %255 = vst [vmem:[#allocation2 + $0x58] sm:$0xc0] %v226
  %256 = vst [vmem:[#allocation2 + $0x60] sm:$0xc0] %v227
  %257 = vst [vmem:[#allocation2 + $0x68] sm:$0xc0] %v228
  %vm258 = vcmask 1014790
  %259 = vst.msk [vmem:[#allocation2 + $0x70] sm:$0xc0] %vm258, %v213
  %260 = vst [vmem:[#allocation2 + $0x78] sm:$0x1] %v215
  %261 = vst [vmem:[#allocation2 + $0x80] sm:$0x1] %v216
  %262 = vst [vmem:[#allocation2 + $0x88] sm:$0x1] %v217
  %263 = vst [vmem:[#allocation2 + $0x90] sm:$0x1] %v218
  %264 = vst [vmem:[#allocation2 + $0x98] sm:$0x1] %v219
  %265 = vst [vmem:[#allocation2 + $0xa0] sm:$0x1] %v220
  %266 = vst [vmem:[#allocation2 + $0xa8] sm:$0x1] %v221
  %267 = vst [vmem:[#allocation2 + $0xb0] sm:$0x1] %v222
  %268 = vst [vmem:[#allocation2 + $0xb8] sm:$0x1] %v223
  %269 = vst [vmem:[#allocation2 + $0xc0] sm:$0x1] %v224
  %270 = vst [vmem:[#allocation2 + $0xc8] sm:$0x1] %v225
  %271 = vst [vmem:[#allocation2 + $0xd0] sm:$0x1] %v226
  %272 = vst [vmem:[#allocation2 + $0xd8] sm:$0x1] %v227
  %273 = vst [vmem:[#allocation2 + $0xe0] sm:$0x1] %v228
  %vm274 = vcmask 1007616
  %275 = vst.msk [vmem:[#allocation2 + $0xe8] sm:$0x1] %vm274, %v213
  %v276 = vrot.slane %v32, 7
  %v277 = vrot.slane %v48, 7
  %v278 = vrot.slane %v33, 7
  %v279 = vrot.slane %v49, 7
  %v280 = vrot.slane %v34, 7
  %v281 = vrot.slane %v50, 7
  %v282 = vrot.slane %v35, 7
  %v283 = vrot.slane %v51, 7
  %v284 = vrot.slane %v36, 7
  %v285 = vrot.slane %v52, 7
  %v286 = vrot.slane %v37, 7
  %v287 = vrot.slane %v53, 7
  %v288 = vrot.slane %v38, 7
  %v289 = vrot.slane %v54, 7
  %v290 = vrot.slane %v39, 7
  %291 = vrot.lane.b32.xlu0 %v276, 125
  %v292 = vpop.permute.xlu0 %291
  %293 = vrot.lane.b32.xlu0 %v277, 125
  %v294 = vpop.permute.xlu0 %293
  %295 = vrot.lane.b32.xlu0 %v278, 125
  %v296 = vpop.permute.xlu0 %295
  %297 = vrot.lane.b32.xlu0 %v279, 125
  %v298 = vpop.permute.xlu0 %297
  %299 = vrot.lane.b32.xlu0 %v280, 125
  %v300 = vpop.permute.xlu0 %299
  %301 = vrot.lane.b32.xlu0 %v281, 125
  %v302 = vpop.permute.xlu0 %301
  %303 = vrot.lane.b32.xlu0 %v282, 125
  %v304 = vpop.permute.xlu0 %303
  %305 = vrot.lane.b32.xlu0 %v283, 125
  %v306 = vpop.permute.xlu0 %305
  %307 = vrot.lane.b32.xlu0 %v284, 125
  %v308 = vpop.permute.xlu0 %307
  %309 = vrot.lane.b32.xlu0 %v285, 125
  %v310 = vpop.permute.xlu0 %309
  %311 = vrot.lane.b32.xlu0 %v286, 125
  %v312 = vpop.permute.xlu0 %311
  %313 = vrot.lane.b32.xlu0 %v287, 125
  %v314 = vpop.permute.xlu0 %313
  %315 = vrot.lane.b32.xlu0 %v288, 125
  %v316 = vpop.permute.xlu0 %315
  %317 = vrot.lane.b32.xlu0 %v289, 125
  %v318 = vpop.permute.xlu0 %317
  %319 = vrot.lane.b32.xlu0 %v290, 125
  %v320 = vpop.permute.xlu0 %319
  %vm321 = vcmask 1022976
  %v322 = vsel %vm321, %v292, %v294
  %v323 = vsel %vm321, %v294, %v296
  %v324 = vsel %vm321, %v296, %v298
  %v325 = vsel %vm321, %v298, %v300
  %v326 = vsel %vm321, %v300, %v302
  %v327 = vsel %vm321, %v302, %v304
  %v328 = vsel %vm321, %v304, %v306
  %v329 = vsel %vm321, %v306, %v308
  %v330 = vsel %vm321, %v308, %v310
  %v331 = vsel %vm321, %v310, %v312
  %v332 = vsel %vm321, %v312, %v314
  %v333 = vsel %vm321, %v314, %v316
  %v334 = vsel %vm321, %v316, %v318
  %v335 = vsel %vm321, %v318, %v320
  %351 = vst [vmem:[#allocation2 + $0x78] sm:$0xe] %v322
  %352 = vst [vmem:[#allocation2 + $0x80] sm:$0xe] %v323
  %353 = vst [vmem:[#allocation2 + $0x88] sm:$0xe] %v324
  %354 = vst [vmem:[#allocation2 + $0x90] sm:$0xe] %v325
  %355 = vst [vmem:[#allocation2 + $0x98] sm:$0xe] %v326
  %356 = vst [vmem:[#allocation2 + $0xa0] sm:$0xe] %v327
  %357 = vst [vmem:[#allocation2 + $0xa8] sm:$0xe] %v328
  %358 = vst [vmem:[#allocation2 + $0xb0] sm:$0xe] %v329
  %359 = vst [vmem:[#allocation2 + $0xb8] sm:$0xe] %v330
  %360 = vst [vmem:[#allocation2 + $0xc0] sm:$0xe] %v331
  %361 = vst [vmem:[#allocation2 + $0xc8] sm:$0xe] %v332
  %362 = vst [vmem:[#allocation2 + $0xd0] sm:$0xe] %v333
  %363 = vst [vmem:[#allocation2 + $0xd8] sm:$0xe] %v334
  %364 = vst [vmem:[#allocation2 + $0xe0] sm:$0xe] %v335
  %vm365 = vcmask 1010689
  %366 = vst.msk [vmem:[#allocation2 + $0xe8] sm:$0xe] %vm365, %v320
  %v367 = vcombine.low %v32, %v32
  %v368 = vcombine.low %v33, %v33
  %v369 = vcombine.low %v34, %v34
  %v370 = vcombine.low %v35, %v35
  %v371 = vcombine.low %v36, %v36
  %v372 = vcombine.low %v37, %v37
  %v373 = vcombine.low %v38, %v38
  %v374 = vcombine.low %v39, %v39
  %375 = vrot.lane.b32.xlu0 %v367, 124
  %v376 = vpop.permute.xlu0 %375
  %377 = vrot.lane.b32.xlu0 %v32, 124
  %v378 = vpop.permute.xlu0 %377
  %379 = vrot.lane.b32.xlu0 %v368, 124
  %v380 = vpop.permute.xlu0 %379
  %381 = vrot.lane.b32.xlu0 %v33, 124
  %v382 = vpop.permute.xlu0 %381
  %383 = vrot.lane.b32.xlu0 %v369, 124
  %v384 = vpop.permute.xlu0 %383
  %385 = vrot.lane.b32.xlu0 %v34, 124
  %v386 = vpop.permute.xlu0 %385
  %387 = vrot.lane.b32.xlu0 %v370, 124
  %v388 = vpop.permute.xlu0 %387
  %389 = vrot.lane.b32.xlu0 %v35, 124
  %v390 = vpop.permute.xlu0 %389
  %391 = vrot.lane.b32.xlu0 %v371, 124
  %v392 = vpop.permute.xlu0 %391
  %393 = vrot.lane.b32.xlu0 %v36, 124
  %v394 = vpop.permute.xlu0 %393
  %395 = vrot.lane.b32.xlu0 %v372, 124
  %v396 = vpop.permute.xlu0 %395
  %397 = vrot.lane.b32.xlu0 %v37, 124
  %v398 = vpop.permute.xlu0 %397
  %399 = vrot.lane.b32.xlu0 %v373, 124
  %v400 = vpop.permute.xlu0 %399
  %401 = vrot.lane.b32.xlu0 %v38, 124
  %v402 = vpop.permute.xlu0 %401
  %403 = vrot.lane.b32.xlu0 %v374, 124
  %v404 = vpop.permute.xlu0 %403
  %vm405 = vcmask 1014784
  %v406 = vsel %vm405, %v376, %v378
  %v407 = vsel %vm405, %v378, %v380
  %v408 = vsel %vm405, %v380, %v382
  %v409 = vsel %vm405, %v382, %v384
  %v410 = vsel %vm405, %v384, %v386
  %v411 = vsel %vm405, %v386, %v388
  %v412 = vsel %vm405, %v388, %v390
  %v413 = vsel %vm405, %v390, %v392
  %v414 = vsel %vm405, %v392, %v394
  %v415 = vsel %vm405, %v394, %v396
  %v416 = vsel %vm405, %v396, %v398
  %v417 = vsel %vm405, %v398, %v400
  %v418 = vsel %vm405, %v400, %v402
  %v419 = vsel %vm405, %v402, %v404
  %435 = vst [vmem:[#allocation2 + $0x78] sm:$0x70] %v406
  %436 = vst [vmem:[#allocation2 + $0x80] sm:$0x70] %v407
  %437 = vst [vmem:[#allocation2 + $0x88] sm:$0x70] %v408
  %438 = vst [vmem:[#allocation2 + $0x90] sm:$0x70] %v409
  %439 = vst [vmem:[#allocation2 + $0x98] sm:$0x70] %v410
  %440 = vst [vmem:[#allocation2 + $0xa0] sm:$0x70] %v411
  %441 = vst [vmem:[#allocation2 + $0xa8] sm:$0x70] %v412
  %442 = vst [vmem:[#allocation2 + $0xb0] sm:$0x70] %v413
  %443 = vst [vmem:[#allocation2 + $0xb8] sm:$0x70] %v414
  %444 = vst [vmem:[#allocation2 + $0xc0] sm:$0x70] %v415
  %445 = vst [vmem:[#allocation2 + $0xc8] sm:$0x70] %v416
  %446 = vst [vmem:[#allocation2 + $0xd0] sm:$0x70] %v417
  %447 = vst [vmem:[#allocation2 + $0xd8] sm:$0x70] %v418
  %448 = vst [vmem:[#allocation2 + $0xe0] sm:$0x70] %v419
  %vm449 = vcmask 1013764
  %450 = vst.msk [vmem:[#allocation2 + $0xe8] sm:$0x70] %vm449, %v404
  %v451 = vcombine.high %v39, %v39
  %v452 = vrot.slane %v32, 1
  %v453 = vrot.slane %v48, 1
  %v454 = vrot.slane %v33, 1
  %v455 = vrot.slane %v49, 1
  %v456 = vrot.slane %v34, 1
  %v457 = vrot.slane %v50, 1
  %v458 = vrot.slane %v35, 1
  %v459 = vrot.slane %v51, 1
  %v460 = vrot.slane %v36, 1
  %v461 = vrot.slane %v52, 1
  %v462 = vrot.slane %v37, 1
  %v463 = vrot.slane %v53, 1
  %v464 = vrot.slane %v38, 1
  %v465 = vrot.slane %v54, 1
  %v466 = vrot.slane %v39, 1
  %v467 = vrot.slane %v451, 1
  %468 = vrot.lane.b32.xlu0 %v452, 96
  %v469 = vpop.permute.xlu0 %468
  %470 = vrot.lane.b32.xlu0 %v453, 96
  %v471 = vpop.permute.xlu0 %470
  %472 = vrot.lane.b32.xlu0 %v454, 96
  %v473 = vpop.permute.xlu0 %472
  %474 = vrot.lane.b32.xlu0 %v455, 96
  %v475 = vpop.permute.xlu0 %474
  %476 = vrot.lane.b32.xlu0 %v456, 96
  %v477 = vpop.permute.xlu0 %476
  %478 = vrot.lane.b32.xlu0 %v457, 96
  %v479 = vpop.permute.xlu0 %478
  %480 = vrot.lane.b32.xlu0 %v458, 96
  %v481 = vpop.permute.xlu0 %480
  %482 = vrot.lane.b32.xlu0 %v459, 96
  %v483 = vpop.permute.xlu0 %482
  %484 = vrot.lane.b32.xlu0 %v460, 96
  %v485 = vpop.permute.xlu0 %484
  %486 = vrot.lane.b32.xlu0 %v461, 96
  %v487 = vpop.permute.xlu0 %486
  %488 = vrot.lane.b32.xlu0 %v462, 96
  %v489 = vpop.permute.xlu0 %488
  %490 = vrot.lane.b32.xlu0 %v463, 96
  %v491 = vpop.permute.xlu0 %490
  %492 = vrot.lane.b32.xlu0 %v464, 96
  %v493 = vpop.permute.xlu0 %492
  %494 = vrot.lane.b32.xlu0 %v465, 96
  %v495 = vpop.permute.xlu0 %494
  %496 = vrot.lane.b32.xlu0 %v466, 96
  %v497 = vpop.permute.xlu0 %496
  %498 = vrot.lane.b32.xlu0 %v467, 96
  %v499 = vpop.permute.xlu0 %498
  %vm500 = vcmask 785408
  %v501 = vsel %vm500, %v469, %v471
  %v502 = vsel %vm500, %v471, %v473
  %v503 = vsel %vm500, %v473, %v475
  %v504 = vsel %vm500, %v475, %v477
  %v505 = vsel %vm500, %v477, %v479
  %v506 = vsel %vm500, %v479, %v481
  %v507 = vsel %vm500, %v481, %v483
  %v508 = vsel %vm500, %v483, %v485
  %v509 = vsel %vm500, %v485, %v487
  %v510 = vsel %vm500, %v487, %v489
  %v511 = vsel %vm500, %v489, %v491
  %v512 = vsel %vm500, %v491, %v493
  %v513 = vsel %vm500, %v493, %v495
  %v514 = vsel %vm500, %v495, %v497
  %v515 = vsel %vm500, %v497, %v499
  %531 = vst [vmem:[#allocation2 + $0x78] sm:$0x80] %v501
  %532 = vst [vmem:[#allocation2 + $0x80] sm:$0x80] %v502
  %533 = vst [vmem:[#allocation2 + $0x88] sm:$0x80] %v503
  %534 = vst [vmem:[#allocation2 + $0x90] sm:$0x80] %v504
  %535 = vst [vmem:[#allocation2 + $0x98] sm:$0x80] %v505
  %536 = vst [vmem:[#allocation2 + $0xa0] sm:$0x80] %v506
  %537 = vst [vmem:[#allocation2 + $0xa8] sm:$0x80] %v507
  %538 = vst [vmem:[#allocation2 + $0xb0] sm:$0x80] %v508
  %539 = vst [vmem:[#allocation2 + $0xb8] sm:$0x80] %v509
  %540 = vst [vmem:[#allocation2 + $0xc0] sm:$0x80] %v510
  %541 = vst [vmem:[#allocation2 + $0xc8] sm:$0x80] %v511
  %542 = vst [vmem:[#allocation2 + $0xd0] sm:$0x80] %v512
  %543 = vst [vmem:[#allocation2 + $0xd8] sm:$0x80] %v513
  %544 = vst [vmem:[#allocation2 + $0xe0] sm:$0x80] %v514
  %vm545 = vcmask 1014791
  %546 = vst.msk [vmem:[#allocation2 + $0xe8] sm:$0x80] %vm545, %v515
  %547 = vst [vmem:[#allocation2 + $0xf0] sm:$0x3] %v501
  %548 = vst [vmem:[#allocation2 + $0xf8] sm:$0x3] %v502
  %549 = vst [vmem:[#allocation2 + $0x100] sm:$0x3] %v503
  %550 = vst [vmem:[#allocation2 + $0x108] sm:$0x3] %v504
  %551 = vst [vmem:[#allocation2 + $0x110] sm:$0x3] %v505
  %552 = vst [vmem:[#allocation2 + $0x118] sm:$0x3] %v506
  %553 = vst [vmem:[#allocation2 + $0x120] sm:$0x3] %v507
  %554 = vst [vmem:[#allocation2 + $0x128] sm:$0x3] %v508
  %555 = vst [vmem:[#allocation2 + $0x130] sm:$0x3] %v509
  %556 = vst [vmem:[#allocation2 + $0x138] sm:$0x3] %v510
  %557 = vst [vmem:[#allocation2 + $0x140] sm:$0x3] %v511
  %558 = vst [vmem:[#allocation2 + $0x148] sm:$0x3] %v512
  %559 = vst [vmem:[#allocation2 + $0x150] sm:$0x3] %v513
  %560 = vst [vmem:[#allocation2 + $0x158] sm:$0x3] %v514
  %vm561 = vcmask 1008640
  %562 = vst.msk [vmem:[#allocation2 + $0x160] sm:$0x3] %vm561, %v515
  %v563 = vrot.slane %v32, 6
  %v564 = vrot.slane %v48, 6
  %v565 = vrot.slane %v33, 6
  %v566 = vrot.slane %v49, 6
  %v567 = vrot.slane %v34, 6
  %v568 = vrot.slane %v50, 6
  %v569 = vrot.slane %v35, 6
  %v570 = vrot.slane %v51, 6
  %v571 = vrot.slane %v36, 6
  %v572 = vrot.slane %v52, 6
  %v573 = vrot.slane %v37, 6
  %v574 = vrot.slane %v53, 6
  %v575 = vrot.slane %v38, 6
  %v576 = vrot.slane %v54, 6
  %v577 = vrot.slane %v39, 6
  %v578 = vrot.slane %v451, 6
  %579 = vrot.lane.b32.xlu0 %v563, 95
  %v580 = vpop.permute.xlu0 %579
  %581 = vrot.lane.b32.xlu0 %v564, 95
  %v582 = vpop.permute.xlu0 %581
  %583 = vrot.lane.b32.xlu0 %v565, 95
  %v584 = vpop.permute.xlu0 %583
  %585 = vrot.lane.b32.xlu0 %v566, 95
  %v586 = vpop.permute.xlu0 %585
  %587 = vrot.lane.b32.xlu0 %v567, 95
  %v588 = vpop.permute.xlu0 %587
  %589 = vrot.lane.b32.xlu0 %v568, 95
  %v590 = vpop.permute.xlu0 %589
  %591 = vrot.lane.b32.xlu0 %v569, 95
  %v592 = vpop.permute.xlu0 %591
  %593 = vrot.lane.b32.xlu0 %v570, 95
  %v594 = vpop.permute.xlu0 %593
  %595 = vrot.lane.b32.xlu0 %v571, 95
  %v596 = vpop.permute.xlu0 %595
  %597 = vrot.lane.b32.xlu0 %v572, 95
  %v598 = vpop.permute.xlu0 %597
  %599 = vrot.lane.b32.xlu0 %v573, 95
  %v600 = vpop.permute.xlu0 %599
  %601 = vrot.lane.b32.xlu0 %v574, 95
  %v602 = vpop.permute.xlu0 %601
  %603 = vrot.lane.b32.xlu0 %v575, 95
  %v604 = vpop.permute.xlu0 %603
  %605 = vrot.lane.b32.xlu0 %v576, 95
  %v606 = vpop.permute.xlu0 %605
  %607 = vrot.lane.b32.xlu0 %v577, 95
  %v608 = vpop.permute.xlu0 %607
  %609 = vrot.lane.b32.xlu0 %v578, 95
  %v610 = vpop.permute.xlu0 %609
  %vm611 = vcmask 777216
  %v612 = vsel %vm611, %v580, %v582
  %v613 = vsel %vm611, %v582, %v584
  %v614 = vsel %vm611, %v584, %v586
  %v615 = vsel %vm611, %v586, %v588
  %v616 = vsel %vm611, %v588, %v590
  %v617 = vsel %vm611, %v590, %v592
  %v618 = vsel %vm611, %v592, %v594
  %v619 = vsel %vm611, %v594, %v596
  %v620 = vsel %vm611, %v596, %v598
  %v621 = vsel %vm611, %v598, %v600
  %v622 = vsel %vm611, %v600, %v602
  %v623 = vsel %vm611, %v602, %v604
  %v624 = vsel %vm611, %v604, %v606
  %v625 = vsel %vm611, %v606, %v608
  %v626 = vsel %vm611, %v608, %v610
  %642 = vst [vmem:[#allocation2 + $0xf0] sm:$0x1c] %v612
  %643 = vst [vmem:[#allocation2 + $0xf8] sm:$0x1c] %v613
  %644 = vst [vmem:[#allocation2 + $0x100] sm:$0x1c] %v614
  %645 = vst [vmem:[#allocation2 + $0x108] sm:$0x1c] %v615
  %646 = vst [vmem:[#allocation2 + $0x110] sm:$0x1c] %v616
  %647 = vst [vmem:[#allocation2 + $0x118] sm:$0x1c] %v617
  %648 = vst [vmem:[#allocation2 + $0x120] sm:$0x1c] %v618
  %649 = vst [vmem:[#allocation2 + $0x128] sm:$0x1c] %v619
  %650 = vst [vmem:[#allocation2 + $0x130] sm:$0x1c] %v620
  %651 = vst [vmem:[#allocation2 + $0x138] sm:$0x1c] %v621
  %652 = vst [vmem:[#allocation2 + $0x140] sm:$0x1c] %v622
  %653 = vst [vmem:[#allocation2 + $0x148] sm:$0x1c] %v623
  %654 = vst [vmem:[#allocation2 + $0x150] sm:$0x1c] %v624
  %655 = vst [vmem:[#allocation2 + $0x158] sm:$0x1c] %v625
  %vm656 = vcmask 1011714
  %657 = vst.msk [vmem:[#allocation2 + $0x160] sm:$0x1c] %vm656, %v626
  %v658 = vrot.slane %v32, 3
  %v659 = vrot.slane %v48, 3
  %v660 = vrot.slane %v33, 3
  %v661 = vrot.slane %v49, 3
  %v662 = vrot.slane %v34, 3
  %v663 = vrot.slane %v50, 3
  %v664 = vrot.slane %v35, 3
  %v665 = vrot.slane %v51, 3
  %v666 = vrot.slane %v36, 3
  %v667 = vrot.slane %v52, 3
  %v668 = vrot.slane %v37, 3
  %v669 = vrot.slane %v53, 3
  %v670 = vrot.slane %v38, 3
  %v671 = vrot.slane %v54, 3
  %v672 = vrot.slane %v39, 3
  %v673 = vrot.slane %v451, 3
  %674 = vrot.lane.b32.xlu0 %v658, 94
  %v675 = vpop.permute.xlu0 %674
  %676 = vrot.lane.b32.xlu0 %v659, 94
  %v677 = vpop.permute.xlu0 %676
  %678 = vrot.lane.b32.xlu0 %v660, 94
  %v679 = vpop.permute.xlu0 %678
  %680 = vrot.lane.b32.xlu0 %v661, 94
  %v681 = vpop.permute.xlu0 %680
  %682 = vrot.lane.b32.xlu0 %v662, 94
  %v683 = vpop.permute.xlu0 %682
  %684 = vrot.lane.b32.xlu0 %v663, 94
  %v685 = vpop.permute.xlu0 %684
  %686 = vrot.lane.b32.xlu0 %v664, 94
  %v687 = vpop.permute.xlu0 %686
  %688 = vrot.lane.b32.xlu0 %v665, 94
  %v689 = vpop.permute.xlu0 %688
  %690 = vrot.lane.b32.xlu0 %v666, 94
  %v691 = vpop.permute.xlu0 %690
  %692 = vrot.lane.b32.xlu0 %v667, 94
  %v693 = vpop.permute.xlu0 %692
  %694 = vrot.lane.b32.xlu0 %v668, 94
  %v695 = vpop.permute.xlu0 %694
  %696 = vrot.lane.b32.xlu0 %v669, 94
  %v697 = vpop.permute.xlu0 %696
  %698 = vrot.lane.b32.xlu0 %v670, 94
  %v699 = vpop.permute.xlu0 %698
  %700 = vrot.lane.b32.xlu0 %v671, 94
  %v701 = vpop.permute.xlu0 %700
  %702 = vrot.lane.b32.xlu0 %v672, 94
  %v703 = vpop.permute.xlu0 %702
  %704 = vrot.lane.b32.xlu0 %v673, 94
  %v705 = vpop.permute.xlu0 %704
  %vm706 = vcmask 769024
  %v707 = vsel %vm706, %v675, %v677
  %v708 = vsel %vm706, %v677, %v679
  %v709 = vsel %vm706, %v679, %v681
  %v710 = vsel %vm706, %v681, %v683
  %v711 = vsel %vm706, %v683, %v685
  %v712 = vsel %vm706, %v685, %v687
  %v713 = vsel %vm706, %v687, %v689
  %v714 = vsel %vm706, %v689, %v691
  %v715 = vsel %vm706, %v691, %v693
  %v716 = vsel %vm706, %v693, %v695
  %v717 = vsel %vm706, %v695, %v697
  %v718 = vsel %vm706, %v697, %v699
  %v719 = vsel %vm706, %v699, %v701
  %v720 = vsel %vm706, %v701, %v703
  %v721 = vsel %vm706, %v703, %v705
  %737 = vst [vmem:[#allocation2 + $0xf0] sm:$0xe0] %v707
  %738 = vst [vmem:[#allocation2 + $0xf8] sm:$0xe0] %v708
  %739 = vst [vmem:[#allocation2 + $0x100] sm:$0xe0] %v709
  %740 = vst [vmem:[#allocation2 + $0x108] sm:$0xe0] %v710
  %741 = vst [vmem:[#allocation2 + $0x110] sm:$0xe0] %v711
  %742 = vst [vmem:[#allocation2 + $0x118] sm:$0xe0] %v712
  %743 = vst [vmem:[#allocation2 + $0x120] sm:$0xe0] %v713
  %744 = vst [vmem:[#allocation2 + $0x128] sm:$0xe0] %v714
  %745 = vst [vmem:[#allocation2 + $0x130] sm:$0xe0] %v715
  %746 = vst [vmem:[#allocation2 + $0x138] sm:$0xe0] %v716
  %747 = vst [vmem:[#allocation2 + $0x140] sm:$0xe0] %v717
  %748 = vst [vmem:[#allocation2 + $0x148] sm:$0xe0] %v718
  %749 = vst [vmem:[#allocation2 + $0x150] sm:$0xe0] %v719
  %750 = vst [vmem:[#allocation2 + $0x158] sm:$0xe0] %v720
  %vm751 = vcmask 1014789
  %752 = vst.msk [vmem:[#allocation2 + $0x160] sm:$0xe0] %vm751, %v721
  %753 = vrot.lane.b32.xlu0 %v32, 93
  %v754 = vpop.permute.xlu0 %753
  %755 = vrot.lane.b32.xlu0 %v48, 93
  %v756 = vpop.permute.xlu0 %755
  %757 = vrot.lane.b32.xlu0 %v33, 93
  %v758 = vpop.permute.xlu0 %757
  %759 = vrot.lane.b32.xlu0 %v49, 93
  %v760 = vpop.permute.xlu0 %759
  %761 = vrot.lane.b32.xlu0 %v34, 93
  %v762 = vpop.permute.xlu0 %761
  %763 = vrot.lane.b32.xlu0 %v50, 93
  %v764 = vpop.permute.xlu0 %763
  %765 = vrot.lane.b32.xlu0 %v35, 93
  %v766 = vpop.permute.xlu0 %765
  %767 = vrot.lane.b32.xlu0 %v51, 93
  %v768 = vpop.permute.xlu0 %767
  %769 = vrot.lane.b32.xlu0 %v36, 93
  %v770 = vpop.permute.xlu0 %769
  %771 = vrot.lane.b32.xlu0 %v52, 93
  %v772 = vpop.permute.xlu0 %771
  %773 = vrot.lane.b32.xlu0 %v37, 93
  %v774 = vpop.permute.xlu0 %773
  %775 = vrot.lane.b32.xlu0 %v53, 93
  %v776 = vpop.permute.xlu0 %775
  %777 = vrot.lane.b32.xlu0 %v38, 93
  %v778 = vpop.permute.xlu0 %777
  %779 = vrot.lane.b32.xlu0 %v54, 93
  %v780 = vpop.permute.xlu0 %779
  %781 = vrot.lane.b32.xlu0 %v39, 93
  %v782 = vpop.permute.xlu0 %781
  %783 = vrot.lane.b32.xlu0 %v451, 93
  %v784 = vpop.permute.xlu0 %783
  %vm785 = vcmask 760832
  %v786 = vsel %vm785, %v754, %v756
  %v787 = vsel %vm785, %v756, %v758
  %v788 = vsel %vm785, %v758, %v760
  %v789 = vsel %vm785, %v760, %v762
  %v790 = vsel %vm785, %v762, %v764
  %v791 = vsel %vm785, %v764, %v766
  %v792 = vsel %vm785, %v766, %v768
  %v793 = vsel %vm785, %v768, %v770
  %v794 = vsel %vm785, %v770, %v772
  %v795 = vsel %vm785, %v772, %v774
  %v796 = vsel %vm785, %v774, %v776
  %v797 = vsel %vm785, %v776, %v778
  %v798 = vsel %vm785, %v778, %v780
  %v799 = vsel %vm785, %v780, %v782
  %v800 = vsel %vm785, %v782, %v784
  %816 = vst [vmem:[#allocation2 + $0x168] sm:$0x7] %v786
  %817 = vst [vmem:[#allocation2 + $0x170] sm:$0x7] %v787
  %818 = vst [vmem:[#allocation2 + $0x178] sm:$0x7] %v788
  %819 = vst [vmem:[#allocation2 + $0x180] sm:$0x7] %v789
  %820 = vst [vmem:[#allocation2 + $0x188] sm:$0x7] %v790
  %821 = vst [vmem:[#allocation2 + $0x190] sm:$0x7] %v791
  %822 = vst [vmem:[#allocation2 + $0x198] sm:$0x7] %v792
  %823 = vst [vmem:[#allocation2 + $0x1a0] sm:$0x7] %v793
  %824 = vst [vmem:[#allocation2 + $0x1a8] sm:$0x7] %v794
  %825 = vst [vmem:[#allocation2 + $0x1b0] sm:$0x7] %v795
  %826 = vst [vmem:[#allocation2 + $0x1b8] sm:$0x7] %v796
  %827 = vst [vmem:[#allocation2 + $0x1c0] sm:$0x7] %v797
  %828 = vst [vmem:[#allocation2 + $0x1c8] sm:$0x7] %v798
  %829 = vst [vmem:[#allocation2 + $0x1d0] sm:$0x7] %v799
  %830 = vst.msk [vmem:[#allocation2 + $0x1d8] sm:$0x7] %vm76, %v800
  %v831 = vrot.slane %v451, 5
  %832 = vrot.lane.b32.xlu0 %v78, 92
  %v833 = vpop.permute.xlu0 %832
  %834 = vrot.lane.b32.xlu0 %v79, 92
  %v835 = vpop.permute.xlu0 %834
  %836 = vrot.lane.b32.xlu0 %v80, 92
  %v837 = vpop.permute.xlu0 %836
  %838 = vrot.lane.b32.xlu0 %v81, 92
  %v839 = vpop.permute.xlu0 %838
  %840 = vrot.lane.b32.xlu0 %v82, 92
  %v841 = vpop.permute.xlu0 %840
  %842 = vrot.lane.b32.xlu0 %v83, 92
  %v843 = vpop.permute.xlu0 %842
  %844 = vrot.lane.b32.xlu0 %v84, 92
  %v845 = vpop.permute.xlu0 %844
  %846 = vrot.lane.b32.xlu0 %v85, 92
  %v847 = vpop.permute.xlu0 %846
  %848 = vrot.lane.b32.xlu0 %v86, 92
  %v849 = vpop.permute.xlu0 %848
  %850 = vrot.lane.b32.xlu0 %v87, 92
  %v851 = vpop.permute.xlu0 %850
  %852 = vrot.lane.b32.xlu0 %v88, 92
  %v853 = vpop.permute.xlu0 %852
  %854 = vrot.lane.b32.xlu0 %v89, 92
  %v855 = vpop.permute.xlu0 %854
  %856 = vrot.lane.b32.xlu0 %v90, 92
  %v857 = vpop.permute.xlu0 %856
  %858 = vrot.lane.b32.xlu0 %v91, 92
  %v859 = vpop.permute.xlu0 %858
  %860 = vrot.lane.b32.xlu0 %v92, 92
  %v861 = vpop.permute.xlu0 %860
  %862 = vrot.lane.b32.xlu0 %v831, 92
  %v863 = vpop.permute.xlu0 %862
  %vm864 = vcmask 752640
  %v865 = vsel %vm864, %v833, %v835
  %v866 = vsel %vm864, %v835, %v837
  %v867 = vsel %vm864, %v837, %v839
  %v868 = vsel %vm864, %v839, %v841
  %v869 = vsel %vm864, %v841, %v843
  %v870 = vsel %vm864, %v843, %v845
  %v871 = vsel %vm864, %v845, %v847
  %v872 = vsel %vm864, %v847, %v849
  %v873 = vsel %vm864, %v849, %v851
  %v874 = vsel %vm864, %v851, %v853
  %v875 = vsel %vm864, %v853, %v855
  %v876 = vsel %vm864, %v855, %v857
  %v877 = vsel %vm864, %v857, %v859
  %v878 = vsel %vm864, %v859, %v861
  %v879 = vsel %vm864, %v861, %v863
  %895 = vst [vmem:[#allocation2 + $0x168] sm:$0x38] %v865
  %896 = vst [vmem:[#allocation2 + $0x170] sm:$0x38] %v866
  %897 = vst [vmem:[#allocation2 + $0x178] sm:$0x38] %v867
  %898 = vst [vmem:[#allocation2 + $0x180] sm:$0x38] %v868
  %899 = vst [vmem:[#allocation2 + $0x188] sm:$0x38] %v869
  %900 = vst [vmem:[#allocation2 + $0x190] sm:$0x38] %v870
  %901 = vst [vmem:[#allocation2 + $0x198] sm:$0x38] %v871
  %902 = vst [vmem:[#allocation2 + $0x1a0] sm:$0x38] %v872
  %903 = vst [vmem:[#allocation2 + $0x1a8] sm:$0x38] %v873
  %904 = vst [vmem:[#allocation2 + $0x1b0] sm:$0x38] %v874
  %905 = vst [vmem:[#allocation2 + $0x1b8] sm:$0x38] %v875
  %906 = vst [vmem:[#allocation2 + $0x1c0] sm:$0x38] %v876
  %907 = vst [vmem:[#allocation2 + $0x1c8] sm:$0x38] %v877
  %908 = vst [vmem:[#allocation2 + $0x1d0] sm:$0x38] %v878
  %909 = vst.msk [vmem:[#allocation2 + $0x1d8] sm:$0x38] %vm167, %v879
  %v910 = vrot.slane %v451, 2
  %911 = vrot.lane.b32.xlu0 %v169, 64
  %v912 = vpop.permute.xlu0 %911
  %913 = vrot.lane.b32.xlu0 %v170, 64
  %v914 = vpop.permute.xlu0 %913
  %915 = vrot.lane.b32.xlu0 %v171, 64
  %v916 = vpop.permute.xlu0 %915
  %917 = vrot.lane.b32.xlu0 %v172, 64
  %v918 = vpop.permute.xlu0 %917
  %919 = vrot.lane.b32.xlu0 %v173, 64
  %v920 = vpop.permute.xlu0 %919
  %921 = vrot.lane.b32.xlu0 %v174, 64
  %v922 = vpop.permute.xlu0 %921
  %923 = vrot.lane.b32.xlu0 %v175, 64
  %v924 = vpop.permute.xlu0 %923
  %925 = vrot.lane.b32.xlu0 %v176, 64
  %v926 = vpop.permute.xlu0 %925
  %927 = vrot.lane.b32.xlu0 %v177, 64
  %v928 = vpop.permute.xlu0 %927
  %929 = vrot.lane.b32.xlu0 %v178, 64
  %v930 = vpop.permute.xlu0 %929
  %931 = vrot.lane.b32.xlu0 %v179, 64
  %v932 = vpop.permute.xlu0 %931
  %933 = vrot.lane.b32.xlu0 %v180, 64
  %v934 = vpop.permute.xlu0 %933
  %935 = vrot.lane.b32.xlu0 %v181, 64
  %v936 = vpop.permute.xlu0 %935
  %937 = vrot.lane.b32.xlu0 %v182, 64
  %v938 = vpop.permute.xlu0 %937
  %939 = vrot.lane.b32.xlu0 %v183, 64
  %v940 = vpop.permute.xlu0 %939
  %941 = vrot.lane.b32.xlu0 %v910, 64
  %v942 = vpop.permute.xlu0 %941
  %vm943 = vcmask 523264
  %v944 = vsel %vm943, %v912, %v914
  %v945 = vsel %vm943, %v914, %v916
  %v946 = vsel %vm943, %v916, %v918
  %v947 = vsel %vm943, %v918, %v920
  %v948 = vsel %vm943, %v920, %v922
  %v949 = vsel %vm943, %v922, %v924
  %v950 = vsel %vm943, %v924, %v926
  %v951 = vsel %vm943, %v926, %v928
  %v952 = vsel %vm943, %v928, %v930
  %v953 = vsel %vm943, %v930, %v932
  %v954 = vsel %vm943, %v932, %v934
  %v955 = vsel %vm943, %v934, %v936
  %v956 = vsel %vm943, %v936, %v938
  %v957 = vsel %vm943, %v938, %v940
  %v958 = vsel %vm943, %v940, %v942
  %974 = vst [vmem:[#allocation2 + $0x168] sm:$0xc0] %v944
  %975 = vst [vmem:[#allocation2 + $0x170] sm:$0xc0] %v945
  %976 = vst [vmem:[#allocation2 + $0x178] sm:$0xc0] %v946
  %977 = vst [vmem:[#allocation2 + $0x180] sm:$0xc0] %v947
  %978 = vst [vmem:[#allocation2 + $0x188] sm:$0xc0] %v948
  %979 = vst [vmem:[#allocation2 + $0x190] sm:$0xc0] %v949
  %980 = vst [vmem:[#allocation2 + $0x198] sm:$0xc0] %v950
  %981 = vst [vmem:[#allocation2 + $0x1a0] sm:$0xc0] %v951
  %982 = vst [vmem:[#allocation2 + $0x1a8] sm:$0xc0] %v952
  %983 = vst [vmem:[#allocation2 + $0x1b0] sm:$0xc0] %v953
  %984 = vst [vmem:[#allocation2 + $0x1b8] sm:$0xc0] %v954
  %985 = vst [vmem:[#allocation2 + $0x1c0] sm:$0xc0] %v955
  %986 = vst [vmem:[#allocation2 + $0x1c8] sm:$0xc0] %v956
  %987 = vst [vmem:[#allocation2 + $0x1d0] sm:$0xc0] %v957
  %988 = vst.msk [vmem:[#allocation2 + $0x1d8] sm:$0xc0] %vm258, %v958
  %989 = vst [vmem:[#allocation2 + $0x1e0] sm:$0x1] %v944
  %990 = vst [vmem:[#allocation2 + $0x1e8] sm:$0x1] %v945
  %991 = vst [vmem:[#allocation2 + $0x1f0] sm:$0x1] %v946
  %992 = vst [vmem:[#allocation2 + $0x1f8] sm:$0x1] %v947
  %993 = vst [vmem:[#allocation2 + $0x200] sm:$0x1] %v948
  %994 = vst [vmem:[#allocation2 + $0x208] sm:$0x1] %v949
  %995 = vst [vmem:[#allocation2 + $0x210] sm:$0x1] %v950
  %996 = vst [vmem:[#allocation2 + $0x218] sm:$0x1] %v951
  %997 = vst [vmem:[#allocation2 + $0x220] sm:$0x1] %v952
  %998 = vst [vmem:[#allocation2 + $0x228] sm:$0x1] %v953
  %999 = vst [vmem:[#allocation2 + $0x230] sm:$0x1] %v954
  %1000 = vst [vmem:[#allocation2 + $0x238] sm:$0x1] %v955
  %1001 = vst [vmem:[#allocation2 + $0x240] sm:$0x1] %v956
  %1002 = vst [vmem:[#allocation2 + $0x248] sm:$0x1] %v957
  %1003 = vst.msk [vmem:[#allocation2 + $0x250] sm:$0x1] %vm274, %v958
  %v1004 = vrot.slane %v451, 7
  %1005 = vrot.lane.b32.xlu0 %v276, 63
  %v1006 = vpop.permute.xlu0 %1005
  %1007 = vrot.lane.b32.xlu0 %v277, 63
  %v1008 = vpop.permute.xlu0 %1007
  %1009 = vrot.lane.b32.xlu0 %v278, 63
  %v1010 = vpop.permute.xlu0 %1009
  %1011 = vrot.lane.b32.xlu0 %v279, 63
  %v1012 = vpop.permute.xlu0 %1011
  %1013 = vrot.lane.b32.xlu0 %v280, 63
  %v1014 = vpop.permute.xlu0 %1013
  %1015 = vrot.lane.b32.xlu0 %v281, 63
  %v1016 = vpop.permute.xlu0 %1015
  %1017 = vrot.lane.b32.xlu0 %v282, 63
  %v1018 = vpop.permute.xlu0 %1017
  %1019 = vrot.lane.b32.xlu0 %v283, 63
  %v1020 = vpop.permute.xlu0 %1019
  %1021 = vrot.lane.b32.xlu0 %v284, 63
  %v1022 = vpop.permute.xlu0 %1021
  %1023 = vrot.lane.b32.xlu0 %v285, 63
  %v1024 = vpop.permute.xlu0 %1023
  %1025 = vrot.lane.b32.xlu0 %v286, 63
  %v1026 = vpop.permute.xlu0 %1025
  %1027 = vrot.lane.b32.xlu0 %v287, 63
  %v1028 = vpop.permute.xlu0 %1027
  %1029 = vrot.lane.b32.xlu0 %v288, 63
  %v1030 = vpop.permute.xlu0 %1029
  %1031 = vrot.lane.b32.xlu0 %v289, 63
  %v1032 = vpop.permute.xlu0 %1031
  %1033 = vrot.lane.b32.xlu0 %v290, 63
  %v1034 = vpop.permute.xlu0 %1033
  %1035 = vrot.lane.b32.xlu0 %v1004, 63
  %v1036 = vpop.permute.xlu0 %1035
  %vm1037 = vcmask 515072
  %v1038 = vsel %vm1037, %v1006, %v1008
  %v1039 = vsel %vm1037, %v1008, %v1010
  %v1040 = vsel %vm1037, %v1010, %v1012
  %v1041 = vsel %vm1037, %v1012, %v1014
  %v1042 = vsel %vm1037, %v1014, %v1016
  %v1043 = vsel %vm1037, %v1016, %v1018
  %v1044 = vsel %vm1037, %v1018, %v1020
  %v1045 = vsel %vm1037, %v1020, %v1022
  %v1046 = vsel %vm1037, %v1022, %v1024
  %v1047 = vsel %vm1037, %v1024, %v1026
  %v1048 = vsel %vm1037, %v1026, %v1028
  %v1049 = vsel %vm1037, %v1028, %v1030
  %v1050 = vsel %vm1037, %v1030, %v1032
  %v1051 = vsel %vm1037, %v1032, %v1034
  %v1052 = vsel %vm1037, %v1034, %v1036
  %1068 = vst [vmem:[#allocation2 + $0x1e0] sm:$0xe] %v1038
  %1069 = vst [vmem:[#allocation2 + $0x1e8] sm:$0xe] %v1039
  %1070 = vst [vmem:[#allocation2 + $0x1f0] sm:$0xe] %v1040
  %1071 = vst [vmem:[#allocation2 + $0x1f8] sm:$0xe] %v1041
  %1072 = vst [vmem:[#allocation2 + $0x200] sm:$0xe] %v1042
  %1073 = vst [vmem:[#allocation2 + $0x208] sm:$0xe] %v1043
  %1074 = vst [vmem:[#allocation2 + $0x210] sm:$0xe] %v1044
  %1075 = vst [vmem:[#allocation2 + $0x218] sm:$0xe] %v1045
  %1076 = vst [vmem:[#allocation2 + $0x220] sm:$0xe] %v1046
  %1077 = vst [vmem:[#allocation2 + $0x228] sm:$0xe] %v1047
  %1078 = vst [vmem:[#allocation2 + $0x230] sm:$0xe] %v1048
  %1079 = vst [vmem:[#allocation2 + $0x238] sm:$0xe] %v1049
  %1080 = vst [vmem:[#allocation2 + $0x240] sm:$0xe] %v1050
  %1081 = vst [vmem:[#allocation2 + $0x248] sm:$0xe] %v1051
  %1082 = vst.msk [vmem:[#allocation2 + $0x250] sm:$0xe] %vm365, %v1052
  %1083 = vrot.lane.b32.xlu0 %v367, 62
  %v1084 = vpop.permute.xlu0 %1083
  %1085 = vrot.lane.b32.xlu0 %v32, 62
  %v1086 = vpop.permute.xlu0 %1085
  %1087 = vrot.lane.b32.xlu0 %v368, 62
  %v1088 = vpop.permute.xlu0 %1087
  %1089 = vrot.lane.b32.xlu0 %v33, 62
  %v1090 = vpop.permute.xlu0 %1089
  %1091 = vrot.lane.b32.xlu0 %v369, 62
  %v1092 = vpop.permute.xlu0 %1091
  %1093 = vrot.lane.b32.xlu0 %v34, 62
  %v1094 = vpop.permute.xlu0 %1093
  %1095 = vrot.lane.b32.xlu0 %v370, 62
  %v1096 = vpop.permute.xlu0 %1095
  %1097 = vrot.lane.b32.xlu0 %v35, 62
  %v1098 = vpop.permute.xlu0 %1097
  %1099 = vrot.lane.b32.xlu0 %v371, 62
  %v1100 = vpop.permute.xlu0 %1099
  %1101 = vrot.lane.b32.xlu0 %v36, 62
  %v1102 = vpop.permute.xlu0 %1101
  %1103 = vrot.lane.b32.xlu0 %v372, 62
  %v1104 = vpop.permute.xlu0 %1103
  %1105 = vrot.lane.b32.xlu0 %v37, 62
  %v1106 = vpop.permute.xlu0 %1105
  %1107 = vrot.lane.b32.xlu0 %v373, 62
  %v1108 = vpop.permute.xlu0 %1107
  %1109 = vrot.lane.b32.xlu0 %v38, 62
  %v1110 = vpop.permute.xlu0 %1109
  %1111 = vrot.lane.b32.xlu0 %v374, 62
  %v1112 = vpop.permute.xlu0 %1111
  %1113 = vrot.lane.b32.xlu0 %v39, 62
  %v1114 = vpop.permute.xlu0 %1113
  %vm1115 = vcmask 506880
  %v1116 = vsel %vm1115, %v1084, %v1086
  %v1117 = vsel %vm1115, %v1086, %v1088
  %v1118 = vsel %vm1115, %v1088, %v1090
  %v1119 = vsel %vm1115, %v1090, %v1092
  %v1120 = vsel %vm1115, %v1092, %v1094
  %v1121 = vsel %vm1115, %v1094, %v1096
  %v1122 = vsel %vm1115, %v1096, %v1098
  %v1123 = vsel %vm1115, %v1098, %v1100
  %v1124 = vsel %vm1115, %v1100, %v1102
  %v1125 = vsel %vm1115, %v1102, %v1104
  %v1126 = vsel %vm1115, %v1104, %v1106
  %v1127 = vsel %vm1115, %v1106, %v1108
  %v1128 = vsel %vm1115, %v1108, %v1110
  %v1129 = vsel %vm1115, %v1110, %v1112
  %v1130 = vsel %vm1115, %v1112, %v1114
  %1146 = vst [vmem:[#allocation2 + $0x1e0] sm:$0x70] %v1116
  %1147 = vst [vmem:[#allocation2 + $0x1e8] sm:$0x70] %v1117
  %1148 = vst [vmem:[#allocation2 + $0x1f0] sm:$0x70] %v1118
  %1149 = vst [vmem:[#allocation2 + $0x1f8] sm:$0x70] %v1119
  %1150 = vst [vmem:[#allocation2 + $0x200] sm:$0x70] %v1120
  %1151 = vst [vmem:[#allocation2 + $0x208] sm:$0x70] %v1121
  %1152 = vst [vmem:[#allocation2 + $0x210] sm:$0x70] %v1122
  %1153 = vst [vmem:[#allocation2 + $0x218] sm:$0x70] %v1123
  %1154 = vst [vmem:[#allocation2 + $0x220] sm:$0x70] %v1124
  %1155 = vst [vmem:[#allocation2 + $0x228] sm:$0x70] %v1125
  %1156 = vst [vmem:[#allocation2 + $0x230] sm:$0x70] %v1126
  %1157 = vst [vmem:[#allocation2 + $0x238] sm:$0x70] %v1127
  %1158 = vst [vmem:[#allocation2 + $0x240] sm:$0x70] %v1128
  %1159 = vst [vmem:[#allocation2 + $0x248] sm:$0x70] %v1129
  %1160 = vst.msk [vmem:[#allocation2 + $0x250] sm:$0x70] %vm449, %v1130
  %1161 = vrot.lane.b32.xlu0 %v452, 61
  %v1162 = vpop.permute.xlu0 %1161
  %1163 = vrot.lane.b32.xlu0 %v453, 61
  %v1164 = vpop.permute.xlu0 %1163
  %1165 = vrot.lane.b32.xlu0 %v454, 61
  %v1166 = vpop.permute.xlu0 %1165
  %1167 = vrot.lane.b32.xlu0 %v455, 61
  %v1168 = vpop.permute.xlu0 %1167
  %1169 = vrot.lane.b32.xlu0 %v456, 61
  %v1170 = vpop.permute.xlu0 %1169
  %1171 = vrot.lane.b32.xlu0 %v457, 61
  %v1172 = vpop.permute.xlu0 %1171
  %1173 = vrot.lane.b32.xlu0 %v458, 61
  %v1174 = vpop.permute.xlu0 %1173
  %1175 = vrot.lane.b32.xlu0 %v459, 61
  %v1176 = vpop.permute.xlu0 %1175
  %1177 = vrot.lane.b32.xlu0 %v460, 61
  %v1178 = vpop.permute.xlu0 %1177
  %1179 = vrot.lane.b32.xlu0 %v461, 61
  %v1180 = vpop.permute.xlu0 %1179
  %1181 = vrot.lane.b32.xlu0 %v462, 61
  %v1182 = vpop.permute.xlu0 %1181
  %1183 = vrot.lane.b32.xlu0 %v463, 61
  %v1184 = vpop.permute.xlu0 %1183
  %1185 = vrot.lane.b32.xlu0 %v464, 61
  %v1186 = vpop.permute.xlu0 %1185
  %1187 = vrot.lane.b32.xlu0 %v465, 61
  %v1188 = vpop.permute.xlu0 %1187
  %1189 = vrot.lane.b32.xlu0 %v466, 61
  %v1190 = vpop.permute.xlu0 %1189
  %1191 = vrot.lane.b32.xlu0 %v467, 61
  %v1192 = vpop.permute.xlu0 %1191
  %vm1193 = vcmask 498688
  %v1194 = vsel %vm1193, %v1162, %v1164
  %v1195 = vsel %vm1193, %v1164, %v1166
  %v1196 = vsel %vm1193, %v1166, %v1168
  %v1197 = vsel %vm1193, %v1168, %v1170
  %v1198 = vsel %vm1193, %v1170, %v1172
  %v1199 = vsel %vm1193, %v1172, %v1174
  %v1200 = vsel %vm1193, %v1174, %v1176
  %v1201 = vsel %vm1193, %v1176, %v1178
  %v1202 = vsel %vm1193, %v1178, %v1180
  %v1203 = vsel %vm1193, %v1180, %v1182
  %v1204 = vsel %vm1193, %v1182, %v1184
  %v1205 = vsel %vm1193, %v1184, %v1186
  %v1206 = vsel %vm1193, %v1186, %v1188
  %v1207 = vsel %vm1193, %v1188, %v1190
  %v1208 = vsel %vm1193, %v1190, %v1192
  %1224 = vst [vmem:[#allocation2 + $0x1e0] sm:$0x80] %v1194
  %1225 = vst [vmem:[#allocation2 + $0x1e8] sm:$0x80] %v1195
  %1226 = vst [vmem:[#allocation2 + $0x1f0] sm:$0x80] %v1196
  %1227 = vst [vmem:[#allocation2 + $0x1f8] sm:$0x80] %v1197
  %1228 = vst [vmem:[#allocation2 + $0x200] sm:$0x80] %v1198
  %1229 = vst [vmem:[#allocation2 + $0x208] sm:$0x80] %v1199
  %1230 = vst [vmem:[#allocation2 + $0x210] sm:$0x80] %v1200
  %1231 = vst [vmem:[#allocation2 + $0x218] sm:$0x80] %v1201
  %1232 = vst [vmem:[#allocation2 + $0x220] sm:$0x80] %v1202
  %1233 = vst [vmem:[#allocation2 + $0x228] sm:$0x80] %v1203
  %1234 = vst [vmem:[#allocation2 + $0x230] sm:$0x80] %v1204
  %1235 = vst [vmem:[#allocation2 + $0x238] sm:$0x80] %v1205
  %1236 = vst [vmem:[#allocation2 + $0x240] sm:$0x80] %v1206
  %1237 = vst [vmem:[#allocation2 + $0x248] sm:$0x80] %v1207
  %1238 = vst.msk [vmem:[#allocation2 + $0x250] sm:$0x80] %vm545, %v1208
  %1239 = vst [vmem:[#allocation2 + $0x258] sm:$0x3] %v1194
  %1240 = vst [vmem:[#allocation2 + $0x260] sm:$0x3] %v1195
  %1241 = vst [vmem:[#allocation2 + $0x268] sm:$0x3] %v1196
  %1242 = vst [vmem:[#allocation2 + $0x270] sm:$0x3] %v1197
  %1243 = vst [vmem:[#allocation2 + $0x278] sm:$0x3] %v1198
  %1244 = vst [vmem:[#allocation2 + $0x280] sm:$0x3] %v1199
  %1245 = vst [vmem:[#allocation2 + $0x288] sm:$0x3] %v1200
  %1246 = vst [vmem:[#allocation2 + $0x290] sm:$0x3] %v1201
  %1247 = vst [vmem:[#allocation2 + $0x298] sm:$0x3] %v1202
  %1248 = vst [vmem:[#allocation2 + $0x2a0] sm:$0x3] %v1203
  %1249 = vst [vmem:[#allocation2 + $0x2a8] sm:$0x3] %v1204
  %1250 = vst [vmem:[#allocation2 + $0x2b0] sm:$0x3] %v1205
  %1251 = vst [vmem:[#allocation2 + $0x2b8] sm:$0x3] %v1206
  %1252 = vst [vmem:[#allocation2 + $0x2c0] sm:$0x3] %v1207
  %1253 = vst.msk [vmem:[#allocation2 + $0x2c8] sm:$0x3] %vm561, %v1208
  %1254 = vrot.lane.b32.xlu0 %v563, 60
  %v1255 = vpop.permute.xlu0 %1254
  %1256 = vrot.lane.b32.xlu0 %v564, 60
  %v1257 = vpop.permute.xlu0 %1256
  %1258 = vrot.lane.b32.xlu0 %v565, 60
  %v1259 = vpop.permute.xlu0 %1258
  %1260 = vrot.lane.b32.xlu0 %v566, 60
  %v1261 = vpop.permute.xlu0 %1260
  %1262 = vrot.lane.b32.xlu0 %v567, 60
  %v1263 = vpop.permute.xlu0 %1262
  %1264 = vrot.lane.b32.xlu0 %v568, 60
  %v1265 = vpop.permute.xlu0 %1264
  %1266 = vrot.lane.b32.xlu0 %v569, 60
  %v1267 = vpop.permute.xlu0 %1266
  %1268 = vrot.lane.b32.xlu0 %v570, 60
  %v1269 = vpop.permute.xlu0 %1268
  %1270 = vrot.lane.b32.xlu0 %v571, 60
  %v1271 = vpop.permute.xlu0 %1270
  %1272 = vrot.lane.b32.xlu0 %v572, 60
  %v1273 = vpop.permute.xlu0 %1272
  %1274 = vrot.lane.b32.xlu0 %v573, 60
  %v1275 = vpop.permute.xlu0 %1274
  %1276 = vrot.lane.b32.xlu0 %v574, 60
  %v1277 = vpop.permute.xlu0 %1276
  %1278 = vrot.lane.b32.xlu0 %v575, 60
  %v1279 = vpop.permute.xlu0 %1278
  %1280 = vrot.lane.b32.xlu0 %v576, 60
  %v1281 = vpop.permute.xlu0 %1280
  %1282 = vrot.lane.b32.xlu0 %v577, 60
  %v1283 = vpop.permute.xlu0 %1282
  %1284 = vrot.lane.b32.xlu0 %v578, 60
  %v1285 = vpop.permute.xlu0 %1284
  %vm1286 = vcmask 490496
  %v1287 = vsel %vm1286, %v1255, %v1257
  %v1288 = vsel %vm1286, %v1257, %v1259
  %v1289 = vsel %vm1286, %v1259, %v1261
  %v1290 = vsel %vm1286, %v1261, %v1263
  %v1291 = vsel %vm1286, %v1263, %v1265
  %v1292 = vsel %vm1286, %v1265, %v1267
  %v1293 = vsel %vm1286, %v1267, %v1269
  %v1294 = vsel %vm1286, %v1269, %v1271
  %v1295 = vsel %vm1286, %v1271, %v1273
  %v1296 = vsel %vm1286, %v1273, %v1275
  %v1297 = vsel %vm1286, %v1275, %v1277
  %v1298 = vsel %vm1286, %v1277, %v1279
  %v1299 = vsel %vm1286, %v1279, %v1281
  %v1300 = vsel %vm1286, %v1281, %v1283
  %v1301 = vsel %vm1286, %v1283, %v1285
  %1317 = vst [vmem:[#allocation2 + $0x258] sm:$0x1c] %v1287
  %1318 = vst [vmem:[#allocation2 + $0x260] sm:$0x1c] %v1288
  %1319 = vst [vmem:[#allocation2 + $0x268] sm:$0x1c] %v1289
  %1320 = vst [vmem:[#allocation2 + $0x270] sm:$0x1c] %v1290
  %1321 = vst [vmem:[#allocation2 + $0x278] sm:$0x1c] %v1291
  %1322 = vst [vmem:[#allocation2 + $0x280] sm:$0x1c] %v1292
  %1323 = vst [vmem:[#allocation2 + $0x288] sm:$0x1c] %v1293
  %1324 = vst [vmem:[#allocation2 + $0x290] sm:$0x1c] %v1294
  %1325 = vst [vmem:[#allocation2 + $0x298] sm:$0x1c] %v1295
  %1326 = vst [vmem:[#allocation2 + $0x2a0] sm:$0x1c] %v1296
  %1327 = vst [vmem:[#allocation2 + $0x2a8] sm:$0x1c] %v1297
  %1328 = vst [vmem:[#allocation2 + $0x2b0] sm:$0x1c] %v1298
  %1329 = vst [vmem:[#allocation2 + $0x2b8] sm:$0x1c] %v1299
  %1330 = vst [vmem:[#allocation2 + $0x2c0] sm:$0x1c] %v1300
  %1331 = vst.msk [vmem:[#allocation2 + $0x2c8] sm:$0x1c] %vm656, %v1301
  %1332 = vrot.lane.b32.xlu0 %v658, 32
  %v1333 = vpop.permute.xlu0 %1332
  %1334 = vrot.lane.b32.xlu0 %v659, 32
  %v1335 = vpop.permute.xlu0 %1334
  %1336 = vrot.lane.b32.xlu0 %v660, 32
  %v1337 = vpop.permute.xlu0 %1336
  %1338 = vrot.lane.b32.xlu0 %v661, 32
  %v1339 = vpop.permute.xlu0 %1338
  %1340 = vrot.lane.b32.xlu0 %v662, 32
  %v1341 = vpop.permute.xlu0 %1340
  %1342 = vrot.lane.b32.xlu0 %v663, 32
  %v1343 = vpop.permute.xlu0 %1342
  %1344 = vrot.lane.b32.xlu0 %v664, 32
  %v1345 = vpop.permute.xlu0 %1344
  %1346 = vrot.lane.b32.xlu0 %v665, 32
  %v1347 = vpop.permute.xlu0 %1346
  %1348 = vrot.lane.b32.xlu0 %v666, 32
  %v1349 = vpop.permute.xlu0 %1348
  %1350 = vrot.lane.b32.xlu0 %v667, 32
  %v1351 = vpop.permute.xlu0 %1350
  %1352 = vrot.lane.b32.xlu0 %v668, 32
  %v1353 = vpop.permute.xlu0 %1352
  %1354 = vrot.lane.b32.xlu0 %v669, 32
  %v1355 = vpop.permute.xlu0 %1354
  %1356 = vrot.lane.b32.xlu0 %v670, 32
  %v1357 = vpop.permute.xlu0 %1356
  %1358 = vrot.lane.b32.xlu0 %v671, 32
  %v1359 = vpop.permute.xlu0 %1358
  %1360 = vrot.lane.b32.xlu0 %v672, 32
  %v1361 = vpop.permute.xlu0 %1360
  %1362 = vrot.lane.b32.xlu0 %v673, 32
  %v1363 = vpop.permute.xlu0 %1362
  %vm1364 = vcmask 261120
  %v1365 = vsel %vm1364, %v1333, %v1335
  %v1366 = vsel %vm1364, %v1335, %v1337
  %v1367 = vsel %vm1364, %v1337, %v1339
  %v1368 = vsel %vm1364, %v1339, %v1341
  %v1369 = vsel %vm1364, %v1341, %v1343
  %v1370 = vsel %vm1364, %v1343, %v1345
  %v1371 = vsel %vm1364, %v1345, %v1347
  %v1372 = vsel %vm1364, %v1347, %v1349
  %v1373 = vsel %vm1364, %v1349, %v1351
  %v1374 = vsel %vm1364, %v1351, %v1353
  %v1375 = vsel %vm1364, %v1353, %v1355
  %v1376 = vsel %vm1364, %v1355, %v1357
  %v1377 = vsel %vm1364, %v1357, %v1359
  %v1378 = vsel %vm1364, %v1359, %v1361
  %v1379 = vsel %vm1364, %v1361, %v1363
  %1395 = vst [vmem:[#allocation2 + $0x258] sm:$0xe0] %v1365
  %1396 = vst [vmem:[#allocation2 + $0x260] sm:$0xe0] %v1366
  %1397 = vst [vmem:[#allocation2 + $0x268] sm:$0xe0] %v1367
  %1398 = vst [vmem:[#allocation2 + $0x270] sm:$0xe0] %v1368
  %1399 = vst [vmem:[#allocation2 + $0x278] sm:$0xe0] %v1369
  %1400 = vst [vmem:[#allocation2 + $0x280] sm:$0xe0] %v1370
  %1401 = vst [vmem:[#allocation2 + $0x288] sm:$0xe0] %v1371
  %1402 = vst [vmem:[#allocation2 + $0x290] sm:$0xe0] %v1372
  %1403 = vst [vmem:[#allocation2 + $0x298] sm:$0xe0] %v1373
  %1404 = vst [vmem:[#allocation2 + $0x2a0] sm:$0xe0] %v1374
  %1405 = vst [vmem:[#allocation2 + $0x2a8] sm:$0xe0] %v1375
  %1406 = vst [vmem:[#allocation2 + $0x2b0] sm:$0xe0] %v1376
  %1407 = vst [vmem:[#allocation2 + $0x2b8] sm:$0xe0] %v1377
  %1408 = vst [vmem:[#allocation2 + $0x2c0] sm:$0xe0] %v1378
  %1409 = vst.msk [vmem:[#allocation2 + $0x2c8] sm:$0xe0] %vm751, %v1379
  %1410 = vrot.lane.b32.xlu0 %v32, 31
  %v1411 = vpop.permute.xlu0 %1410
  %1412 = vrot.lane.b32.xlu0 %v48, 31
  %v1413 = vpop.permute.xlu0 %1412
  %1414 = vrot.lane.b32.xlu0 %v33, 31
  %v1415 = vpop.permute.xlu0 %1414
  %1416 = vrot.lane.b32.xlu0 %v49, 31
  %v1417 = vpop.permute.xlu0 %1416
  %1418 = vrot.lane.b32.xlu0 %v34, 31
  %v1419 = vpop.permute.xlu0 %1418
  %1420 = vrot.lane.b32.xlu0 %v50, 31
  %v1421 = vpop.permute.xlu0 %1420
  %1422 = vrot.lane.b32.xlu0 %v35, 31
  %v1423 = vpop.permute.xlu0 %1422
  %1424 = vrot.lane.b32.xlu0 %v51, 31
  %v1425 = vpop.permute.xlu0 %1424
  %1426 = vrot.lane.b32.xlu0 %v36, 31
  %v1427 = vpop.permute.xlu0 %1426
  %1428 = vrot.lane.b32.xlu0 %v52, 31
  %v1429 = vpop.permute.xlu0 %1428
  %1430 = vrot.lane.b32.xlu0 %v37, 31
  %v1431 = vpop.permute.xlu0 %1430
  %1432 = vrot.lane.b32.xlu0 %v53, 31
  %v1433 = vpop.permute.xlu0 %1432
  %1434 = vrot.lane.b32.xlu0 %v38, 31
  %v1435 = vpop.permute.xlu0 %1434
  %1436 = vrot.lane.b32.xlu0 %v54, 31
  %v1437 = vpop.permute.xlu0 %1436
  %1438 = vrot.lane.b32.xlu0 %v39, 31
  %v1439 = vpop.permute.xlu0 %1438
  %1440 = vrot.lane.b32.xlu0 %v451, 31
  %v1441 = vpop.permute.xlu0 %1440
  %vm1442 = vcmask 252928
  %v1443 = vsel %vm1442, %v1411, %v1413
  %v1444 = vsel %vm1442, %v1413, %v1415
  %v1445 = vsel %vm1442, %v1415, %v1417
  %v1446 = vsel %vm1442, %v1417, %v1419
  %v1447 = vsel %vm1442, %v1419, %v1421
  %v1448 = vsel %vm1442, %v1421, %v1423
  %v1449 = vsel %vm1442, %v1423, %v1425
  %v1450 = vsel %vm1442, %v1425, %v1427
  %v1451 = vsel %vm1442, %v1427, %v1429
  %v1452 = vsel %vm1442, %v1429, %v1431
  %v1453 = vsel %vm1442, %v1431, %v1433
  %v1454 = vsel %vm1442, %v1433, %v1435
  %v1455 = vsel %vm1442, %v1435, %v1437
  %v1456 = vsel %vm1442, %v1437, %v1439
  %v1457 = vsel %vm1442, %v1439, %v1441
  %1473 = vst [vmem:[#allocation2 + $0x2d0] sm:$0x7] %v1443
  %1474 = vst [vmem:[#allocation2 + $0x2d8] sm:$0x7] %v1444
  %1475 = vst [vmem:[#allocation2 + $0x2e0] sm:$0x7] %v1445
  %1476 = vst [vmem:[#allocation2 + $0x2e8] sm:$0x7] %v1446
  %1477 = vst [vmem:[#allocation2 + $0x2f0] sm:$0x7] %v1447
  %1478 = vst [vmem:[#allocation2 + $0x2f8] sm:$0x7] %v1448
  %1479 = vst [vmem:[#allocation2 + $0x300] sm:$0x7] %v1449
  %1480 = vst [vmem:[#allocation2 + $0x308] sm:$0x7] %v1450
  %1481 = vst [vmem:[#allocation2 + $0x310] sm:$0x7] %v1451
  %1482 = vst [vmem:[#allocation2 + $0x318] sm:$0x7] %v1452
  %1483 = vst [vmem:[#allocation2 + $0x320] sm:$0x7] %v1453
  %1484 = vst [vmem:[#allocation2 + $0x328] sm:$0x7] %v1454
  %1485 = vst [vmem:[#allocation2 + $0x330] sm:$0x7] %v1455
  %1486 = vst [vmem:[#allocation2 + $0x338] sm:$0x7] %v1456
  %1487 = vst.msk [vmem:[#allocation2 + $0x340] sm:$0x7] %vm76, %v1457
  %1488 = vrot.lane.b32.xlu0 %v78, 30
  %v1489 = vpop.permute.xlu0 %1488
  %1490 = vrot.lane.b32.xlu0 %v79, 30
  %v1491 = vpop.permute.xlu0 %1490
  %1492 = vrot.lane.b32.xlu0 %v80, 30
  %v1493 = vpop.permute.xlu0 %1492
  %1494 = vrot.lane.b32.xlu0 %v81, 30
  %v1495 = vpop.permute.xlu0 %1494
  %1496 = vrot.lane.b32.xlu0 %v82, 30
  %v1497 = vpop.permute.xlu0 %1496
  %1498 = vrot.lane.b32.xlu0 %v83, 30
  %v1499 = vpop.permute.xlu0 %1498
  %1500 = vrot.lane.b32.xlu0 %v84, 30
  %v1501 = vpop.permute.xlu0 %1500
  %1502 = vrot.lane.b32.xlu0 %v85, 30
  %v1503 = vpop.permute.xlu0 %1502
  %1504 = vrot.lane.b32.xlu0 %v86, 30
  %v1505 = vpop.permute.xlu0 %1504
  %1506 = vrot.lane.b32.xlu0 %v87, 30
  %v1507 = vpop.permute.xlu0 %1506
  %1508 = vrot.lane.b32.xlu0 %v88, 30
  %v1509 = vpop.permute.xlu0 %1508
  %1510 = vrot.lane.b32.xlu0 %v89, 30
  %v1511 = vpop.permute.xlu0 %1510
  %1512 = vrot.lane.b32.xlu0 %v90, 30
  %v1513 = vpop.permute.xlu0 %1512
  %1514 = vrot.lane.b32.xlu0 %v91, 30
  %v1515 = vpop.permute.xlu0 %1514
  %1516 = vrot.lane.b32.xlu0 %v92, 30
  %v1517 = vpop.permute.xlu0 %1516
  %1518 = vrot.lane.b32.xlu0 %v831, 30
  %v1519 = vpop.permute.xlu0 %1518
  %vm1520 = vcmask 244736
  %v1521 = vsel %vm1520, %v1489, %v1491
  %v1522 = vsel %vm1520, %v1491, %v1493
  %v1523 = vsel %vm1520, %v1493, %v1495
  %v1524 = vsel %vm1520, %v1495, %v1497
  %v1525 = vsel %vm1520, %v1497, %v1499
  %v1526 = vsel %vm1520, %v1499, %v1501
  %v1527 = vsel %vm1520, %v1501, %v1503
  %v1528 = vsel %vm1520, %v1503, %v1505
  %v1529 = vsel %vm1520, %v1505, %v1507
  %v1530 = vsel %vm1520, %v1507, %v1509
  %v1531 = vsel %vm1520, %v1509, %v1511
  %v1532 = vsel %vm1520, %v1511, %v1513
  %v1533 = vsel %vm1520, %v1513, %v1515
  %v1534 = vsel %vm1520, %v1515, %v1517
  %v1535 = vsel %vm1520, %v1517, %v1519
  %1551 = vst [vmem:[#allocation2 + $0x2d0] sm:$0x38] %v1521
  %1552 = vst [vmem:[#allocation2 + $0x2d8] sm:$0x38] %v1522
  %1553 = vst [vmem:[#allocation2 + $0x2e0] sm:$0x38] %v1523
  %1554 = vst [vmem:[#allocation2 + $0x2e8] sm:$0x38] %v1524
  %1555 = vst [vmem:[#allocation2 + $0x2f0] sm:$0x38] %v1525
  %1556 = vst [vmem:[#allocation2 + $0x2f8] sm:$0x38] %v1526
  %1557 = vst [vmem:[#allocation2 + $0x300] sm:$0x38] %v1527
  %1558 = vst [vmem:[#allocation2 + $0x308] sm:$0x38] %v1528
  %1559 = vst [vmem:[#allocation2 + $0x310] sm:$0x38] %v1529
  %1560 = vst [vmem:[#allocation2 + $0x318] sm:$0x38] %v1530
  %1561 = vst [vmem:[#allocation2 + $0x320] sm:$0x38] %v1531
  %1562 = vst [vmem:[#allocation2 + $0x328] sm:$0x38] %v1532
  %1563 = vst [vmem:[#allocation2 + $0x330] sm:$0x38] %v1533
  %1564 = vst [vmem:[#allocation2 + $0x338] sm:$0x38] %v1534
  %1565 = vst.msk [vmem:[#allocation2 + $0x340] sm:$0x38] %vm167, %v1535
  %1566 = vrot.lane.b32.xlu0 %v169, 29
  %v1567 = vpop.permute.xlu0 %1566
  %1568 = vrot.lane.b32.xlu0 %v170, 29
  %v1569 = vpop.permute.xlu0 %1568
  %1570 = vrot.lane.b32.xlu0 %v171, 29
  %v1571 = vpop.permute.xlu0 %1570
  %1572 = vrot.lane.b32.xlu0 %v172, 29
  %v1573 = vpop.permute.xlu0 %1572
  %1574 = vrot.lane.b32.xlu0 %v173, 29
  %v1575 = vpop.permute.xlu0 %1574
  %1576 = vrot.lane.b32.xlu0 %v174, 29
  %v1577 = vpop.permute.xlu0 %1576
  %1578 = vrot.lane.b32.xlu0 %v175, 29
  %v1579 = vpop.permute.xlu0 %1578
  %1580 = vrot.lane.b32.xlu0 %v176, 29
  %v1581 = vpop.permute.xlu0 %1580
  %1582 = vrot.lane.b32.xlu0 %v177, 29
  %v1583 = vpop.permute.xlu0 %1582
  %1584 = vrot.lane.b32.xlu0 %v178, 29
  %v1585 = vpop.permute.xlu0 %1584
  %1586 = vrot.lane.b32.xlu0 %v179, 29
  %v1587 = vpop.permute.xlu0 %1586
  %1588 = vrot.lane.b32.xlu0 %v180, 29
  %v1589 = vpop.permute.xlu0 %1588
  %1590 = vrot.lane.b32.xlu0 %v181, 29
  %v1591 = vpop.permute.xlu0 %1590
  %1592 = vrot.lane.b32.xlu0 %v182, 29
  %v1593 = vpop.permute.xlu0 %1592
  %1594 = vrot.lane.b32.xlu0 %v183, 29
  %v1595 = vpop.permute.xlu0 %1594
  %1596 = vrot.lane.b32.xlu0 %v910, 29
  %v1597 = vpop.permute.xlu0 %1596
  %vm1598 = vcmask 236544
  %v1599 = vsel %vm1598, %v1567, %v1569
  %v1600 = vsel %vm1598, %v1569, %v1571
  %v1601 = vsel %vm1598, %v1571, %v1573
  %v1602 = vsel %vm1598, %v1573, %v1575
  %v1603 = vsel %vm1598, %v1575, %v1577
  %v1604 = vsel %vm1598, %v1577, %v1579
  %v1605 = vsel %vm1598, %v1579, %v1581
  %v1606 = vsel %vm1598, %v1581, %v1583
  %v1607 = vsel %vm1598, %v1583, %v1585
  %v1608 = vsel %vm1598, %v1585, %v1587
  %v1609 = vsel %vm1598, %v1587, %v1589
  %v1610 = vsel %vm1598, %v1589, %v1591
  %v1611 = vsel %vm1598, %v1591, %v1593
  %v1612 = vsel %vm1598, %v1593, %v1595
  %v1613 = vsel %vm1598, %v1595, %v1597
  %1629 = vst [vmem:[#allocation2 + $0x2d0] sm:$0xc0] %v1599
  %1630 = vst [vmem:[#allocation2 + $0x2d8] sm:$0xc0] %v1600
  %1631 = vst [vmem:[#allocation2 + $0x2e0] sm:$0xc0] %v1601
  %1632 = vst [vmem:[#allocation2 + $0x2e8] sm:$0xc0] %v1602
  %1633 = vst [vmem:[#allocation2 + $0x2f0] sm:$0xc0] %v1603
  %1634 = vst [vmem:[#allocation2 + $0x2f8] sm:$0xc0] %v1604
  %1635 = vst [vmem:[#allocation2 + $0x300] sm:$0xc0] %v1605
  %1636 = vst [vmem:[#allocation2 + $0x308] sm:$0xc0] %v1606
  %1637 = vst [vmem:[#allocation2 + $0x310] sm:$0xc0] %v1607
  %1638 = vst [vmem:[#allocation2 + $0x318] sm:$0xc0] %v1608
  %1639 = vst [vmem:[#allocation2 + $0x320] sm:$0xc0] %v1609
  %1640 = vst [vmem:[#allocation2 + $0x328] sm:$0xc0] %v1610
  %1641 = vst [vmem:[#allocation2 + $0x330] sm:$0xc0] %v1611
  %1642 = vst [vmem:[#allocation2 + $0x338] sm:$0xc0] %v1612
  %1643 = vst.msk [vmem:[#allocation2 + $0x340] sm:$0xc0] %vm258, %v1613
  %1644 = vst [vmem:[#allocation2 + $0x348] sm:$0x1] %v1599
  %1645 = vst [vmem:[#allocation2 + $0x350] sm:$0x1] %v1600
  %1646 = vst [vmem:[#allocation2 + $0x358] sm:$0x1] %v1601
  %1647 = vst [vmem:[#allocation2 + $0x360] sm:$0x1] %v1602
  %1648 = vst [vmem:[#allocation2 + $0x368] sm:$0x1] %v1603
  %1649 = vst [vmem:[#allocation2 + $0x370] sm:$0x1] %v1604
  %1650 = vst [vmem:[#allocation2 + $0x378] sm:$0x1] %v1605
  %1651 = vst [vmem:[#allocation2 + $0x380] sm:$0x1] %v1606
  %1652 = vst [vmem:[#allocation2 + $0x388] sm:$0x1] %v1607
  %1653 = vst [vmem:[#allocation2 + $0x390] sm:$0x1] %v1608
  %1654 = vst [vmem:[#allocation2 + $0x398] sm:$0x1] %v1609
  %1655 = vst [vmem:[#allocation2 + $0x3a0] sm:$0x1] %v1610
  %1656 = vst [vmem:[#allocation2 + $0x3a8] sm:$0x1] %v1611
  %1657 = vst [vmem:[#allocation2 + $0x3b0] sm:$0x1] %v1612
  %1658 = vst.msk [vmem:[#allocation2 + $0x3b8] sm:$0x1] %vm274, %v1613
  %1659 = vrot.lane.b32.xlu0 %v276, 28
  %v1660 = vpop.permute.xlu0 %1659
  %1661 = vrot.lane.b32.xlu0 %v277, 28
  %v1662 = vpop.permute.xlu0 %1661
  %1663 = vrot.lane.b32.xlu0 %v278, 28
  %v1664 = vpop.permute.xlu0 %1663
  %1665 = vrot.lane.b32.xlu0 %v279, 28
  %v1666 = vpop.permute.xlu0 %1665
  %1667 = vrot.lane.b32.xlu0 %v280, 28
  %v1668 = vpop.permute.xlu0 %1667
  %1669 = vrot.lane.b32.xlu0 %v281, 28
  %v1670 = vpop.permute.xlu0 %1669
  %1671 = vrot.lane.b32.xlu0 %v282, 28
  %v1672 = vpop.permute.xlu0 %1671
  %1673 = vrot.lane.b32.xlu0 %v283, 28
  %v1674 = vpop.permute.xlu0 %1673
  %1675 = vrot.lane.b32.xlu0 %v284, 28
  %v1676 = vpop.permute.xlu0 %1675
  %1677 = vrot.lane.b32.xlu0 %v285, 28
  %v1678 = vpop.permute.xlu0 %1677
  %1679 = vrot.lane.b32.xlu0 %v286, 28
  %v1680 = vpop.permute.xlu0 %1679
  %1681 = vrot.lane.b32.xlu0 %v287, 28
  %v1682 = vpop.permute.xlu0 %1681
  %1683 = vrot.lane.b32.xlu0 %v288, 28
  %v1684 = vpop.permute.xlu0 %1683
  %1685 = vrot.lane.b32.xlu0 %v289, 28
  %v1686 = vpop.permute.xlu0 %1685
  %1687 = vrot.lane.b32.xlu0 %v290, 28
  %v1688 = vpop.permute.xlu0 %1687
  %1689 = vrot.lane.b32.xlu0 %v1004, 28
  %v1690 = vpop.permute.xlu0 %1689
  %vm1691 = vcmask 228352
  %v1692 = vsel %vm1691, %v1660, %v1662
  %v1693 = vsel %vm1691, %v1662, %v1664
  %v1694 = vsel %vm1691, %v1664, %v1666
  %v1695 = vsel %vm1691, %v1666, %v1668
  %v1696 = vsel %vm1691, %v1668, %v1670
  %v1697 = vsel %vm1691, %v1670, %v1672
  %v1698 = vsel %vm1691, %v1672, %v1674
  %v1699 = vsel %vm1691, %v1674, %v1676
  %v1700 = vsel %vm1691, %v1676, %v1678
  %v1701 = vsel %vm1691, %v1678, %v1680
  %v1702 = vsel %vm1691, %v1680, %v1682
  %v1703 = vsel %vm1691, %v1682, %v1684
  %v1704 = vsel %vm1691, %v1684, %v1686
  %v1705 = vsel %vm1691, %v1686, %v1688
  %v1706 = vsel %vm1691, %v1688, %v1690
  %1722 = vst [vmem:[#allocation2 + $0x348] sm:$0xe] %v1692
  %1723 = vst [vmem:[#allocation2 + $0x350] sm:$0xe] %v1693
  %1724 = vst [vmem:[#allocation2 + $0x358] sm:$0xe] %v1694
  %1725 = vst [vmem:[#allocation2 + $0x360] sm:$0xe] %v1695
  %1726 = vst [vmem:[#allocation2 + $0x368] sm:$0xe] %v1696
  %1727 = vst [vmem:[#allocation2 + $0x370] sm:$0xe] %v1697
  %1728 = vst [vmem:[#allocation2 + $0x378] sm:$0xe] %v1698
  %1729 = vst [vmem:[#allocation2 + $0x380] sm:$0xe] %v1699
  %1730 = vst [vmem:[#allocation2 + $0x388] sm:$0xe] %v1700
  %1731 = vst [vmem:[#allocation2 + $0x390] sm:$0xe] %v1701
  %1732 = vst [vmem:[#allocation2 + $0x398] sm:$0xe] %v1702
  %1733 = vst [vmem:[#allocation2 + $0x3a0] sm:$0xe] %v1703
  %1734 = vst [vmem:[#allocation2 + $0x3a8] sm:$0xe] %v1704
  %1735 = vst [vmem:[#allocation2 + $0x3b0] sm:$0xe] %v1705
  %1736 = vst.msk [vmem:[#allocation2 + $0x3b8] sm:$0xe] %vm365, %v1706
  %1744 = vst [vmem:[#allocation2 + $0x348] sm:$0x70] %v32
  %1745 = vst [vmem:[#allocation2 + $0x350] sm:$0x70] %v368
  %1746 = vst [vmem:[#allocation2 + $0x358] sm:$0x70] %v33
  %1747 = vst [vmem:[#allocation2 + $0x360] sm:$0x70] %v369
  %1748 = vst [vmem:[#allocation2 + $0x368] sm:$0x70] %v34
  %1749 = vst [vmem:[#allocation2 + $0x370] sm:$0x70] %v370
  %1750 = vst [vmem:[#allocation2 + $0x378] sm:$0x70] %v35
  %1751 = vst [vmem:[#allocation2 + $0x380] sm:$0x70] %v371
  %1752 = vst [vmem:[#allocation2 + $0x388] sm:$0x70] %v36
  %1753 = vst [vmem:[#allocation2 + $0x390] sm:$0x70] %v372
  %1754 = vst [vmem:[#allocation2 + $0x398] sm:$0x70] %v37
  %1755 = vst [vmem:[#allocation2 + $0x3a0] sm:$0x70] %v373
  %1756 = vst [vmem:[#allocation2 + $0x3a8] sm:$0x70] %v38
  %1757 = vst [vmem:[#allocation2 + $0x3b0] sm:$0x70] %v374
  %1758 = vst.msk [vmem:[#allocation2 + $0x3b8] sm:$0x70] %vm449, %v39
  %1759 = vrot.lane.b32.xlu0 %v453, 127
  %v1760 = vpop.permute.xlu0 %1759
  %1761 = vrot.lane.b32.xlu0 %v454, 127
  %v1762 = vpop.permute.xlu0 %1761
  %1763 = vrot.lane.b32.xlu0 %v455, 127
  %v1764 = vpop.permute.xlu0 %1763
  %1765 = vrot.lane.b32.xlu0 %v456, 127
  %v1766 = vpop.permute.xlu0 %1765
  %1767 = vrot.lane.b32.xlu0 %v457, 127
  %v1768 = vpop.permute.xlu0 %1767
  %1769 = vrot.lane.b32.xlu0 %v458, 127
  %v1770 = vpop.permute.xlu0 %1769
  %1771 = vrot.lane.b32.xlu0 %v459, 127
  %v1772 = vpop.permute.xlu0 %1771
  %1773 = vrot.lane.b32.xlu0 %v460, 127
  %v1774 = vpop.permute.xlu0 %1773
  %1775 = vrot.lane.b32.xlu0 %v461, 127
  %v1776 = vpop.permute.xlu0 %1775
  %1777 = vrot.lane.b32.xlu0 %v462, 127
  %v1778 = vpop.permute.xlu0 %1777
  %1779 = vrot.lane.b32.xlu0 %v463, 127
  %v1780 = vpop.permute.xlu0 %1779
  %1781 = vrot.lane.b32.xlu0 %v464, 127
  %v1782 = vpop.permute.xlu0 %1781
  %1783 = vrot.lane.b32.xlu0 %v465, 127
  %v1784 = vpop.permute.xlu0 %1783
  %1785 = vrot.lane.b32.xlu0 %v466, 127
  %v1786 = vpop.permute.xlu0 %1785
  %1787 = vrot.lane.b32.xlu0 %v467, 127
  %v1788 = vpop.permute.xlu0 %1787
  %v1789 = vsel %vm123, %v1760, %v1762
  %v1790 = vsel %vm123, %v1762, %v1764
  %v1791 = vsel %vm123, %v1764, %v1766
  %v1792 = vsel %vm123, %v1766, %v1768
  %v1793 = vsel %vm123, %v1768, %v1770
  %v1794 = vsel %vm123, %v1770, %v1772
  %v1795 = vsel %vm123, %v1772, %v1774
  %v1796 = vsel %vm123, %v1774, %v1776
  %v1797 = vsel %vm123, %v1776, %v1778
  %v1798 = vsel %vm123, %v1778, %v1780
  %v1799 = vsel %vm123, %v1780, %v1782
  %v1800 = vsel %vm123, %v1782, %v1784
  %v1801 = vsel %vm123, %v1784, %v1786
  %v1802 = vsel %vm123, %v1786, %v1788
  %1818 = vst [vmem:[#allocation2 + $0x348] sm:$0x80] %v1789
  %1819 = vst [vmem:[#allocation2 + $0x350] sm:$0x80] %v1790
  %1820 = vst [vmem:[#allocation2 + $0x358] sm:$0x80] %v1791
  %1821 = vst [vmem:[#allocation2 + $0x360] sm:$0x80] %v1792
  %1822 = vst [vmem:[#allocation2 + $0x368] sm:$0x80] %v1793
  %1823 = vst [vmem:[#allocation2 + $0x370] sm:$0x80] %v1794
  %1824 = vst [vmem:[#allocation2 + $0x378] sm:$0x80] %v1795
  %1825 = vst [vmem:[#allocation2 + $0x380] sm:$0x80] %v1796
  %1826 = vst [vmem:[#allocation2 + $0x388] sm:$0x80] %v1797
  %1827 = vst [vmem:[#allocation2 + $0x390] sm:$0x80] %v1798
  %1828 = vst [vmem:[#allocation2 + $0x398] sm:$0x80] %v1799
  %1829 = vst [vmem:[#allocation2 + $0x3a0] sm:$0x80] %v1800
  %1830 = vst [vmem:[#allocation2 + $0x3a8] sm:$0x80] %v1801
  %1831 = vst [vmem:[#allocation2 + $0x3b0] sm:$0x80] %v1802
  %1832 = vst.msk [vmem:[#allocation2 + $0x3b8] sm:$0x80] %vm545, %v1788
  %1833 = vst [vmem:[#allocation2 + $0x3c0] sm:$0x3] %v1789
  %1834 = vst [vmem:[#allocation2 + $0x3c8] sm:$0x3] %v1790
  %1835 = vst [vmem:[#allocation2 + $0x3d0] sm:$0x3] %v1791
  %1836 = vst [vmem:[#allocation2 + $0x3d8] sm:$0x3] %v1792
  %1837 = vst [vmem:[#allocation2 + $0x3e0] sm:$0x3] %v1793
  %1838 = vst [vmem:[#allocation2 + $0x3e8] sm:$0x3] %v1794
  %1839 = vst [vmem:[#allocation2 + $0x3f0] sm:$0x3] %v1795
  %1840 = vst [vmem:[#allocation2 + $0x3f8] sm:$0x3] %v1796
  %1841 = vst [vmem:[#allocation2 + $0x400] sm:$0x3] %v1797
  %1842 = vst [vmem:[#allocation2 + $0x408] sm:$0x3] %v1798
  %1843 = vst [vmem:[#allocation2 + $0x410] sm:$0x3] %v1799
  %1844 = vst [vmem:[#allocation2 + $0x418] sm:$0x3] %v1800
  %1845 = vst [vmem:[#allocation2 + $0x420] sm:$0x3] %v1801
  %1846 = vst [vmem:[#allocation2 + $0x428] sm:$0x3] %v1802
  %1847 = vst.msk [vmem:[#allocation2 + $0x430] sm:$0x3] %vm561, %v1788
  %1848 = vrot.lane.b32.xlu0 %v564, 126
  %v1849 = vpop.permute.xlu0 %1848
  %1850 = vrot.lane.b32.xlu0 %v565, 126
  %v1851 = vpop.permute.xlu0 %1850
  %1852 = vrot.lane.b32.xlu0 %v566, 126
  %v1853 = vpop.permute.xlu0 %1852
  %1854 = vrot.lane.b32.xlu0 %v567, 126
  %v1855 = vpop.permute.xlu0 %1854
  %1856 = vrot.lane.b32.xlu0 %v568, 126
  %v1857 = vpop.permute.xlu0 %1856
  %1858 = vrot.lane.b32.xlu0 %v569, 126
  %v1859 = vpop.permute.xlu0 %1858
  %1860 = vrot.lane.b32.xlu0 %v570, 126
  %v1861 = vpop.permute.xlu0 %1860
  %1862 = vrot.lane.b32.xlu0 %v571, 126
  %v1863 = vpop.permute.xlu0 %1862
  %1864 = vrot.lane.b32.xlu0 %v572, 126
  %v1865 = vpop.permute.xlu0 %1864
  %1866 = vrot.lane.b32.xlu0 %v573, 126
  %v1867 = vpop.permute.xlu0 %1866
  %1868 = vrot.lane.b32.xlu0 %v574, 126
  %v1869 = vpop.permute.xlu0 %1868
  %1870 = vrot.lane.b32.xlu0 %v575, 126
  %v1871 = vpop.permute.xlu0 %1870
  %1872 = vrot.lane.b32.xlu0 %v576, 126
  %v1873 = vpop.permute.xlu0 %1872
  %1874 = vrot.lane.b32.xlu0 %v577, 126
  %v1875 = vpop.permute.xlu0 %1874
  %1876 = vrot.lane.b32.xlu0 %v578, 126
  %v1877 = vpop.permute.xlu0 %1876
  %v1878 = vsel %vm214, %v1849, %v1851
  %v1879 = vsel %vm214, %v1851, %v1853
  %v1880 = vsel %vm214, %v1853, %v1855
  %v1881 = vsel %vm214, %v1855, %v1857
  %v1882 = vsel %vm214, %v1857, %v1859
  %v1883 = vsel %vm214, %v1859, %v1861
  %v1884 = vsel %vm214, %v1861, %v1863
  %v1885 = vsel %vm214, %v1863, %v1865
  %v1886 = vsel %vm214, %v1865, %v1867
  %v1887 = vsel %vm214, %v1867, %v1869
  %v1888 = vsel %vm214, %v1869, %v1871
  %v1889 = vsel %vm214, %v1871, %v1873
  %v1890 = vsel %vm214, %v1873, %v1875
  %v1891 = vsel %vm214, %v1875, %v1877
  %1907 = vst [vmem:[#allocation2 + $0x3c0] sm:$0x1c] %v1878
  %1908 = vst [vmem:[#allocation2 + $0x3c8] sm:$0x1c] %v1879
  %1909 = vst [vmem:[#allocation2 + $0x3d0] sm:$0x1c] %v1880
  %1910 = vst [vmem:[#allocation2 + $0x3d8] sm:$0x1c] %v1881
  %1911 = vst [vmem:[#allocation2 + $0x3e0] sm:$0x1c] %v1882
  %1912 = vst [vmem:[#allocation2 + $0x3e8] sm:$0x1c] %v1883
  %1913 = vst [vmem:[#allocation2 + $0x3f0] sm:$0x1c] %v1884
  %1914 = vst [vmem:[#allocation2 + $0x3f8] sm:$0x1c] %v1885
  %1915 = vst [vmem:[#allocation2 + $0x400] sm:$0x1c] %v1886
  %1916 = vst [vmem:[#allocation2 + $0x408] sm:$0x1c] %v1887
  %1917 = vst [vmem:[#allocation2 + $0x410] sm:$0x1c] %v1888
  %1918 = vst [vmem:[#allocation2 + $0x418] sm:$0x1c] %v1889
  %1919 = vst [vmem:[#allocation2 + $0x420] sm:$0x1c] %v1890
  %1920 = vst [vmem:[#allocation2 + $0x428] sm:$0x1c] %v1891
  %1921 = vst.msk [vmem:[#allocation2 + $0x430] sm:$0x1c] %vm656, %v1877
  %1922 = vrot.lane.b32.xlu0 %v659, 125
  %v1923 = vpop.permute.xlu0 %1922
  %1924 = vrot.lane.b32.xlu0 %v660, 125
  %v1925 = vpop.permute.xlu0 %1924
  %1926 = vrot.lane.b32.xlu0 %v661, 125
  %v1927 = vpop.permute.xlu0 %1926
  %1928 = vrot.lane.b32.xlu0 %v662, 125
  %v1929 = vpop.permute.xlu0 %1928
  %1930 = vrot.lane.b32.xlu0 %v663, 125
  %v1931 = vpop.permute.xlu0 %1930
  %1932 = vrot.lane.b32.xlu0 %v664, 125
  %v1933 = vpop.permute.xlu0 %1932
  %1934 = vrot.lane.b32.xlu0 %v665, 125
  %v1935 = vpop.permute.xlu0 %1934
  %1936 = vrot.lane.b32.xlu0 %v666, 125
  %v1937 = vpop.permute.xlu0 %1936
  %1938 = vrot.lane.b32.xlu0 %v667, 125
  %v1939 = vpop.permute.xlu0 %1938
  %1940 = vrot.lane.b32.xlu0 %v668, 125
  %v1941 = vpop.permute.xlu0 %1940
  %1942 = vrot.lane.b32.xlu0 %v669, 125
  %v1943 = vpop.permute.xlu0 %1942
  %1944 = vrot.lane.b32.xlu0 %v670, 125
  %v1945 = vpop.permute.xlu0 %1944
  %1946 = vrot.lane.b32.xlu0 %v671, 125
  %v1947 = vpop.permute.xlu0 %1946
  %1948 = vrot.lane.b32.xlu0 %v672, 125
  %v1949 = vpop.permute.xlu0 %1948
  %1950 = vrot.lane.b32.xlu0 %v673, 125
  %v1951 = vpop.permute.xlu0 %1950
  %v1952 = vsel %vm321, %v1923, %v1925
  %v1953 = vsel %vm321, %v1925, %v1927
  %v1954 = vsel %vm321, %v1927, %v1929
  %v1955 = vsel %vm321, %v1929, %v1931
  %v1956 = vsel %vm321, %v1931, %v1933
  %v1957 = vsel %vm321, %v1933, %v1935
  %v1958 = vsel %vm321, %v1935, %v1937
  %v1959 = vsel %vm321, %v1937, %v1939
  %v1960 = vsel %vm321, %v1939, %v1941
  %v1961 = vsel %vm321, %v1941, %v1943
  %v1962 = vsel %vm321, %v1943, %v1945
  %v1963 = vsel %vm321, %v1945, %v1947
  %v1964 = vsel %vm321, %v1947, %v1949
  %v1965 = vsel %vm321, %v1949, %v1951
  %1981 = vst [vmem:[#allocation2 + $0x3c0] sm:$0xe0] %v1952
  %1982 = vst [vmem:[#allocation2 + $0x3c8] sm:$0xe0] %v1953
  %1983 = vst [vmem:[#allocation2 + $0x3d0] sm:$0xe0] %v1954
  %1984 = vst [vmem:[#allocation2 + $0x3d8] sm:$0xe0] %v1955
  %1985 = vst [vmem:[#allocation2 + $0x3e0] sm:$0xe0] %v1956
  %1986 = vst [vmem:[#allocation2 + $0x3e8] sm:$0xe0] %v1957
  %1987 = vst [vmem:[#allocation2 + $0x3f0] sm:$0xe0] %v1958
  %1988 = vst [vmem:[#allocation2 + $0x3f8] sm:$0xe0] %v1959
  %1989 = vst [vmem:[#allocation2 + $0x400] sm:$0xe0] %v1960
  %1990 = vst [vmem:[#allocation2 + $0x408] sm:$0xe0] %v1961
  %1991 = vst [vmem:[#allocation2 + $0x410] sm:$0xe0] %v1962
  %1992 = vst [vmem:[#allocation2 + $0x418] sm:$0xe0] %v1963
  %1993 = vst [vmem:[#allocation2 + $0x420] sm:$0xe0] %v1964
  %1994 = vst [vmem:[#allocation2 + $0x428] sm:$0xe0] %v1965
  %1995 = vst.msk [vmem:[#allocation2 + $0x430] sm:$0xe0] %vm751, %v1951
  %1996 = vrot.lane.b32.xlu0 %v48, 124
  %v1997 = vpop.permute.xlu0 %1996
  %1998 = vrot.lane.b32.xlu0 %v49, 124
  %v1999 = vpop.permute.xlu0 %1998
  %2000 = vrot.lane.b32.xlu0 %v50, 124
  %v2001 = vpop.permute.xlu0 %2000
  %2002 = vrot.lane.b32.xlu0 %v51, 124
  %v2003 = vpop.permute.xlu0 %2002
  %2004 = vrot.lane.b32.xlu0 %v52, 124
  %v2005 = vpop.permute.xlu0 %2004
  %2006 = vrot.lane.b32.xlu0 %v53, 124
  %v2007 = vpop.permute.xlu0 %2006
  %2008 = vrot.lane.b32.xlu0 %v54, 124
  %v2009 = vpop.permute.xlu0 %2008
  %2010 = vrot.lane.b32.xlu0 %v39, 124
  %v2011 = vpop.permute.xlu0 %2010
  %2012 = vrot.lane.b32.xlu0 %v451, 124
  %v2013 = vpop.permute.xlu0 %2012
  %v2014 = vsel %vm405, %v1997, %v382
  %v2015 = vsel %vm405, %v382, %v1999
  %v2016 = vsel %vm405, %v1999, %v386
  %v2017 = vsel %vm405, %v386, %v2001
  %v2018 = vsel %vm405, %v2001, %v390
  %v2019 = vsel %vm405, %v390, %v2003
  %v2020 = vsel %vm405, %v2003, %v394
  %v2021 = vsel %vm405, %v394, %v2005
  %v2022 = vsel %vm405, %v2005, %v398
  %v2023 = vsel %vm405, %v398, %v2007
  %v2024 = vsel %vm405, %v2007, %v402
  %v2025 = vsel %vm405, %v402, %v2009
  %v2026 = vsel %vm405, %v2009, %v2011
  %v2027 = vsel %vm405, %v2011, %v2013
  %2043 = vst [vmem:[#allocation2 + $0x438] sm:$0x7] %v2014
  %2044 = vst [vmem:[#allocation2 + $0x440] sm:$0x7] %v2015
  %2045 = vst [vmem:[#allocation2 + $0x448] sm:$0x7] %v2016
  %2046 = vst [vmem:[#allocation2 + $0x450] sm:$0x7] %v2017
  %2047 = vst [vmem:[#allocation2 + $0x458] sm:$0x7] %v2018
  %2048 = vst [vmem:[#allocation2 + $0x460] sm:$0x7] %v2019
  %2049 = vst [vmem:[#allocation2 + $0x468] sm:$0x7] %v2020
  %2050 = vst [vmem:[#allocation2 + $0x470] sm:$0x7] %v2021
  %2051 = vst [vmem:[#allocation2 + $0x478] sm:$0x7] %v2022
  %2052 = vst [vmem:[#allocation2 + $0x480] sm:$0x7] %v2023
  %2053 = vst [vmem:[#allocation2 + $0x488] sm:$0x7] %v2024
  %2054 = vst [vmem:[#allocation2 + $0x490] sm:$0x7] %v2025
  %2055 = vst [vmem:[#allocation2 + $0x498] sm:$0x7] %v2026
  %2056 = vst [vmem:[#allocation2 + $0x4a0] sm:$0x7] %v2027
  %2057 = vst.msk [vmem:[#allocation2 + $0x4a8] sm:$0x7] %vm76, %v2013
  %v2058 = vld [vmem:[%s1] sm:$0x3f]
  %v2059 = vld [vmem:[#allocation2] sm:$0xff]
  %v2060 = vld [vmem:[#allocation2 + $0x8] sm:$0xff]
  %v2061 = vld [vmem:[#allocation2 + $0x10] sm:$0xff]
  %v2062 = vld [vmem:[#allocation2 + $0x18] sm:$0xff]
  %v2063 = vld [vmem:[#allocation2 + $0x20] sm:$0xff]
  %v2064 = vld [vmem:[#allocation2 + $0x28] sm:$0xff]
  %v2065 = vld [vmem:[#allocation2 + $0x30] sm:$0xff]
  %v2066 = vld [vmem:[#allocation2 + $0x38] sm:$0xff]
  %v2067 = vld [vmem:[#allocation2 + $0x40] sm:$0xff]
  %v2068 = vld [vmem:[#allocation2 + $0x48] sm:$0xff]
  %v2069 = vld [vmem:[#allocation2 + $0x50] sm:$0xff]
  %v2070 = vld [vmem:[#allocation2 + $0x58] sm:$0xff]
  %v2071 = vld [vmem:[#allocation2 + $0x60] sm:$0xff]
  %v2072 = vld [vmem:[#allocation2 + $0x68] sm:$0xff]
  %v2073 = vld [vmem:[#allocation2 + $0x70] sm:$0xff]
  %v2074 = vld [vmem:[#allocation2 + $0x78] sm:$0xff]
  %v2075 = vld [vmem:[#allocation2 + $0x80] sm:$0xff]
  %v2076 = vld [vmem:[#allocation2 + $0x88] sm:$0xff]
  %v2077 = vld [vmem:[#allocation2 + $0x90] sm:$0xff]
  %v2078 = vld [vmem:[#allocation2 + $0x98] sm:$0xff]
  %v2079 = vld [vmem:[#allocation2 + $0xa0] sm:$0xff]
  %v2080 = vld [vmem:[#allocation2 + $0xa8] sm:$0xff]
  %v2081 = vld [vmem:[#allocation2 + $0xb0] sm:$0xff]
  %v2082 = vld [vmem:[#allocation2 + $0xb8] sm:$0xff]
  %v2083 = vld [vmem:[#allocation2 + $0xc0] sm:$0xff]
  %v2084 = vld [vmem:[#allocation2 + $0xc8] sm:$0xff]
  %v2085 = vld [vmem:[#allocation2 + $0xd0] sm:$0xff]
  %v2086 = vld [vmem:[#allocation2 + $0xd8] sm:$0xff]
  %v2087 = vld [vmem:[#allocation2 + $0xe0] sm:$0xff]
  %v2088 = vld [vmem:[#allocation2 + $0xe8] sm:$0xff]
  %v2089 = vld [vmem:[#allocation2 + $0xf0] sm:$0xff]
  %v2090 = vld [vmem:[#allocation2 + $0xf8] sm:$0xff]
  %v2091 = vld [vmem:[#allocation2 + $0x100] sm:$0xff]
  %v2092 = vld [vmem:[#allocation2 + $0x108] sm:$0xff]
  %v2093 = vld [vmem:[#allocation2 + $0x110] sm:$0xff]
  %v2094 = vld [vmem:[#allocation2 + $0x118] sm:$0xff]
  %v2095 = vld [vmem:[#allocation2 + $0x120] sm:$0xff]
  %v2096 = vld [vmem:[#allocation2 + $0x128] sm:$0xff]
  %v2097 = vld [vmem:[#allocation2 + $0x130] sm:$0xff]
  %v2098 = vld [vmem:[#allocation2 + $0x138] sm:$0xff]
  %v2099 = vld [vmem:[#allocation2 + $0x140] sm:$0xff]
  %v2100 = vld [vmem:[#allocation2 + $0x148] sm:$0xff]
  %v2101 = vld [vmem:[#allocation2 + $0x150] sm:$0xff]
  %v2102 = vld [vmem:[#allocation2 + $0x158] sm:$0xff]
  %v2103 = vld [vmem:[#allocation2 + $0x160] sm:$0xff]
  %v2104 = vld [vmem:[#allocation2 + $0x168] sm:$0xff]
  %v2105 = vld [vmem:[#allocation2 + $0x170] sm:$0xff]
  %v2106 = vld [vmem:[#allocation2 + $0x178] sm:$0xff]
  %v2107 = vld [vmem:[#allocation2 + $0x180] sm:$0xff]
  %v2108 = vld [vmem:[#allocation2 + $0x188] sm:$0xff]
  %v2109 = vld [vmem:[#allocation2 + $0x190] sm:$0xff]
  %v2110 = vld [vmem:[#allocation2 + $0x198] sm:$0xff]
  %v2111 = vld [vmem:[#allocation2 + $0x1a0] sm:$0xff]
  %v2112 = vld [vmem:[#allocation2 + $0x1a8] sm:$0xff]
  %v2113 = vld [vmem:[#allocation2 + $0x1b0] sm:$0xff]
  %v2114 = vld [vmem:[#allocation2 + $0x1b8] sm:$0xff]
  %v2115 = vld [vmem:[#allocation2 + $0x1c0] sm:$0xff]
  %v2116 = vld [vmem:[#allocation2 + $0x1c8] sm:$0xff]
  %v2117 = vld [vmem:[#allocation2 + $0x1d0] sm:$0xff]
  %v2118 = vld [vmem:[#allocation2 + $0x1d8] sm:$0xff]
  %v2119 = vld [vmem:[#allocation2 + $0x1e0] sm:$0xff]
  %v2120 = vld [vmem:[#allocation2 + $0x1e8] sm:$0xff]
  %v2121 = vld [vmem:[#allocation2 + $0x1f0] sm:$0xff]
  %v2122 = vld [vmem:[#allocation2 + $0x1f8] sm:$0xff]
  %v2123 = vld [vmem:[#allocation2 + $0x200] sm:$0xff]
  %v2124 = vld [vmem:[#allocation2 + $0x208] sm:$0xff]
  %v2125 = vld [vmem:[#allocation2 + $0x210] sm:$0xff]
  %v2126 = vld [vmem:[#allocation2 + $0x218] sm:$0xff]
  %v2127 = vld [vmem:[#allocation2 + $0x220] sm:$0xff]
  %v2128 = vld [vmem:[#allocation2 + $0x228] sm:$0xff]
  %v2129 = vld [vmem:[#allocation2 + $0x230] sm:$0xff]
  %v2130 = vld [vmem:[#allocation2 + $0x238] sm:$0xff]
  %v2131 = vld [vmem:[#allocation2 + $0x240] sm:$0xff]
  %v2132 = vld [vmem:[#allocation2 + $0x248] sm:$0xff]
  %v2133 = vld [vmem:[#allocation2 + $0x250] sm:$0xff]
  %v2134 = vld [vmem:[#allocation2 + $0x258] sm:$0xff]
  %v2135 = vld [vmem:[#allocation2 + $0x260] sm:$0xff]
  %v2136 = vld [vmem:[#allocation2 + $0x268] sm:$0xff]
  %v2137 = vld [vmem:[#allocation2 + $0x270] sm:$0xff]
  %v2138 = vld [vmem:[#allocation2 + $0x278] sm:$0xff]
  %v2139 = vld [vmem:[#allocation2 + $0x280] sm:$0xff]
  %v2140 = vld [vmem:[#allocation2 + $0x288] sm:$0xff]
  %v2141 = vld [vmem:[#allocation2 + $0x290] sm:$0xff]
  %v2142 = vld [vmem:[#allocation2 + $0x298] sm:$0xff]
  %v2143 = vld [vmem:[#allocation2 + $0x2a0] sm:$0xff]
  %v2144 = vld [vmem:[#allocation2 + $0x2a8] sm:$0xff]
  %v2145 = vld [vmem:[#allocation2 + $0x2b0] sm:$0xff]
  %v2146 = vld [vmem:[#allocation2 + $0x2b8] sm:$0xff]
  %v2147 = vld [vmem:[#allocation2 + $0x2c0] sm:$0xff]
  %v2148 = vld [vmem:[#allocation2 + $0x2c8] sm:$0xff]
  %v2149 = vld [vmem:[#allocation2 + $0x2d0] sm:$0xff]
  %v2150 = vld [vmem:[#allocation2 + $0x2d8] sm:$0xff]
  %v2151 = vld [vmem:[#allocation2 + $0x2e0] sm:$0xff]
  %v2152 = vld [vmem:[#allocation2 + $0x2e8] sm:$0xff]
  %v2153 = vld [vmem:[#allocation2 + $0x2f0] sm:$0xff]
  %v2154 = vld [vmem:[#allocation2 + $0x2f8] sm:$0xff]
  %v2155 = vld [vmem:[#allocation2 + $0x300] sm:$0xff]
  %v2156 = vld [vmem:[#allocation2 + $0x308] sm:$0xff]
  %v2157 = vld [vmem:[#allocation2 + $0x310] sm:$0xff]
  %v2158 = vld [vmem:[#allocation2 + $0x318] sm:$0xff]
  %v2159 = vld [vmem:[#allocation2 + $0x320] sm:$0xff]
  %v2160 = vld [vmem:[#allocation2 + $0x328] sm:$0xff]
  %v2161 = vld [vmem:[#allocation2 + $0x330] sm:$0xff]
  %v2162 = vld [vmem:[#allocation2 + $0x338] sm:$0xff]
  %v2163 = vld [vmem:[#allocation2 + $0x340] sm:$0xff]
  %v2164 = vld [vmem:[#allocation2 + $0x348] sm:$0xff]
  %v2165 = vld [vmem:[#allocation2 + $0x350] sm:$0xff]
  %v2166 = vld [vmem:[#allocation2 + $0x358] sm:$0xff]
  %v2167 = vld [vmem:[#allocation2 + $0x360] sm:$0xff]
  %v2168 = vld [vmem:[#allocation2 + $0x368] sm:$0xff]
  %v2169 = vld [vmem:[#allocation2 + $0x370] sm:$0xff]
  %v2170 = vld [vmem:[#allocation2 + $0x378] sm:$0xff]
  %v2171 = vld [vmem:[#allocation2 + $0x380] sm:$0xff]
  %v2172 = vld [vmem:[#allocation2 + $0x388] sm:$0xff]
  %v2173 = vld [vmem:[#allocation2 + $0x390] sm:$0xff]
  %v2174 = vld [vmem:[#allocation2 + $0x398] sm:$0xff]
  %v2175 = vld [vmem:[#allocation2 + $0x3a0] sm:$0xff]
  %v2176 = vld [vmem:[#allocation2 + $0x3a8] sm:$0xff]
  %v2177 = vld [vmem:[#allocation2 + $0x3b0] sm:$0xff]
  %v2178 = vld [vmem:[#allocation2 + $0x3b8] sm:$0xff]
  %v2179 = vld [vmem:[#allocation2 + $0x3c0] sm:$0xff]
  %v2180 = vld [vmem:[#allocation2 + $0x3c8] sm:$0xff]
  %v2181 = vld [vmem:[#allocation2 + $0x3d0] sm:$0xff]
  %v2182 = vld [vmem:[#allocation2 + $0x3d8] sm:$0xff]
  %v2183 = vld [vmem:[#allocation2 + $0x3e0] sm:$0xff]
  %v2184 = vld [vmem:[#allocation2 + $0x3e8] sm:$0xff]
  %v2185 = vld [vmem:[#allocation2 + $0x3f0] sm:$0xff]
  %v2186 = vld [vmem:[#allocation2 + $0x3f8] sm:$0xff]
  %v2187 = vld [vmem:[#allocation2 + $0x400] sm:$0xff]
  %v2188 = vld [vmem:[#allocation2 + $0x408] sm:$0xff]
  %v2189 = vld [vmem:[#allocation2 + $0x410] sm:$0xff]
  %v2190 = vld [vmem:[#allocation2 + $0x418] sm:$0xff]
  %v2191 = vld [vmem:[#allocation2 + $0x420] sm:$0xff]
  %v2192 = vld [vmem:[#allocation2 + $0x428] sm:$0xff]
  %v2193 = vld [vmem:[#allocation2 + $0x430] sm:$0xff]
  %v2194 = vld [vmem:[#allocation2 + $0x438] sm:$0x7]
  %v2195 = vld [vmem:[#allocation2 + $0x440] sm:$0x7]
  %v2196 = vld [vmem:[#allocation2 + $0x448] sm:$0x7]
  %v2197 = vld [vmem:[#allocation2 + $0x450] sm:$0x7]
  %v2198 = vld [vmem:[#allocation2 + $0x458] sm:$0x7]
  %v2199 = vld [vmem:[#allocation2 + $0x460] sm:$0x7]
  %v2200 = vld [vmem:[#allocation2 + $0x468] sm:$0x7]
  %v2201 = vld [vmem:[#allocation2 + $0x470] sm:$0x7]
  %v2202 = vld [vmem:[#allocation2 + $0x478] sm:$0x7]
  %v2203 = vld [vmem:[#allocation2 + $0x480] sm:$0x7]
  %v2204 = vld [vmem:[#allocation2 + $0x488] sm:$0x7]
  %v2205 = vld [vmem:[#allocation2 + $0x490] sm:$0x7]
  %v2206 = vld [vmem:[#allocation2 + $0x498] sm:$0x7]
  %v2207 = vld [vmem:[#allocation2 + $0x4a0] sm:$0x7]
  %v2208 = vld [vmem:[#allocation2 + $0x4a8] sm:$0x7]
  %vm2209 = vcmask 613376
  %v2211 = vsel %vm2209, %v2058, 0
  %vm2213 = vcmask 1042432
  %v2215 = vsel %vm2213, %v2194, 0
  %v2218 = vsel %vm2213, %v2195, 0
  %v2221 = vsel %vm2213, %v2196, 0
  %v2224 = vsel %vm2213, %v2197, 0
  %v2227 = vsel %vm2213, %v2198, 0
  %v2230 = vsel %vm2213, %v2199, 0
  %v2233 = vsel %vm2213, %v2200, 0
  %v2236 = vsel %vm2213, %v2201, 0
  %v2239 = vsel %vm2213, %v2202, 0
  %v2242 = vsel %vm2213, %v2203, 0
  %v2245 = vsel %vm2213, %v2204, 0
  %v2248 = vsel %vm2213, %v2205, 0
  %v2251 = vsel %vm2213, %v2206, 0
  %v2254 = vsel %vm2213, %v2207, 0
  %v2257 = vsel %vm2213, %v2208, 0
  %2259 = vmatprep.subr.mxu0 0.0
  %2260 = vmatpush1.msra.mxu0 0.0
  %2261 = vmatprep.subr.mxu0 0.0
  %2262 = vmatpush1.msra.mxu0 0.0
  %2263 = vmatprep.subr.mxu0 0.0
  %2264 = vmatpush1.msra.mxu0 0.0
  %2265 = vmatprep.subr.mxu0 0.0
  %2266 = vmatpush1.msra.mxu0 0.0
  %2267 = vmatprep.subr.mxu0 0.0
  %2268 = vmatpush1.msra.mxu0 0.0
  %2269 = vmatprep.subr.mxu0 0.0
  %2270 = vmatpush1.msra.mxu0 0.0
  %2271 = vmatprep.subr.mxu0 %v2218
  %2272 = vmatpush1.msra.mxu0 %v2215
  %2273 = vmatprep.subr.mxu0 %v2180
  %2274 = vmatpush1.msra.mxu0 %v2179
  %2275 = vmatprep.subr.mxu0 %v2165
  %2276 = vmatpush1.msra.mxu0 %v2164
  %2277 = vmatprep.subr.mxu0 %v2150
  %2278 = vmatpush1.msra.mxu0 %v2149
  %2279 = vmatprep.subr.mxu0 %v2135
  %2280 = vmatpush1.msra.mxu0 %v2134
  %2281 = vmatprep.subr.mxu0 %v2120
  %2282 = vmatpush1.msra.mxu0 %v2119
  %2283 = vmatprep.subr.mxu0 %v2105
  %2284 = vmatpush1.msra.mxu0 %v2104
  %2285 = vmatprep.subr.mxu0 %v2090
  %2286 = vmatpush1.msra.mxu0 %v2089
  %2287 = vmatprep.subr.mxu0 %v2075
  %2288 = vmatpush1.msra.mxu0 %v2074
  %2289 = vmatprep.subr.mxu0 %v2060
  %2290 = vmatpush1.msra.mxu0 %v2059
  %2291 = vmatprep.subr.mxu0 0.0
  %2292 = vmatpush2.msra.mxu0 0.0
  %2293 = vmatprep.subr.mxu0 0.0
  %2294 = vmatpush2.msra.mxu0 0.0
  %2295 = vmatprep.subr.mxu0 0.0
  %2296 = vmatpush2.msra.mxu0 0.0
  %2297 = vmatprep.subr.mxu0 0.0
  %2298 = vmatpush2.msra.mxu0 0.0
  %2299 = vmatprep.subr.mxu0 0.0
  %2300 = vmatpush2.msra.mxu0 0.0
  %2301 = vmatprep.subr.mxu0 0.0
  %2302 = vmatpush2.msra.mxu0 0.0
  %2303 = vmatprep.subr.mxu0 0.0
  %2304 = vmatpush2.msra.mxu0 0.0
  %2305 = vmatprep.subr.mxu0 0.0
  %2306 = vmatpush2.msra.mxu0 0.0
  %2307 = vmatprep.subr.mxu0 0.0
  %2308 = vmatpush2.msra.mxu0 0.0
  %2309 = vmatprep.subr.mxu0 0.0
  %2310 = vmatpush2.msra.mxu0 0.0
  %2311 = vmatprep.subr.mxu0 0.0
  %2312 = vmatpush2.msra.mxu0 0.0
  %2313 = vmatprep.subr.mxu0 0.0
  %2314 = vmatpush2.msra.mxu0 0.0
  %2315 = vmatprep.subr.mxu0 0.0
  %2316 = vmatpush2.msra.mxu0 0.0
  %2317 = vmatprep.subr.mxu0 0.0
  %2318 = vmatpush2.msra.mxu0 0.0
  %2319 = vmatprep.subr.mxu0 0.0
  %2320 = vmatpush2.msra.mxu0 0.0
  %2321 = vmatprep.subr.mxu0 0.0
  %2322 = vmatpush2.msra.mxu0 0.0
  %2323 = vmatprep.mubr.f32.mxu0 0.0
  %2324 = vmatmul.mubr.f32.gmra.mxu0 %v2211
  %v2325 = vpop.f32.mrf.mxu0
  %v2326 = vadd.f32 0.0, %v2325
  %v2327 = vpop.f32.mrf.mxu0
  %v2328 = vadd.f32 0.0, %v2327
  %2329 = vdwg.mxu0
  %2330 = vmatprep.subr.mxu0 0.0
  %2331 = vmatpush1.msra.mxu0 0.0
  %2332 = vmatprep.subr.mxu0 0.0
  %2333 = vmatpush1.msra.mxu0 0.0
  %2334 = vmatprep.subr.mxu0 0.0
  %2335 = vmatpush1.msra.mxu0 0.0
  %2336 = vmatprep.subr.mxu0 0.0
  %2337 = vmatpush1.msra.mxu0 0.0
  %2338 = vmatprep.subr.mxu0 0.0
  %2339 = vmatpush1.msra.mxu0 0.0
  %2340 = vmatprep.subr.mxu0 0.0
  %2341 = vmatpush1.msra.mxu0 0.0
  %2342 = vmatprep.subr.mxu0 %v2224
  %2343 = vmatpush1.msra.mxu0 %v2221
  %2344 = vmatprep.subr.mxu0 %v2182
  %2345 = vmatpush1.msra.mxu0 %v2181
  %2346 = vmatprep.subr.mxu0 %v2167
  %2347 = vmatpush1.msra.mxu0 %v2166
  %2348 = vmatprep.subr.mxu0 %v2152
  %2349 = vmatpush1.msra.mxu0 %v2151
  %2350 = vmatprep.subr.mxu0 %v2137
  %2351 = vmatpush1.msra.mxu0 %v2136
  %2352 = vmatprep.subr.mxu0 %v2122
  %2353 = vmatpush1.msra.mxu0 %v2121
  %2354 = vmatprep.subr.mxu0 %v2107
  %2355 = vmatpush1.msra.mxu0 %v2106
  %2356 = vmatprep.subr.mxu0 %v2092
  %2357 = vmatpush1.msra.mxu0 %v2091
  %2358 = vmatprep.subr.mxu0 %v2077
  %2359 = vmatpush1.msra.mxu0 %v2076
  %2360 = vmatprep.subr.mxu0 %v2062
  %2361 = vmatpush1.msra.mxu0 %v2061
  %2362 = vmatprep.subr.mxu0 0.0
  %2363 = vmatpush2.msra.mxu0 0.0
  %2364 = vmatprep.subr.mxu0 0.0
  %2365 = vmatpush2.msra.mxu0 0.0
  %2366 = vmatprep.subr.mxu0 0.0
  %2367 = vmatpush2.msra.mxu0 0.0
  %2368 = vmatprep.subr.mxu0 0.0
  %2369 = vmatpush2.msra.mxu0 0.0
  %2370 = vmatprep.subr.mxu0 0.0
  %2371 = vmatpush2.msra.mxu0 0.0
  %2372 = vmatprep.subr.mxu0 0.0
  %2373 = vmatpush2.msra.mxu0 0.0
  %2374 = vmatprep.subr.mxu0 0.0
  %2375 = vmatpush2.msra.mxu0 0.0
  %2376 = vmatprep.subr.mxu0 0.0
  %2377 = vmatpush2.msra.mxu0 0.0
  %2378 = vmatprep.subr.mxu0 0.0
  %2379 = vmatpush2.msra.mxu0 0.0
  %2380 = vmatprep.subr.mxu0 0.0
  %2381 = vmatpush2.msra.mxu0 0.0
  %2382 = vmatprep.subr.mxu0 0.0
  %2383 = vmatpush2.msra.mxu0 0.0
  %2384 = vmatprep.subr.mxu0 0.0
  %2385 = vmatpush2.msra.mxu0 0.0
  %2386 = vmatprep.subr.mxu0 0.0
  %2387 = vmatpush2.msra.mxu0 0.0
  %2388 = vmatprep.subr.mxu0 0.0
  %2389 = vmatpush2.msra.mxu0 0.0
  %2390 = vmatprep.subr.mxu0 0.0
  %2391 = vmatpush2.msra.mxu0 0.0
  %2392 = vmatprep.subr.mxu0 0.0
  %2393 = vmatpush2.msra.mxu0 0.0
  %2394 = vmatprep.mubr.f32.mxu0 0.0
  %2395 = vmatmul.mubr.f32.gmra.mxu0 %v2211
  %v2396 = vpop.f32.mrf.mxu0
  %v2397 = vadd.f32 0.0, %v2396
  %v2398 = vpop.f32.mrf.mxu0
  %v2399 = vadd.f32 0.0, %v2398
  %2400 = vdwg.mxu0
  %2401 = vmatprep.subr.mxu0 0.0
  %2402 = vmatpush1.msra.mxu0 0.0
  %2403 = vmatprep.subr.mxu0 0.0
  %2404 = vmatpush1.msra.mxu0 0.0
  %2405 = vmatprep.subr.mxu0 0.0
  %2406 = vmatpush1.msra.mxu0 0.0
  %2407 = vmatprep.subr.mxu0 0.0
  %2408 = vmatpush1.msra.mxu0 0.0
  %2409 = vmatprep.subr.mxu0 0.0
  %2410 = vmatpush1.msra.mxu0 0.0
  %2411 = vmatprep.subr.mxu0 0.0
  %2412 = vmatpush1.msra.mxu0 0.0
  %2413 = vmatprep.subr.mxu0 %v2230
  %2414 = vmatpush1.msra.mxu0 %v2227
  %2415 = vmatprep.subr.mxu0 %v2184
  %2416 = vmatpush1.msra.mxu0 %v2183
  %2417 = vmatprep.subr.mxu0 %v2169
  %2418 = vmatpush1.msra.mxu0 %v2168
  %2419 = vmatprep.subr.mxu0 %v2154
  %2420 = vmatpush1.msra.mxu0 %v2153
  %2421 = vmatprep.subr.mxu0 %v2139
  %2422 = vmatpush1.msra.mxu0 %v2138
  %2423 = vmatprep.subr.mxu0 %v2124
  %2424 = vmatpush1.msra.mxu0 %v2123
  %2425 = vmatprep.subr.mxu0 %v2109
  %2426 = vmatpush1.msra.mxu0 %v2108
  %2427 = vmatprep.subr.mxu0 %v2094
  %2428 = vmatpush1.msra.mxu0 %v2093
  %2429 = vmatprep.subr.mxu0 %v2079
  %2430 = vmatpush1.msra.mxu0 %v2078
  %2431 = vmatprep.subr.mxu0 %v2064
  %2432 = vmatpush1.msra.mxu0 %v2063
  %2433 = vmatprep.subr.mxu0 0.0
  %2434 = vmatpush2.msra.mxu0 0.0
  %2435 = vmatprep.subr.mxu0 0.0
  %2436 = vmatpush2.msra.mxu0 0.0
  %2437 = vmatprep.subr.mxu0 0.0
  %2438 = vmatpush2.msra.mxu0 0.0
  %2439 = vmatprep.subr.mxu0 0.0
  %2440 = vmatpush2.msra.mxu0 0.0
  %2441 = vmatprep.subr.mxu0 0.0
  %2442 = vmatpush2.msra.mxu0 0.0
  %2443 = vmatprep.subr.mxu0 0.0
  %2444 = vmatpush2.msra.mxu0 0.0
  %2445 = vmatprep.subr.mxu0 0.0
  %2446 = vmatpush2.msra.mxu0 0.0
  %2447 = vmatprep.subr.mxu0 0.0
  %2448 = vmatpush2.msra.mxu0 0.0
  %2449 = vmatprep.subr.mxu0 0.0
  %2450 = vmatpush2.msra.mxu0 0.0
  %2451 = vmatprep.subr.mxu0 0.0
  %2452 = vmatpush2.msra.mxu0 0.0
  %2453 = vmatprep.subr.mxu0 0.0
  %2454 = vmatpush2.msra.mxu0 0.0
  %2455 = vmatprep.subr.mxu0 0.0
  %2456 = vmatpush2.msra.mxu0 0.0
  %2457 = vmatprep.subr.mxu0 0.0
  %2458 = vmatpush2.msra.mxu0 0.0
  %2459 = vmatprep.subr.mxu0 0.0
  %2460 = vmatpush2.msra.mxu0 0.0
  %2461 = vmatprep.subr.mxu0 0.0
  %2462 = vmatpush2.msra.mxu0 0.0
  %2463 = vmatprep.subr.mxu0 0.0
  %2464 = vmatpush2.msra.mxu0 0.0
  %2465 = vmatprep.mubr.f32.mxu0 0.0
  %2466 = vmatmul.mubr.f32.gmra.mxu0 %v2211
  %v2467 = vpop.f32.mrf.mxu0
  %v2468 = vadd.f32 0.0, %v2467
  %v2469 = vpop.f32.mrf.mxu0
  %v2470 = vadd.f32 0.0, %v2469
  %2471 = vdwg.mxu0
  %2472 = vmatprep.subr.mxu0 0.0
  %2473 = vmatpush1.msra.mxu0 0.0
  %2474 = vmatprep.subr.mxu0 0.0
  %2475 = vmatpush1.msra.mxu0 0.0
  %2476 = vmatprep.subr.mxu0 0.0
  %2477 = vmatpush1.msra.mxu0 0.0
  %2478 = vmatprep.subr.mxu0 0.0
  %2479 = vmatpush1.msra.mxu0 0.0
  %2480 = vmatprep.subr.mxu0 0.0
  %2481 = vmatpush1.msra.mxu0 0.0
  %2482 = vmatprep.subr.mxu0 0.0
  %2483 = vmatpush1.msra.mxu0 0.0
  %2484 = vmatprep.subr.mxu0 %v2236
  %2485 = vmatpush1.msra.mxu0 %v2233
  %2486 = vmatprep.subr.mxu0 %v2186
  %2487 = vmatpush1.msra.mxu0 %v2185
  %2488 = vmatprep.subr.mxu0 %v2171
  %2489 = vmatpush1.msra.mxu0 %v2170
  %2490 = vmatprep.subr.mxu0 %v2156
  %2491 = vmatpush1.msra.mxu0 %v2155
  %2492 = vmatprep.subr.mxu0 %v2141
  %2493 = vmatpush1.msra.mxu0 %v2140
  %2494 = vmatprep.subr.mxu0 %v2126
  %2495 = vmatpush1.msra.mxu0 %v2125
  %2496 = vmatprep.subr.mxu0 %v2111
  %2497 = vmatpush1.msra.mxu0 %v2110
  %2498 = vmatprep.subr.mxu0 %v2096
  %2499 = vmatpush1.msra.mxu0 %v2095
  %2500 = vmatprep.subr.mxu0 %v2081
  %2501 = vmatpush1.msra.mxu0 %v2080
  %2502 = vmatprep.subr.mxu0 %v2066
  %2503 = vmatpush1.msra.mxu0 %v2065
  %2504 = vmatprep.subr.mxu0 0.0
  %2505 = vmatpush2.msra.mxu0 0.0
  %2506 = vmatprep.subr.mxu0 0.0
  %2507 = vmatpush2.msra.mxu0 0.0
  %2508 = vmatprep.subr.mxu0 0.0
  %2509 = vmatpush2.msra.mxu0 0.0
  %2510 = vmatprep.subr.mxu0 0.0
  %2511 = vmatpush2.msra.mxu0 0.0
  %2512 = vmatprep.subr.mxu0 0.0
  %2513 = vmatpush2.msra.mxu0 0.0
  %2514 = vmatprep.subr.mxu0 0.0
  %2515 = vmatpush2.msra.mxu0 0.0
  %2516 = vmatprep.subr.mxu0 0.0
  %2517 = vmatpush2.msra.mxu0 0.0
  %2518 = vmatprep.subr.mxu0 0.0
  %2519 = vmatpush2.msra.mxu0 0.0
  %2520 = vmatprep.subr.mxu0 0.0
  %2521 = vmatpush2.msra.mxu0 0.0
  %2522 = vmatprep.subr.mxu0 0.0
  %2523 = vmatpush2.msra.mxu0 0.0
  %2524 = vmatprep.subr.mxu0 0.0
  %2525 = vmatpush2.msra.mxu0 0.0
  %2526 = vmatprep.subr.mxu0 0.0
  %2527 = vmatpush2.msra.mxu0 0.0
  %2528 = vmatprep.subr.mxu0 0.0
  %2529 = vmatpush2.msra.mxu0 0.0
  %2530 = vmatprep.subr.mxu0 0.0
  %2531 = vmatpush2.msra.mxu0 0.0
  %2532 = vmatprep.subr.mxu0 0.0
  %2533 = vmatpush2.msra.mxu0 0.0
  %2534 = vmatprep.subr.mxu0 0.0
  %2535 = vmatpush2.msra.mxu0 0.0
  %2536 = vmatprep.mubr.f32.mxu0 0.0
  %2537 = vmatmul.mubr.f32.gmra.mxu0 %v2211
  %v2538 = vpop.f32.mrf.mxu0
  %v2539 = vadd.f32 0.0, %v2538
  %v2540 = vpop.f32.mrf.mxu0
  %v2541 = vadd.f32 0.0, %v2540
  %2542 = vdwg.mxu0
  %2543 = vmatprep.subr.mxu0 0.0
  %2544 = vmatpush1.msra.mxu0 0.0
  %2545 = vmatprep.subr.mxu0 0.0
  %2546 = vmatpush1.msra.mxu0 0.0
  %2547 = vmatprep.subr.mxu0 0.0
  %2548 = vmatpush1.msra.mxu0 0.0
  %2549 = vmatprep.subr.mxu0 0.0
  %2550 = vmatpush1.msra.mxu0 0.0
  %2551 = vmatprep.subr.mxu0 0.0
  %2552 = vmatpush1.msra.mxu0 0.0
  %2553 = vmatprep.subr.mxu0 0.0
  %2554 = vmatpush1.msra.mxu0 0.0
  %2555 = vmatprep.subr.mxu0 %v2242
  %2556 = vmatpush1.msra.mxu0 %v2239
  %2557 = vmatprep.subr.mxu0 %v2188
  %2558 = vmatpush1.msra.mxu0 %v2187
  %2559 = vmatprep.subr.mxu0 %v2173
  %2560 = vmatpush1.msra.mxu0 %v2172
  %2561 = vmatprep.subr.mxu0 %v2158
  %2562 = vmatpush1.msra.mxu0 %v2157
  %2563 = vmatprep.subr.mxu0 %v2143
  %2564 = vmatpush1.msra.mxu0 %v2142
  %2565 = vmatprep.subr.mxu0 %v2128
  %2566 = vmatpush1.msra.mxu0 %v2127
  %2567 = vmatprep.subr.mxu0 %v2113
  %2568 = vmatpush1.msra.mxu0 %v2112
  %2569 = vmatprep.subr.mxu0 %v2098
  %2570 = vmatpush1.msra.mxu0 %v2097
  %2571 = vmatprep.subr.mxu0 %v2083
  %2572 = vmatpush1.msra.mxu0 %v2082
  %2573 = vmatprep.subr.mxu0 %v2068
  %2574 = vmatpush1.msra.mxu0 %v2067
  %2575 = vmatprep.subr.mxu0 0.0
  %2576 = vmatpush2.msra.mxu0 0.0
  %2577 = vmatprep.subr.mxu0 0.0
  %2578 = vmatpush2.msra.mxu0 0.0
  %2579 = vmatprep.subr.mxu0 0.0
  %2580 = vmatpush2.msra.mxu0 0.0
  %2581 = vmatprep.subr.mxu0 0.0
  %2582 = vmatpush2.msra.mxu0 0.0
  %2583 = vmatprep.subr.mxu0 0.0
  %2584 = vmatpush2.msra.mxu0 0.0
  %2585 = vmatprep.subr.mxu0 0.0
  %2586 = vmatpush2.msra.mxu0 0.0
  %2587 = vmatprep.subr.mxu0 0.0
  %2588 = vmatpush2.msra.mxu0 0.0
  %2589 = vmatprep.subr.mxu0 0.0
  %2590 = vmatpush2.msra.mxu0 0.0
  %2591 = vmatprep.subr.mxu0 0.0
  %2592 = vmatpush2.msra.mxu0 0.0
  %2593 = vmatprep.subr.mxu0 0.0
  %2594 = vmatpush2.msra.mxu0 0.0
  %2595 = vmatprep.subr.mxu0 0.0
  %2596 = vmatpush2.msra.mxu0 0.0
  %2597 = vmatprep.subr.mxu0 0.0
  %2598 = vmatpush2.msra.mxu0 0.0
  %2599 = vmatprep.subr.mxu0 0.0
  %2600 = vmatpush2.msra.mxu0 0.0
  %2601 = vmatprep.subr.mxu0 0.0
  %2602 = vmatpush2.msra.mxu0 0.0
  %2603 = vmatprep.subr.mxu0 0.0
  %2604 = vmatpush2.msra.mxu0 0.0
  %2605 = vmatprep.subr.mxu0 0.0
  %2606 = vmatpush2.msra.mxu0 0.0
  %2607 = vmatprep.mubr.f32.mxu0 0.0
  %2608 = vmatmul.mubr.f32.gmra.mxu0 %v2211
  %v2609 = vpop.f32.mrf.mxu0
  %v2610 = vadd.f32 0.0, %v2609
  %v2611 = vpop.f32.mrf.mxu0
  %v2612 = vadd.f32 0.0, %v2611
  %2613 = vdwg.mxu0
  %2614 = vmatprep.subr.mxu0 0.0
  %2615 = vmatpush1.msra.mxu0 0.0
  %2616 = vmatprep.subr.mxu0 0.0
  %2617 = vmatpush1.msra.mxu0 0.0
  %2618 = vmatprep.subr.mxu0 0.0
  %2619 = vmatpush1.msra.mxu0 0.0
  %2620 = vmatprep.subr.mxu0 0.0
  %2621 = vmatpush1.msra.mxu0 0.0
  %2622 = vmatprep.subr.mxu0 0.0
  %2623 = vmatpush1.msra.mxu0 0.0
  %2624 = vmatprep.subr.mxu0 0.0
  %2625 = vmatpush1.msra.mxu0 0.0
  %2626 = vmatprep.subr.mxu0 %v2248
  %2627 = vmatpush1.msra.mxu0 %v2245
  %2628 = vmatprep.subr.mxu0 %v2190
  %2629 = vmatpush1.msra.mxu0 %v2189
  %2630 = vmatprep.subr.mxu0 %v2175
  %2631 = vmatpush1.msra.mxu0 %v2174
  %2632 = vmatprep.subr.mxu0 %v2160
  %2633 = vmatpush1.msra.mxu0 %v2159
  %2634 = vmatprep.subr.mxu0 %v2145
  %2635 = vmatpush1.msra.mxu0 %v2144
  %2636 = vmatprep.subr.mxu0 %v2130
  %2637 = vmatpush1.msra.mxu0 %v2129
  %2638 = vmatprep.subr.mxu0 %v2115
  %2639 = vmatpush1.msra.mxu0 %v2114
  %2640 = vmatprep.subr.mxu0 %v2100
  %2641 = vmatpush1.msra.mxu0 %v2099
  %2642 = vmatprep.subr.mxu0 %v2085
  %2643 = vmatpush1.msra.mxu0 %v2084
  %2644 = vmatprep.subr.mxu0 %v2070
  %2645 = vmatpush1.msra.mxu0 %v2069
  %2646 = vmatprep.subr.mxu0 0.0
  %2647 = vmatpush2.msra.mxu0 0.0
  %2648 = vmatprep.subr.mxu0 0.0
  %2649 = vmatpush2.msra.mxu0 0.0
  %2650 = vmatprep.subr.mxu0 0.0
  %2651 = vmatpush2.msra.mxu0 0.0
  %2652 = vmatprep.subr.mxu0 0.0
  %2653 = vmatpush2.msra.mxu0 0.0
  %2654 = vmatprep.subr.mxu0 0.0
  %2655 = vmatpush2.msra.mxu0 0.0
  %2656 = vmatprep.subr.mxu0 0.0
  %2657 = vmatpush2.msra.mxu0 0.0
  %2658 = vmatprep.subr.mxu0 0.0
  %2659 = vmatpush2.msra.mxu0 0.0
  %2660 = vmatprep.subr.mxu0 0.0
  %2661 = vmatpush2.msra.mxu0 0.0
  %2662 = vmatprep.subr.mxu0 0.0
  %2663 = vmatpush2.msra.mxu0 0.0
  %2664 = vmatprep.subr.mxu0 0.0
  %2665 = vmatpush2.msra.mxu0 0.0
  %2666 = vmatprep.subr.mxu0 0.0
  %2667 = vmatpush2.msra.mxu0 0.0
  %2668 = vmatprep.subr.mxu0 0.0
  %2669 = vmatpush2.msra.mxu0 0.0
  %2670 = vmatprep.subr.mxu0 0.0
  %2671 = vmatpush2.msra.mxu0 0.0
  %2672 = vmatprep.subr.mxu0 0.0
  %2673 = vmatpush2.msra.mxu0 0.0
  %2674 = vmatprep.subr.mxu0 0.0
  %2675 = vmatpush2.msra.mxu0 0.0
  %2676 = vmatprep.subr.mxu0 0.0
  %2677 = vmatpush2.msra.mxu0 0.0
  %2678 = vmatprep.mubr.f32.mxu0 0.0
  %2679 = vmatmul.mubr.f32.gmra.mxu0 %v2211
  %v2680 = vpop.f32.mrf.mxu0
  %v2681 = vadd.f32 0.0, %v2680
  %v2682 = vpop.f32.mrf.mxu0
  %v2683 = vadd.f32 0.0, %v2682
  %2684 = vdwg.mxu0
  %2685 = vmatprep.subr.mxu0 0.0
  %2686 = vmatpush1.msra.mxu0 0.0
  %2687 = vmatprep.subr.mxu0 0.0
  %2688 = vmatpush1.msra.mxu0 0.0
  %2689 = vmatprep.subr.mxu0 0.0
  %2690 = vmatpush1.msra.mxu0 0.0
  %2691 = vmatprep.subr.mxu0 0.0
  %2692 = vmatpush1.msra.mxu0 0.0
  %2693 = vmatprep.subr.mxu0 0.0
  %2694 = vmatpush1.msra.mxu0 0.0
  %2695 = vmatprep.subr.mxu0 0.0
  %2696 = vmatpush1.msra.mxu0 0.0
  %2697 = vmatprep.subr.mxu0 %v2254
  %2698 = vmatpush1.msra.mxu0 %v2251
  %2699 = vmatprep.subr.mxu0 %v2192
  %2700 = vmatpush1.msra.mxu0 %v2191
  %2701 = vmatprep.subr.mxu0 %v2177
  %2702 = vmatpush1.msra.mxu0 %v2176
  %2703 = vmatprep.subr.mxu0 %v2162
  %2704 = vmatpush1.msra.mxu0 %v2161
  %2705 = vmatprep.subr.mxu0 %v2147
  %2706 = vmatpush1.msra.mxu0 %v2146
  %2707 = vmatprep.subr.mxu0 %v2132
  %2708 = vmatpush1.msra.mxu0 %v2131
  %2709 = vmatprep.subr.mxu0 %v2117
  %2710 = vmatpush1.msra.mxu0 %v2116
  %2711 = vmatprep.subr.mxu0 %v2102
  %2712 = vmatpush1.msra.mxu0 %v2101
  %2713 = vmatprep.subr.mxu0 %v2087
  %2714 = vmatpush1.msra.mxu0 %v2086
  %2715 = vmatprep.subr.mxu0 %v2072
  %2716 = vmatpush1.msra.mxu0 %v2071
  %2717 = vmatprep.subr.mxu0 0.0
  %2718 = vmatpush2.msra.mxu0 0.0
  %2719 = vmatprep.subr.mxu0 0.0
  %2720 = vmatpush2.msra.mxu0 0.0
  %2721 = vmatprep.subr.mxu0 0.0
  %2722 = vmatpush2.msra.mxu0 0.0
  %2723 = vmatprep.subr.mxu0 0.0
  %2724 = vmatpush2.msra.mxu0 0.0
  %2725 = vmatprep.subr.mxu0 0.0
  %2726 = vmatpush2.msra.mxu0 0.0
  %2727 = vmatprep.subr.mxu0 0.0
  %2728 = vmatpush2.msra.mxu0 0.0
  %2729 = vmatprep.subr.mxu0 0.0
  %2730 = vmatpush2.msra.mxu0 0.0
  %2731 = vmatprep.subr.mxu0 0.0
  %2732 = vmatpush2.msra.mxu0 0.0
  %2733 = vmatprep.subr.mxu0 0.0
  %2734 = vmatpush2.msra.mxu0 0.0
  %2735 = vmatprep.subr.mxu0 0.0
  %2736 = vmatpush2.msra.mxu0 0.0
  %2737 = vmatprep.subr.mxu0 0.0
  %2738 = vmatpush2.msra.mxu0 0.0
  %2739 = vmatprep.subr.mxu0 0.0
  %2740 = vmatpush2.msra.mxu0 0.0
  %2741 = vmatprep.subr.mxu0 0.0
  %2742 = vmatpush2.msra.mxu0 0.0
  %2743 = vmatprep.subr.mxu0 0.0
  %2744 = vmatpush2.msra.mxu0 0.0
  %2745 = vmatprep.subr.mxu0 0.0
  %2746 = vmatpush2.msra.mxu0 0.0
  %2747 = vmatprep.subr.mxu0 0.0
  %2748 = vmatpush2.msra.mxu0 0.0
  %2749 = vmatprep.mubr.f32.mxu0 0.0
  %2750 = vmatmul.mubr.f32.gmra.mxu0 %v2211
  %v2751 = vpop.f32.mrf.mxu0
  %v2752 = vadd.f32 0.0, %v2751
  %v2753 = vpop.f32.mrf.mxu0
  %v2754 = vadd.f32 0.0, %v2753
  %2755 = vdwg.mxu0
  %2756 = vmatprep.subr.mxu0 0.0
  %2757 = vmatpush1.msra.mxu0 0.0
  %2758 = vmatprep.subr.mxu0 0.0
  %2759 = vmatpush1.msra.mxu0 0.0
  %2760 = vmatprep.subr.mxu0 0.0
  %2761 = vmatpush1.msra.mxu0 0.0
  %2762 = vmatprep.subr.mxu0 0.0
  %2763 = vmatpush1.msra.mxu0 0.0
  %2764 = vmatprep.subr.mxu0 0.0
  %2765 = vmatpush1.msra.mxu0 0.0
  %2766 = vmatprep.subr.mxu0 0.0
  %2767 = vmatpush1.msra.mxu0 0.0
  %2768 = vmatprep.subr.mxu0 0.0
  %2769 = vmatpush1.msra.mxu0 %v2257
  %2770 = vmatprep.subr.mxu0 0.0
  %2771 = vmatpush1.msra.mxu0 %v2193
  %2772 = vmatprep.subr.mxu0 0.0
  %2773 = vmatpush1.msra.mxu0 %v2178
  %2774 = vmatprep.subr.mxu0 0.0
  %2775 = vmatpush1.msra.mxu0 %v2163
  %2776 = vmatprep.subr.mxu0 0.0
  %2777 = vmatpush1.msra.mxu0 %v2148
  %2778 = vmatprep.subr.mxu0 0.0
  %2779 = vmatpush1.msra.mxu0 %v2133
  %2780 = vmatprep.subr.mxu0 0.0
  %2781 = vmatpush1.msra.mxu0 %v2118
  %2782 = vmatprep.subr.mxu0 0.0
  %2783 = vmatpush1.msra.mxu0 %v2103
  %2784 = vmatprep.subr.mxu0 0.0
  %2785 = vmatpush1.msra.mxu0 %v2088
  %2786 = vmatprep.subr.mxu0 0.0
  %2787 = vmatpush1.msra.mxu0 %v2073
  %2788 = vmatprep.subr.mxu0 0.0
  %2789 = vmatpush2.msra.mxu0 0.0
  %2790 = vmatprep.subr.mxu0 0.0
  %2791 = vmatpush2.msra.mxu0 0.0
  %2792 = vmatprep.subr.mxu0 0.0
  %2793 = vmatpush2.msra.mxu0 0.0
  %2794 = vmatprep.subr.mxu0 0.0
  %2795 = vmatpush2.msra.mxu0 0.0
  %2796 = vmatprep.subr.mxu0 0.0
  %2797 = vmatpush2.msra.mxu0 0.0
  %2798 = vmatprep.subr.mxu0 0.0
  %2799 = vmatpush2.msra.mxu0 0.0
  %2800 = vmatprep.subr.mxu0 0.0
  %2801 = vmatpush2.msra.mxu0 0.0
  %2802 = vmatprep.subr.mxu0 0.0
  %2803 = vmatpush2.msra.mxu0 0.0
  %2804 = vmatprep.subr.mxu0 0.0
  %2805 = vmatpush2.msra.mxu0 0.0
  %2806 = vmatprep.subr.mxu0 0.0
  %2807 = vmatpush2.msra.mxu0 0.0
  %2808 = vmatprep.subr.mxu0 0.0
  %2809 = vmatpush2.msra.mxu0 0.0
  %2810 = vmatprep.subr.mxu0 0.0
  %2811 = vmatpush2.msra.mxu0 0.0
  %2812 = vmatprep.subr.mxu0 0.0
  %2813 = vmatpush2.msra.mxu0 0.0
  %2814 = vmatprep.subr.mxu0 0.0
  %2815 = vmatpush2.msra.mxu0 0.0
  %2816 = vmatprep.subr.mxu0 0.0
  %2817 = vmatpush2.msra.mxu0 0.0
  %2818 = vmatprep.subr.mxu0 0.0
  %2819 = vmatpush2.msra.mxu0 0.0
  %2820 = vmatprep.mubr.f32.mxu0 0.0
  %2821 = vmatmul.mubr.f32.gmra.mxu0 %v2211
  %v2822 = vpop.f32.mrf.mxu0
  %v2823 = vadd.f32 0.0, %v2822
  %v2824 = vpop.f32.mrf.mxu0
  %2825 = vdwg.mxu0
  %v2826 = vld [vmem:[%s8] sm:$0xff]
  %v2827 = vld [vmem:[%s8 + $0x8] sm:$0x7f]
  %v2830 = vlaneseq
  %v2831 = vshrl.u32 %v2830, 7
  %v2832 = vsub.s32 0, %v2831
  %v2833 = vrot.slane %v2826, %v2832
  %v2834 = vlaneseq
  %v2835 = vshrl.u32 %v2834, 7
  %v2836 = vsub.s32 1, %v2835
  %v2837 = vrot.slane %v2826, %v2836
  %v2838 = vlaneseq
  %v2839 = vshrl.u32 %v2838, 7
  %v2840 = vsub.s32 2, %v2839
  %v2841 = vrot.slane %v2826, %v2840
  %v2842 = vlaneseq
  %v2843 = vshrl.u32 %v2842, 7
  %v2844 = vsub.s32 3, %v2843
  %v2845 = vrot.slane %v2826, %v2844
  %v2846 = vlaneseq
  %v2847 = vshrl.u32 %v2846, 7
  %v2848 = vsub.s32 4, %v2847
  %v2849 = vrot.slane %v2826, %v2848
  %v2850 = vlaneseq
  %v2851 = vshrl.u32 %v2850, 7
  %v2852 = vsub.s32 5, %v2851
  %v2853 = vrot.slane %v2826, %v2852
  %v2854 = vlaneseq
  %v2855 = vshrl.u32 %v2854, 7
  %v2856 = vsub.s32 6, %v2855
  %v2857 = vrot.slane %v2826, %v2856
  %v2858 = vlaneseq
  %v2859 = vshrl.u32 %v2858, 7
  %v2860 = vsub.s32 7, %v2859
  %v2861 = vrot.slane %v2826, %v2860
  %v2862 = vlaneseq
  %v2863 = vshrl.u32 %v2862, 7
  %v2864 = vsub.s32 0, %v2863
  %v2865 = vrot.slane %v2827, %v2864
  %v2866 = vlaneseq
  %v2867 = vshrl.u32 %v2866, 7
  %v2868 = vsub.s32 1, %v2867
  %v2869 = vrot.slane %v2827, %v2868
  %v2870 = vlaneseq
  %v2871 = vshrl.u32 %v2870, 7
  %v2872 = vsub.s32 2, %v2871
  %v2873 = vrot.slane %v2827, %v2872
  %v2874 = vlaneseq
  %v2875 = vshrl.u32 %v2874, 7
  %v2876 = vsub.s32 3, %v2875
  %v2877 = vrot.slane %v2827, %v2876
  %v2878 = vlaneseq
  %v2879 = vshrl.u32 %v2878, 7
  %v2880 = vsub.s32 4, %v2879
  %v2881 = vrot.slane %v2827, %v2880
  %v2882 = vlaneseq
  %v2883 = vshrl.u32 %v2882, 7
  %v2884 = vsub.s32 5, %v2883
  %v2885 = vrot.slane %v2827, %v2884
  %v2886 = vlaneseq
  %v2887 = vshrl.u32 %v2886, 7
  %v2888 = vsub.s32 6, %v2887
  %v2889 = vrot.slane %v2827, %v2888
  %v2905 = vmul.f32 %v2326, %v2833
  %v2906 = vmul.f32 %v2328, %v2837
  %v2907 = vmul.f32 %v2397, %v2841
  %v2908 = vmul.f32 %v2399, %v2845
  %v2909 = vmul.f32 %v2468, %v2849
  %v2910 = vmul.f32 %v2470, %v2853
  %v2911 = vmul.f32 %v2539, %v2857
  %v2912 = vmul.f32 %v2541, %v2861
  %v2913 = vmul.f32 %v2610, %v2865
  %v2914 = vmul.f32 %v2612, %v2869
  %v2915 = vmul.f32 %v2681, %v2873
  %v2916 = vmul.f32 %v2683, %v2877
  %v2917 = vmul.f32 %v2752, %v2881
  %v2918 = vmul.f32 %v2754, %v2885
  %v2919 = vmul.f32 %v2823, %v2889
  %vm2920 = vcmask 1045504
  %v2921 = vsel %vm2920, %v2905, 0.0
  %v2922 = vsel %vm2920, %v2906, 0.0
  %v2923 = vadd.f32 %v2921, %v2922
  %v2924 = vsel %vm2920, %v2907, 0.0
  %v2925 = vadd.f32 %v2923, %v2924
  %v2926 = vsel %vm2920, %v2908, 0.0
  %v2927 = vadd.f32 %v2925, %v2926
  %v2928 = vsel %vm2920, %v2909, 0.0
  %v2929 = vadd.f32 %v2927, %v2928
  %v2930 = vsel %vm2920, %v2910, 0.0
  %v2931 = vadd.f32 %v2929, %v2930
  %v2932 = vsel %vm2920, %v2911, 0.0
  %v2933 = vadd.f32 %v2931, %v2932
  %v2934 = vsel %vm2920, %v2912, 0.0
  %v2935 = vadd.f32 %v2933, %v2934
  %v2936 = vsel %vm2920, %v2913, 0.0
  %v2937 = vadd.f32 %v2935, %v2936
  %v2938 = vsel %vm2920, %v2914, 0.0
  %v2939 = vadd.f32 %v2937, %v2938
  %v2940 = vsel %vm2920, %v2915, 0.0
  %v2941 = vadd.f32 %v2939, %v2940
  %v2942 = vsel %vm2920, %v2916, 0.0
  %v2943 = vadd.f32 %v2941, %v2942
  %v2944 = vsel %vm2920, %v2917, 0.0
  %v2945 = vadd.f32 %v2943, %v2944
  %v2946 = vsel %vm2920, %v2918, 0.0
  %v2947 = vadd.f32 %v2945, %v2946
  %vm2948 = vcmask 1012736
  %v2949 = vsel %vm2948, %v2919, 0.0
  %v2950 = vadd.f32 %v2947, %v2949
  %2951 = vadd.xlane.f32.xlu0 %v2950
  %v2952 = vpop.xlane.xlu0 %2951
  %v2953 = vmul.f32 %v2952, 0.0006377551
  %v2954 = vsub.f32 %v2326, %v2953
  %v2955 = vsub.f32 %v2328, %v2953
  %v2956 = vsub.f32 %v2397, %v2953
  %v2957 = vsub.f32 %v2399, %v2953
  %v2958 = vsub.f32 %v2468, %v2953
  %v2959 = vsub.f32 %v2470, %v2953
  %v2960 = vsub.f32 %v2539, %v2953
  %v2961 = vsub.f32 %v2541, %v2953
  %v2962 = vsub.f32 %v2610, %v2953
  %v2963 = vsub.f32 %v2612, %v2953
  %v2964 = vsub.f32 %v2681, %v2953
  %v2965 = vsub.f32 %v2683, %v2953
  %v2966 = vsub.f32 %v2752, %v2953
  %v2967 = vsub.f32 %v2754, %v2953
  %v2968 = vsub.f32 %v2823, %v2953
  %v2969 = vmul.f32 %v2954, %v2833
  %v2970 = vmul.f32 %v2955, %v2837
  %v2971 = vmul.f32 %v2956, %v2841
  %v2972 = vmul.f32 %v2957, %v2845
  %v2973 = vmul.f32 %v2958, %v2849
  %v2974 = vmul.f32 %v2959, %v2853
  %v2975 = vmul.f32 %v2960, %v2857
  %v2976 = vmul.f32 %v2961, %v2861
  %v2977 = vmul.f32 %v2962, %v2865
  %v2978 = vmul.f32 %v2963, %v2869
  %v2979 = vmul.f32 %v2964, %v2873
  %v2980 = vmul.f32 %v2965, %v2877
  %v2981 = vmul.f32 %v2966, %v2881
  %v2982 = vmul.f32 %v2967, %v2885
  %v2983 = vmul.f32 %v2968, %v2889
  %v2984 = vmul.f32 %v2969, %v2954
  %v2985 = vmul.f32 %v2970, %v2955
  %v2986 = vmul.f32 %v2971, %v2956
  %v2987 = vmul.f32 %v2972, %v2957
  %v2988 = vmul.f32 %v2973, %v2958
  %v2989 = vmul.f32 %v2974, %v2959
  %v2990 = vmul.f32 %v2975, %v2960
  %v2991 = vmul.f32 %v2976, %v2961
  %v2992 = vmul.f32 %v2977, %v2962
  %v2993 = vmul.f32 %v2978, %v2963
  %v2994 = vmul.f32 %v2979, %v2964
  %v2995 = vmul.f32 %v2980, %v2965
  %v2996 = vmul.f32 %v2981, %v2966
  %v2997 = vmul.f32 %v2982, %v2967
  %v2998 = vmul.f32 %v2983, %v2968
  %v2999 = vsel %vm2920, %v2984, 0.0
  %v3000 = vsel %vm2920, %v2985, 0.0
  %v3001 = vadd.f32 %v2999, %v3000
  %v3002 = vsel %vm2920, %v2986, 0.0
  %v3003 = vadd.f32 %v3001, %v3002
  %v3004 = vsel %vm2920, %v2987, 0.0
  %v3005 = vadd.f32 %v3003, %v3004
  %v3006 = vsel %vm2920, %v2988, 0.0
  %v3007 = vadd.f32 %v3005, %v3006
  %v3008 = vsel %vm2920, %v2989, 0.0
  %v3009 = vadd.f32 %v3007, %v3008
  %v3010 = vsel %vm2920, %v2990, 0.0
  %v3011 = vadd.f32 %v3009, %v3010
  %v3012 = vsel %vm2920, %v2991, 0.0
  %v3013 = vadd.f32 %v3011, %v3012
  %v3014 = vsel %vm2920, %v2992, 0.0
  %v3015 = vadd.f32 %v3013, %v3014
  %v3016 = vsel %vm2920, %v2993, 0.0
  %v3017 = vadd.f32 %v3015, %v3016
  %v3018 = vsel %vm2920, %v2994, 0.0
  %v3019 = vadd.f32 %v3017, %v3018
  %v3020 = vsel %vm2920, %v2995, 0.0
  %v3021 = vadd.f32 %v3019, %v3020
  %v3022 = vsel %vm2920, %v2996, 0.0
  %v3023 = vadd.f32 %v3021, %v3022
  %v3024 = vsel %vm2920, %v2997, 0.0
  %v3025 = vadd.f32 %v3023, %v3024
  %v3026 = vsel %vm2948, %v2998, 0.0
  %v3027 = vadd.f32 %v3025, %v3026
  %3028 = vadd.xlane.f32.xlu0 %v3027
  %v3029 = vpop.xlane.xlu0 %3028
  %v3030 = vmul.f32 %v3029, 0.0006377551
  %v3031 = vadd.f32 %v3030, 1e-05
  %v3032 = vrsqrt.pop %v3031
  %v3033 = vmul.f32 %v2954, %v3032
  %v3034 = vmul.f32 %v2955, %v3032
  %v3035 = vmul.f32 %v2956, %v3032
  %v3036 = vmul.f32 %v2957, %v3032
  %v3037 = vmul.f32 %v2958, %v3032
  %v3038 = vmul.f32 %v2959, %v3032
  %v3039 = vmul.f32 %v2960, %v3032
  %v3040 = vmul.f32 %v2961, %v3032
  %v3041 = vmul.f32 %v2962, %v3032
  %v3042 = vmul.f32 %v2963, %v3032
  %v3043 = vmul.f32 %v2964, %v3032
  %v3044 = vmul.f32 %v2965, %v3032
  %v3045 = vmul.f32 %v2966, %v3032
  %v3046 = vmul.f32 %v2967, %v3032
  %v3047 = vmul.f32 %v2968, %v3032
  %v3048 = vld [vmem:[%s2] sm:$0x3f]
  %3050 = vset.pattern.permute.xlu0 0
  %3051 = vperm.xlu0 %3050, %v3048
  %v3052 = vpop.permute.xlu0 %3051
  %v3054 = vmul.f32 %v3033, %v3052
  %v3055 = vmul.f32 %v3034, %v3052
  %v3056 = vmul.f32 %v3035, %v3052
  %v3057 = vmul.f32 %v3036, %v3052
  %v3058 = vmul.f32 %v3037, %v3052
  %v3059 = vmul.f32 %v3038, %v3052
  %v3060 = vmul.f32 %v3039, %v3052
  %v3061 = vmul.f32 %v3040, %v3052
  %v3062 = vmul.f32 %v3041, %v3052
  %v3063 = vmul.f32 %v3042, %v3052
  %v3064 = vmul.f32 %v3043, %v3052
  %v3065 = vmul.f32 %v3044, %v3052
  %v3066 = vmul.f32 %v3045, %v3052
  %v3067 = vmul.f32 %v3046, %v3052
  %v3068 = vmul.f32 %v3047, %v3052
  %v3069 = vld [vmem:[%s3] sm:$0x3f]
  %3071 = vset.pattern.permute.xlu0 0
  %3072 = vperm.xlu0 %3071, %v3069
  %v3073 = vpop.permute.xlu0 %3072
  %v3075 = vadd.f32 %v3054, %v3073
  %v3076 = vadd.f32 %v3055, %v3073
  %v3077 = vadd.f32 %v3056, %v3073
  %v3078 = vadd.f32 %v3057, %v3073
  %v3079 = vadd.f32 %v3058, %v3073
  %v3080 = vadd.f32 %v3059, %v3073
  %v3081 = vadd.f32 %v3060, %v3073
  %v3082 = vadd.f32 %v3061, %v3073
  %v3083 = vadd.f32 %v3062, %v3073
  %v3084 = vadd.f32 %v3063, %v3073
  %v3085 = vadd.f32 %v3064, %v3073
  %v3086 = vadd.f32 %v3065, %v3073
  %v3087 = vadd.f32 %v3066, %v3073
  %v3088 = vadd.f32 %v3067, %v3073
  %v3089 = vadd.f32 %v3068, %v3073
  %v3090 = vmax.f32 %v3075, 0.0
  %v3091 = vmax.f32 %v3076, 0.0
  %v3092 = vmax.f32 %v3077, 0.0
  %v3093 = vmax.f32 %v3078, 0.0
  %v3094 = vmax.f32 %v3079, 0.0
  %v3095 = vmax.f32 %v3080, 0.0
  %v3096 = vmax.f32 %v3081, 0.0
  %v3097 = vmax.f32 %v3082, 0.0
  %v3098 = vmax.f32 %v3083, 0.0
  %v3099 = vmax.f32 %v3084, 0.0
  %v3100 = vmax.f32 %v3085, 0.0
  %v3101 = vmax.f32 %v3086, 0.0
  %v3102 = vmax.f32 %v3087, 0.0
  %v3103 = vmax.f32 %v3088, 0.0
  %v3104 = vmax.f32 %v3089, 0.0
  %3120 = vrot.lane.b32.xlu0 %v3090, 127
  %v3121 = vpop.permute.xlu0 %3120
  %3122 = vrot.lane.b32.xlu0 %v3091, 127
  %v3123 = vpop.permute.xlu0 %3122
  %3124 = vrot.lane.b32.xlu0 %v3092, 127
  %v3125 = vpop.permute.xlu0 %3124
  %3126 = vrot.lane.b32.xlu0 %v3093, 127
  %v3127 = vpop.permute.xlu0 %3126
  %3128 = vrot.lane.b32.xlu0 %v3094, 127
  %v3129 = vpop.permute.xlu0 %3128
  %3130 = vrot.lane.b32.xlu0 %v3095, 127
  %v3131 = vpop.permute.xlu0 %3130
  %3132 = vrot.lane.b32.xlu0 %v3096, 127
  %v3133 = vpop.permute.xlu0 %3132
  %3134 = vrot.lane.b32.xlu0 %v3097, 127
  %v3135 = vpop.permute.xlu0 %3134
  %3136 = vrot.lane.b32.xlu0 %v3098, 127
  %v3137 = vpop.permute.xlu0 %3136
  %3138 = vrot.lane.b32.xlu0 %v3099, 127
  %v3139 = vpop.permute.xlu0 %3138
  %3140 = vrot.lane.b32.xlu0 %v3100, 127
  %v3141 = vpop.permute.xlu0 %3140
  %3142 = vrot.lane.b32.xlu0 %v3101, 127
  %v3143 = vpop.permute.xlu0 %3142
  %3144 = vrot.lane.b32.xlu0 %v3102, 127
  %v3145 = vpop.permute.xlu0 %3144
  %3146 = vrot.lane.b32.xlu0 %v3103, 127
  %v3147 = vpop.permute.xlu0 %3146
  %3148 = vrot.lane.b32.xlu0 %v3104, 127
  %v3149 = vpop.permute.xlu0 %3148
  %v3150 = vsel %vm123, %v3121, %v3123
  %v3151 = vsel %vm123, %v3123, %v3125
  %v3152 = vsel %vm123, %v3125, %v3127
  %v3153 = vsel %vm123, %v3127, %v3129
  %v3154 = vsel %vm123, %v3129, %v3131
  %v3155 = vsel %vm123, %v3131, %v3133
  %v3156 = vsel %vm123, %v3133, %v3135
  %v3157 = vsel %vm123, %v3135, %v3137
  %v3158 = vsel %vm123, %v3137, %v3139
  %v3159 = vsel %vm123, %v3139, %v3141
  %v3160 = vsel %vm123, %v3141, %v3143
  %v3161 = vsel %vm123, %v3143, %v3145
  %v3162 = vsel %vm123, %v3145, %v3147
  %v3163 = vsel %vm123, %v3147, %v3149
  %v3179 = vmax.f32 %v3090, %v3150
  %v3180 = vmax.f32 %v3091, %v3151
  %v3181 = vmax.f32 %v3092, %v3152
  %v3182 = vmax.f32 %v3093, %v3153
  %v3183 = vmax.f32 %v3094, %v3154
  %v3184 = vmax.f32 %v3095, %v3155
  %v3185 = vmax.f32 %v3096, %v3156
  %v3186 = vmax.f32 %v3097, %v3157
  %v3187 = vmax.f32 %v3098, %v3158
  %v3188 = vmax.f32 %v3099, %v3159
  %v3189 = vmax.f32 %v3100, %v3160
  %v3190 = vmax.f32 %v3101, %v3161
  %v3191 = vmax.f32 %v3102, %v3162
  %v3192 = vmax.f32 %v3103, %v3163
  %v3193 = vmax.f32 %v3104, %v3149
  %3209 = vrot.lane.b32.xlu0 %v3179, 96
  %v3210 = vpop.permute.xlu0 %3209
  %3211 = vrot.lane.b32.xlu0 %v3180, 96
  %v3212 = vpop.permute.xlu0 %3211
  %3213 = vrot.lane.b32.xlu0 %v3181, 96
  %v3214 = vpop.permute.xlu0 %3213
  %3215 = vrot.lane.b32.xlu0 %v3182, 96
  %v3216 = vpop.permute.xlu0 %3215
  %3217 = vrot.lane.b32.xlu0 %v3183, 96
  %v3218 = vpop.permute.xlu0 %3217
  %3219 = vrot.lane.b32.xlu0 %v3184, 96
  %v3220 = vpop.permute.xlu0 %3219
  %3221 = vrot.lane.b32.xlu0 %v3185, 96
  %v3222 = vpop.permute.xlu0 %3221
  %3223 = vrot.lane.b32.xlu0 %v3186, 96
  %v3224 = vpop.permute.xlu0 %3223
  %3225 = vrot.lane.b32.xlu0 %v3187, 96
  %v3226 = vpop.permute.xlu0 %3225
  %3227 = vrot.lane.b32.xlu0 %v3188, 96
  %v3228 = vpop.permute.xlu0 %3227
  %3229 = vrot.lane.b32.xlu0 %v3189, 96
  %v3230 = vpop.permute.xlu0 %3229
  %3231 = vrot.lane.b32.xlu0 %v3190, 96
  %v3232 = vpop.permute.xlu0 %3231
  %3233 = vrot.lane.b32.xlu0 %v3191, 96
  %v3234 = vpop.permute.xlu0 %3233
  %3235 = vrot.lane.b32.xlu0 %v3192, 96
  %v3236 = vpop.permute.xlu0 %3235
  %3237 = vrot.lane.b32.xlu0 %v3193, 96
  %v3238 = vpop.permute.xlu0 %3237
  %v3239 = vsel %vm500, %v3210, %v3212
  %v3240 = vsel %vm500, %v3212, %v3214
  %v3241 = vsel %vm500, %v3214, %v3216
  %v3242 = vsel %vm500, %v3216, %v3218
  %v3243 = vsel %vm500, %v3218, %v3220
  %v3244 = vsel %vm500, %v3220, %v3222
  %v3245 = vsel %vm500, %v3222, %v3224
  %v3246 = vsel %vm500, %v3224, %v3226
  %v3247 = vsel %vm500, %v3226, %v3228
  %v3248 = vsel %vm500, %v3228, %v3230
  %v3249 = vsel %vm500, %v3230, %v3232
  %v3250 = vsel %vm500, %v3232, %v3234
  %v3251 = vsel %vm500, %v3234, %v3236
  %v3252 = vsel %vm500, %v3236, %v3238
  %v3268 = vmax.f32 %v3179, %v3239
  %v3269 = vmax.f32 %v3180, %v3240
  %v3270 = vmax.f32 %v3181, %v3241
  %v3271 = vmax.f32 %v3182, %v3242
  %v3272 = vmax.f32 %v3183, %v3243
  %v3273 = vmax.f32 %v3184, %v3244
  %v3274 = vmax.f32 %v3185, %v3245
  %v3275 = vmax.f32 %v3186, %v3246
  %v3276 = vmax.f32 %v3187, %v3247
  %v3277 = vmax.f32 %v3188, %v3248
  %v3278 = vmax.f32 %v3189, %v3249
  %v3279 = vmax.f32 %v3190, %v3250
  %v3280 = vmax.f32 %v3191, %v3251
  %v3281 = vmax.f32 %v3192, %v3252
  %v3282 = vmax.f32 %v3193, %v3238
  %3283 = vst [vmem:[#allocation3] sm:$0x3f] %v3268
  %3284 = vst [vmem:[#allocation3 + $0x8] sm:$0x3f] %v3269
  %3285 = vst [vmem:[#allocation3 + $0x10] sm:$0x3f] %v3270
  %3286 = vst [vmem:[#allocation3 + $0x18] sm:$0x3f] %v3271
  %3287 = vst [vmem:[#allocation3 + $0x20] sm:$0x3f] %v3272
  %3288 = vst [vmem:[#allocation3 + $0x28] sm:$0x3f] %v3273
  %3289 = vst [vmem:[#allocation3 + $0x30] sm:$0x3f] %v3274
  %3290 = vst [vmem:[#allocation3 + $0x38] sm:$0x3f] %v3275
  %3291 = vst [vmem:[#allocation3 + $0x40] sm:$0x3f] %v3276
  %3292 = vst [vmem:[#allocation3 + $0x48] sm:$0x3f] %v3277
  %3293 = vst [vmem:[#allocation3 + $0x50] sm:$0x3f] %v3278
  %3294 = vst [vmem:[#allocation3 + $0x58] sm:$0x3f] %v3279
  %vm3295 = vcmask 676864
  %3296 = vst.msk [vmem:[#allocation3 + $0x60] sm:$0x3f] %vm3295, %v3280
  %v3310 = vrot.slane %v3268, 2
  %v3311 = vrot.slane %v3269, 2
  %v3312 = vrot.slane %v3270, 2
  %v3313 = vrot.slane %v3271, 2
  %v3314 = vrot.slane %v3272, 2
  %v3315 = vrot.slane %v3273, 2
  %v3316 = vrot.slane %v3274, 2
  %v3317 = vrot.slane %v3275, 2
  %v3318 = vrot.slane %v3276, 2
  %v3319 = vrot.slane %v3277, 2
  %v3320 = vrot.slane %v3278, 2
  %v3321 = vrot.slane %v3279, 2
  %v3322 = vrot.slane %v3280, 2
  %3323 = vrot.lane.b32.xlu0 %v3310, 126
  %v3324 = vpop.permute.xlu0 %3323
  %3325 = vrot.lane.b32.xlu0 %v3311, 126
  %v3326 = vpop.permute.xlu0 %3325
  %3327 = vrot.lane.b32.xlu0 %v3312, 126
  %v3328 = vpop.permute.xlu0 %3327
  %3329 = vrot.lane.b32.xlu0 %v3313, 126
  %v3330 = vpop.permute.xlu0 %3329
  %3331 = vrot.lane.b32.xlu0 %v3314, 126
  %v3332 = vpop.permute.xlu0 %3331
  %3333 = vrot.lane.b32.xlu0 %v3315, 126
  %v3334 = vpop.permute.xlu0 %3333
  %3335 = vrot.lane.b32.xlu0 %v3316, 126
  %v3336 = vpop.permute.xlu0 %3335
  %3337 = vrot.lane.b32.xlu0 %v3317, 126
  %v3338 = vpop.permute.xlu0 %3337
  %3339 = vrot.lane.b32.xlu0 %v3318, 126
  %v3340 = vpop.permute.xlu0 %3339
  %3341 = vrot.lane.b32.xlu0 %v3319, 126
  %v3342 = vpop.permute.xlu0 %3341
  %3343 = vrot.lane.b32.xlu0 %v3320, 126
  %v3344 = vpop.permute.xlu0 %3343
  %3345 = vrot.lane.b32.xlu0 %v3321, 126
  %v3346 = vpop.permute.xlu0 %3345
  %3347 = vrot.lane.b32.xlu0 %v3322, 126
  %v3348 = vpop.permute.xlu0 %3347
  %v3349 = vsel %vm214, %v3324, %v3326
  %v3350 = vsel %vm214, %v3326, %v3328
  %v3351 = vsel %vm214, %v3328, %v3330
  %v3352 = vsel %vm214, %v3330, %v3332
  %v3353 = vsel %vm214, %v3332, %v3334
  %v3354 = vsel %vm214, %v3334, %v3336
  %v3355 = vsel %vm214, %v3336, %v3338
  %v3356 = vsel %vm214, %v3338, %v3340
  %v3357 = vsel %vm214, %v3340, %v3342
  %v3358 = vsel %vm214, %v3342, %v3344
  %v3359 = vsel %vm214, %v3344, %v3346
  %v3360 = vsel %vm214, %v3346, %v3348
  %3374 = vst [vmem:[#allocation3] sm:$0xc0] %v3349
  %3375 = vst [vmem:[#allocation3 + $0x8] sm:$0xc0] %v3350
  %3376 = vst [vmem:[#allocation3 + $0x10] sm:$0xc0] %v3351
  %3377 = vst [vmem:[#allocation3 + $0x18] sm:$0xc0] %v3352
  %3378 = vst [vmem:[#allocation3 + $0x20] sm:$0xc0] %v3353
  %3379 = vst [vmem:[#allocation3 + $0x28] sm:$0xc0] %v3354
  %3380 = vst [vmem:[#allocation3 + $0x30] sm:$0xc0] %v3355
  %3381 = vst [vmem:[#allocation3 + $0x38] sm:$0xc0] %v3356
  %3382 = vst [vmem:[#allocation3 + $0x40] sm:$0xc0] %v3357
  %3383 = vst [vmem:[#allocation3 + $0x48] sm:$0xc0] %v3358
  %3384 = vst [vmem:[#allocation3 + $0x50] sm:$0xc0] %v3359
  %3385 = vst [vmem:[#allocation3 + $0x58] sm:$0xc0] %v3360
  %vm3386 = vcmask 678918
  %3387 = vst.msk [vmem:[#allocation3 + $0x60] sm:$0xc0] %vm3386, %v3348
  %3388 = vst [vmem:[#allocation3 + $0x68] sm:$0xf] %v3349
  %3389 = vst [vmem:[#allocation3 + $0x70] sm:$0xf] %v3350
  %3390 = vst [vmem:[#allocation3 + $0x78] sm:$0xf] %v3351
  %3391 = vst [vmem:[#allocation3 + $0x80] sm:$0xf] %v3352
  %3392 = vst [vmem:[#allocation3 + $0x88] sm:$0xf] %v3353
  %3393 = vst [vmem:[#allocation3 + $0x90] sm:$0xf] %v3354
  %3394 = vst [vmem:[#allocation3 + $0x98] sm:$0xf] %v3355
  %3395 = vst [vmem:[#allocation3 + $0xa0] sm:$0xf] %v3356
  %3396 = vst [vmem:[#allocation3 + $0xa8] sm:$0xf] %v3357
  %3397 = vst [vmem:[#allocation3 + $0xb0] sm:$0xf] %v3358
  %3398 = vst [vmem:[#allocation3 + $0xb8] sm:$0xf] %v3359
  %3399 = vst [vmem:[#allocation3 + $0xc0] sm:$0xf] %v3360
  %vm3400 = vcmask 674816
  %3401 = vst.msk [vmem:[#allocation3 + $0xc8] sm:$0xf] %vm3400, %v3348
  %v3402 = vrot.slane %v3268, 4
  %v3403 = vrot.slane %v3269, 4
  %v3404 = vrot.slane %v3270, 4
  %v3405 = vrot.slane %v3271, 4
  %v3406 = vrot.slane %v3272, 4
  %v3407 = vrot.slane %v3273, 4
  %v3408 = vrot.slane %v3274, 4
  %v3409 = vrot.slane %v3275, 4
  %v3410 = vrot.slane %v3276, 4
  %v3411 = vrot.slane %v3277, 4
  %v3412 = vrot.slane %v3278, 4
  %v3413 = vrot.slane %v3279, 4
  %v3414 = vrot.slane %v3280, 4
  %3415 = vrot.lane.b32.xlu0 %v3402, 124
  %v3416 = vpop.permute.xlu0 %3415
  %3417 = vrot.lane.b32.xlu0 %v3403, 124
  %v3418 = vpop.permute.xlu0 %3417
  %3419 = vrot.lane.b32.xlu0 %v3404, 124
  %v3420 = vpop.permute.xlu0 %3419
  %3421 = vrot.lane.b32.xlu0 %v3405, 124
  %v3422 = vpop.permute.xlu0 %3421
  %3423 = vrot.lane.b32.xlu0 %v3406, 124
  %v3424 = vpop.permute.xlu0 %3423
  %3425 = vrot.lane.b32.xlu0 %v3407, 124
  %v3426 = vpop.permute.xlu0 %3425
  %3427 = vrot.lane.b32.xlu0 %v3408, 124
  %v3428 = vpop.permute.xlu0 %3427
  %3429 = vrot.lane.b32.xlu0 %v3409, 124
  %v3430 = vpop.permute.xlu0 %3429
  %3431 = vrot.lane.b32.xlu0 %v3410, 124
  %v3432 = vpop.permute.xlu0 %3431
  %3433 = vrot.lane.b32.xlu0 %v3411, 124
  %v3434 = vpop.permute.xlu0 %3433
  %3435 = vrot.lane.b32.xlu0 %v3412, 124
  %v3436 = vpop.permute.xlu0 %3435
  %3437 = vrot.lane.b32.xlu0 %v3413, 124
  %v3438 = vpop.permute.xlu0 %3437
  %3439 = vrot.lane.b32.xlu0 %v3414, 124
  %v3440 = vpop.permute.xlu0 %3439
  %v3441 = vsel %vm405, %v3416, %v3418
  %v3442 = vsel %vm405, %v3418, %v3420
  %v3443 = vsel %vm405, %v3420, %v3422
  %v3444 = vsel %vm405, %v3422, %v3424
  %v3445 = vsel %vm405, %v3424, %v3426
  %v3446 = vsel %vm405, %v3426, %v3428
  %v3447 = vsel %vm405, %v3428, %v3430
  %v3448 = vsel %vm405, %v3430, %v3432
  %v3449 = vsel %vm405, %v3432, %v3434
  %v3450 = vsel %vm405, %v3434, %v3436
  %v3451 = vsel %vm405, %v3436, %v3438
  %v3452 = vsel %vm405, %v3438, %v3440
  %3466 = vst [vmem:[#allocation3 + $0x68] sm:$0xf0] %v3441
  %3467 = vst [vmem:[#allocation3 + $0x70] sm:$0xf0] %v3442
  %3468 = vst [vmem:[#allocation3 + $0x78] sm:$0xf0] %v3443
  %3469 = vst [vmem:[#allocation3 + $0x80] sm:$0xf0] %v3444
  %3470 = vst [vmem:[#allocation3 + $0x88] sm:$0xf0] %v3445
  %3471 = vst [vmem:[#allocation3 + $0x90] sm:$0xf0] %v3446
  %3472 = vst [vmem:[#allocation3 + $0x98] sm:$0xf0] %v3447
  %3473 = vst [vmem:[#allocation3 + $0xa0] sm:$0xf0] %v3448
  %3474 = vst [vmem:[#allocation3 + $0xa8] sm:$0xf0] %v3449
  %3475 = vst [vmem:[#allocation3 + $0xb0] sm:$0xf0] %v3450
  %3476 = vst [vmem:[#allocation3 + $0xb8] sm:$0xf0] %v3451
  %3477 = vst [vmem:[#allocation3 + $0xc0] sm:$0xf0] %v3452
  %vm3478 = vcmask 678916
  %3479 = vst.msk [vmem:[#allocation3 + $0xc8] sm:$0xf0] %vm3478, %v3440
  %3480 = vst [vmem:[#allocation3 + $0xd0] sm:$0x3] %v3441
  %3481 = vst [vmem:[#allocation3 + $0xd8] sm:$0x3] %v3442
  %3482 = vst [vmem:[#allocation3 + $0xe0] sm:$0x3] %v3443
  %3483 = vst [vmem:[#allocation3 + $0xe8] sm:$0x3] %v3444
  %3484 = vst [vmem:[#allocation3 + $0xf0] sm:$0x3] %v3445
  %3485 = vst [vmem:[#allocation3 + $0xf8] sm:$0x3] %v3446
  %3486 = vst [vmem:[#allocation3 + $0x100] sm:$0x3] %v3447
  %3487 = vst [vmem:[#allocation3 + $0x108] sm:$0x3] %v3448
  %3488 = vst [vmem:[#allocation3 + $0x110] sm:$0x3] %v3449
  %3489 = vst [vmem:[#allocation3 + $0x118] sm:$0x3] %v3450
  %3490 = vst [vmem:[#allocation3 + $0x120] sm:$0x3] %v3451
  %3491 = vst [vmem:[#allocation3 + $0x128] sm:$0x3] %v3452
  %vm3492 = vcmask 672768
  %3493 = vst.msk [vmem:[#allocation3 + $0x130] sm:$0x3] %vm3492, %v3440
  %v3494 = vrot.slane %v3268, 6
  %v3495 = vrot.slane %v3269, 6
  %v3496 = vrot.slane %v3270, 6
  %v3497 = vrot.slane %v3271, 6
  %v3498 = vrot.slane %v3272, 6
  %v3499 = vrot.slane %v3273, 6
  %v3500 = vrot.slane %v3274, 6
  %v3501 = vrot.slane %v3275, 6
  %v3502 = vrot.slane %v3276, 6
  %v3503 = vrot.slane %v3277, 6
  %v3504 = vrot.slane %v3278, 6
  %v3505 = vrot.slane %v3279, 6
  %v3506 = vrot.slane %v3280, 6
  %3507 = vrot.lane.b32.xlu0 %v3494, 122
  %v3508 = vpop.permute.xlu0 %3507
  %3509 = vrot.lane.b32.xlu0 %v3495, 122
  %v3510 = vpop.permute.xlu0 %3509
  %3511 = vrot.lane.b32.xlu0 %v3496, 122
  %v3512 = vpop.permute.xlu0 %3511
  %3513 = vrot.lane.b32.xlu0 %v3497, 122
  %v3514 = vpop.permute.xlu0 %3513
  %3515 = vrot.lane.b32.xlu0 %v3498, 122
  %v3516 = vpop.permute.xlu0 %3515
  %3517 = vrot.lane.b32.xlu0 %v3499, 122
  %v3518 = vpop.permute.xlu0 %3517
  %3519 = vrot.lane.b32.xlu0 %v3500, 122
  %v3520 = vpop.permute.xlu0 %3519
  %3521 = vrot.lane.b32.xlu0 %v3501, 122
  %v3522 = vpop.permute.xlu0 %3521
  %3523 = vrot.lane.b32.xlu0 %v3502, 122
  %v3524 = vpop.permute.xlu0 %3523
  %3525 = vrot.lane.b32.xlu0 %v3503, 122
  %v3526 = vpop.permute.xlu0 %3525
  %3527 = vrot.lane.b32.xlu0 %v3504, 122
  %v3528 = vpop.permute.xlu0 %3527
  %3529 = vrot.lane.b32.xlu0 %v3505, 122
  %v3530 = vpop.permute.xlu0 %3529
  %3531 = vrot.lane.b32.xlu0 %v3506, 122
  %v3532 = vpop.permute.xlu0 %3531
  %vm3533 = vcmask 998400
  %v3534 = vsel %vm3533, %v3508, %v3510
  %v3535 = vsel %vm3533, %v3510, %v3512
  %v3536 = vsel %vm3533, %v3512, %v3514
  %v3537 = vsel %vm3533, %v3514, %v3516
  %v3538 = vsel %vm3533, %v3516, %v3518
  %v3539 = vsel %vm3533, %v3518, %v3520
  %v3540 = vsel %vm3533, %v3520, %v3522
  %v3541 = vsel %vm3533, %v3522, %v3524
  %v3542 = vsel %vm3533, %v3524, %v3526
  %v3543 = vsel %vm3533, %v3526, %v3528
  %v3544 = vsel %vm3533, %v3528, %v3530
  %v3545 = vsel %vm3533, %v3530, %v3532
  %3559 = vst [vmem:[#allocation3 + $0xd0] sm:$0xfc] %v3534
  %3560 = vst [vmem:[#allocation3 + $0xd8] sm:$0xfc] %v3535
  %3561 = vst [vmem:[#allocation3 + $0xe0] sm:$0xfc] %v3536
  %3562 = vst [vmem:[#allocation3 + $0xe8] sm:$0xfc] %v3537
  %3563 = vst [vmem:[#allocation3 + $0xf0] sm:$0xfc] %v3538
  %3564 = vst [vmem:[#allocation3 + $0xf8] sm:$0xfc] %v3539
  %3565 = vst [vmem:[#allocation3 + $0x100] sm:$0xfc] %v3540
  %3566 = vst [vmem:[#allocation3 + $0x108] sm:$0xfc] %v3541
  %3567 = vst [vmem:[#allocation3 + $0x110] sm:$0xfc] %v3542
  %3568 = vst [vmem:[#allocation3 + $0x118] sm:$0xfc] %v3543
  %3569 = vst [vmem:[#allocation3 + $0x120] sm:$0xfc] %v3544
  %3570 = vst [vmem:[#allocation3 + $0x128] sm:$0xfc] %v3545
  %vm3571 = vcmask 678914
  %3572 = vst.msk [vmem:[#allocation3 + $0x130] sm:$0xfc] %vm3571, %v3532
  %3573 = vrot.lane.b32.xlu0 %v3268, 120
  %v3574 = vpop.permute.xlu0 %3573
  %3575 = vrot.lane.b32.xlu0 %v3269, 120
  %v3576 = vpop.permute.xlu0 %3575
  %3577 = vrot.lane.b32.xlu0 %v3270, 120
  %v3578 = vpop.permute.xlu0 %3577
  %3579 = vrot.lane.b32.xlu0 %v3271, 120
  %v3580 = vpop.permute.xlu0 %3579
  %3581 = vrot.lane.b32.xlu0 %v3272, 120
  %v3582 = vpop.permute.xlu0 %3581
  %3583 = vrot.lane.b32.xlu0 %v3273, 120
  %v3584 = vpop.permute.xlu0 %3583
  %3585 = vrot.lane.b32.xlu0 %v3274, 120
  %v3586 = vpop.permute.xlu0 %3585
  %3587 = vrot.lane.b32.xlu0 %v3275, 120
  %v3588 = vpop.permute.xlu0 %3587
  %3589 = vrot.lane.b32.xlu0 %v3276, 120
  %v3590 = vpop.permute.xlu0 %3589
  %3591 = vrot.lane.b32.xlu0 %v3277, 120
  %v3592 = vpop.permute.xlu0 %3591
  %3593 = vrot.lane.b32.xlu0 %v3278, 120
  %v3594 = vpop.permute.xlu0 %3593
  %3595 = vrot.lane.b32.xlu0 %v3279, 120
  %v3596 = vpop.permute.xlu0 %3595
  %3597 = vrot.lane.b32.xlu0 %v3280, 120
  %v3598 = vpop.permute.xlu0 %3597
  %vm3599 = vcmask 982016
  %v3600 = vsel %vm3599, %v3574, %v3576
  %v3601 = vsel %vm3599, %v3576, %v3578
  %v3602 = vsel %vm3599, %v3578, %v3580
  %v3603 = vsel %vm3599, %v3580, %v3582
  %v3604 = vsel %vm3599, %v3582, %v3584
  %v3605 = vsel %vm3599, %v3584, %v3586
  %v3606 = vsel %vm3599, %v3586, %v3588
  %v3607 = vsel %vm3599, %v3588, %v3590
  %v3608 = vsel %vm3599, %v3590, %v3592
  %v3609 = vsel %vm3599, %v3592, %v3594
  %v3610 = vsel %vm3599, %v3594, %v3596
  %v3611 = vsel %vm3599, %v3596, %v3598
  %3625 = vst [vmem:[#allocation3 + $0x138] sm:$0x3f] %v3600
  %3626 = vst [vmem:[#allocation3 + $0x140] sm:$0x3f] %v3601
  %3627 = vst [vmem:[#allocation3 + $0x148] sm:$0x3f] %v3602
  %3628 = vst [vmem:[#allocation3 + $0x150] sm:$0x3f] %v3603
  %3629 = vst [vmem:[#allocation3 + $0x158] sm:$0x3f] %v3604
  %3630 = vst [vmem:[#allocation3 + $0x160] sm:$0x3f] %v3605
  %3631 = vst [vmem:[#allocation3 + $0x168] sm:$0x3f] %v3606
  %3632 = vst [vmem:[#allocation3 + $0x170] sm:$0x3f] %v3607
  %3633 = vst [vmem:[#allocation3 + $0x178] sm:$0x3f] %v3608
  %3634 = vst [vmem:[#allocation3 + $0x180] sm:$0x3f] %v3609
  %3635 = vst [vmem:[#allocation3 + $0x188] sm:$0x3f] %v3610
  %3636 = vst [vmem:[#allocation3 + $0x190] sm:$0x3f] %v3611
  %3637 = vst.msk [vmem:[#allocation3 + $0x198] sm:$0x3f] %vm3295, %v3598
  %v3639 = vrot.slane %v3281, 2
  %3640 = vrot.lane.b32.xlu0 %v3310, 64
  %v3641 = vpop.permute.xlu0 %3640
  %3642 = vrot.lane.b32.xlu0 %v3311, 64
  %v3643 = vpop.permute.xlu0 %3642
  %3644 = vrot.lane.b32.xlu0 %v3312, 64
  %v3645 = vpop.permute.xlu0 %3644
  %3646 = vrot.lane.b32.xlu0 %v3313, 64
  %v3647 = vpop.permute.xlu0 %3646
  %3648 = vrot.lane.b32.xlu0 %v3314, 64
  %v3649 = vpop.permute.xlu0 %3648
  %3650 = vrot.lane.b32.xlu0 %v3315, 64
  %v3651 = vpop.permute.xlu0 %3650
  %3652 = vrot.lane.b32.xlu0 %v3316, 64
  %v3653 = vpop.permute.xlu0 %3652
  %3654 = vrot.lane.b32.xlu0 %v3317, 64
  %v3655 = vpop.permute.xlu0 %3654
  %3656 = vrot.lane.b32.xlu0 %v3318, 64
  %v3657 = vpop.permute.xlu0 %3656
  %3658 = vrot.lane.b32.xlu0 %v3319, 64
  %v3659 = vpop.permute.xlu0 %3658
  %3660 = vrot.lane.b32.xlu0 %v3320, 64
  %v3661 = vpop.permute.xlu0 %3660
  %3662 = vrot.lane.b32.xlu0 %v3321, 64
  %v3663 = vpop.permute.xlu0 %3662
  %3664 = vrot.lane.b32.xlu0 %v3322, 64
  %v3665 = vpop.permute.xlu0 %3664
  %3666 = vrot.lane.b32.xlu0 %v3639, 64
  %v3667 = vpop.permute.xlu0 %3666
  %v3668 = vsel %vm943, %v3641, %v3643
  %v3669 = vsel %vm943, %v3643, %v3645
  %v3670 = vsel %vm943, %v3645, %v3647
  %v3671 = vsel %vm943, %v3647, %v3649
  %v3672 = vsel %vm943, %v3649, %v3651
  %v3673 = vsel %vm943, %v3651, %v3653
  %v3674 = vsel %vm943, %v3653, %v3655
  %v3675 = vsel %vm943, %v3655, %v3657
  %v3676 = vsel %vm943, %v3657, %v3659
  %v3677 = vsel %vm943, %v3659, %v3661
  %v3678 = vsel %vm943, %v3661, %v3663
  %v3679 = vsel %vm943, %v3663, %v3665
  %v3680 = vsel %vm943, %v3665, %v3667
  %3694 = vst [vmem:[#allocation3 + $0x138] sm:$0xc0] %v3668
  %3695 = vst [vmem:[#allocation3 + $0x140] sm:$0xc0] %v3669
  %3696 = vst [vmem:[#allocation3 + $0x148] sm:$0xc0] %v3670
  %3697 = vst [vmem:[#allocation3 + $0x150] sm:$0xc0] %v3671
  %3698 = vst [vmem:[#allocation3 + $0x158] sm:$0xc0] %v3672
  %3699 = vst [vmem:[#allocation3 + $0x160] sm:$0xc0] %v3673
  %3700 = vst [vmem:[#allocation3 + $0x168] sm:$0xc0] %v3674
  %3701 = vst [vmem:[#allocation3 + $0x170] sm:$0xc0] %v3675
  %3702 = vst [vmem:[#allocation3 + $0x178] sm:$0xc0] %v3676
  %3703 = vst [vmem:[#allocation3 + $0x180] sm:$0xc0] %v3677
  %3704 = vst [vmem:[#allocation3 + $0x188] sm:$0xc0] %v3678
  %3705 = vst [vmem:[#allocation3 + $0x190] sm:$0xc0] %v3679
  %3706 = vst.msk [vmem:[#allocation3 + $0x198] sm:$0xc0] %vm3386, %v3680
  %3707 = vst [vmem:[#allocation3 + $0x1a0] sm:$0xf] %v3668
  %3708 = vst [vmem:[#allocation3 + $0x1a8] sm:$0xf] %v3669
  %3709 = vst [vmem:[#allocation3 + $0x1b0] sm:$0xf] %v3670
  %3710 = vst [vmem:[#allocation3 + $0x1b8] sm:$0xf] %v3671
  %3711 = vst [vmem:[#allocation3 + $0x1c0] sm:$0xf] %v3672
  %3712 = vst [vmem:[#allocation3 + $0x1c8] sm:$0xf] %v3673
  %3713 = vst [vmem:[#allocation3 + $0x1d0] sm:$0xf] %v3674
  %3714 = vst [vmem:[#allocation3 + $0x1d8] sm:$0xf] %v3675
  %3715 = vst [vmem:[#allocation3 + $0x1e0] sm:$0xf] %v3676
  %3716 = vst [vmem:[#allocation3 + $0x1e8] sm:$0xf] %v3677
  %3717 = vst [vmem:[#allocation3 + $0x1f0] sm:$0xf] %v3678
  %3718 = vst [vmem:[#allocation3 + $0x1f8] sm:$0xf] %v3679
  %3719 = vst.msk [vmem:[#allocation3 + $0x200] sm:$0xf] %vm3400, %v3680
  %v3720 = vrot.slane %v3281, 4
  %3721 = vrot.lane.b32.xlu0 %v3402, 62
  %v3722 = vpop.permute.xlu0 %3721
  %3723 = vrot.lane.b32.xlu0 %v3403, 62
  %v3724 = vpop.permute.xlu0 %3723
  %3725 = vrot.lane.b32.xlu0 %v3404, 62
  %v3726 = vpop.permute.xlu0 %3725
  %3727 = vrot.lane.b32.xlu0 %v3405, 62
  %v3728 = vpop.permute.xlu0 %3727
  %3729 = vrot.lane.b32.xlu0 %v3406, 62
  %v3730 = vpop.permute.xlu0 %3729
  %3731 = vrot.lane.b32.xlu0 %v3407, 62
  %v3732 = vpop.permute.xlu0 %3731
  %3733 = vrot.lane.b32.xlu0 %v3408, 62
  %v3734 = vpop.permute.xlu0 %3733
  %3735 = vrot.lane.b32.xlu0 %v3409, 62
  %v3736 = vpop.permute.xlu0 %3735
  %3737 = vrot.lane.b32.xlu0 %v3410, 62
  %v3738 = vpop.permute.xlu0 %3737
  %3739 = vrot.lane.b32.xlu0 %v3411, 62
  %v3740 = vpop.permute.xlu0 %3739
  %3741 = vrot.lane.b32.xlu0 %v3412, 62
  %v3742 = vpop.permute.xlu0 %3741
  %3743 = vrot.lane.b32.xlu0 %v3413, 62
  %v3744 = vpop.permute.xlu0 %3743
  %3745 = vrot.lane.b32.xlu0 %v3414, 62
  %v3746 = vpop.permute.xlu0 %3745
  %3747 = vrot.lane.b32.xlu0 %v3720, 62
  %v3748 = vpop.permute.xlu0 %3747
  %v3749 = vsel %vm1115, %v3722, %v3724
  %v3750 = vsel %vm1115, %v3724, %v3726
  %v3751 = vsel %vm1115, %v3726, %v3728
  %v3752 = vsel %vm1115, %v3728, %v3730
  %v3753 = vsel %vm1115, %v3730, %v3732
  %v3754 = vsel %vm1115, %v3732, %v3734
  %v3755 = vsel %vm1115, %v3734, %v3736
  %v3756 = vsel %vm1115, %v3736, %v3738
  %v3757 = vsel %vm1115, %v3738, %v3740
  %v3758 = vsel %vm1115, %v3740, %v3742
  %v3759 = vsel %vm1115, %v3742, %v3744
  %v3760 = vsel %vm1115, %v3744, %v3746
  %v3761 = vsel %vm1115, %v3746, %v3748
  %3775 = vst [vmem:[#allocation3 + $0x1a0] sm:$0xf0] %v3749
  %3776 = vst [vmem:[#allocation3 + $0x1a8] sm:$0xf0] %v3750
  %3777 = vst [vmem:[#allocation3 + $0x1b0] sm:$0xf0] %v3751
  %3778 = vst [vmem:[#allocation3 + $0x1b8] sm:$0xf0] %v3752
  %3779 = vst [vmem:[#allocation3 + $0x1c0] sm:$0xf0] %v3753
  %3780 = vst [vmem:[#allocation3 + $0x1c8] sm:$0xf0] %v3754
  %3781 = vst [vmem:[#allocation3 + $0x1d0] sm:$0xf0] %v3755
  %3782 = vst [vmem:[#allocation3 + $0x1d8] sm:$0xf0] %v3756
  %3783 = vst [vmem:[#allocation3 + $0x1e0] sm:$0xf0] %v3757
  %3784 = vst [vmem:[#allocation3 + $0x1e8] sm:$0xf0] %v3758
  %3785 = vst [vmem:[#allocation3 + $0x1f0] sm:$0xf0] %v3759
  %3786 = vst [vmem:[#allocation3 + $0x1f8] sm:$0xf0] %v3760
  %3787 = vst.msk [vmem:[#allocation3 + $0x200] sm:$0xf0] %vm3478, %v3761
  %3788 = vst [vmem:[#allocation3 + $0x208] sm:$0x3] %v3749
  %3789 = vst [vmem:[#allocation3 + $0x210] sm:$0x3] %v3750
  %3790 = vst [vmem:[#allocation3 + $0x218] sm:$0x3] %v3751
  %3791 = vst [vmem:[#allocation3 + $0x220] sm:$0x3] %v3752
  %3792 = vst [vmem:[#allocation3 + $0x228] sm:$0x3] %v3753
  %3793 = vst [vmem:[#allocation3 + $0x230] sm:$0x3] %v3754
  %3794 = vst [vmem:[#allocation3 + $0x238] sm:$0x3] %v3755
  %3795 = vst [vmem:[#allocation3 + $0x240] sm:$0x3] %v3756
  %3796 = vst [vmem:[#allocation3 + $0x248] sm:$0x3] %v3757
  %3797 = vst [vmem:[#allocation3 + $0x250] sm:$0x3] %v3758
  %3798 = vst [vmem:[#allocation3 + $0x258] sm:$0x3] %v3759
  %3799 = vst [vmem:[#allocation3 + $0x260] sm:$0x3] %v3760
  %3800 = vst.msk [vmem:[#allocation3 + $0x268] sm:$0x3] %vm3492, %v3761
  %v3801 = vrot.slane %v3281, 6
  %3802 = vrot.lane.b32.xlu0 %v3494, 60
  %v3803 = vpop.permute.xlu0 %3802
  %3804 = vrot.lane.b32.xlu0 %v3495, 60
  %v3805 = vpop.permute.xlu0 %3804
  %3806 = vrot.lane.b32.xlu0 %v3496, 60
  %v3807 = vpop.permute.xlu0 %3806
  %3808 = vrot.lane.b32.xlu0 %v3497, 60
  %v3809 = vpop.permute.xlu0 %3808
  %3810 = vrot.lane.b32.xlu0 %v3498, 60
  %v3811 = vpop.permute.xlu0 %3810
  %3812 = vrot.lane.b32.xlu0 %v3499, 60
  %v3813 = vpop.permute.xlu0 %3812
  %3814 = vrot.lane.b32.xlu0 %v3500, 60
  %v3815 = vpop.permute.xlu0 %3814
  %3816 = vrot.lane.b32.xlu0 %v3501, 60
  %v3817 = vpop.permute.xlu0 %3816
  %3818 = vrot.lane.b32.xlu0 %v3502, 60
  %v3819 = vpop.permute.xlu0 %3818
  %3820 = vrot.lane.b32.xlu0 %v3503, 60
  %v3821 = vpop.permute.xlu0 %3820
  %3822 = vrot.lane.b32.xlu0 %v3504, 60
  %v3823 = vpop.permute.xlu0 %3822
  %3824 = vrot.lane.b32.xlu0 %v3505, 60
  %v3825 = vpop.permute.xlu0 %3824
  %3826 = vrot.lane.b32.xlu0 %v3506, 60
  %v3827 = vpop.permute.xlu0 %3826
  %3828 = vrot.lane.b32.xlu0 %v3801, 60
  %v3829 = vpop.permute.xlu0 %3828
  %v3830 = vsel %vm1286, %v3803, %v3805
  %v3831 = vsel %vm1286, %v3805, %v3807
  %v3832 = vsel %vm1286, %v3807, %v3809
  %v3833 = vsel %vm1286, %v3809, %v3811
  %v3834 = vsel %vm1286, %v3811, %v3813
  %v3835 = vsel %vm1286, %v3813, %v3815
  %v3836 = vsel %vm1286, %v3815, %v3817
  %v3837 = vsel %vm1286, %v3817, %v3819
  %v3838 = vsel %vm1286, %v3819, %v3821
  %v3839 = vsel %vm1286, %v3821, %v3823
  %v3840 = vsel %vm1286, %v3823, %v3825
  %v3841 = vsel %vm1286, %v3825, %v3827
  %v3842 = vsel %vm1286, %v3827, %v3829
  %3856 = vst [vmem:[#allocation3 + $0x208] sm:$0xfc] %v3830
  %3857 = vst [vmem:[#allocation3 + $0x210] sm:$0xfc] %v3831
  %3858 = vst [vmem:[#allocation3 + $0x218] sm:$0xfc] %v3832
  %3859 = vst [vmem:[#allocation3 + $0x220] sm:$0xfc] %v3833
  %3860 = vst [vmem:[#allocation3 + $0x228] sm:$0xfc] %v3834
  %3861 = vst [vmem:[#allocation3 + $0x230] sm:$0xfc] %v3835
  %3862 = vst [vmem:[#allocation3 + $0x238] sm:$0xfc] %v3836
  %3863 = vst [vmem:[#allocation3 + $0x240] sm:$0xfc] %v3837
  %3864 = vst [vmem:[#allocation3 + $0x248] sm:$0xfc] %v3838
  %3865 = vst [vmem:[#allocation3 + $0x250] sm:$0xfc] %v3839
  %3866 = vst [vmem:[#allocation3 + $0x258] sm:$0xfc] %v3840
  %3867 = vst [vmem:[#allocation3 + $0x260] sm:$0xfc] %v3841
  %3868 = vst.msk [vmem:[#allocation3 + $0x268] sm:$0xfc] %vm3571, %v3842
  %3869 = vrot.lane.b32.xlu0 %v3268, 58
  %v3870 = vpop.permute.xlu0 %3869
  %3871 = vrot.lane.b32.xlu0 %v3269, 58
  %v3872 = vpop.permute.xlu0 %3871
  %3873 = vrot.lane.b32.xlu0 %v3270, 58
  %v3874 = vpop.permute.xlu0 %3873
  %3875 = vrot.lane.b32.xlu0 %v3271, 58
  %v3876 = vpop.permute.xlu0 %3875
  %3877 = vrot.lane.b32.xlu0 %v3272, 58
  %v3878 = vpop.permute.xlu0 %3877
  %3879 = vrot.lane.b32.xlu0 %v3273, 58
  %v3880 = vpop.permute.xlu0 %3879
  %3881 = vrot.lane.b32.xlu0 %v3274, 58
  %v3882 = vpop.permute.xlu0 %3881
  %3883 = vrot.lane.b32.xlu0 %v3275, 58
  %v3884 = vpop.permute.xlu0 %3883
  %3885 = vrot.lane.b32.xlu0 %v3276, 58
  %v3886 = vpop.permute.xlu0 %3885
  %3887 = vrot.lane.b32.xlu0 %v3277, 58
  %v3888 = vpop.permute.xlu0 %3887
  %3889 = vrot.lane.b32.xlu0 %v3278, 58
  %v3890 = vpop.permute.xlu0 %3889
  %3891 = vrot.lane.b32.xlu0 %v3279, 58
  %v3892 = vpop.permute.xlu0 %3891
  %3893 = vrot.lane.b32.xlu0 %v3280, 58
  %v3894 = vpop.permute.xlu0 %3893
  %3895 = vrot.lane.b32.xlu0 %v3281, 58
  %v3896 = vpop.permute.xlu0 %3895
  %vm3897 = vcmask 474112
  %v3898 = vsel %vm3897, %v3870, %v3872
  %v3899 = vsel %vm3897, %v3872, %v3874
  %v3900 = vsel %vm3897, %v3874, %v3876
  %v3901 = vsel %vm3897, %v3876, %v3878
  %v3902 = vsel %vm3897, %v3878, %v3880
  %v3903 = vsel %vm3897, %v3880, %v3882
  %v3904 = vsel %vm3897, %v3882, %v3884
  %v3905 = vsel %vm3897, %v3884, %v3886
  %v3906 = vsel %vm3897, %v3886, %v3888
  %v3907 = vsel %vm3897, %v3888, %v3890
  %v3908 = vsel %vm3897, %v3890, %v3892
  %v3909 = vsel %vm3897, %v3892, %v3894
  %v3910 = vsel %vm3897, %v3894, %v3896
  %3924 = vst [vmem:[#allocation3 + $0x270] sm:$0x3f] %v3898
  %3925 = vst [vmem:[#allocation3 + $0x278] sm:$0x3f] %v3899
  %3926 = vst [vmem:[#allocation3 + $0x280] sm:$0x3f] %v3900
  %3927 = vst [vmem:[#allocation3 + $0x288] sm:$0x3f] %v3901
  %3928 = vst [vmem:[#allocation3 + $0x290] sm:$0x3f] %v3902
  %3929 = vst [vmem:[#allocation3 + $0x298] sm:$0x3f] %v3903
  %3930 = vst [vmem:[#allocation3 + $0x2a0] sm:$0x3f] %v3904
  %3931 = vst [vmem:[#allocation3 + $0x2a8] sm:$0x3f] %v3905
  %3932 = vst [vmem:[#allocation3 + $0x2b0] sm:$0x3f] %v3906
  %3933 = vst [vmem:[#allocation3 + $0x2b8] sm:$0x3f] %v3907
  %3934 = vst [vmem:[#allocation3 + $0x2c0] sm:$0x3f] %v3908
  %3935 = vst [vmem:[#allocation3 + $0x2c8] sm:$0x3f] %v3909
  %3936 = vst.msk [vmem:[#allocation3 + $0x2d0] sm:$0x3f] %vm3295, %v3910
  %3937 = vrot.lane.b32.xlu0 %v3310, 56
  %v3938 = vpop.permute.xlu0 %3937
  %3939 = vrot.lane.b32.xlu0 %v3311, 56
  %v3940 = vpop.permute.xlu0 %3939
  %3941 = vrot.lane.b32.xlu0 %v3312, 56
  %v3942 = vpop.permute.xlu0 %3941
  %3943 = vrot.lane.b32.xlu0 %v3313, 56
  %v3944 = vpop.permute.xlu0 %3943
  %3945 = vrot.lane.b32.xlu0 %v3314, 56
  %v3946 = vpop.permute.xlu0 %3945
  %3947 = vrot.lane.b32.xlu0 %v3315, 56
  %v3948 = vpop.permute.xlu0 %3947
  %3949 = vrot.lane.b32.xlu0 %v3316, 56
  %v3950 = vpop.permute.xlu0 %3949
  %3951 = vrot.lane.b32.xlu0 %v3317, 56
  %v3952 = vpop.permute.xlu0 %3951
  %3953 = vrot.lane.b32.xlu0 %v3318, 56
  %v3954 = vpop.permute.xlu0 %3953
  %3955 = vrot.lane.b32.xlu0 %v3319, 56
  %v3956 = vpop.permute.xlu0 %3955
  %3957 = vrot.lane.b32.xlu0 %v3320, 56
  %v3958 = vpop.permute.xlu0 %3957
  %3959 = vrot.lane.b32.xlu0 %v3321, 56
  %v3960 = vpop.permute.xlu0 %3959
  %3961 = vrot.lane.b32.xlu0 %v3322, 56
  %v3962 = vpop.permute.xlu0 %3961
  %3963 = vrot.lane.b32.xlu0 %v3639, 56
  %v3964 = vpop.permute.xlu0 %3963
  %vm3965 = vcmask 457728
  %v3966 = vsel %vm3965, %v3938, %v3940
  %v3967 = vsel %vm3965, %v3940, %v3942
  %v3968 = vsel %vm3965, %v3942, %v3944
  %v3969 = vsel %vm3965, %v3944, %v3946
  %v3970 = vsel %vm3965, %v3946, %v3948
  %v3971 = vsel %vm3965, %v3948, %v3950
  %v3972 = vsel %vm3965, %v3950, %v3952
  %v3973 = vsel %vm3965, %v3952, %v3954
  %v3974 = vsel %vm3965, %v3954, %v3956
  %v3975 = vsel %vm3965, %v3956, %v3958
  %v3976 = vsel %vm3965, %v3958, %v3960
  %v3977 = vsel %vm3965, %v3960, %v3962
  %v3978 = vsel %vm3965, %v3962, %v3964
  %3992 = vst [vmem:[#allocation3 + $0x270] sm:$0xc0] %v3966
  %3993 = vst [vmem:[#allocation3 + $0x278] sm:$0xc0] %v3967
  %3994 = vst [vmem:[#allocation3 + $0x280] sm:$0xc0] %v3968
  %3995 = vst [vmem:[#allocation3 + $0x288] sm:$0xc0] %v3969
  %3996 = vst [vmem:[#allocation3 + $0x290] sm:$0xc0] %v3970
  %3997 = vst [vmem:[#allocation3 + $0x298] sm:$0xc0] %v3971
  %3998 = vst [vmem:[#allocation3 + $0x2a0] sm:$0xc0] %v3972
  %3999 = vst [vmem:[#allocation3 + $0x2a8] sm:$0xc0] %v3973
  %4000 = vst [vmem:[#allocation3 + $0x2b0] sm:$0xc0] %v3974
  %4001 = vst [vmem:[#allocation3 + $0x2b8] sm:$0xc0] %v3975
  %4002 = vst [vmem:[#allocation3 + $0x2c0] sm:$0xc0] %v3976
  %4003 = vst [vmem:[#allocation3 + $0x2c8] sm:$0xc0] %v3977
  %4004 = vst.msk [vmem:[#allocation3 + $0x2d0] sm:$0xc0] %vm3386, %v3978
  %4005 = vst [vmem:[#allocation3 + $0x2d8] sm:$0xf] %v3966
  %4006 = vst [vmem:[#allocation3 + $0x2e0] sm:$0xf] %v3967
  %4007 = vst [vmem:[#allocation3 + $0x2e8] sm:$0xf] %v3968
  %4008 = vst [vmem:[#allocation3 + $0x2f0] sm:$0xf] %v3969
  %4009 = vst [vmem:[#allocation3 + $0x2f8] sm:$0xf] %v3970
  %4010 = vst [vmem:[#allocation3 + $0x300] sm:$0xf] %v3971
  %4011 = vst [vmem:[#allocation3 + $0x308] sm:$0xf] %v3972
  %4012 = vst [vmem:[#allocation3 + $0x310] sm:$0xf] %v3973
  %4013 = vst [vmem:[#allocation3 + $0x318] sm:$0xf] %v3974
  %4014 = vst [vmem:[#allocation3 + $0x320] sm:$0xf] %v3975
  %4015 = vst [vmem:[#allocation3 + $0x328] sm:$0xf] %v3976
  %4016 = vst [vmem:[#allocation3 + $0x330] sm:$0xf] %v3977
  %4017 = vst.msk [vmem:[#allocation3 + $0x338] sm:$0xf] %vm3400, %v3978
  %4031 = vst [vmem:[#allocation3 + $0x2d8] sm:$0xf0] %v3403
  %4032 = vst [vmem:[#allocation3 + $0x2e0] sm:$0xf0] %v3404
  %4033 = vst [vmem:[#allocation3 + $0x2e8] sm:$0xf0] %v3405
  %4034 = vst [vmem:[#allocation3 + $0x2f0] sm:$0xf0] %v3406
  %4035 = vst [vmem:[#allocation3 + $0x2f8] sm:$0xf0] %v3407
  %4036 = vst [vmem:[#allocation3 + $0x300] sm:$0xf0] %v3408
  %4037 = vst [vmem:[#allocation3 + $0x308] sm:$0xf0] %v3409
  %4038 = vst [vmem:[#allocation3 + $0x310] sm:$0xf0] %v3410
  %4039 = vst [vmem:[#allocation3 + $0x318] sm:$0xf0] %v3411
  %4040 = vst [vmem:[#allocation3 + $0x320] sm:$0xf0] %v3412
  %4041 = vst [vmem:[#allocation3 + $0x328] sm:$0xf0] %v3413
  %4042 = vst [vmem:[#allocation3 + $0x330] sm:$0xf0] %v3414
  %4043 = vst.msk [vmem:[#allocation3 + $0x338] sm:$0xf0] %vm3478, %v3720
  %4044 = vst [vmem:[#allocation3 + $0x340] sm:$0x3] %v3403
  %4045 = vst [vmem:[#allocation3 + $0x348] sm:$0x3] %v3404
  %4046 = vst [vmem:[#allocation3 + $0x350] sm:$0x3] %v3405
  %4047 = vst [vmem:[#allocation3 + $0x358] sm:$0x3] %v3406
  %4048 = vst [vmem:[#allocation3 + $0x360] sm:$0x3] %v3407
  %4049 = vst [vmem:[#allocation3 + $0x368] sm:$0x3] %v3408
  %4050 = vst [vmem:[#allocation3 + $0x370] sm:$0x3] %v3409
  %4051 = vst [vmem:[#allocation3 + $0x378] sm:$0x3] %v3410
  %4052 = vst [vmem:[#allocation3 + $0x380] sm:$0x3] %v3411
  %4053 = vst [vmem:[#allocation3 + $0x388] sm:$0x3] %v3412
  %4054 = vst [vmem:[#allocation3 + $0x390] sm:$0x3] %v3413
  %4055 = vst [vmem:[#allocation3 + $0x398] sm:$0x3] %v3414
  %4056 = vst.msk [vmem:[#allocation3 + $0x3a0] sm:$0x3] %vm3492, %v3720
  %4057 = vrot.lane.b32.xlu0 %v3495, 126
  %v4058 = vpop.permute.xlu0 %4057
  %4059 = vrot.lane.b32.xlu0 %v3496, 126
  %v4060 = vpop.permute.xlu0 %4059
  %4061 = vrot.lane.b32.xlu0 %v3497, 126
  %v4062 = vpop.permute.xlu0 %4061
  %4063 = vrot.lane.b32.xlu0 %v3498, 126
  %v4064 = vpop.permute.xlu0 %4063
  %4065 = vrot.lane.b32.xlu0 %v3499, 126
  %v4066 = vpop.permute.xlu0 %4065
  %4067 = vrot.lane.b32.xlu0 %v3500, 126
  %v4068 = vpop.permute.xlu0 %4067
  %4069 = vrot.lane.b32.xlu0 %v3501, 126
  %v4070 = vpop.permute.xlu0 %4069
  %4071 = vrot.lane.b32.xlu0 %v3502, 126
  %v4072 = vpop.permute.xlu0 %4071
  %4073 = vrot.lane.b32.xlu0 %v3503, 126
  %v4074 = vpop.permute.xlu0 %4073
  %4075 = vrot.lane.b32.xlu0 %v3504, 126
  %v4076 = vpop.permute.xlu0 %4075
  %4077 = vrot.lane.b32.xlu0 %v3505, 126
  %v4078 = vpop.permute.xlu0 %4077
  %4079 = vrot.lane.b32.xlu0 %v3506, 126
  %v4080 = vpop.permute.xlu0 %4079
  %4081 = vrot.lane.b32.xlu0 %v3801, 126
  %v4082 = vpop.permute.xlu0 %4081
  %v4083 = vsel %vm214, %v4058, %v4060
  %v4084 = vsel %vm214, %v4060, %v4062
  %v4085 = vsel %vm214, %v4062, %v4064
  %v4086 = vsel %vm214, %v4064, %v4066
  %v4087 = vsel %vm214, %v4066, %v4068
  %v4088 = vsel %vm214, %v4068, %v4070
  %v4089 = vsel %vm214, %v4070, %v4072
  %v4090 = vsel %vm214, %v4072, %v4074
  %v4091 = vsel %vm214, %v4074, %v4076
  %v4092 = vsel %vm214, %v4076, %v4078
  %v4093 = vsel %vm214, %v4078, %v4080
  %v4094 = vsel %vm214, %v4080, %v4082
  %4108 = vst [vmem:[#allocation3 + $0x340] sm:$0xfc] %v4083
  %4109 = vst [vmem:[#allocation3 + $0x348] sm:$0xfc] %v4084
  %4110 = vst [vmem:[#allocation3 + $0x350] sm:$0xfc] %v4085
  %4111 = vst [vmem:[#allocation3 + $0x358] sm:$0xfc] %v4086
  %4112 = vst [vmem:[#allocation3 + $0x360] sm:$0xfc] %v4087
  %4113 = vst [vmem:[#allocation3 + $0x368] sm:$0xfc] %v4088
  %4114 = vst [vmem:[#allocation3 + $0x370] sm:$0xfc] %v4089
  %4115 = vst [vmem:[#allocation3 + $0x378] sm:$0xfc] %v4090
  %4116 = vst [vmem:[#allocation3 + $0x380] sm:$0xfc] %v4091
  %4117 = vst [vmem:[#allocation3 + $0x388] sm:$0xfc] %v4092
  %4118 = vst [vmem:[#allocation3 + $0x390] sm:$0xfc] %v4093
  %4119 = vst [vmem:[#allocation3 + $0x398] sm:$0xfc] %v4094
  %4120 = vst.msk [vmem:[#allocation3 + $0x3a0] sm:$0xfc] %vm3571, %v4082
  %4121 = vrot.lane.b32.xlu0 %v3269, 124
  %v4122 = vpop.permute.xlu0 %4121
  %4123 = vrot.lane.b32.xlu0 %v3270, 124
  %v4124 = vpop.permute.xlu0 %4123
  %4125 = vrot.lane.b32.xlu0 %v3271, 124
  %v4126 = vpop.permute.xlu0 %4125
  %4127 = vrot.lane.b32.xlu0 %v3272, 124
  %v4128 = vpop.permute.xlu0 %4127
  %4129 = vrot.lane.b32.xlu0 %v3273, 124
  %v4130 = vpop.permute.xlu0 %4129
  %4131 = vrot.lane.b32.xlu0 %v3274, 124
  %v4132 = vpop.permute.xlu0 %4131
  %4133 = vrot.lane.b32.xlu0 %v3275, 124
  %v4134 = vpop.permute.xlu0 %4133
  %4135 = vrot.lane.b32.xlu0 %v3276, 124
  %v4136 = vpop.permute.xlu0 %4135
  %4137 = vrot.lane.b32.xlu0 %v3277, 124
  %v4138 = vpop.permute.xlu0 %4137
  %4139 = vrot.lane.b32.xlu0 %v3278, 124
  %v4140 = vpop.permute.xlu0 %4139
  %4141 = vrot.lane.b32.xlu0 %v3279, 124
  %v4142 = vpop.permute.xlu0 %4141
  %4143 = vrot.lane.b32.xlu0 %v3280, 124
  %v4144 = vpop.permute.xlu0 %4143
  %4145 = vrot.lane.b32.xlu0 %v3281, 124
  %v4146 = vpop.permute.xlu0 %4145
  %v4147 = vsel %vm405, %v4122, %v4124
  %v4148 = vsel %vm405, %v4124, %v4126
  %v4149 = vsel %vm405, %v4126, %v4128
  %v4150 = vsel %vm405, %v4128, %v4130
  %v4151 = vsel %vm405, %v4130, %v4132
  %v4152 = vsel %vm405, %v4132, %v4134
  %v4153 = vsel %vm405, %v4134, %v4136
  %v4154 = vsel %vm405, %v4136, %v4138
  %v4155 = vsel %vm405, %v4138, %v4140
  %v4156 = vsel %vm405, %v4140, %v4142
  %v4157 = vsel %vm405, %v4142, %v4144
  %v4158 = vsel %vm405, %v4144, %v4146
  %4172 = vst [vmem:[#allocation3 + $0x3a8] sm:$0x3f] %v4147
  %4173 = vst [vmem:[#allocation3 + $0x3b0] sm:$0x3f] %v4148
  %4174 = vst [vmem:[#allocation3 + $0x3b8] sm:$0x3f] %v4149
  %4175 = vst [vmem:[#allocation3 + $0x3c0] sm:$0x3f] %v4150
  %4176 = vst [vmem:[#allocation3 + $0x3c8] sm:$0x3f] %v4151
  %4177 = vst [vmem:[#allocation3 + $0x3d0] sm:$0x3f] %v4152
  %4178 = vst [vmem:[#allocation3 + $0x3d8] sm:$0x3f] %v4153
  %4179 = vst [vmem:[#allocation3 + $0x3e0] sm:$0x3f] %v4154
  %4180 = vst [vmem:[#allocation3 + $0x3e8] sm:$0x3f] %v4155
  %4181 = vst [vmem:[#allocation3 + $0x3f0] sm:$0x3f] %v4156
  %4182 = vst [vmem:[#allocation3 + $0x3f8] sm:$0x3f] %v4157
  %4183 = vst [vmem:[#allocation3 + $0x400] sm:$0x3f] %v4158
  %4184 = vst.msk [vmem:[#allocation3 + $0x408] sm:$0x3f] %vm3295, %v4146
  %4185 = vrot.lane.b32.xlu0 %v3311, 122
  %v4186 = vpop.permute.xlu0 %4185
  %4187 = vrot.lane.b32.xlu0 %v3312, 122
  %v4188 = vpop.permute.xlu0 %4187
  %4189 = vrot.lane.b32.xlu0 %v3313, 122
  %v4190 = vpop.permute.xlu0 %4189
  %4191 = vrot.lane.b32.xlu0 %v3314, 122
  %v4192 = vpop.permute.xlu0 %4191
  %4193 = vrot.lane.b32.xlu0 %v3315, 122
  %v4194 = vpop.permute.xlu0 %4193
  %4195 = vrot.lane.b32.xlu0 %v3316, 122
  %v4196 = vpop.permute.xlu0 %4195
  %4197 = vrot.lane.b32.xlu0 %v3317, 122
  %v4198 = vpop.permute.xlu0 %4197
  %4199 = vrot.lane.b32.xlu0 %v3318, 122
  %v4200 = vpop.permute.xlu0 %4199
  %4201 = vrot.lane.b32.xlu0 %v3319, 122
  %v4202 = vpop.permute.xlu0 %4201
  %4203 = vrot.lane.b32.xlu0 %v3320, 122
  %v4204 = vpop.permute.xlu0 %4203
  %4205 = vrot.lane.b32.xlu0 %v3321, 122
  %v4206 = vpop.permute.xlu0 %4205
  %4207 = vrot.lane.b32.xlu0 %v3322, 122
  %v4208 = vpop.permute.xlu0 %4207
  %4209 = vrot.lane.b32.xlu0 %v3639, 122
  %v4210 = vpop.permute.xlu0 %4209
  %v4211 = vsel %vm3533, %v4186, %v4188
  %v4212 = vsel %vm3533, %v4188, %v4190
  %v4213 = vsel %vm3533, %v4190, %v4192
  %v4214 = vsel %vm3533, %v4192, %v4194
  %v4215 = vsel %vm3533, %v4194, %v4196
  %v4216 = vsel %vm3533, %v4196, %v4198
  %v4217 = vsel %vm3533, %v4198, %v4200
  %v4218 = vsel %vm3533, %v4200, %v4202
  %v4219 = vsel %vm3533, %v4202, %v4204
  %v4220 = vsel %vm3533, %v4204, %v4206
  %v4221 = vsel %vm3533, %v4206, %v4208
  %v4222 = vsel %vm3533, %v4208, %v4210
  %4236 = vst [vmem:[#allocation3 + $0x3a8] sm:$0xc0] %v4211
  %4237 = vst [vmem:[#allocation3 + $0x3b0] sm:$0xc0] %v4212
  %4238 = vst [vmem:[#allocation3 + $0x3b8] sm:$0xc0] %v4213
  %4239 = vst [vmem:[#allocation3 + $0x3c0] sm:$0xc0] %v4214
  %4240 = vst [vmem:[#allocation3 + $0x3c8] sm:$0xc0] %v4215
  %4241 = vst [vmem:[#allocation3 + $0x3d0] sm:$0xc0] %v4216
  %4242 = vst [vmem:[#allocation3 + $0x3d8] sm:$0xc0] %v4217
  %4243 = vst [vmem:[#allocation3 + $0x3e0] sm:$0xc0] %v4218
  %4244 = vst [vmem:[#allocation3 + $0x3e8] sm:$0xc0] %v4219
  %4245 = vst [vmem:[#allocation3 + $0x3f0] sm:$0xc0] %v4220
  %4246 = vst [vmem:[#allocation3 + $0x3f8] sm:$0xc0] %v4221
  %4247 = vst [vmem:[#allocation3 + $0x400] sm:$0xc0] %v4222
  %4248 = vst.msk [vmem:[#allocation3 + $0x408] sm:$0xc0] %vm3386, %v4210
  %4249 = vst [vmem:[#allocation3 + $0x410] sm:$0xf] %v4211
  %4250 = vst [vmem:[#allocation3 + $0x418] sm:$0xf] %v4212
  %4251 = vst [vmem:[#allocation3 + $0x420] sm:$0xf] %v4213
  %4252 = vst [vmem:[#allocation3 + $0x428] sm:$0xf] %v4214
  %4253 = vst [vmem:[#allocation3 + $0x430] sm:$0xf] %v4215
  %4254 = vst [vmem:[#allocation3 + $0x438] sm:$0xf] %v4216
  %4255 = vst [vmem:[#allocation3 + $0x440] sm:$0xf] %v4217
  %4256 = vst [vmem:[#allocation3 + $0x448] sm:$0xf] %v4218
  %4257 = vst [vmem:[#allocation3 + $0x450] sm:$0xf] %v4219
  %4258 = vst [vmem:[#allocation3 + $0x458] sm:$0xf] %v4220
  %4259 = vst [vmem:[#allocation3 + $0x460] sm:$0xf] %v4221
  %4260 = vst [vmem:[#allocation3 + $0x468] sm:$0xf] %v4222
  %4261 = vst.msk [vmem:[#allocation3 + $0x470] sm:$0xf] %vm3400, %v4210
  %4262 = vrot.lane.b32.xlu0 %v3403, 120
  %v4263 = vpop.permute.xlu0 %4262
  %4264 = vrot.lane.b32.xlu0 %v3404, 120
  %v4265 = vpop.permute.xlu0 %4264
  %4266 = vrot.lane.b32.xlu0 %v3405, 120
  %v4267 = vpop.permute.xlu0 %4266
  %4268 = vrot.lane.b32.xlu0 %v3406, 120
  %v4269 = vpop.permute.xlu0 %4268
  %4270 = vrot.lane.b32.xlu0 %v3407, 120
  %v4271 = vpop.permute.xlu0 %4270
  %4272 = vrot.lane.b32.xlu0 %v3408, 120
  %v4273 = vpop.permute.xlu0 %4272
  %4274 = vrot.lane.b32.xlu0 %v3409, 120
  %v4275 = vpop.permute.xlu0 %4274
  %4276 = vrot.lane.b32.xlu0 %v3410, 120
  %v4277 = vpop.permute.xlu0 %4276
  %4278 = vrot.lane.b32.xlu0 %v3411, 120
  %v4279 = vpop.permute.xlu0 %4278
  %4280 = vrot.lane.b32.xlu0 %v3412, 120
  %v4281 = vpop.permute.xlu0 %4280
  %4282 = vrot.lane.b32.xlu0 %v3413, 120
  %v4283 = vpop.permute.xlu0 %4282
  %4284 = vrot.lane.b32.xlu0 %v3414, 120
  %v4285 = vpop.permute.xlu0 %4284
  %4286 = vrot.lane.b32.xlu0 %v3720, 120
  %v4287 = vpop.permute.xlu0 %4286
  %v4288 = vsel %vm3599, %v4263, %v4265
  %v4289 = vsel %vm3599, %v4265, %v4267
  %v4290 = vsel %vm3599, %v4267, %v4269
  %v4291 = vsel %vm3599, %v4269, %v4271
  %v4292 = vsel %vm3599, %v4271, %v4273
  %v4293 = vsel %vm3599, %v4273, %v4275
  %v4294 = vsel %vm3599, %v4275, %v4277
  %v4295 = vsel %vm3599, %v4277, %v4279
  %v4296 = vsel %vm3599, %v4279, %v4281
  %v4297 = vsel %vm3599, %v4281, %v4283
  %v4298 = vsel %vm3599, %v4283, %v4285
  %v4299 = vsel %vm3599, %v4285, %v4287
  %4313 = vst [vmem:[#allocation3 + $0x410] sm:$0xf0] %v4288
  %4314 = vst [vmem:[#allocation3 + $0x418] sm:$0xf0] %v4289
  %4315 = vst [vmem:[#allocation3 + $0x420] sm:$0xf0] %v4290
  %4316 = vst [vmem:[#allocation3 + $0x428] sm:$0xf0] %v4291
  %4317 = vst [vmem:[#allocation3 + $0x430] sm:$0xf0] %v4292
  %4318 = vst [vmem:[#allocation3 + $0x438] sm:$0xf0] %v4293
  %4319 = vst [vmem:[#allocation3 + $0x440] sm:$0xf0] %v4294
  %4320 = vst [vmem:[#allocation3 + $0x448] sm:$0xf0] %v4295
  %4321 = vst [vmem:[#allocation3 + $0x450] sm:$0xf0] %v4296
  %4322 = vst [vmem:[#allocation3 + $0x458] sm:$0xf0] %v4297
  %4323 = vst [vmem:[#allocation3 + $0x460] sm:$0xf0] %v4298
  %4324 = vst [vmem:[#allocation3 + $0x468] sm:$0xf0] %v4299
  %4325 = vst.msk [vmem:[#allocation3 + $0x470] sm:$0xf0] %vm3478, %v4287
  %4326 = vst [vmem:[#allocation3 + $0x478] sm:$0x3] %v4288
  %4327 = vst [vmem:[#allocation3 + $0x480] sm:$0x3] %v4289
  %4328 = vst [vmem:[#allocation3 + $0x488] sm:$0x3] %v4290
  %4329 = vst [vmem:[#allocation3 + $0x490] sm:$0x3] %v4291
  %4330 = vst [vmem:[#allocation3 + $0x498] sm:$0x3] %v4292
  %4331 = vst [vmem:[#allocation3 + $0x4a0] sm:$0x3] %v4293
  %4332 = vst [vmem:[#allocation3 + $0x4a8] sm:$0x3] %v4294
  %4333 = vst [vmem:[#allocation3 + $0x4b0] sm:$0x3] %v4295
  %4334 = vst [vmem:[#allocation3 + $0x4b8] sm:$0x3] %v4296
  %4335 = vst [vmem:[#allocation3 + $0x4c0] sm:$0x3] %v4297
  %4336 = vst [vmem:[#allocation3 + $0x4c8] sm:$0x3] %v4298
  %4337 = vst [vmem:[#allocation3 + $0x4d0] sm:$0x3] %v4299
  %4338 = vst.msk [vmem:[#allocation3 + $0x4d8] sm:$0x3] %vm3492, %v4287
  %v4340 = vrot.slane %v3282, 6
  %4341 = vrot.lane.b32.xlu0 %v3495, 64
  %v4342 = vpop.permute.xlu0 %4341
  %4343 = vrot.lane.b32.xlu0 %v3496, 64
  %v4344 = vpop.permute.xlu0 %4343
  %4345 = vrot.lane.b32.xlu0 %v3497, 64
  %v4346 = vpop.permute.xlu0 %4345
  %4347 = vrot.lane.b32.xlu0 %v3498, 64
  %v4348 = vpop.permute.xlu0 %4347
  %4349 = vrot.lane.b32.xlu0 %v3499, 64
  %v4350 = vpop.permute.xlu0 %4349
  %4351 = vrot.lane.b32.xlu0 %v3500, 64
  %v4352 = vpop.permute.xlu0 %4351
  %4353 = vrot.lane.b32.xlu0 %v3501, 64
  %v4354 = vpop.permute.xlu0 %4353
  %4355 = vrot.lane.b32.xlu0 %v3502, 64
  %v4356 = vpop.permute.xlu0 %4355
  %4357 = vrot.lane.b32.xlu0 %v3503, 64
  %v4358 = vpop.permute.xlu0 %4357
  %4359 = vrot.lane.b32.xlu0 %v3504, 64
  %v4360 = vpop.permute.xlu0 %4359
  %4361 = vrot.lane.b32.xlu0 %v3505, 64
  %v4362 = vpop.permute.xlu0 %4361
  %4363 = vrot.lane.b32.xlu0 %v3506, 64
  %v4364 = vpop.permute.xlu0 %4363
  %4365 = vrot.lane.b32.xlu0 %v3801, 64
  %v4366 = vpop.permute.xlu0 %4365
  %4367 = vrot.lane.b32.xlu0 %v4340, 64
  %v4368 = vpop.permute.xlu0 %4367
  %v4369 = vsel %vm943, %v4342, %v4344
  %v4370 = vsel %vm943, %v4344, %v4346
  %v4371 = vsel %vm943, %v4346, %v4348
  %v4372 = vsel %vm943, %v4348, %v4350
  %v4373 = vsel %vm943, %v4350, %v4352
  %v4374 = vsel %vm943, %v4352, %v4354
  %v4375 = vsel %vm943, %v4354, %v4356
  %v4376 = vsel %vm943, %v4356, %v4358
  %v4377 = vsel %vm943, %v4358, %v4360
  %v4378 = vsel %vm943, %v4360, %v4362
  %v4379 = vsel %vm943, %v4362, %v4364
  %v4380 = vsel %vm943, %v4364, %v4366
  %v4381 = vsel %vm943, %v4366, %v4368
  %4395 = vst [vmem:[#allocation3 + $0x478] sm:$0xfc] %v4369
  %4396 = vst [vmem:[#allocation3 + $0x480] sm:$0xfc] %v4370
  %4397 = vst [vmem:[#allocation3 + $0x488] sm:$0xfc] %v4371
  %4398 = vst [vmem:[#allocation3 + $0x490] sm:$0xfc] %v4372
  %4399 = vst [vmem:[#allocation3 + $0x498] sm:$0xfc] %v4373
  %4400 = vst [vmem:[#allocation3 + $0x4a0] sm:$0xfc] %v4374
  %4401 = vst [vmem:[#allocation3 + $0x4a8] sm:$0xfc] %v4375
  %4402 = vst [vmem:[#allocation3 + $0x4b0] sm:$0xfc] %v4376
  %4403 = vst [vmem:[#allocation3 + $0x4b8] sm:$0xfc] %v4377
  %4404 = vst [vmem:[#allocation3 + $0x4c0] sm:$0xfc] %v4378
  %4405 = vst [vmem:[#allocation3 + $0x4c8] sm:$0xfc] %v4379
  %4406 = vst [vmem:[#allocation3 + $0x4d0] sm:$0xfc] %v4380
  %4407 = vst.msk [vmem:[#allocation3 + $0x4d8] sm:$0xfc] %vm3571, %v4381
  %4408 = vrot.lane.b32.xlu0 %v3269, 62
  %v4409 = vpop.permute.xlu0 %4408
  %4410 = vrot.lane.b32.xlu0 %v3270, 62
  %v4411 = vpop.permute.xlu0 %4410
  %4412 = vrot.lane.b32.xlu0 %v3271, 62
  %v4413 = vpop.permute.xlu0 %4412
  %4414 = vrot.lane.b32.xlu0 %v3272, 62
  %v4415 = vpop.permute.xlu0 %4414
  %4416 = vrot.lane.b32.xlu0 %v3273, 62
  %v4417 = vpop.permute.xlu0 %4416
  %4418 = vrot.lane.b32.xlu0 %v3274, 62
  %v4419 = vpop.permute.xlu0 %4418
  %4420 = vrot.lane.b32.xlu0 %v3275, 62
  %v4421 = vpop.permute.xlu0 %4420
  %4422 = vrot.lane.b32.xlu0 %v3276, 62
  %v4423 = vpop.permute.xlu0 %4422
  %4424 = vrot.lane.b32.xlu0 %v3277, 62
  %v4425 = vpop.permute.xlu0 %4424
  %4426 = vrot.lane.b32.xlu0 %v3278, 62
  %v4427 = vpop.permute.xlu0 %4426
  %4428 = vrot.lane.b32.xlu0 %v3279, 62
  %v4429 = vpop.permute.xlu0 %4428
  %4430 = vrot.lane.b32.xlu0 %v3280, 62
  %v4431 = vpop.permute.xlu0 %4430
  %4432 = vrot.lane.b32.xlu0 %v3281, 62
  %v4433 = vpop.permute.xlu0 %4432
  %4434 = vrot.lane.b32.xlu0 %v3282, 62
  %v4435 = vpop.permute.xlu0 %4434
  %v4436 = vsel %vm1115, %v4409, %v4411
  %v4437 = vsel %vm1115, %v4411, %v4413
  %v4438 = vsel %vm1115, %v4413, %v4415
  %v4439 = vsel %vm1115, %v4415, %v4417
  %v4440 = vsel %vm1115, %v4417, %v4419
  %v4441 = vsel %vm1115, %v4419, %v4421
  %v4442 = vsel %vm1115, %v4421, %v4423
  %v4443 = vsel %vm1115, %v4423, %v4425
  %v4444 = vsel %vm1115, %v4425, %v4427
  %v4445 = vsel %vm1115, %v4427, %v4429
  %v4446 = vsel %vm1115, %v4429, %v4431
  %v4447 = vsel %vm1115, %v4431, %v4433
  %v4448 = vsel %vm1115, %v4433, %v4435
  %4462 = vst [vmem:[#allocation3 + $0x4e0] sm:$0x3f] %v4436
  %4463 = vst [vmem:[#allocation3 + $0x4e8] sm:$0x3f] %v4437
  %4464 = vst [vmem:[#allocation3 + $0x4f0] sm:$0x3f] %v4438
  %4465 = vst [vmem:[#allocation3 + $0x4f8] sm:$0x3f] %v4439
  %4466 = vst [vmem:[#allocation3 + $0x500] sm:$0x3f] %v4440
  %4467 = vst [vmem:[#allocation3 + $0x508] sm:$0x3f] %v4441
  %4468 = vst [vmem:[#allocation3 + $0x510] sm:$0x3f] %v4442
  %4469 = vst [vmem:[#allocation3 + $0x518] sm:$0x3f] %v4443
  %4470 = vst [vmem:[#allocation3 + $0x520] sm:$0x3f] %v4444
  %4471 = vst [vmem:[#allocation3 + $0x528] sm:$0x3f] %v4445
  %4472 = vst [vmem:[#allocation3 + $0x530] sm:$0x3f] %v4446
  %4473 = vst [vmem:[#allocation3 + $0x538] sm:$0x3f] %v4447
  %4474 = vst.msk [vmem:[#allocation3 + $0x540] sm:$0x3f] %vm3295, %v4448
  %v4475 = vrot.slane %v3282, 2
  %4476 = vrot.lane.b32.xlu0 %v3311, 60
  %v4477 = vpop.permute.xlu0 %4476
  %4478 = vrot.lane.b32.xlu0 %v3312, 60
  %v4479 = vpop.permute.xlu0 %4478
  %4480 = vrot.lane.b32.xlu0 %v3313, 60
  %v4481 = vpop.permute.xlu0 %4480
  %4482 = vrot.lane.b32.xlu0 %v3314, 60
  %v4483 = vpop.permute.xlu0 %4482
  %4484 = vrot.lane.b32.xlu0 %v3315, 60
  %v4485 = vpop.permute.xlu0 %4484
  %4486 = vrot.lane.b32.xlu0 %v3316, 60
  %v4487 = vpop.permute.xlu0 %4486
  %4488 = vrot.lane.b32.xlu0 %v3317, 60
  %v4489 = vpop.permute.xlu0 %4488
  %4490 = vrot.lane.b32.xlu0 %v3318, 60
  %v4491 = vpop.permute.xlu0 %4490
  %4492 = vrot.lane.b32.xlu0 %v3319, 60
  %v4493 = vpop.permute.xlu0 %4492
  %4494 = vrot.lane.b32.xlu0 %v3320, 60
  %v4495 = vpop.permute.xlu0 %4494
  %4496 = vrot.lane.b32.xlu0 %v3321, 60
  %v4497 = vpop.permute.xlu0 %4496
  %4498 = vrot.lane.b32.xlu0 %v3322, 60
  %v4499 = vpop.permute.xlu0 %4498
  %4500 = vrot.lane.b32.xlu0 %v3639, 60
  %v4501 = vpop.permute.xlu0 %4500
  %4502 = vrot.lane.b32.xlu0 %v4475, 60
  %v4503 = vpop.permute.xlu0 %4502
  %v4504 = vsel %vm1286, %v4477, %v4479
  %v4505 = vsel %vm1286, %v4479, %v4481
  %v4506 = vsel %vm1286, %v4481, %v4483
  %v4507 = vsel %vm1286, %v4483, %v4485
  %v4508 = vsel %vm1286, %v4485, %v4487
  %v4509 = vsel %vm1286, %v4487, %v4489
  %v4510 = vsel %vm1286, %v4489, %v4491
  %v4511 = vsel %vm1286, %v4491, %v4493
  %v4512 = vsel %vm1286, %v4493, %v4495
  %v4513 = vsel %vm1286, %v4495, %v4497
  %v4514 = vsel %vm1286, %v4497, %v4499
  %v4515 = vsel %vm1286, %v4499, %v4501
  %v4516 = vsel %vm1286, %v4501, %v4503
  %4530 = vst [vmem:[#allocation3 + $0x4e0] sm:$0xc0] %v4504
  %4531 = vst [vmem:[#allocation3 + $0x4e8] sm:$0xc0] %v4505
  %4532 = vst [vmem:[#allocation3 + $0x4f0] sm:$0xc0] %v4506
  %4533 = vst [vmem:[#allocation3 + $0x4f8] sm:$0xc0] %v4507
  %4534 = vst [vmem:[#allocation3 + $0x500] sm:$0xc0] %v4508
  %4535 = vst [vmem:[#allocation3 + $0x508] sm:$0xc0] %v4509
  %4536 = vst [vmem:[#allocation3 + $0x510] sm:$0xc0] %v4510
  %4537 = vst [vmem:[#allocation3 + $0x518] sm:$0xc0] %v4511
  %4538 = vst [vmem:[#allocation3 + $0x520] sm:$0xc0] %v4512
  %4539 = vst [vmem:[#allocation3 + $0x528] sm:$0xc0] %v4513
  %4540 = vst [vmem:[#allocation3 + $0x530] sm:$0xc0] %v4514
  %4541 = vst [vmem:[#allocation3 + $0x538] sm:$0xc0] %v4515
  %4542 = vst.msk [vmem:[#allocation3 + $0x540] sm:$0xc0] %vm3386, %v4516
  %4543 = vst [vmem:[#allocation3 + $0x548] sm:$0xf] %v4504
  %4544 = vst [vmem:[#allocation3 + $0x550] sm:$0xf] %v4505
  %4545 = vst [vmem:[#allocation3 + $0x558] sm:$0xf] %v4506
  %4546 = vst [vmem:[#allocation3 + $0x560] sm:$0xf] %v4507
  %4547 = vst [vmem:[#allocation3 + $0x568] sm:$0xf] %v4508
  %4548 = vst [vmem:[#allocation3 + $0x570] sm:$0xf] %v4509
  %4549 = vst [vmem:[#allocation3 + $0x578] sm:$0xf] %v4510
  %4550 = vst [vmem:[#allocation3 + $0x580] sm:$0xf] %v4511
  %4551 = vst [vmem:[#allocation3 + $0x588] sm:$0xf] %v4512
  %4552 = vst [vmem:[#allocation3 + $0x590] sm:$0xf] %v4513
  %4553 = vst [vmem:[#allocation3 + $0x598] sm:$0xf] %v4514
  %4554 = vst [vmem:[#allocation3 + $0x5a0] sm:$0xf] %v4515
  %4555 = vst.msk [vmem:[#allocation3 + $0x5a8] sm:$0xf] %vm3400, %v4516
  %v4556 = vrot.slane %v3282, 4
  %4557 = vrot.lane.b32.xlu0 %v3403, 58
  %v4558 = vpop.permute.xlu0 %4557
  %4559 = vrot.lane.b32.xlu0 %v3404, 58
  %v4560 = vpop.permute.xlu0 %4559
  %4561 = vrot.lane.b32.xlu0 %v3405, 58
  %v4562 = vpop.permute.xlu0 %4561
  %4563 = vrot.lane.b32.xlu0 %v3406, 58
  %v4564 = vpop.permute.xlu0 %4563
  %4565 = vrot.lane.b32.xlu0 %v3407, 58
  %v4566 = vpop.permute.xlu0 %4565
  %4567 = vrot.lane.b32.xlu0 %v3408, 58
  %v4568 = vpop.permute.xlu0 %4567
  %4569 = vrot.lane.b32.xlu0 %v3409, 58
  %v4570 = vpop.permute.xlu0 %4569
  %4571 = vrot.lane.b32.xlu0 %v3410, 58
  %v4572 = vpop.permute.xlu0 %4571
  %4573 = vrot.lane.b32.xlu0 %v3411, 58
  %v4574 = vpop.permute.xlu0 %4573
  %4575 = vrot.lane.b32.xlu0 %v3412, 58
  %v4576 = vpop.permute.xlu0 %4575
  %4577 = vrot.lane.b32.xlu0 %v3413, 58
  %v4578 = vpop.permute.xlu0 %4577
  %4579 = vrot.lane.b32.xlu0 %v3414, 58
  %v4580 = vpop.permute.xlu0 %4579
  %4581 = vrot.lane.b32.xlu0 %v3720, 58
  %v4582 = vpop.permute.xlu0 %4581
  %4583 = vrot.lane.b32.xlu0 %v4556, 58
  %v4584 = vpop.permute.xlu0 %4583
  %v4585 = vsel %vm3897, %v4558, %v4560
  %v4586 = vsel %vm3897, %v4560, %v4562
  %v4587 = vsel %vm3897, %v4562, %v4564
  %v4588 = vsel %vm3897, %v4564, %v4566
  %v4589 = vsel %vm3897, %v4566, %v4568
  %v4590 = vsel %vm3897, %v4568, %v4570
  %v4591 = vsel %vm3897, %v4570, %v4572
  %v4592 = vsel %vm3897, %v4572, %v4574
  %v4593 = vsel %vm3897, %v4574, %v4576
  %v4594 = vsel %vm3897, %v4576, %v4578
  %v4595 = vsel %vm3897, %v4578, %v4580
  %v4596 = vsel %vm3897, %v4580, %v4582
  %v4597 = vsel %vm3897, %v4582, %v4584
  %4611 = vst [vmem:[#allocation3 + $0x548] sm:$0xf0] %v4585
  %4612 = vst [vmem:[#allocation3 + $0x550] sm:$0xf0] %v4586
  %4613 = vst [vmem:[#allocation3 + $0x558] sm:$0xf0] %v4587
  %4614 = vst [vmem:[#allocation3 + $0x560] sm:$0xf0] %v4588
  %4615 = vst [vmem:[#allocation3 + $0x568] sm:$0xf0] %v4589
  %4616 = vst [vmem:[#allocation3 + $0x570] sm:$0xf0] %v4590
  %4617 = vst [vmem:[#allocation3 + $0x578] sm:$0xf0] %v4591
  %4618 = vst [vmem:[#allocation3 + $0x580] sm:$0xf0] %v4592
  %4619 = vst [vmem:[#allocation3 + $0x588] sm:$0xf0] %v4593
  %4620 = vst [vmem:[#allocation3 + $0x590] sm:$0xf0] %v4594
  %4621 = vst [vmem:[#allocation3 + $0x598] sm:$0xf0] %v4595
  %4622 = vst [vmem:[#allocation3 + $0x5a0] sm:$0xf0] %v4596
  %4623 = vst.msk [vmem:[#allocation3 + $0x5a8] sm:$0xf0] %vm3478, %v4597
  %4624 = vst [vmem:[#allocation3 + $0x5b0] sm:$0x3] %v4585
  %4625 = vst [vmem:[#allocation3 + $0x5b8] sm:$0x3] %v4586
  %4626 = vst [vmem:[#allocation3 + $0x5c0] sm:$0x3] %v4587
  %4627 = vst [vmem:[#allocation3 + $0x5c8] sm:$0x3] %v4588
  %4628 = vst [vmem:[#allocation3 + $0x5d0] sm:$0x3] %v4589
  %4629 = vst [vmem:[#allocation3 + $0x5d8] sm:$0x3] %v4590
  %4630 = vst [vmem:[#allocation3 + $0x5e0] sm:$0x3] %v4591
  %4631 = vst [vmem:[#allocation3 + $0x5e8] sm:$0x3] %v4592
  %4632 = vst [vmem:[#allocation3 + $0x5f0] sm:$0x3] %v4593
  %4633 = vst [vmem:[#allocation3 + $0x5f8] sm:$0x3] %v4594
  %4634 = vst [vmem:[#allocation3 + $0x600] sm:$0x3] %v4595
  %4635 = vst [vmem:[#allocation3 + $0x608] sm:$0x3] %v4596
  %4636 = vst.msk [vmem:[#allocation3 + $0x610] sm:$0x3] %vm3492, %v4597
  %4637 = vrot.lane.b32.xlu0 %v3495, 56
  %v4638 = vpop.permute.xlu0 %4637
  %4639 = vrot.lane.b32.xlu0 %v3496, 56
  %v4640 = vpop.permute.xlu0 %4639
  %4641 = vrot.lane.b32.xlu0 %v3497, 56
  %v4642 = vpop.permute.xlu0 %4641
  %4643 = vrot.lane.b32.xlu0 %v3498, 56
  %v4644 = vpop.permute.xlu0 %4643
  %4645 = vrot.lane.b32.xlu0 %v3499, 56
  %v4646 = vpop.permute.xlu0 %4645
  %4647 = vrot.lane.b32.xlu0 %v3500, 56
  %v4648 = vpop.permute.xlu0 %4647
  %4649 = vrot.lane.b32.xlu0 %v3501, 56
  %v4650 = vpop.permute.xlu0 %4649
  %4651 = vrot.lane.b32.xlu0 %v3502, 56
  %v4652 = vpop.permute.xlu0 %4651
  %4653 = vrot.lane.b32.xlu0 %v3503, 56
  %v4654 = vpop.permute.xlu0 %4653
  %4655 = vrot.lane.b32.xlu0 %v3504, 56
  %v4656 = vpop.permute.xlu0 %4655
  %4657 = vrot.lane.b32.xlu0 %v3505, 56
  %v4658 = vpop.permute.xlu0 %4657
  %4659 = vrot.lane.b32.xlu0 %v3506, 56
  %v4660 = vpop.permute.xlu0 %4659
  %4661 = vrot.lane.b32.xlu0 %v3801, 56
  %v4662 = vpop.permute.xlu0 %4661
  %4663 = vrot.lane.b32.xlu0 %v4340, 56
  %v4664 = vpop.permute.xlu0 %4663
  %v4665 = vsel %vm3965, %v4638, %v4640
  %v4666 = vsel %vm3965, %v4640, %v4642
  %v4667 = vsel %vm3965, %v4642, %v4644
  %v4668 = vsel %vm3965, %v4644, %v4646
  %v4669 = vsel %vm3965, %v4646, %v4648
  %v4670 = vsel %vm3965, %v4648, %v4650
  %v4671 = vsel %vm3965, %v4650, %v4652
  %v4672 = vsel %vm3965, %v4652, %v4654
  %v4673 = vsel %vm3965, %v4654, %v4656
  %v4674 = vsel %vm3965, %v4656, %v4658
  %v4675 = vsel %vm3965, %v4658, %v4660
  %v4676 = vsel %vm3965, %v4660, %v4662
  %v4677 = vsel %vm3965, %v4662, %v4664
  %4691 = vst [vmem:[#allocation3 + $0x5b0] sm:$0xfc] %v4665
  %4692 = vst [vmem:[#allocation3 + $0x5b8] sm:$0xfc] %v4666
  %4693 = vst [vmem:[#allocation3 + $0x5c0] sm:$0xfc] %v4667
  %4694 = vst [vmem:[#allocation3 + $0x5c8] sm:$0xfc] %v4668
  %4695 = vst [vmem:[#allocation3 + $0x5d0] sm:$0xfc] %v4669
  %4696 = vst [vmem:[#allocation3 + $0x5d8] sm:$0xfc] %v4670
  %4697 = vst [vmem:[#allocation3 + $0x5e0] sm:$0xfc] %v4671
  %4698 = vst [vmem:[#allocation3 + $0x5e8] sm:$0xfc] %v4672
  %4699 = vst [vmem:[#allocation3 + $0x5f0] sm:$0xfc] %v4673
  %4700 = vst [vmem:[#allocation3 + $0x5f8] sm:$0xfc] %v4674
  %4701 = vst [vmem:[#allocation3 + $0x600] sm:$0xfc] %v4675
  %4702 = vst [vmem:[#allocation3 + $0x608] sm:$0xfc] %v4676
  %4703 = vst.msk [vmem:[#allocation3 + $0x610] sm:$0xfc] %vm3571, %v4677
  %4704 = vst [vmem:[#allocation3 + $0x618] sm:$0x3f] %v3270
  %4705 = vst [vmem:[#allocation3 + $0x620] sm:$0x3f] %v3271
  %4706 = vst [vmem:[#allocation3 + $0x628] sm:$0x3f] %v3272
  %4707 = vst [vmem:[#allocation3 + $0x630] sm:$0x3f] %v3273
  %4708 = vst [vmem:[#allocation3 + $0x638] sm:$0x3f] %v3274
  %4709 = vst [vmem:[#allocation3 + $0x640] sm:$0x3f] %v3275
  %4710 = vst [vmem:[#allocation3 + $0x648] sm:$0x3f] %v3276
  %4711 = vst [vmem:[#allocation3 + $0x650] sm:$0x3f] %v3277
  %4712 = vst [vmem:[#allocation3 + $0x658] sm:$0x3f] %v3278
  %4713 = vst [vmem:[#allocation3 + $0x660] sm:$0x3f] %v3279
  %4714 = vst [vmem:[#allocation3 + $0x668] sm:$0x3f] %v3280
  %4715 = vst [vmem:[#allocation3 + $0x670] sm:$0x3f] %v3281
  %4716 = vst.msk [vmem:[#allocation3 + $0x678] sm:$0x3f] %vm3295, %v3282
  %4717 = vrot.lane.b32.xlu0 %v3639, 126
  %v4718 = vpop.permute.xlu0 %4717
  %4719 = vrot.lane.b32.xlu0 %v4475, 126
  %v4720 = vpop.permute.xlu0 %4719
  %v4721 = vsel %vm214, %v3348, %v4718
  %v4722 = vsel %vm214, %v4718, %v4720
  %4726 = vst [vmem:[#allocation3 + $0x618] sm:$0xc0] %v3351
  %4727 = vst [vmem:[#allocation3 + $0x620] sm:$0xc0] %v3352
  %4728 = vst [vmem:[#allocation3 + $0x628] sm:$0xc0] %v3353
  %4729 = vst [vmem:[#allocation3 + $0x630] sm:$0xc0] %v3354
  %4730 = vst [vmem:[#allocation3 + $0x638] sm:$0xc0] %v3355
  %4731 = vst [vmem:[#allocation3 + $0x640] sm:$0xc0] %v3356
  %4732 = vst [vmem:[#allocation3 + $0x648] sm:$0xc0] %v3357
  %4733 = vst [vmem:[#allocation3 + $0x650] sm:$0xc0] %v3358
  %4734 = vst [vmem:[#allocation3 + $0x658] sm:$0xc0] %v3359
  %4735 = vst [vmem:[#allocation3 + $0x660] sm:$0xc0] %v3360
  %4736 = vst [vmem:[#allocation3 + $0x668] sm:$0xc0] %v4721
  %4737 = vst [vmem:[#allocation3 + $0x670] sm:$0xc0] %v4722
  %4738 = vst.msk [vmem:[#allocation3 + $0x678] sm:$0xc0] %vm3386, %v4720
  %4739 = vst [vmem:[#allocation3 + $0x680] sm:$0xf] %v3351
  %4740 = vst [vmem:[#allocation3 + $0x688] sm:$0xf] %v3352
  %4741 = vst [vmem:[#allocation3 + $0x690] sm:$0xf] %v3353
  %4742 = vst [vmem:[#allocation3 + $0x698] sm:$0xf] %v3354
  %4743 = vst [vmem:[#allocation3 + $0x6a0] sm:$0xf] %v3355
  %4744 = vst [vmem:[#allocation3 + $0x6a8] sm:$0xf] %v3356
  %4745 = vst [vmem:[#allocation3 + $0x6b0] sm:$0xf] %v3357
  %4746 = vst [vmem:[#allocation3 + $0x6b8] sm:$0xf] %v3358
  %4747 = vst [vmem:[#allocation3 + $0x6c0] sm:$0xf] %v3359
  %4748 = vst [vmem:[#allocation3 + $0x6c8] sm:$0xf] %v3360
  %4749 = vst [vmem:[#allocation3 + $0x6d0] sm:$0xf] %v4721
  %4750 = vst [vmem:[#allocation3 + $0x6d8] sm:$0xf] %v4722
  %4751 = vst.msk [vmem:[#allocation3 + $0x6e0] sm:$0xf] %vm3400, %v4720
  %4752 = vrot.lane.b32.xlu0 %v3720, 124
  %v4753 = vpop.permute.xlu0 %4752
  %4754 = vrot.lane.b32.xlu0 %v4556, 124
  %v4755 = vpop.permute.xlu0 %4754
  %v4756 = vsel %vm405, %v3440, %v4753
  %v4757 = vsel %vm405, %v4753, %v4755
  %4761 = vst [vmem:[#allocation3 + $0x680] sm:$0xf0] %v3443
  %4762 = vst [vmem:[#allocation3 + $0x688] sm:$0xf0] %v3444
  %4763 = vst [vmem:[#allocation3 + $0x690] sm:$0xf0] %v3445
  %4764 = vst [vmem:[#allocation3 + $0x698] sm:$0xf0] %v3446
  %4765 = vst [vmem:[#allocation3 + $0x6a0] sm:$0xf0] %v3447
  %4766 = vst [vmem:[#allocation3 + $0x6a8] sm:$0xf0] %v3448
  %4767 = vst [vmem:[#allocation3 + $0x6b0] sm:$0xf0] %v3449
  %4768 = vst [vmem:[#allocation3 + $0x6b8] sm:$0xf0] %v3450
  %4769 = vst [vmem:[#allocation3 + $0x6c0] sm:$0xf0] %v3451
  %4770 = vst [vmem:[#allocation3 + $0x6c8] sm:$0xf0] %v3452
  %4771 = vst [vmem:[#allocation3 + $0x6d0] sm:$0xf0] %v4756
  %4772 = vst [vmem:[#allocation3 + $0x6d8] sm:$0xf0] %v4757
  %4773 = vst.msk [vmem:[#allocation3 + $0x6e0] sm:$0xf0] %vm3478, %v4755
  %4774 = vst [vmem:[#allocation3 + $0x6e8] sm:$0x3] %v3443
  %4775 = vst [vmem:[#allocation3 + $0x6f0] sm:$0x3] %v3444
  %4776 = vst [vmem:[#allocation3 + $0x6f8] sm:$0x3] %v3445
  %4777 = vst [vmem:[#allocation3 + $0x700] sm:$0x3] %v3446
  %4778 = vst [vmem:[#allocation3 + $0x708] sm:$0x3] %v3447
  %4779 = vst [vmem:[#allocation3 + $0x710] sm:$0x3] %v3448
  %4780 = vst [vmem:[#allocation3 + $0x718] sm:$0x3] %v3449
  %4781 = vst [vmem:[#allocation3 + $0x720] sm:$0x3] %v3450
  %4782 = vst [vmem:[#allocation3 + $0x728] sm:$0x3] %v3451
  %4783 = vst [vmem:[#allocation3 + $0x730] sm:$0x3] %v3452
  %4784 = vst [vmem:[#allocation3 + $0x738] sm:$0x3] %v4756
  %4785 = vst [vmem:[#allocation3 + $0x740] sm:$0x3] %v4757
  %4786 = vst.msk [vmem:[#allocation3 + $0x748] sm:$0x3] %vm3492, %v4755
  %4787 = vrot.lane.b32.xlu0 %v3801, 122
  %v4788 = vpop.permute.xlu0 %4787
  %4789 = vrot.lane.b32.xlu0 %v4340, 122
  %v4790 = vpop.permute.xlu0 %4789
  %v4791 = vsel %vm3533, %v3532, %v4788
  %v4792 = vsel %vm3533, %v4788, %v4790
  %4796 = vst [vmem:[#allocation3 + $0x6e8] sm:$0xfc] %v3536
  %4797 = vst [vmem:[#allocation3 + $0x6f0] sm:$0xfc] %v3537
  %4798 = vst [vmem:[#allocation3 + $0x6f8] sm:$0xfc] %v3538
  %4799 = vst [vmem:[#allocation3 + $0x700] sm:$0xfc] %v3539
  %4800 = vst [vmem:[#allocation3 + $0x708] sm:$0xfc] %v3540
  %4801 = vst [vmem:[#allocation3 + $0x710] sm:$0xfc] %v3541
  %4802 = vst [vmem:[#allocation3 + $0x718] sm:$0xfc] %v3542
  %4803 = vst [vmem:[#allocation3 + $0x720] sm:$0xfc] %v3543
  %4804 = vst [vmem:[#allocation3 + $0x728] sm:$0xfc] %v3544
  %4805 = vst [vmem:[#allocation3 + $0x730] sm:$0xfc] %v3545
  %4806 = vst [vmem:[#allocation3 + $0x738] sm:$0xfc] %v4791
  %4807 = vst [vmem:[#allocation3 + $0x740] sm:$0xfc] %v4792
  %4808 = vst.msk [vmem:[#allocation3 + $0x748] sm:$0xfc] %vm3571, %v4790
  %4809 = vrot.lane.b32.xlu0 %v3281, 120
  %v4810 = vpop.permute.xlu0 %4809
  %4811 = vrot.lane.b32.xlu0 %v3282, 120
  %v4812 = vpop.permute.xlu0 %4811
  %v4813 = vsel %vm3599, %v3598, %v4810
  %v4814 = vsel %vm3599, %v4810, %v4812
  %4818 = vst [vmem:[#allocation3 + $0x750] sm:$0x3f] %v3602
  %4819 = vst [vmem:[#allocation3 + $0x758] sm:$0x3f] %v3603
  %4820 = vst [vmem:[#allocation3 + $0x760] sm:$0x3f] %v3604
  %4821 = vst [vmem:[#allocation3 + $0x768] sm:$0x3f] %v3605
  %4822 = vst [vmem:[#allocation3 + $0x770] sm:$0x3f] %v3606
  %4823 = vst [vmem:[#allocation3 + $0x778] sm:$0x3f] %v3607
  %4824 = vst [vmem:[#allocation3 + $0x780] sm:$0x3f] %v3608
  %4825 = vst [vmem:[#allocation3 + $0x788] sm:$0x3f] %v3609
  %4826 = vst [vmem:[#allocation3 + $0x790] sm:$0x3f] %v3610
  %4827 = vst [vmem:[#allocation3 + $0x798] sm:$0x3f] %v3611
  %4828 = vst [vmem:[#allocation3 + $0x7a0] sm:$0x3f] %v4813
  %4829 = vst [vmem:[#allocation3 + $0x7a8] sm:$0x3f] %v4814
  %4830 = vst.msk [vmem:[#allocation3 + $0x7b0] sm:$0x3f] %vm3295, %v4812
  %v4831 = vld [vmem:[%s4] sm:$0xff]
  %v4832 = vld [vmem:[%s4 + $0x8] sm:$0xff]
  %v4833 = vld [vmem:[%s4 + $0x10] sm:$0xff]
  %v4834 = vld [vmem:[%s4 + $0x18] sm:$0xff]
  %v4835 = vld [vmem:[#allocation3] sm:$0xff]
  %v4836 = vld [vmem:[#allocation3 + $0x8] sm:$0xff]
  %v4837 = vld [vmem:[#allocation3 + $0x10] sm:$0xff]
  %v4838 = vld [vmem:[#allocation3 + $0x18] sm:$0xff]
  %v4839 = vld [vmem:[#allocation3 + $0x20] sm:$0xff]
  %v4840 = vld [vmem:[#allocation3 + $0x28] sm:$0xff]
  %v4841 = vld [vmem:[#allocation3 + $0x30] sm:$0xff]
  %v4842 = vld [vmem:[#allocation3 + $0x38] sm:$0xff]
  %v4843 = vld [vmem:[#allocation3 + $0x40] sm:$0xff]
  %v4844 = vld [vmem:[#allocation3 + $0x48] sm:$0xff]
  %v4845 = vld [vmem:[#allocation3 + $0x50] sm:$0xff]
  %v4846 = vld [vmem:[#allocation3 + $0x58] sm:$0xff]
  %v4847 = vld [vmem:[#allocation3 + $0x60] sm:$0xff]
  %v4848 = vld [vmem:[#allocation3 + $0x68] sm:$0xff]
  %v4849 = vld [vmem:[#allocation3 + $0x70] sm:$0xff]
  %v4850 = vld [vmem:[#allocation3 + $0x78] sm:$0xff]
  %v4851 = vld [vmem:[#allocation3 + $0x80] sm:$0xff]
  %v4852 = vld [vmem:[#allocation3 + $0x88] sm:$0xff]
  %v4853 = vld [vmem:[#allocation3 + $0x90] sm:$0xff]
  %v4854 = vld [vmem:[#allocation3 + $0x98] sm:$0xff]
  %v4855 = vld [vmem:[#allocation3 + $0xa0] sm:$0xff]
  %v4856 = vld [vmem:[#allocation3 + $0xa8] sm:$0xff]
  %v4857 = vld [vmem:[#allocation3 + $0xb0] sm:$0xff]
  %v4858 = vld [vmem:[#allocation3 + $0xb8] sm:$0xff]
  %v4859 = vld [vmem:[#allocation3 + $0xc0] sm:$0xff]
  %v4860 = vld [vmem:[#allocation3 + $0xc8] sm:$0xff]
  %v4861 = vld [vmem:[#allocation3 + $0xd0] sm:$0xff]
  %v4862 = vld [vmem:[#allocation3 + $0xd8] sm:$0xff]
  %v4863 = vld [vmem:[#allocation3 + $0xe0] sm:$0xff]
  %v4864 = vld [vmem:[#allocation3 + $0xe8] sm:$0xff]
  %v4865 = vld [vmem:[#allocation3 + $0xf0] sm:$0xff]
  %v4866 = vld [vmem:[#allocation3 + $0xf8] sm:$0xff]
  %v4867 = vld [vmem:[#allocation3 + $0x100] sm:$0xff]
  %v4868 = vld [vmem:[#allocation3 + $0x108] sm:$0xff]
  %v4869 = vld [vmem:[#allocation3 + $0x110] sm:$0xff]
  %v4870 = vld [vmem:[#allocation3 + $0x118] sm:$0xff]
  %v4871 = vld [vmem:[#allocation3 + $0x120] sm:$0xff]
  %v4872 = vld [vmem:[#allocation3 + $0x128] sm:$0xff]
  %v4873 = vld [vmem:[#allocation3 + $0x130] sm:$0xff]
  %v4874 = vld [vmem:[#allocation3 + $0x138] sm:$0xff]
  %v4875 = vld [vmem:[#allocation3 + $0x140] sm:$0xff]
  %v4876 = vld [vmem:[#allocation3 + $0x148] sm:$0xff]
  %v4877 = vld [vmem:[#allocation3 + $0x150] sm:$0xff]
  %v4878 = vld [vmem:[#allocation3 + $0x158] sm:$0xff]
  %v4879 = vld [vmem:[#allocation3 + $0x160] sm:$0xff]
  %v4880 = vld [vmem:[#allocation3 + $0x168] sm:$0xff]
  %v4881 = vld [vmem:[#allocation3 + $0x170] sm:$0xff]
  %v4882 = vld [vmem:[#allocation3 + $0x178] sm:$0xff]
  %v4883 = vld [vmem:[#allocation3 + $0x180] sm:$0xff]
  %v4884 = vld [vmem:[#allocation3 + $0x188] sm:$0xff]
  %v4885 = vld [vmem:[#allocation3 + $0x190] sm:$0xff]
  %v4886 = vld [vmem:[#allocation3 + $0x198] sm:$0xff]
  %v4887 = vld [vmem:[#allocation3 + $0x1a0] sm:$0xff]
  %v4888 = vld [vmem:[#allocation3 + $0x1a8] sm:$0xff]
  %v4889 = vld [vmem:[#allocation3 + $0x1b0] sm:$0xff]
  %v4890 = vld [vmem:[#allocation3 + $0x1b8] sm:$0xff]
  %v4891 = vld [vmem:[#allocation3 + $0x1c0] sm:$0xff]
  %v4892 = vld [vmem:[#allocation3 + $0x1c8] sm:$0xff]
  %v4893 = vld [vmem:[#allocation3 + $0x1d0] sm:$0xff]
  %v4894 = vld [vmem:[#allocation3 + $0x1d8] sm:$0xff]
  %v4895 = vld [vmem:[#allocation3 + $0x1e0] sm:$0xff]
  %v4896 = vld [vmem:[#allocation3 + $0x1e8] sm:$0xff]
  %v4897 = vld [vmem:[#allocation3 + $0x1f0] sm:$0xff]
  %v4898 = vld [vmem:[#allocation3 + $0x1f8] sm:$0xff]
  %v4899 = vld [vmem:[#allocation3 + $0x200] sm:$0xff]
  %v4900 = vld [vmem:[#allocation3 + $0x208] sm:$0xff]
  %v4901 = vld [vmem:[#allocation3 + $0x210] sm:$0xff]
  %v4902 = vld [vmem:[#allocation3 + $0x218] sm:$0xff]
  %v4903 = vld [vmem:[#allocation3 + $0x220] sm:$0xff]
  %v4904 = vld [vmem:[#allocation3 + $0x228] sm:$0xff]
  %v4905 = vld [vmem:[#allocation3 + $0x230] sm:$0xff]
  %v4906 = vld [vmem:[#allocation3 + $0x238] sm:$0xff]
  %v4907 = vld [vmem:[#allocation3 + $0x240] sm:$0xff]
  %v4908 = vld [vmem:[#allocation3 + $0x248] sm:$0xff]
  %v4909 = vld [vmem:[#allocation3 + $0x250] sm:$0xff]
  %v4910 = vld [vmem:[#allocation3 + $0x258] sm:$0xff]
  %v4911 = vld [vmem:[#allocation3 + $0x260] sm:$0xff]
  %v4912 = vld [vmem:[#allocation3 + $0x268] sm:$0xff]
  %v4913 = vld [vmem:[#allocation3 + $0x270] sm:$0xff]
  %v4914 = vld [vmem:[#allocation3 + $0x278] sm:$0xff]
  %v4915 = vld [vmem:[#allocation3 + $0x280] sm:$0xff]
  %v4916 = vld [vmem:[#allocation3 + $0x288] sm:$0xff]
  %v4917 = vld [vmem:[#allocation3 + $0x290] sm:$0xff]
  %v4918 = vld [vmem:[#allocation3 + $0x298] sm:$0xff]
  %v4919 = vld [vmem:[#allocation3 + $0x2a0] sm:$0xff]
  %v4920 = vld [vmem:[#allocation3 + $0x2a8] sm:$0xff]
  %v4921 = vld [vmem:[#allocation3 + $0x2b0] sm:$0xff]
  %v4922 = vld [vmem:[#allocation3 + $0x2b8] sm:$0xff]
  %v4923 = vld [vmem:[#allocation3 + $0x2c0] sm:$0xff]
  %v4924 = vld [vmem:[#allocation3 + $0x2c8] sm:$0xff]
  %v4925 = vld [vmem:[#allocation3 + $0x2d0] sm:$0xff]
  %v4926 = vld [vmem:[#allocation3 + $0x2d8] sm:$0xff]
  %v4927 = vld [vmem:[#allocation3 + $0x2e0] sm:$0xff]
  %v4928 = vld [vmem:[#allocation3 + $0x2e8] sm:$0xff]
  %v4929 = vld [vmem:[#allocation3 + $0x2f0] sm:$0xff]
  %v4930 = vld [vmem:[#allocation3 + $0x2f8] sm:$0xff]
  %v4931 = vld [vmem:[#allocation3 + $0x300] sm:$0xff]
  %v4932 = vld [vmem:[#allocation3 + $0x308] sm:$0xff]
  %v4933 = vld [vmem:[#allocation3 + $0x310] sm:$0xff]
  %v4934 = vld [vmem:[#allocation3 + $0x318] sm:$0xff]
  %v4935 = vld [vmem:[#allocation3 + $0x320] sm:$0xff]
  %v4936 = vld [vmem:[#allocation3 + $0x328] sm:$0xff]
  %v4937 = vld [vmem:[#allocation3 + $0x330] sm:$0xff]
  %v4938 = vld [vmem:[#allocation3 + $0x338] sm:$0xff]
  %v4939 = vld [vmem:[#allocation3 + $0x340] sm:$0xff]
  %v4940 = vld [vmem:[#allocation3 + $0x348] sm:$0xff]
  %v4941 = vld [vmem:[#allocation3 + $0x350] sm:$0xff]
  %v4942 = vld [vmem:[#allocation3 + $0x358] sm:$0xff]
  %v4943 = vld [vmem:[#allocation3 + $0x360] sm:$0xff]
  %v4944 = vld [vmem:[#allocation3 + $0x368] sm:$0xff]
  %v4945 = vld [vmem:[#allocation3 + $0x370] sm:$0xff]
  %v4946 = vld [vmem:[#allocation3 + $0x378] sm:$0xff]
  %v4947 = vld [vmem:[#allocation3 + $0x380] sm:$0xff]
  %v4948 = vld [vmem:[#allocation3 + $0x388] sm:$0xff]
  %v4949 = vld [vmem:[#allocation3 + $0x390] sm:$0xff]
  %v4950 = vld [vmem:[#allocation3 + $0x398] sm:$0xff]
  %v4951 = vld [vmem:[#allocation3 + $0x3a0] sm:$0xff]
  %v4952 = vld [vmem:[#allocation3 + $0x3a8] sm:$0xff]
  %v4953 = vld [vmem:[#allocation3 + $0x3b0] sm:$0xff]
  %v4954 = vld [vmem:[#allocation3 + $0x3b8] sm:$0xff]
  %v4955 = vld [vmem:[#allocation3 + $0x3c0] sm:$0xff]
  %v4956 = vld [vmem:[#allocation3 + $0x3c8] sm:$0xff]
  %v4957 = vld [vmem:[#allocation3 + $0x3d0] sm:$0xff]
  %v4958 = vld [vmem:[#allocation3 + $0x3d8] sm:$0xff]
  %v4959 = vld [vmem:[#allocation3 + $0x3e0] sm:$0xff]
  %v4960 = vld [vmem:[#allocation3 + $0x3e8] sm:$0xff]
  %v4961 = vld [vmem:[#allocation3 + $0x3f0] sm:$0xff]
  %v4962 = vld [vmem:[#allocation3 + $0x3f8] sm:$0xff]
  %v4963 = vld [vmem:[#allocation3 + $0x400] sm:$0xff]
  %v4964 = vld [vmem:[#allocation3 + $0x408] sm:$0xff]
  %v4965 = vld [vmem:[#allocation3 + $0x410] sm:$0xff]
  %v4966 = vld [vmem:[#allocation3 + $0x418] sm:$0xff]
  %v4967 = vld [vmem:[#allocation3 + $0x420] sm:$0xff]
  %v4968 = vld [vmem:[#allocation3 + $0x428] sm:$0xff]
  %v4969 = vld [vmem:[#allocation3 + $0x430] sm:$0xff]
  %v4970 = vld [vmem:[#allocation3 + $0x438] sm:$0xff]
  %v4971 = vld [vmem:[#allocation3 + $0x440] sm:$0xff]
  %v4972 = vld [vmem:[#allocation3 + $0x448] sm:$0xff]
  %v4973 = vld [vmem:[#allocation3 + $0x450] sm:$0xff]
  %v4974 = vld [vmem:[#allocation3 + $0x458] sm:$0xff]
  %v4975 = vld [vmem:[#allocation3 + $0x460] sm:$0xff]
  %v4976 = vld [vmem:[#allocation3 + $0x468] sm:$0xff]
  %v4977 = vld [vmem:[#allocation3 + $0x470] sm:$0xff]
  %v4978 = vld [vmem:[#allocation3 + $0x478] sm:$0xff]
  %v4979 = vld [vmem:[#allocation3 + $0x480] sm:$0xff]
  %v4980 = vld [vmem:[#allocation3 + $0x488] sm:$0xff]
  %v4981 = vld [vmem:[#allocation3 + $0x490] sm:$0xff]
  %v4982 = vld [vmem:[#allocation3 + $0x498] sm:$0xff]
  %v4983 = vld [vmem:[#allocation3 + $0x4a0] sm:$0xff]
  %v4984 = vld [vmem:[#allocation3 + $0x4a8] sm:$0xff]
  %v4985 = vld [vmem:[#allocation3 + $0x4b0] sm:$0xff]
  %v4986 = vld [vmem:[#allocation3 + $0x4b8] sm:$0xff]
  %v4987 = vld [vmem:[#allocation3 + $0x4c0] sm:$0xff]
  %v4988 = vld [vmem:[#allocation3 + $0x4c8] sm:$0xff]
  %v4989 = vld [vmem:[#allocation3 + $0x4d0] sm:$0xff]
  %v4990 = vld [vmem:[#allocation3 + $0x4d8] sm:$0xff]
  %v4991 = vld [vmem:[#allocation3 + $0x4e0] sm:$0xff]
  %v4992 = vld [vmem:[#allocation3 + $0x4e8] sm:$0xff]
  %v4993 = vld [vmem:[#allocation3 + $0x4f0] sm:$0xff]
  %v4994 = vld [vmem:[#allocation3 + $0x4f8] sm:$0xff]
  %v4995 = vld [vmem:[#allocation3 + $0x500] sm:$0xff]
  %v4996 = vld [vmem:[#allocation3 + $0x508] sm:$0xff]
  %v4997 = vld [vmem:[#allocation3 + $0x510] sm:$0xff]
  %v4998 = vld [vmem:[#allocation3 + $0x518] sm:$0xff]
  %v4999 = vld [vmem:[#allocation3 + $0x520] sm:$0xff]
  %v5000 = vld [vmem:[#allocation3 + $0x528] sm:$0xff]
  %v5001 = vld [vmem:[#allocation3 + $0x530] sm:$0xff]
  %v5002 = vld [vmem:[#allocation3 + $0x538] sm:$0xff]
  %v5003 = vld [vmem:[#allocation3 + $0x540] sm:$0xff]
  %v5004 = vld [vmem:[#allocation3 + $0x548] sm:$0xff]
  %v5005 = vld [vmem:[#allocation3 + $0x550] sm:$0xff]
  %v5006 = vld [vmem:[#allocation3 + $0x558] sm:$0xff]
  %v5007 = vld [vmem:[#allocation3 + $0x560] sm:$0xff]
  %v5008 = vld [vmem:[#allocation3 + $0x568] sm:$0xff]
  %v5009 = vld [vmem:[#allocation3 + $0x570] sm:$0xff]
  %v5010 = vld [vmem:[#allocation3 + $0x578] sm:$0xff]
  %v5011 = vld [vmem:[#allocation3 + $0x580] sm:$0xff]
  %v5012 = vld [vmem:[#allocation3 + $0x588] sm:$0xff]
  %v5013 = vld [vmem:[#allocation3 + $0x590] sm:$0xff]
  %v5014 = vld [vmem:[#allocation3 + $0x598] sm:$0xff]
  %v5015 = vld [vmem:[#allocation3 + $0x5a0] sm:$0xff]
  %v5016 = vld [vmem:[#allocation3 + $0x5a8] sm:$0xff]
  %v5017 = vld [vmem:[#allocation3 + $0x5b0] sm:$0xff]
  %v5018 = vld [vmem:[#allocation3 + $0x5b8] sm:$0xff]
  %v5019 = vld [vmem:[#allocation3 + $0x5c0] sm:$0xff]
  %v5020 = vld [vmem:[#allocation3 + $0x5c8] sm:$0xff]
  %v5021 = vld [vmem:[#allocation3 + $0x5d0] sm:$0xff]
  %v5022 = vld [vmem:[#allocation3 + $0x5d8] sm:$0xff]
  %v5023 = vld [vmem:[#allocation3 + $0x5e0] sm:$0xff]
  %v5024 = vld [vmem:[#allocation3 + $0x5e8] sm:$0xff]
  %v5025 = vld [vmem:[#allocation3 + $0x5f0] sm:$0xff]
  %v5026 = vld [vmem:[#allocation3 + $0x5f8] sm:$0xff]
  %v5027 = vld [vmem:[#allocation3 + $0x600] sm:$0xff]
  %v5028 = vld [vmem:[#allocation3 + $0x608] sm:$0xff]
  %v5029 = vld [vmem:[#allocation3 + $0x610] sm:$0xff]
  %v5030 = vld [vmem:[#allocation3 + $0x618] sm:$0xff]
  %v5031 = vld [vmem:[#allocation3 + $0x620] sm:$0xff]
  %v5032 = vld [vmem:[#allocation3 + $0x628] sm:$0xff]
  %v5033 = vld [vmem:[#allocation3 + $0x630] sm:$0xff]
  %v5034 = vld [vmem:[#allocation3 + $0x638] sm:$0xff]
  %v5035 = vld [vmem:[#allocation3 + $0x640] sm:$0xff]
  %v5036 = vld [vmem:[#allocation3 + $0x648] sm:$0xff]
  %v5037 = vld [vmem:[#allocation3 + $0x650] sm:$0xff]
  %v5038 = vld [vmem:[#allocation3 + $0x658] sm:$0xff]
  %v5039 = vld [vmem:[#allocation3 + $0x660] sm:$0xff]
  %v5040 = vld [vmem:[#allocation3 + $0x668] sm:$0xff]
  %v5041 = vld [vmem:[#allocation3 + $0x670] sm:$0xff]
  %v5042 = vld [vmem:[#allocation3 + $0x678] sm:$0xff]
  %v5043 = vld [vmem:[#allocation3 + $0x680] sm:$0xff]
  %v5044 = vld [vmem:[#allocation3 + $0x688] sm:$0xff]
  %v5045 = vld [vmem:[#allocation3 + $0x690] sm:$0xff]
  %v5046 = vld [vmem:[#allocation3 + $0x698] sm:$0xff]
  %v5047 = vld [vmem:[#allocation3 + $0x6a0] sm:$0xff]
  %v5048 = vld [vmem:[#allocation3 + $0x6a8] sm:$0xff]
  %v5049 = vld [vmem:[#allocation3 + $0x6b0] sm:$0xff]
  %v5050 = vld [vmem:[#allocation3 + $0x6b8] sm:$0xff]
  %v5051 = vld [vmem:[#allocation3 + $0x6c0] sm:$0xff]
  %v5052 = vld [vmem:[#allocation3 + $0x6c8] sm:$0xff]
  %v5053 = vld [vmem:[#allocation3 + $0x6d0] sm:$0xff]
  %v5054 = vld [vmem:[#allocation3 + $0x6d8] sm:$0xff]
  %v5055 = vld [vmem:[#allocation3 + $0x6e0] sm:$0xff]
  %v5056 = vld [vmem:[#allocation3 + $0x6e8] sm:$0xff]
  %v5057 = vld [vmem:[#allocation3 + $0x6f0] sm:$0xff]
  %v5058 = vld [vmem:[#allocation3 + $0x6f8] sm:$0xff]
  %v5059 = vld [vmem:[#allocation3 + $0x700] sm:$0xff]
  %v5060 = vld [vmem:[#allocation3 + $0x708] sm:$0xff]
  %v5061 = vld [vmem:[#allocation3 + $0x710] sm:$0xff]
  %v5062 = vld [vmem:[#allocation3 + $0x718] sm:$0xff]
  %v5063 = vld [vmem:[#allocation3 + $0x720] sm:$0xff]
  %v5064 = vld [vmem:[#allocation3 + $0x728] sm:$0xff]
  %v5065 = vld [vmem:[#allocation3 + $0x730] sm:$0xff]
  %v5066 = vld [vmem:[#allocation3 + $0x738] sm:$0xff]
  %v5067 = vld [vmem:[#allocation3 + $0x740] sm:$0xff]
  %v5068 = vld [vmem:[#allocation3 + $0x748] sm:$0xff]
  %v5069 = vld [vmem:[#allocation3 + $0x750] sm:$0x3f]
  %v5070 = vld [vmem:[#allocation3 + $0x758] sm:$0x3f]
  %v5071 = vld [vmem:[#allocation3 + $0x760] sm:$0x3f]
  %v5072 = vld [vmem:[#allocation3 + $0x768] sm:$0x3f]
  %v5073 = vld [vmem:[#allocation3 + $0x770] sm:$0x3f]
  %v5074 = vld [vmem:[#allocation3 + $0x778] sm:$0x3f]
  %v5075 = vld [vmem:[#allocation3 + $0x780] sm:$0x3f]
  %v5076 = vld [vmem:[#allocation3 + $0x788] sm:$0x3f]
  %v5077 = vld [vmem:[#allocation3 + $0x790] sm:$0x3f]
  %v5078 = vld [vmem:[#allocation3 + $0x798] sm:$0x3f]
  %v5079 = vld [vmem:[#allocation3 + $0x7a0] sm:$0x3f]
  %v5080 = vld [vmem:[#allocation3 + $0x7a8] sm:$0x3f]
  %v5081 = vld [vmem:[#allocation3 + $0x7b0] sm:$0x3f]
  %v5082 = vld [vmem:[%s5] sm:$0xff]
  %v5083 = vld [vmem:[%s5 + $0x8] sm:$0xff]
  %5085 = vset.pattern.permute.xlu0 0
  %5086 = vperm.xlu0 %5085, %v5082
  %v5087 = vpop.permute.xlu0 %5086
  %5090 = vset.pattern.permute.xlu0 0
  %5091 = vperm.xlu0 %5090, %v5083
  %v5092 = vpop.permute.xlu0 %5091
  %vm5094 = vcmask 179200
  %v5096 = vsel %vm5094, %v4832, 0
  %v5099 = vsel %vm5094, %v4834, 0
  %v5102 = vsel %vm2920, %v5069, 0
  %v5105 = vsel %vm2920, %v5070, 0
  %v5108 = vsel %vm2920, %v5071, 0
  %v5111 = vsel %vm2920, %v5072, 0
  %v5114 = vsel %vm2920, %v5073, 0
  %v5117 = vsel %vm2920, %v5074, 0
  %v5120 = vsel %vm2920, %v5075, 0
  %v5123 = vsel %vm2920, %v5076, 0
  %v5126 = vsel %vm2920, %v5077, 0
  %v5129 = vsel %vm2920, %v5078, 0
  %v5132 = vsel %vm2920, %v5079, 0
  %v5135 = vsel %vm2920, %v5080, 0
  %v5138 = vsel %vm2920, %v5081, 0
  %5140 = vmatprep.subr.mxu0 %v5031
  %5141 = vmatpush1.msra.mxu0 %v5030
  %5142 = vmatprep.subr.mxu0 %v5018
  %5143 = vmatpush1.msra.mxu0 %v5017
  %5144 = vmatprep.subr.mxu0 %v5005
  %5145 = vmatpush1.msra.mxu0 %v5004
  %5146 = vmatprep.subr.mxu0 %v4992
  %5147 = vmatpush1.msra.mxu0 %v4991
  %5148 = vmatprep.subr.mxu0 %v4979
  %5149 = vmatpush1.msra.mxu0 %v4978
  %5150 = vmatprep.subr.mxu0 %v4966
  %5151 = vmatpush1.msra.mxu0 %v4965
  %5152 = vmatprep.subr.mxu0 %v4953
  %5153 = vmatpush1.msra.mxu0 %v4952
  %5154 = vmatprep.subr.mxu0 %v4940
  %5155 = vmatpush1.msra.mxu0 %v4939
  %5156 = vmatprep.subr.mxu0 %v4927
  %5157 = vmatpush1.msra.mxu0 %v4926
  %5158 = vmatprep.subr.mxu0 %v4914
  %5159 = vmatpush1.msra.mxu0 %v4913
  %5160 = vmatprep.subr.mxu0 %v4901
  %5161 = vmatpush1.msra.mxu0 %v4900
  %5162 = vmatprep.subr.mxu0 %v4888
  %5163 = vmatpush1.msra.mxu0 %v4887
  %5164 = vmatprep.subr.mxu0 %v4875
  %5165 = vmatpush1.msra.mxu0 %v4874
  %5166 = vmatprep.subr.mxu0 %v4862
  %5167 = vmatpush1.msra.mxu0 %v4861
  %5168 = vmatprep.subr.mxu0 %v4849
  %5169 = vmatpush1.msra.mxu0 %v4848
  %5170 = vmatprep.subr.mxu0 %v4836
  %5171 = vmatpush1.msra.mxu0 %v4835
  %5172 = vmatprep.subr.mxu0 0.0
  %5173 = vmatpush2.msra.mxu0 0.0
  %5174 = vmatprep.subr.mxu0 0.0
  %5175 = vmatpush2.msra.mxu0 0.0
  %5176 = vmatprep.subr.mxu0 0.0
  %5177 = vmatpush2.msra.mxu0 0.0
  %5178 = vmatprep.subr.mxu0 0.0
  %5179 = vmatpush2.msra.mxu0 0.0
  %5180 = vmatprep.subr.mxu0 0.0
  %5181 = vmatpush2.msra.mxu0 0.0
  %5182 = vmatprep.subr.mxu0 0.0
  %5183 = vmatpush2.msra.mxu0 0.0
  %5184 = vmatprep.subr.mxu0 0.0
  %5185 = vmatpush2.msra.mxu0 0.0
  %5186 = vmatprep.subr.mxu0 0.0
  %5187 = vmatpush2.msra.mxu0 0.0
  %5188 = vmatprep.subr.mxu0 0.0
  %5189 = vmatpush2.msra.mxu0 0.0
  %5190 = vmatprep.subr.mxu0 0.0
  %5191 = vmatpush2.msra.mxu0 0.0
  %5192 = vmatprep.subr.mxu0 0.0
  %5193 = vmatpush2.msra.mxu0 0.0
  %5194 = vmatprep.subr.mxu0 0.0
  %5195 = vmatpush2.msra.mxu0 0.0
  %5196 = vmatprep.subr.mxu0 0.0
  %5197 = vmatpush2.msra.mxu0 0.0
  %5198 = vmatprep.subr.mxu0 %v5105
  %5199 = vmatpush2.msra.mxu0 %v5102
  %5200 = vmatprep.subr.mxu0 %v5057
  %5201 = vmatpush2.msra.mxu0 %v5056
  %5202 = vmatprep.subr.mxu0 %v5044
  %5203 = vmatpush2.msra.mxu0 %v5043
  %5204 = vmatprep.mubr.f32.mxu0 %v5096
  %5205 = vmatmul.mubr.f32.gmra.mxu0 %v4831
  %v5206 = vpop.f32.mrf.mxu0
  %v5207 = vadd.f32 %v5087, %v5206
  %v5208 = vpop.f32.mrf.mxu0
  %v5209 = vadd.f32 %v5087, %v5208
  %5210 = vmatprep.mubr.f32.mxu0 %v5099
  %5211 = vmatmul.mubr.f32.gmra.mxu0 %v4833
  %v5212 = vpop.f32.mrf.mxu0
  %v5213 = vadd.f32 %v5092, %v5212
  %v5214 = vpop.f32.mrf.mxu0
  %v5215 = vadd.f32 %v5092, %v5214
  %5216 = vdwg.mxu0
  %5217 = vmatprep.subr.mxu0 %v5033
  %5218 = vmatpush1.msra.mxu0 %v5032
  %5219 = vmatprep.subr.mxu0 %v5020
  %5220 = vmatpush1.msra.mxu0 %v5019
  %5221 = vmatprep.subr.mxu0 %v5007
  %5222 = vmatpush1.msra.mxu0 %v5006
  %5223 = vmatprep.subr.mxu0 %v4994
  %5224 = vmatpush1.msra.mxu0 %v4993
  %5225 = vmatprep.subr.mxu0 %v4981
  %5226 = vmatpush1.msra.mxu0 %v4980
  %5227 = vmatprep.subr.mxu0 %v4968
  %5228 = vmatpush1.msra.mxu0 %v4967
  %5229 = vmatprep.subr.mxu0 %v4955
  %5230 = vmatpush1.msra.mxu0 %v4954
  %5231 = vmatprep.subr.mxu0 %v4942
  %5232 = vmatpush1.msra.mxu0 %v4941
  %5233 = vmatprep.subr.mxu0 %v4929
  %5234 = vmatpush1.msra.mxu0 %v4928
  %5235 = vmatprep.subr.mxu0 %v4916
  %5236 = vmatpush1.msra.mxu0 %v4915
  %5237 = vmatprep.subr.mxu0 %v4903
  %5238 = vmatpush1.msra.mxu0 %v4902
  %5239 = vmatprep.subr.mxu0 %v4890
  %5240 = vmatpush1.msra.mxu0 %v4889
  %5241 = vmatprep.subr.mxu0 %v4877
  %5242 = vmatpush1.msra.mxu0 %v4876
  %5243 = vmatprep.subr.mxu0 %v4864
  %5244 = vmatpush1.msra.mxu0 %v4863
  %5245 = vmatprep.subr.mxu0 %v4851
  %5246 = vmatpush1.msra.mxu0 %v4850
  %5247 = vmatprep.subr.mxu0 %v4838
  %5248 = vmatpush1.msra.mxu0 %v4837
  %5249 = vmatprep.subr.mxu0 0.0
  %5250 = vmatpush2.msra.mxu0 0.0
  %5251 = vmatprep.subr.mxu0 0.0
  %5252 = vmatpush2.msra.mxu0 0.0
  %5253 = vmatprep.subr.mxu0 0.0
  %5254 = vmatpush2.msra.mxu0 0.0
  %5255 = vmatprep.subr.mxu0 0.0
  %5256 = vmatpush2.msra.mxu0 0.0
  %5257 = vmatprep.subr.mxu0 0.0
  %5258 = vmatpush2.msra.mxu0 0.0
  %5259 = vmatprep.subr.mxu0 0.0
  %5260 = vmatpush2.msra.mxu0 0.0
  %5261 = vmatprep.subr.mxu0 0.0
  %5262 = vmatpush2.msra.mxu0 0.0
  %5263 = vmatprep.subr.mxu0 0.0
  %5264 = vmatpush2.msra.mxu0 0.0
  %5265 = vmatprep.subr.mxu0 0.0
  %5266 = vmatpush2.msra.mxu0 0.0
  %5267 = vmatprep.subr.mxu0 0.0
  %5268 = vmatpush2.msra.mxu0 0.0
  %5269 = vmatprep.subr.mxu0 0.0
  %5270 = vmatpush2.msra.mxu0 0.0
  %5271 = vmatprep.subr.mxu0 0.0
  %5272 = vmatpush2.msra.mxu0 0.0
  %5273 = vmatprep.subr.mxu0 0.0
  %5274 = vmatpush2.msra.mxu0 0.0
  %5275 = vmatprep.subr.mxu0 %v5111
  %5276 = vmatpush2.msra.mxu0 %v5108
  %5277 = vmatprep.subr.mxu0 %v5059
  %5278 = vmatpush2.msra.mxu0 %v5058
  %5279 = vmatprep.subr.mxu0 %v5046
  %5280 = vmatpush2.msra.mxu0 %v5045
  %5281 = vmatprep.mubr.f32.mxu0 %v5096
  %5282 = vmatmul.mubr.f32.gmra.mxu0 %v4831
  %v5283 = vpop.f32.mrf.mxu0
  %v5284 = vadd.f32 %v5087, %v5283
  %v5285 = vpop.f32.mrf.mxu0
  %v5286 = vadd.f32 %v5087, %v5285
  %5287 = vmatprep.mubr.f32.mxu0 %v5099
  %5288 = vmatmul.mubr.f32.gmra.mxu0 %v4833
  %v5289 = vpop.f32.mrf.mxu0
  %v5290 = vadd.f32 %v5092, %v5289
  %v5291 = vpop.f32.mrf.mxu0
  %v5292 = vadd.f32 %v5092, %v5291
  %5293 = vdwg.mxu0
  %5294 = vmatprep.subr.mxu0 %v5035
  %5295 = vmatpush1.msra.mxu0 %v5034
  %5296 = vmatprep.subr.mxu0 %v5022
  %5297 = vmatpush1.msra.mxu0 %v5021
  %5298 = vmatprep.subr.mxu0 %v5009
  %5299 = vmatpush1.msra.mxu0 %v5008
  %5300 = vmatprep.subr.mxu0 %v4996
  %5301 = vmatpush1.msra.mxu0 %v4995
  %5302 = vmatprep.subr.mxu0 %v4983
  %5303 = vmatpush1.msra.mxu0 %v4982
  %5304 = vmatprep.subr.mxu0 %v4970
  %5305 = vmatpush1.msra.mxu0 %v4969
  %5306 = vmatprep.subr.mxu0 %v4957
  %5307 = vmatpush1.msra.mxu0 %v4956
  %5308 = vmatprep.subr.mxu0 %v4944
  %5309 = vmatpush1.msra.mxu0 %v4943
  %5310 = vmatprep.subr.mxu0 %v4931
  %5311 = vmatpush1.msra.mxu0 %v4930
  %5312 = vmatprep.subr.mxu0 %v4918
  %5313 = vmatpush1.msra.mxu0 %v4917
  %5314 = vmatprep.subr.mxu0 %v4905
  %5315 = vmatpush1.msra.mxu0 %v4904
  %5316 = vmatprep.subr.mxu0 %v4892
  %5317 = vmatpush1.msra.mxu0 %v4891
  %5318 = vmatprep.subr.mxu0 %v4879
  %5319 = vmatpush1.msra.mxu0 %v4878
  %5320 = vmatprep.subr.mxu0 %v4866
  %5321 = vmatpush1.msra.mxu0 %v4865
  %5322 = vmatprep.subr.mxu0 %v4853
  %5323 = vmatpush1.msra.mxu0 %v4852
  %5324 = vmatprep.subr.mxu0 %v4840
  %5325 = vmatpush1.msra.mxu0 %v4839
  %5326 = vmatprep.subr.mxu0 0.0
  %5327 = vmatpush2.msra.mxu0 0.0
  %5328 = vmatprep.subr.mxu0 0.0
  %5329 = vmatpush2.msra.mxu0 0.0
  %5330 = vmatprep.subr.mxu0 0.0
  %5331 = vmatpush2.msra.mxu0 0.0
  %5332 = vmatprep.subr.mxu0 0.0
  %5333 = vmatpush2.msra.mxu0 0.0
  %5334 = vmatprep.subr.mxu0 0.0
  %5335 = vmatpush2.msra.mxu0 0.0
  %5336 = vmatprep.subr.mxu0 0.0
  %5337 = vmatpush2.msra.mxu0 0.0
  %5338 = vmatprep.subr.mxu0 0.0
  %5339 = vmatpush2.msra.mxu0 0.0
  %5340 = vmatprep.subr.mxu0 0.0
  %5341 = vmatpush2.msra.mxu0 0.0
  %5342 = vmatprep.subr.mxu0 0.0
  %5343 = vmatpush2.msra.mxu0 0.0
  %5344 = vmatprep.subr.mxu0 0.0
  %5345 = vmatpush2.msra.mxu0 0.0
  %5346 = vmatprep.subr.mxu0 0.0
  %5347 = vmatpush2.msra.mxu0 0.0
  %5348 = vmatprep.subr.mxu0 0.0
  %5349 = vmatpush2.msra.mxu0 0.0
  %5350 = vmatprep.subr.mxu0 0.0
  %5351 = vmatpush2.msra.mxu0 0.0
  %5352 = vmatprep.subr.mxu0 %v5117
  %5353 = vmatpush2.msra.mxu0 %v5114
  %5354 = vmatprep.subr.mxu0 %v5061
  %5355 = vmatpush2.msra.mxu0 %v5060
  %5356 = vmatprep.subr.mxu0 %v5048
  %5357 = vmatpush2.msra.mxu0 %v5047
  %5358 = vmatprep.mubr.f32.mxu0 %v5096
  %5359 = vmatmul.mubr.f32.gmra.mxu0 %v4831
  %v5360 = vpop.f32.mrf.mxu0
  %v5361 = vadd.f32 %v5087, %v5360
  %v5362 = vpop.f32.mrf.mxu0
  %v5363 = vadd.f32 %v5087, %v5362
  %5364 = vmatprep.mubr.f32.mxu0 %v5099
  %5365 = vmatmul.mubr.f32.gmra.mxu0 %v4833
  %v5366 = vpop.f32.mrf.mxu0
  %v5367 = vadd.f32 %v5092, %v5366
  %v5368 = vpop.f32.mrf.mxu0
  %v5369 = vadd.f32 %v5092, %v5368
  %5370 = vdwg.mxu0
  %5371 = vmatprep.subr.mxu0 %v5037
  %5372 = vmatpush1.msra.mxu0 %v5036
  %5373 = vmatprep.subr.mxu0 %v5024
  %5374 = vmatpush1.msra.mxu0 %v5023
  %5375 = vmatprep.subr.mxu0 %v5011
  %5376 = vmatpush1.msra.mxu0 %v5010
  %5377 = vmatprep.subr.mxu0 %v4998
  %5378 = vmatpush1.msra.mxu0 %v4997
  %5379 = vmatprep.subr.mxu0 %v4985
  %5380 = vmatpush1.msra.mxu0 %v4984
  %5381 = vmatprep.subr.mxu0 %v4972
  %5382 = vmatpush1.msra.mxu0 %v4971
  %5383 = vmatprep.subr.mxu0 %v4959
  %5384 = vmatpush1.msra.mxu0 %v4958
  %5385 = vmatprep.subr.mxu0 %v4946
  %5386 = vmatpush1.msra.mxu0 %v4945
  %5387 = vmatprep.subr.mxu0 %v4933
  %5388 = vmatpush1.msra.mxu0 %v4932
  %5389 = vmatprep.subr.mxu0 %v4920
  %5390 = vmatpush1.msra.mxu0 %v4919
  %5391 = vmatprep.subr.mxu0 %v4907
  %5392 = vmatpush1.msra.mxu0 %v4906
  %5393 = vmatprep.subr.mxu0 %v4894
  %5394 = vmatpush1.msra.mxu0 %v4893
  %5395 = vmatprep.subr.mxu0 %v4881
  %5396 = vmatpush1.msra.mxu0 %v4880
  %5397 = vmatprep.subr.mxu0 %v4868
  %5398 = vmatpush1.msra.mxu0 %v4867
  %5399 = vmatprep.subr.mxu0 %v4855
  %5400 = vmatpush1.msra.mxu0 %v4854
  %5401 = vmatprep.subr.mxu0 %v4842
  %5402 = vmatpush1.msra.mxu0 %v4841
  %5403 = vmatprep.subr.mxu0 0.0
  %5404 = vmatpush2.msra.mxu0 0.0
  %5405 = vmatprep.subr.mxu0 0.0
  %5406 = vmatpush2.msra.mxu0 0.0
  %5407 = vmatprep.subr.mxu0 0.0
  %5408 = vmatpush2.msra.mxu0 0.0
  %5409 = vmatprep.subr.mxu0 0.0
  %5410 = vmatpush2.msra.mxu0 0.0
  %5411 = vmatprep.subr.mxu0 0.0
  %5412 = vmatpush2.msra.mxu0 0.0
  %5413 = vmatprep.subr.mxu0 0.0
  %5414 = vmatpush2.msra.mxu0 0.0
  %5415 = vmatprep.subr.mxu0 0.0
  %5416 = vmatpush2.msra.mxu0 0.0
  %5417 = vmatprep.subr.mxu0 0.0
  %5418 = vmatpush2.msra.mxu0 0.0
  %5419 = vmatprep.subr.mxu0 0.0
  %5420 = vmatpush2.msra.mxu0 0.0
  %5421 = vmatprep.subr.mxu0 0.0
  %5422 = vmatpush2.msra.mxu0 0.0
  %5423 = vmatprep.subr.mxu0 0.0
  %5424 = vmatpush2.msra.mxu0 0.0
  %5425 = vmatprep.subr.mxu0 0.0
  %5426 = vmatpush2.msra.mxu0 0.0
  %5427 = vmatprep.subr.mxu0 0.0
  %5428 = vmatpush2.msra.mxu0 0.0
  %5429 = vmatprep.subr.mxu0 %v5123
  %5430 = vmatpush2.msra.mxu0 %v5120
  %5431 = vmatprep.subr.mxu0 %v5063
  %5432 = vmatpush2.msra.mxu0 %v5062
  %5433 = vmatprep.subr.mxu0 %v5050
  %5434 = vmatpush2.msra.mxu0 %v5049
  %5435 = vmatprep.mubr.f32.mxu0 %v5096
  %5436 = vmatmul.mubr.f32.gmra.mxu0 %v4831
  %v5437 = vpop.f32.mrf.mxu0
  %v5438 = vadd.f32 %v5087, %v5437
  %v5439 = vpop.f32.mrf.mxu0
  %v5440 = vadd.f32 %v5087, %v5439
  %5441 = vmatprep.mubr.f32.mxu0 %v5099
  %5442 = vmatmul.mubr.f32.gmra.mxu0 %v4833
  %v5443 = vpop.f32.mrf.mxu0
  %v5444 = vadd.f32 %v5092, %v5443
  %v5445 = vpop.f32.mrf.mxu0
  %v5446 = vadd.f32 %v5092, %v5445
  %5447 = vdwg.mxu0
  %5448 = vmatprep.subr.mxu0 %v5039
  %5449 = vmatpush1.msra.mxu0 %v5038
  %5450 = vmatprep.subr.mxu0 %v5026
  %5451 = vmatpush1.msra.mxu0 %v5025
  %5452 = vmatprep.subr.mxu0 %v5013
  %5453 = vmatpush1.msra.mxu0 %v5012
  %5454 = vmatprep.subr.mxu0 %v5000
  %5455 = vmatpush1.msra.mxu0 %v4999
  %5456 = vmatprep.subr.mxu0 %v4987
  %5457 = vmatpush1.msra.mxu0 %v4986
  %5458 = vmatprep.subr.mxu0 %v4974
  %5459 = vmatpush1.msra.mxu0 %v4973
  %5460 = vmatprep.subr.mxu0 %v4961
  %5461 = vmatpush1.msra.mxu0 %v4960
  %5462 = vmatprep.subr.mxu0 %v4948
  %5463 = vmatpush1.msra.mxu0 %v4947
  %5464 = vmatprep.subr.mxu0 %v4935
  %5465 = vmatpush1.msra.mxu0 %v4934
  %5466 = vmatprep.subr.mxu0 %v4922
  %5467 = vmatpush1.msra.mxu0 %v4921
  %5468 = vmatprep.subr.mxu0 %v4909
  %5469 = vmatpush1.msra.mxu0 %v4908
  %5470 = vmatprep.subr.mxu0 %v4896
  %5471 = vmatpush1.msra.mxu0 %v4895
  %5472 = vmatprep.subr.mxu0 %v4883
  %5473 = vmatpush1.msra.mxu0 %v4882
  %5474 = vmatprep.subr.mxu0 %v4870
  %5475 = vmatpush1.msra.mxu0 %v4869
  %5476 = vmatprep.subr.mxu0 %v4857
  %5477 = vmatpush1.msra.mxu0 %v4856
  %5478 = vmatprep.subr.mxu0 %v4844
  %5479 = vmatpush1.msra.mxu0 %v4843
  %5480 = vmatprep.subr.mxu0 0.0
  %5481 = vmatpush2.msra.mxu0 0.0
  %5482 = vmatprep.subr.mxu0 0.0
  %5483 = vmatpush2.msra.mxu0 0.0
  %5484 = vmatprep.subr.mxu0 0.0
  %5485 = vmatpush2.msra.mxu0 0.0
  %5486 = vmatprep.subr.mxu0 0.0
  %5487 = vmatpush2.msra.mxu0 0.0
  %5488 = vmatprep.subr.mxu0 0.0
  %5489 = vmatpush2.msra.mxu0 0.0
  %5490 = vmatprep.subr.mxu0 0.0
  %5491 = vmatpush2.msra.mxu0 0.0
  %5492 = vmatprep.subr.mxu0 0.0
  %5493 = vmatpush2.msra.mxu0 0.0
  %5494 = vmatprep.subr.mxu0 0.0
  %5495 = vmatpush2.msra.mxu0 0.0
  %5496 = vmatprep.subr.mxu0 0.0
  %5497 = vmatpush2.msra.mxu0 0.0
  %5498 = vmatprep.subr.mxu0 0.0
  %5499 = vmatpush2.msra.mxu0 0.0
  %5500 = vmatprep.subr.mxu0 0.0
  %5501 = vmatpush2.msra.mxu0 0.0
  %5502 = vmatprep.subr.mxu0 0.0
  %5503 = vmatpush2.msra.mxu0 0.0
  %5504 = vmatprep.subr.mxu0 0.0
  %5505 = vmatpush2.msra.mxu0 0.0
  %5506 = vmatprep.subr.mxu0 %v5129
  %5507 = vmatpush2.msra.mxu0 %v5126
  %5508 = vmatprep.subr.mxu0 %v5065
  %5509 = vmatpush2.msra.mxu0 %v5064
  %5510 = vmatprep.subr.mxu0 %v5052
  %5511 = vmatpush2.msra.mxu0 %v5051
  %5512 = vmatprep.mubr.f32.mxu0 %v5096
  %5513 = vmatmul.mubr.f32.gmra.mxu0 %v4831
  %v5514 = vpop.f32.mrf.mxu0
  %v5515 = vadd.f32 %v5087, %v5514
  %v5516 = vpop.f32.mrf.mxu0
  %v5517 = vadd.f32 %v5087, %v5516
  %5518 = vmatprep.mubr.f32.mxu0 %v5099
  %5519 = vmatmul.mubr.f32.gmra.mxu0 %v4833
  %v5520 = vpop.f32.mrf.mxu0
  %v5521 = vadd.f32 %v5092, %v5520
  %v5522 = vpop.f32.mrf.mxu0
  %v5523 = vadd.f32 %v5092, %v5522
  %5524 = vdwg.mxu0
  %5525 = vmatprep.subr.mxu0 %v5041
  %5526 = vmatpush1.msra.mxu0 %v5040
  %5527 = vmatprep.subr.mxu0 %v5028
  %5528 = vmatpush1.msra.mxu0 %v5027
  %5529 = vmatprep.subr.mxu0 %v5015
  %5530 = vmatpush1.msra.mxu0 %v5014
  %5531 = vmatprep.subr.mxu0 %v5002
  %5532 = vmatpush1.msra.mxu0 %v5001
  %5533 = vmatprep.subr.mxu0 %v4989
  %5534 = vmatpush1.msra.mxu0 %v4988
  %5535 = vmatprep.subr.mxu0 %v4976
  %5536 = vmatpush1.msra.mxu0 %v4975
  %5537 = vmatprep.subr.mxu0 %v4963
  %5538 = vmatpush1.msra.mxu0 %v4962
  %5539 = vmatprep.subr.mxu0 %v4950
  %5540 = vmatpush1.msra.mxu0 %v4949
  %5541 = vmatprep.subr.mxu0 %v4937
  %5542 = vmatpush1.msra.mxu0 %v4936
  %5543 = vmatprep.subr.mxu0 %v4924
  %5544 = vmatpush1.msra.mxu0 %v4923
  %5545 = vmatprep.subr.mxu0 %v4911
  %5546 = vmatpush1.msra.mxu0 %v4910
  %5547 = vmatprep.subr.mxu0 %v4898
  %5548 = vmatpush1.msra.mxu0 %v4897
  %5549 = vmatprep.subr.mxu0 %v4885
  %5550 = vmatpush1.msra.mxu0 %v4884
  %5551 = vmatprep.subr.mxu0 %v4872
  %5552 = vmatpush1.msra.mxu0 %v4871
  %5553 = vmatprep.subr.mxu0 %v4859
  %5554 = vmatpush1.msra.mxu0 %v4858
  %5555 = vmatprep.subr.mxu0 %v4846
  %5556 = vmatpush1.msra.mxu0 %v4845
  %5557 = vmatprep.subr.mxu0 0.0
  %5558 = vmatpush2.msra.mxu0 0.0
  %5559 = vmatprep.subr.mxu0 0.0
  %5560 = vmatpush2.msra.mxu0 0.0
  %5561 = vmatprep.subr.mxu0 0.0
  %5562 = vmatpush2.msra.mxu0 0.0
  %5563 = vmatprep.subr.mxu0 0.0
  %5564 = vmatpush2.msra.mxu0 0.0
  %5565 = vmatprep.subr.mxu0 0.0
  %5566 = vmatpush2.msra.mxu0 0.0
  %5567 = vmatprep.subr.mxu0 0.0
  %5568 = vmatpush2.msra.mxu0 0.0
  %5569 = vmatprep.subr.mxu0 0.0
  %5570 = vmatpush2.msra.mxu0 0.0
  %5571 = vmatprep.subr.mxu0 0.0
  %5572 = vmatpush2.msra.mxu0 0.0
  %5573 = vmatprep.subr.mxu0 0.0
  %5574 = vmatpush2.msra.mxu0 0.0
  %5575 = vmatprep.subr.mxu0 0.0
  %5576 = vmatpush2.msra.mxu0 0.0
  %5577 = vmatprep.subr.mxu0 0.0
  %5578 = vmatpush2.msra.mxu0 0.0
  %5579 = vmatprep.subr.mxu0 0.0
  %5580 = vmatpush2.msra.mxu0 0.0
  %5581 = vmatprep.subr.mxu0 0.0
  %5582 = vmatpush2.msra.mxu0 0.0
  %5583 = vmatprep.subr.mxu0 %v5135
  %5584 = vmatpush2.msra.mxu0 %v5132
  %5585 = vmatprep.subr.mxu0 %v5067
  %5586 = vmatpush2.msra.mxu0 %v5066
  %5587 = vmatprep.subr.mxu0 %v5054
  %5588 = vmatpush2.msra.mxu0 %v5053
  %5589 = vmatprep.mubr.f32.mxu0 %v5096
  %5590 = vmatmul.mubr.f32.gmra.mxu0 %v4831
  %v5591 = vpop.f32.mrf.mxu0
  %v5592 = vadd.f32 %v5087, %v5591
  %v5593 = vpop.f32.mrf.mxu0
  %v5594 = vadd.f32 %v5087, %v5593
  %5595 = vmatprep.mubr.f32.mxu0 %v5099
  %5596 = vmatmul.mubr.f32.gmra.mxu0 %v4833
  %v5597 = vpop.f32.mrf.mxu0
  %v5598 = vadd.f32 %v5092, %v5597
  %v5599 = vpop.f32.mrf.mxu0
  %v5600 = vadd.f32 %v5092, %v5599
  %5601 = vdwg.mxu0
  %5602 = vmatprep.subr.mxu0 0.0
  %5603 = vmatpush1.msra.mxu0 %v5042
  %5604 = vmatprep.subr.mxu0 0.0
  %5605 = vmatpush1.msra.mxu0 %v5029
  %5606 = vmatprep.subr.mxu0 0.0
  %5607 = vmatpush1.msra.mxu0 %v5016
  %5608 = vmatprep.subr.mxu0 0.0
  %5609 = vmatpush1.msra.mxu0 %v5003
  %5610 = vmatprep.subr.mxu0 0.0
  %5611 = vmatpush1.msra.mxu0 %v4990
  %5612 = vmatprep.subr.mxu0 0.0
  %5613 = vmatpush1.msra.mxu0 %v4977
  %5614 = vmatprep.subr.mxu0 0.0
  %5615 = vmatpush1.msra.mxu0 %v4964
  %5616 = vmatprep.subr.mxu0 0.0
  %5617 = vmatpush1.msra.mxu0 %v4951
  %5618 = vmatprep.subr.mxu0 0.0
  %5619 = vmatpush1.msra.mxu0 %v4938
  %5620 = vmatprep.subr.mxu0 0.0
  %5621 = vmatpush1.msra.mxu0 %v4925
  %5622 = vmatprep.subr.mxu0 0.0
  %5623 = vmatpush1.msra.mxu0 %v4912
  %5624 = vmatprep.subr.mxu0 0.0
  %5625 = vmatpush1.msra.mxu0 %v4899
  %5626 = vmatprep.subr.mxu0 0.0
  %5627 = vmatpush1.msra.mxu0 %v4886
  %5628 = vmatprep.subr.mxu0 0.0
  %5629 = vmatpush1.msra.mxu0 %v4873
  %5630 = vmatprep.subr.mxu0 0.0
  %5631 = vmatpush1.msra.mxu0 %v4860
  %5632 = vmatprep.subr.mxu0 0.0
  %5633 = vmatpush1.msra.mxu0 %v4847
  %5634 = vmatprep.subr.mxu0 0.0
  %5635 = vmatpush2.msra.mxu0 0.0
  %5636 = vmatprep.subr.mxu0 0.0
  %5637 = vmatpush2.msra.mxu0 0.0
  %5638 = vmatprep.subr.mxu0 0.0
  %5639 = vmatpush2.msra.mxu0 0.0
  %5640 = vmatprep.subr.mxu0 0.0
  %5641 = vmatpush2.msra.mxu0 0.0
  %5642 = vmatprep.subr.mxu0 0.0
  %5643 = vmatpush2.msra.mxu0 0.0
  %5644 = vmatprep.subr.mxu0 0.0
  %5645 = vmatpush2.msra.mxu0 0.0
  %5646 = vmatprep.subr.mxu0 0.0
  %5647 = vmatpush2.msra.mxu0 0.0
  %5648 = vmatprep.subr.mxu0 0.0
  %5649 = vmatpush2.msra.mxu0 0.0
  %5650 = vmatprep.subr.mxu0 0.0
  %5651 = vmatpush2.msra.mxu0 0.0
  %5652 = vmatprep.subr.mxu0 0.0
  %5653 = vmatpush2.msra.mxu0 0.0
  %5654 = vmatprep.subr.mxu0 0.0
  %5655 = vmatpush2.msra.mxu0 0.0
  %5656 = vmatprep.subr.mxu0 0.0
  %5657 = vmatpush2.msra.mxu0 0.0
  %5658 = vmatprep.subr.mxu0 0.0
  %5659 = vmatpush2.msra.mxu0 0.0
  %5660 = vmatprep.subr.mxu0 0.0
  %5661 = vmatpush2.msra.mxu0 %v5138
  %5662 = vmatprep.subr.mxu0 0.0
  %5663 = vmatpush2.msra.mxu0 %v5068
  %5664 = vmatprep.subr.mxu0 0.0
  %5665 = vmatpush2.msra.mxu0 %v5055
  %5666 = vmatprep.mubr.f32.mxu0 %v5096
  %5667 = vmatmul.mubr.f32.gmra.mxu0 %v4831
  %v5668 = vpop.f32.mrf.mxu0
  %v5669 = vadd.f32 %v5087, %v5668
  %v5670 = vpop.f32.mrf.mxu0
  %5671 = vmatprep.mubr.f32.mxu0 %v5099
  %5672 = vmatmul.mubr.f32.gmra.mxu0 %v4833
  %v5673 = vpop.f32.mrf.mxu0
  %v5674 = vadd.f32 %v5092, %v5673
  %v5675 = vpop.f32.mrf.mxu0
  %5676 = vdwg.mxu0
  %5703 = vrot.lane.b32.xlu0 %v5207, 126
  %v5704 = vpop.permute.xlu0 %5703
  %5705 = vrot.lane.b32.xlu0 %v5209, 126
  %v5706 = vpop.permute.xlu0 %5705
  %5707 = vrot.lane.b32.xlu0 %v5284, 126
  %v5708 = vpop.permute.xlu0 %5707
  %5709 = vrot.lane.b32.xlu0 %v5286, 126
  %v5710 = vpop.permute.xlu0 %5709
  %5711 = vrot.lane.b32.xlu0 %v5361, 126
  %v5712 = vpop.permute.xlu0 %5711
  %5713 = vrot.lane.b32.xlu0 %v5363, 126
  %v5714 = vpop.permute.xlu0 %5713
  %5715 = vrot.lane.b32.xlu0 %v5438, 126
  %v5716 = vpop.permute.xlu0 %5715
  %5717 = vrot.lane.b32.xlu0 %v5440, 126
  %v5718 = vpop.permute.xlu0 %5717
  %5719 = vrot.lane.b32.xlu0 %v5515, 126
  %v5720 = vpop.permute.xlu0 %5719
  %5721 = vrot.lane.b32.xlu0 %v5517, 126
  %v5722 = vpop.permute.xlu0 %5721
  %5723 = vrot.lane.b32.xlu0 %v5592, 126
  %v5724 = vpop.permute.xlu0 %5723
  %5725 = vrot.lane.b32.xlu0 %v5594, 126
  %v5726 = vpop.permute.xlu0 %5725
  %5727 = vrot.lane.b32.xlu0 %v5669, 126
  %v5728 = vpop.permute.xlu0 %5727
  %5729 = vrot.lane.b32.xlu0 %v5213, 126
  %v5730 = vpop.permute.xlu0 %5729
  %5731 = vrot.lane.b32.xlu0 %v5215, 126
  %v5732 = vpop.permute.xlu0 %5731
  %5733 = vrot.lane.b32.xlu0 %v5290, 126
  %v5734 = vpop.permute.xlu0 %5733
  %5735 = vrot.lane.b32.xlu0 %v5292, 126
  %v5736 = vpop.permute.xlu0 %5735
  %5737 = vrot.lane.b32.xlu0 %v5367, 126
  %v5738 = vpop.permute.xlu0 %5737
  %5739 = vrot.lane.b32.xlu0 %v5369, 126
  %v5740 = vpop.permute.xlu0 %5739
  %5741 = vrot.lane.b32.xlu0 %v5444, 126
  %v5742 = vpop.permute.xlu0 %5741
  %5743 = vrot.lane.b32.xlu0 %v5446, 126
  %v5744 = vpop.permute.xlu0 %5743
  %5745 = vrot.lane.b32.xlu0 %v5521, 126
  %v5746 = vpop.permute.xlu0 %5745
  %5747 = vrot.lane.b32.xlu0 %v5523, 126
  %v5748 = vpop.permute.xlu0 %5747
  %5749 = vrot.lane.b32.xlu0 %v5598, 126
  %v5750 = vpop.permute.xlu0 %5749
  %5751 = vrot.lane.b32.xlu0 %v5600, 126
  %v5752 = vpop.permute.xlu0 %5751
  %5753 = vrot.lane.b32.xlu0 %v5674, 126
  %v5754 = vpop.permute.xlu0 %5753
  %v5755 = vsel %vm214, %v5704, %v5706
  %v5756 = vsel %vm214, %v5706, %v5708
  %v5757 = vsel %vm214, %v5708, %v5710
  %v5758 = vsel %vm214, %v5710, %v5712
  %v5759 = vsel %vm214, %v5712, %v5714
  %v5760 = vsel %vm214, %v5714, %v5716
  %v5761 = vsel %vm214, %v5716, %v5718
  %v5762 = vsel %vm214, %v5718, %v5720
  %v5763 = vsel %vm214, %v5720, %v5722
  %v5764 = vsel %vm214, %v5722, %v5724
  %v5765 = vsel %vm214, %v5724, %v5726
  %v5766 = vsel %vm214, %v5726, %v5728
  %v5767 = vsel %vm214, %v5730, %v5732
  %v5768 = vsel %vm214, %v5732, %v5734
  %v5769 = vsel %vm214, %v5734, %v5736
  %v5770 = vsel %vm214, %v5736, %v5738
  %v5771 = vsel %vm214, %v5738, %v5740
  %v5772 = vsel %vm214, %v5740, %v5742
  %v5773 = vsel %vm214, %v5742, %v5744
  %v5774 = vsel %vm214, %v5744, %v5746
  %v5775 = vsel %vm214, %v5746, %v5748
  %v5776 = vsel %vm214, %v5748, %v5750
  %v5777 = vsel %vm214, %v5750, %v5752
  %v5778 = vsel %vm214, %v5752, %v5754
  %v5805 = vmax.f32 %v5207, %v5755
  %v5806 = vmax.f32 %v5209, %v5756
  %v5807 = vmax.f32 %v5284, %v5757
  %v5808 = vmax.f32 %v5286, %v5758
  %v5809 = vmax.f32 %v5361, %v5759
  %v5810 = vmax.f32 %v5363, %v5760
  %v5811 = vmax.f32 %v5438, %v5761
  %v5812 = vmax.f32 %v5440, %v5762
  %v5813 = vmax.f32 %v5515, %v5763
  %v5814 = vmax.f32 %v5517, %v5764
  %v5815 = vmax.f32 %v5592, %v5765
  %v5816 = vmax.f32 %v5594, %v5766
  %v5817 = vmax.f32 %v5669, %v5728
  %v5818 = vmax.f32 %v5213, %v5767
  %v5819 = vmax.f32 %v5215, %v5768
  %v5820 = vmax.f32 %v5290, %v5769
  %v5821 = vmax.f32 %v5292, %v5770
  %v5822 = vmax.f32 %v5367, %v5771
  %v5823 = vmax.f32 %v5369, %v5772
  %v5824 = vmax.f32 %v5444, %v5773
  %v5825 = vmax.f32 %v5446, %v5774
  %v5826 = vmax.f32 %v5521, %v5775
  %v5827 = vmax.f32 %v5523, %v5776
  %v5828 = vmax.f32 %v5598, %v5777
  %v5829 = vmax.f32 %v5600, %v5778
  %v5830 = vmax.f32 %v5674, %v5754
  %5857 = vrot.lane.b32.xlu0 %v5805, 64
  %v5858 = vpop.permute.xlu0 %5857
  %5859 = vrot.lane.b32.xlu0 %v5806, 64
  %v5860 = vpop.permute.xlu0 %5859
  %5861 = vrot.lane.b32.xlu0 %v5807, 64
  %v5862 = vpop.permute.xlu0 %5861
  %5863 = vrot.lane.b32.xlu0 %v5808, 64
  %v5864 = vpop.permute.xlu0 %5863
  %5865 = vrot.lane.b32.xlu0 %v5809, 64
  %v5866 = vpop.permute.xlu0 %5865
  %5867 = vrot.lane.b32.xlu0 %v5810, 64
  %v5868 = vpop.permute.xlu0 %5867
  %5869 = vrot.lane.b32.xlu0 %v5811, 64
  %v5870 = vpop.permute.xlu0 %5869
  %5871 = vrot.lane.b32.xlu0 %v5812, 64
  %v5872 = vpop.permute.xlu0 %5871
  %5873 = vrot.lane.b32.xlu0 %v5813, 64
  %v5874 = vpop.permute.xlu0 %5873
  %5875 = vrot.lane.b32.xlu0 %v5814, 64
  %v5876 = vpop.permute.xlu0 %5875
  %5877 = vrot.lane.b32.xlu0 %v5815, 64
  %v5878 = vpop.permute.xlu0 %5877
  %5879 = vrot.lane.b32.xlu0 %v5816, 64
  %v5880 = vpop.permute.xlu0 %5879
  %5881 = vrot.lane.b32.xlu0 %v5817, 64
  %v5882 = vpop.permute.xlu0 %5881
  %5883 = vrot.lane.b32.xlu0 %v5818, 64
  %v5884 = vpop.permute.xlu0 %5883
  %5885 = vrot.lane.b32.xlu0 %v5819, 64
  %v5886 = vpop.permute.xlu0 %5885
  %5887 = vrot.lane.b32.xlu0 %v5820, 64
  %v5888 = vpop.permute.xlu0 %5887
  %5889 = vrot.lane.b32.xlu0 %v5821, 64
  %v5890 = vpop.permute.xlu0 %5889
  %5891 = vrot.lane.b32.xlu0 %v5822, 64
  %v5892 = vpop.permute.xlu0 %5891
  %5893 = vrot.lane.b32.xlu0 %v5823, 64
  %v5894 = vpop.permute.xlu0 %5893
  %5895 = vrot.lane.b32.xlu0 %v5824, 64
  %v5896 = vpop.permute.xlu0 %5895
  %5897 = vrot.lane.b32.xlu0 %v5825, 64
  %v5898 = vpop.permute.xlu0 %5897
  %5899 = vrot.lane.b32.xlu0 %v5826, 64
  %v5900 = vpop.permute.xlu0 %5899
  %5901 = vrot.lane.b32.xlu0 %v5827, 64
  %v5902 = vpop.permute.xlu0 %5901
  %5903 = vrot.lane.b32.xlu0 %v5828, 64
  %v5904 = vpop.permute.xlu0 %5903
  %5905 = vrot.lane.b32.xlu0 %v5829, 64
  %v5906 = vpop.permute.xlu0 %5905
  %5907 = vrot.lane.b32.xlu0 %v5830, 64
  %v5908 = vpop.permute.xlu0 %5907
  %v5909 = vsel %vm943, %v5858, %v5860
  %v5910 = vsel %vm943, %v5860, %v5862
  %v5911 = vsel %vm943, %v5862, %v5864
  %v5912 = vsel %vm943, %v5864, %v5866
  %v5913 = vsel %vm943, %v5866, %v5868
  %v5914 = vsel %vm943, %v5868, %v5870
  %v5915 = vsel %vm943, %v5870, %v5872
  %v5916 = vsel %vm943, %v5872, %v5874
  %v5917 = vsel %vm943, %v5874, %v5876
  %v5918 = vsel %vm943, %v5876, %v5878
  %v5919 = vsel %vm943, %v5878, %v5880
  %v5920 = vsel %vm943, %v5880, %v5882
  %v5921 = vsel %vm943, %v5884, %v5886
  %v5922 = vsel %vm943, %v5886, %v5888
  %v5923 = vsel %vm943, %v5888, %v5890
  %v5924 = vsel %vm943, %v5890, %v5892
  %v5925 = vsel %vm943, %v5892, %v5894
  %v5926 = vsel %vm943, %v5894, %v5896
  %v5927 = vsel %vm943, %v5896, %v5898
  %v5928 = vsel %vm943, %v5898, %v5900
  %v5929 = vsel %vm943, %v5900, %v5902
  %v5930 = vsel %vm943, %v5902, %v5904
  %v5931 = vsel %vm943, %v5904, %v5906
  %v5932 = vsel %vm943, %v5906, %v5908
  %v5959 = vmax.f32 %v5805, %v5909
  %v5960 = vmax.f32 %v5806, %v5910
  %v5961 = vmax.f32 %v5807, %v5911
  %v5962 = vmax.f32 %v5808, %v5912
  %v5963 = vmax.f32 %v5809, %v5913
  %v5964 = vmax.f32 %v5810, %v5914
  %v5965 = vmax.f32 %v5811, %v5915
  %v5966 = vmax.f32 %v5812, %v5916
  %v5967 = vmax.f32 %v5813, %v5917
  %v5968 = vmax.f32 %v5814, %v5918
  %v5969 = vmax.f32 %v5815, %v5919
  %v5970 = vmax.f32 %v5816, %v5920
  %v5971 = vmax.f32 %v5817, %v5882
  %v5972 = vmax.f32 %v5818, %v5921
  %v5973 = vmax.f32 %v5819, %v5922
  %v5974 = vmax.f32 %v5820, %v5923
  %v5975 = vmax.f32 %v5821, %v5924
  %v5976 = vmax.f32 %v5822, %v5925
  %v5977 = vmax.f32 %v5823, %v5926
  %v5978 = vmax.f32 %v5824, %v5927
  %v5979 = vmax.f32 %v5825, %v5928
  %v5980 = vmax.f32 %v5826, %v5929
  %v5981 = vmax.f32 %v5827, %v5930
  %v5982 = vmax.f32 %v5828, %v5931
  %v5983 = vmax.f32 %v5829, %v5932
  %v5984 = vmax.f32 %v5830, %v5908
  %5985 = vst [vmem:[#allocation5] sm:$0xff] %v5959
  %5986 = vst [vmem:[#allocation5 + $0x8] sm:$0xff] %v5960
  %5987 = vst [vmem:[#allocation5 + $0x10] sm:$0xff] %v5961
  %5988 = vst [vmem:[#allocation5 + $0x18] sm:$0xff] %v5962
  %5989 = vst [vmem:[#allocation5 + $0x20] sm:$0xff] %v5963
  %5990 = vst [vmem:[#allocation5 + $0x28] sm:$0xff] %v5964
  %5991 = vst [vmem:[#allocation5 + $0x30] sm:$0xff] %v5965
  %5992 = vst [vmem:[#allocation5 + $0x38] sm:$0xff] %v5966
  %5993 = vst [vmem:[#allocation5 + $0x40] sm:$0xff] %v5967
  %5994 = vst [vmem:[#allocation5 + $0x48] sm:$0xff] %v5968
  %5995 = vst [vmem:[#allocation5 + $0x50] sm:$0xff] %v5969
  %5996 = vst [vmem:[#allocation5 + $0x58] sm:$0xff] %v5970
  %vm5997 = vcmask 138240
  %5998 = vst.msk [vmem:[#allocation5 + $0x60] sm:$0xff] %vm5997, %v5971
  %5999 = vst [vmem:[#allocation5 + $0x68] sm:$0xff] %v5972
  %6000 = vst [vmem:[#allocation5 + $0x70] sm:$0xff] %v5973
  %6001 = vst [vmem:[#allocation5 + $0x78] sm:$0xff] %v5974
  %6002 = vst [vmem:[#allocation5 + $0x80] sm:$0xff] %v5975
  %6003 = vst [vmem:[#allocation5 + $0x88] sm:$0xff] %v5976
  %6004 = vst [vmem:[#allocation5 + $0x90] sm:$0xff] %v5977
  %6005 = vst [vmem:[#allocation5 + $0x98] sm:$0xff] %v5978
  %6006 = vst [vmem:[#allocation5 + $0xa0] sm:$0xff] %v5979
  %6007 = vst [vmem:[#allocation5 + $0xa8] sm:$0xff] %v5980
  %6008 = vst [vmem:[#allocation5 + $0xb0] sm:$0xff] %v5981
  %6009 = vst [vmem:[#allocation5 + $0xb8] sm:$0xff] %v5982
  %6010 = vst [vmem:[#allocation5 + $0xc0] sm:$0xff] %v5983
  %6011 = vst.msk [vmem:[#allocation5 + $0xc8] sm:$0xff] %vm5997, %v5984
  %v6012 = vld [vmem:[#allocation5] sm:$0xff]
  %v6013 = vld [vmem:[#allocation5 + $0x8] sm:$0xff]
  %v6014 = vld [vmem:[#allocation5 + $0x10] sm:$0xff]
  %v6015 = vld [vmem:[#allocation5 + $0x18] sm:$0xff]
  %v6016 = vld [vmem:[#allocation5 + $0x20] sm:$0xff]
  %v6017 = vld [vmem:[#allocation5 + $0x28] sm:$0xff]
  %v6018 = vld [vmem:[#allocation5 + $0x30] sm:$0xff]
  %v6019 = vld [vmem:[#allocation5 + $0x38] sm:$0xff]
  %v6020 = vld [vmem:[#allocation5 + $0x40] sm:$0xff]
  %v6021 = vld [vmem:[#allocation5 + $0x68] sm:$0xff]
  %v6022 = vld [vmem:[#allocation5 + $0x70] sm:$0xff]
  %v6023 = vld [vmem:[#allocation5 + $0x78] sm:$0xff]
  %v6024 = vld [vmem:[#allocation5 + $0x80] sm:$0xff]
  %v6025 = vld [vmem:[#allocation5 + $0x88] sm:$0xff]
  %v6026 = vld [vmem:[#allocation5 + $0x90] sm:$0xff]
  %v6027 = vld [vmem:[#allocation5 + $0x98] sm:$0xff]
  %v6028 = vld [vmem:[#allocation5 + $0xa0] sm:$0xff]
  %v6029 = vld [vmem:[#allocation5 + $0xa8] sm:$0xff]
  %6030 = vst [vmem:[#allocation4] sm:$0xff] %v6012
  %6031 = vst [vmem:[#allocation4 + $0x8] sm:$0xff] %v6013
  %6032 = vst [vmem:[#allocation4 + $0x10] sm:$0xff] %v6014
  %6033 = vst [vmem:[#allocation4 + $0x18] sm:$0xff] %v6015
  %6034 = vst [vmem:[#allocation4 + $0x20] sm:$0xff] %v6016
  %6035 = vst [vmem:[#allocation4 + $0x28] sm:$0xff] %v6017
  %6036 = vst [vmem:[#allocation4 + $0x30] sm:$0xff] %v6018
  %6037 = vst [vmem:[#allocation4 + $0x38] sm:$0xff] %v6019
  %vm6038 = vcmask 7168
  %6039 = vst.msk [vmem:[#allocation4 + $0x40] sm:$0xff] %vm6038, %v6020
  %6040 = vst [vmem:[#allocation4 + $0x48] sm:$0xff] %v6021
  %6041 = vst [vmem:[#allocation4 + $0x50] sm:$0xff] %v6022
  %6042 = vst [vmem:[#allocation4 + $0x58] sm:$0xff] %v6023
  %6043 = vst [vmem:[#allocation4 + $0x60] sm:$0xff] %v6024
  %6044 = vst [vmem:[#allocation4 + $0x68] sm:$0xff] %v6025
  %6045 = vst [vmem:[#allocation4 + $0x70] sm:$0xff] %v6026
  %6046 = vst [vmem:[#allocation4 + $0x78] sm:$0xff] %v6027
  %6047 = vst [vmem:[#allocation4 + $0x80] sm:$0xff] %v6028
  %6048 = vst.msk [vmem:[#allocation4 + $0x88] sm:$0xff] %vm6038, %v6029
  %v6049 = vld [vmem:[#allocation5] sm:$0xff]
  %v6050 = vld [vmem:[#allocation5 + $0x8] sm:$0xff]
  %v6051 = vld [vmem:[#allocation5 + $0x10] sm:$0xff]
  %v6052 = vld [vmem:[#allocation5 + $0x18] sm:$0xff]
  %v6053 = vld [vmem:[#allocation5 + $0x20] sm:$0xff]
  %v6054 = vld [vmem:[#allocation5 + $0x28] sm:$0xff]
  %v6055 = vld [vmem:[#allocation5 + $0x30] sm:$0xff]
  %v6056 = vld [vmem:[#allocation5 + $0x38] sm:$0xff]
  %v6057 = vld [vmem:[#allocation5 + $0x40] sm:$0xff]
  %v6058 = vld [vmem:[#allocation5 + $0x68] sm:$0xff]
  %v6059 = vld [vmem:[#allocation5 + $0x70] sm:$0xff]
  %v6060 = vld [vmem:[#allocation5 + $0x78] sm:$0xff]
  %v6061 = vld [vmem:[#allocation5 + $0x80] sm:$0xff]
  %v6062 = vld [vmem:[#allocation5 + $0x88] sm:$0xff]
  %v6063 = vld [vmem:[#allocation5 + $0x90] sm:$0xff]
  %v6064 = vld [vmem:[#allocation5 + $0x98] sm:$0xff]
  %v6065 = vld [vmem:[#allocation5 + $0xa0] sm:$0xff]
  %v6066 = vld [vmem:[#allocation5 + $0xa8] sm:$0xff]
  %6085 = vrot.lane.b32.xlu0 %v6049, 124
  %v6086 = vpop.permute.xlu0 %6085
  %6087 = vrot.lane.b32.xlu0 %v6050, 124
  %v6088 = vpop.permute.xlu0 %6087
  %6089 = vrot.lane.b32.xlu0 %v6051, 124
  %v6090 = vpop.permute.xlu0 %6089
  %6091 = vrot.lane.b32.xlu0 %v6052, 124
  %v6092 = vpop.permute.xlu0 %6091
  %6093 = vrot.lane.b32.xlu0 %v6053, 124
  %v6094 = vpop.permute.xlu0 %6093
  %6095 = vrot.lane.b32.xlu0 %v6054, 124
  %v6096 = vpop.permute.xlu0 %6095
  %6097 = vrot.lane.b32.xlu0 %v6055, 124
  %v6098 = vpop.permute.xlu0 %6097
  %6099 = vrot.lane.b32.xlu0 %v6056, 124
  %v6100 = vpop.permute.xlu0 %6099
  %6101 = vrot.lane.b32.xlu0 %v6057, 124
  %v6102 = vpop.permute.xlu0 %6101
  %6103 = vrot.lane.b32.xlu0 %v6058, 124
  %v6104 = vpop.permute.xlu0 %6103
  %6105 = vrot.lane.b32.xlu0 %v6059, 124
  %v6106 = vpop.permute.xlu0 %6105
  %6107 = vrot.lane.b32.xlu0 %v6060, 124
  %v6108 = vpop.permute.xlu0 %6107
  %6109 = vrot.lane.b32.xlu0 %v6061, 124
  %v6110 = vpop.permute.xlu0 %6109
  %6111 = vrot.lane.b32.xlu0 %v6062, 124
  %v6112 = vpop.permute.xlu0 %6111
  %6113 = vrot.lane.b32.xlu0 %v6063, 124
  %v6114 = vpop.permute.xlu0 %6113
  %6115 = vrot.lane.b32.xlu0 %v6064, 124
  %v6116 = vpop.permute.xlu0 %6115
  %6117 = vrot.lane.b32.xlu0 %v6065, 124
  %v6118 = vpop.permute.xlu0 %6117
  %6119 = vrot.lane.b32.xlu0 %v6066, 124
  %v6120 = vpop.permute.xlu0 %6119
  %v6121 = vsel %vm405, %v6086, %v6088
  %v6122 = vsel %vm405, %v6088, %v6090
  %v6123 = vsel %vm405, %v6090, %v6092
  %v6124 = vsel %vm405, %v6092, %v6094
  %v6125 = vsel %vm405, %v6094, %v6096
  %v6126 = vsel %vm405, %v6096, %v6098
  %v6127 = vsel %vm405, %v6098, %v6100
  %v6128 = vsel %vm405, %v6100, %v6102
  %v6129 = vsel %vm405, %v6104, %v6106
  %v6130 = vsel %vm405, %v6106, %v6108
  %v6131 = vsel %vm405, %v6108, %v6110
  %v6132 = vsel %vm405, %v6110, %v6112
  %v6133 = vsel %vm405, %v6112, %v6114
  %v6134 = vsel %vm405, %v6114, %v6116
  %v6135 = vsel %vm405, %v6116, %v6118
  %v6136 = vsel %vm405, %v6118, %v6120
  %6155 = vst [vmem:[#allocation4 + $0x90] sm:$0xff] %v6121
  %6156 = vst [vmem:[#allocation4 + $0x98] sm:$0xff] %v6122
  %6157 = vst [vmem:[#allocation4 + $0xa0] sm:$0xff] %v6123
  %6158 = vst [vmem:[#allocation4 + $0xa8] sm:$0xff] %v6124
  %6159 = vst [vmem:[#allocation4 + $0xb0] sm:$0xff] %v6125
  %6160 = vst [vmem:[#allocation4 + $0xb8] sm:$0xff] %v6126
  %6161 = vst [vmem:[#allocation4 + $0xc0] sm:$0xff] %v6127
  %6162 = vst [vmem:[#allocation4 + $0xc8] sm:$0xff] %v6128
  %6163 = vst.msk [vmem:[#allocation4 + $0xd0] sm:$0xff] %vm6038, %v6102
  %6164 = vst [vmem:[#allocation4 + $0xd8] sm:$0xff] %v6129
  %6165 = vst [vmem:[#allocation4 + $0xe0] sm:$0xff] %v6130
  %6166 = vst [vmem:[#allocation4 + $0xe8] sm:$0xff] %v6131
  %6167 = vst [vmem:[#allocation4 + $0xf0] sm:$0xff] %v6132
  %6168 = vst [vmem:[#allocation4 + $0xf8] sm:$0xff] %v6133
  %6169 = vst [vmem:[#allocation4 + $0x100] sm:$0xff] %v6134
  %6170 = vst [vmem:[#allocation4 + $0x108] sm:$0xff] %v6135
  %6171 = vst [vmem:[#allocation4 + $0x110] sm:$0xff] %v6136
  %6172 = vst.msk [vmem:[#allocation4 + $0x118] sm:$0xff] %vm6038, %v6120
  %v6173 = vld [vmem:[#allocation5] sm:$0xff]
  %v6174 = vld [vmem:[#allocation5 + $0x8] sm:$0xff]
  %v6175 = vld [vmem:[#allocation5 + $0x10] sm:$0xff]
  %v6176 = vld [vmem:[#allocation5 + $0x18] sm:$0xff]
  %v6177 = vld [vmem:[#allocation5 + $0x20] sm:$0xff]
  %v6178 = vld [vmem:[#allocation5 + $0x28] sm:$0xff]
  %v6179 = vld [vmem:[#allocation5 + $0x30] sm:$0xff]
  %v6180 = vld [vmem:[#allocation5 + $0x38] sm:$0xff]
  %v6181 = vld [vmem:[#allocation5 + $0x40] sm:$0xff]
  %v6182 = vld [vmem:[#allocation5 + $0x68] sm:$0xff]
  %v6183 = vld [vmem:[#allocation5 + $0x70] sm:$0xff]
  %v6184 = vld [vmem:[#allocation5 + $0x78] sm:$0xff]
  %v6185 = vld [vmem:[#allocation5 + $0x80] sm:$0xff]
  %v6186 = vld [vmem:[#allocation5 + $0x88] sm:$0xff]
  %v6187 = vld [vmem:[#allocation5 + $0x90] sm:$0xff]
  %v6188 = vld [vmem:[#allocation5 + $0x98] sm:$0xff]
  %v6189 = vld [vmem:[#allocation5 + $0xa0] sm:$0xff]
  %v6190 = vld [vmem:[#allocation5 + $0xa8] sm:$0xff]
  %6209 = vrot.lane.b32.xlu0 %v6173, 120
  %v6210 = vpop.permute.xlu0 %6209
  %6211 = vrot.lane.b32.xlu0 %v6174, 120
  %v6212 = vpop.permute.xlu0 %6211
  %6213 = vrot.lane.b32.xlu0 %v6175, 120
  %v6214 = vpop.permute.xlu0 %6213
  %6215 = vrot.lane.b32.xlu0 %v6176, 120
  %v6216 = vpop.permute.xlu0 %6215
  %6217 = vrot.lane.b32.xlu0 %v6177, 120
  %v6218 = vpop.permute.xlu0 %6217
  %6219 = vrot.lane.b32.xlu0 %v6178, 120
  %v6220 = vpop.permute.xlu0 %6219
  %6221 = vrot.lane.b32.xlu0 %v6179, 120
  %v6222 = vpop.permute.xlu0 %6221
  %6223 = vrot.lane.b32.xlu0 %v6180, 120
  %v6224 = vpop.permute.xlu0 %6223
  %6225 = vrot.lane.b32.xlu0 %v6181, 120
  %v6226 = vpop.permute.xlu0 %6225
  %6227 = vrot.lane.b32.xlu0 %v6182, 120
  %v6228 = vpop.permute.xlu0 %6227
  %6229 = vrot.lane.b32.xlu0 %v6183, 120
  %v6230 = vpop.permute.xlu0 %6229
  %6231 = vrot.lane.b32.xlu0 %v6184, 120
  %v6232 = vpop.permute.xlu0 %6231
  %6233 = vrot.lane.b32.xlu0 %v6185, 120
  %v6234 = vpop.permute.xlu0 %6233
  %6235 = vrot.lane.b32.xlu0 %v6186, 120
  %v6236 = vpop.permute.xlu0 %6235
  %6237 = vrot.lane.b32.xlu0 %v6187, 120
  %v6238 = vpop.permute.xlu0 %6237
  %6239 = vrot.lane.b32.xlu0 %v6188, 120
  %v6240 = vpop.permute.xlu0 %6239
  %6241 = vrot.lane.b32.xlu0 %v6189, 120
  %v6242 = vpop.permute.xlu0 %6241
  %6243 = vrot.lane.b32.xlu0 %v6190, 120
  %v6244 = vpop.permute.xlu0 %6243
  %v6245 = vsel %vm3599, %v6210, %v6212
  %v6246 = vsel %vm3599, %v6212, %v6214
  %v6247 = vsel %vm3599, %v6214, %v6216
  %v6248 = vsel %vm3599, %v6216, %v6218
  %v6249 = vsel %vm3599, %v6218, %v6220
  %v6250 = vsel %vm3599, %v6220, %v6222
  %v6251 = vsel %vm3599, %v6222, %v6224
  %v6252 = vsel %vm3599, %v6224, %v6226
  %v6253 = vsel %vm3599, %v6228, %v6230
  %v6254 = vsel %vm3599, %v6230, %v6232
  %v6255 = vsel %vm3599, %v6232, %v6234
  %v6256 = vsel %vm3599, %v6234, %v6236
  %v6257 = vsel %vm3599, %v6236, %v6238
  %v6258 = vsel %vm3599, %v6238, %v6240
  %v6259 = vsel %vm3599, %v6240, %v6242
  %v6260 = vsel %vm3599, %v6242, %v6244
  %6279 = vst [vmem:[#allocation4 + $0x120] sm:$0xff] %v6245
  %6280 = vst [vmem:[#allocation4 + $0x128] sm:$0xff] %v6246
  %6281 = vst [vmem:[#allocation4 + $0x130] sm:$0xff] %v6247
  %6282 = vst [vmem:[#allocation4 + $0x138] sm:$0xff] %v6248
  %6283 = vst [vmem:[#allocation4 + $0x140] sm:$0xff] %v6249
  %6284 = vst [vmem:[#allocation4 + $0x148] sm:$0xff] %v6250
  %6285 = vst [vmem:[#allocation4 + $0x150] sm:$0xff] %v6251
  %6286 = vst [vmem:[#allocation4 + $0x158] sm:$0xff] %v6252
  %6287 = vst.msk [vmem:[#allocation4 + $0x160] sm:$0xff] %vm6038, %v6226
  %6288 = vst [vmem:[#allocation4 + $0x168] sm:$0xff] %v6253
  %6289 = vst [vmem:[#allocation4 + $0x170] sm:$0xff] %v6254
  %6290 = vst [vmem:[#allocation4 + $0x178] sm:$0xff] %v6255
  %6291 = vst [vmem:[#allocation4 + $0x180] sm:$0xff] %v6256
  %6292 = vst [vmem:[#allocation4 + $0x188] sm:$0xff] %v6257
  %6293 = vst [vmem:[#allocation4 + $0x190] sm:$0xff] %v6258
  %6294 = vst [vmem:[#allocation4 + $0x198] sm:$0xff] %v6259
  %6295 = vst [vmem:[#allocation4 + $0x1a0] sm:$0xff] %v6260
  %6296 = vst.msk [vmem:[#allocation4 + $0x1a8] sm:$0xff] %vm6038, %v6244
  %v6297 = vld [vmem:[#allocation5] sm:$0xff]
  %v6298 = vld [vmem:[#allocation5 + $0x8] sm:$0xff]
  %v6299 = vld [vmem:[#allocation5 + $0x10] sm:$0xff]
  %v6300 = vld [vmem:[#allocation5 + $0x18] sm:$0xff]
  %v6301 = vld [vmem:[#allocation5 + $0x20] sm:$0xff]
  %v6302 = vld [vmem:[#allocation5 + $0x28] sm:$0xff]
  %v6303 = vld [vmem:[#allocation5 + $0x30] sm:$0xff]
  %v6304 = vld [vmem:[#allocation5 + $0x38] sm:$0xff]
  %v6305 = vld [vmem:[#allocation5 + $0x40] sm:$0xff]
  %v6306 = vld [vmem:[#allocation5 + $0x68] sm:$0xff]
  %v6307 = vld [vmem:[#allocation5 + $0x70] sm:$0xff]
  %v6308 = vld [vmem:[#allocation5 + $0x78] sm:$0xff]
  %v6309 = vld [vmem:[#allocation5 + $0x80] sm:$0xff]
  %v6310 = vld [vmem:[#allocation5 + $0x88] sm:$0xff]
  %v6311 = vld [vmem:[#allocation5 + $0x90] sm:$0xff]
  %v6312 = vld [vmem:[#allocation5 + $0x98] sm:$0xff]
  %v6313 = vld [vmem:[#allocation5 + $0xa0] sm:$0xff]
  %v6314 = vld [vmem:[#allocation5 + $0xa8] sm:$0xff]
  %6333 = vrot.lane.b32.xlu0 %v6297, 116
  %v6334 = vpop.permute.xlu0 %6333
  %6335 = vrot.lane.b32.xlu0 %v6298, 116
  %v6336 = vpop.permute.xlu0 %6335
  %6337 = vrot.lane.b32.xlu0 %v6299, 116
  %v6338 = vpop.permute.xlu0 %6337
  %6339 = vrot.lane.b32.xlu0 %v6300, 116
  %v6340 = vpop.permute.xlu0 %6339
  %6341 = vrot.lane.b32.xlu0 %v6301, 116
  %v6342 = vpop.permute.xlu0 %6341
  %6343 = vrot.lane.b32.xlu0 %v6302, 116
  %v6344 = vpop.permute.xlu0 %6343
  %6345 = vrot.lane.b32.xlu0 %v6303, 116
  %v6346 = vpop.permute.xlu0 %6345
  %6347 = vrot.lane.b32.xlu0 %v6304, 116
  %v6348 = vpop.permute.xlu0 %6347
  %6349 = vrot.lane.b32.xlu0 %v6305, 116
  %v6350 = vpop.permute.xlu0 %6349
  %6351 = vrot.lane.b32.xlu0 %v6306, 116
  %v6352 = vpop.permute.xlu0 %6351
  %6353 = vrot.lane.b32.xlu0 %v6307, 116
  %v6354 = vpop.permute.xlu0 %6353
  %6355 = vrot.lane.b32.xlu0 %v6308, 116
  %v6356 = vpop.permute.xlu0 %6355
  %6357 = vrot.lane.b32.xlu0 %v6309, 116
  %v6358 = vpop.permute.xlu0 %6357
  %6359 = vrot.lane.b32.xlu0 %v6310, 116
  %v6360 = vpop.permute.xlu0 %6359
  %6361 = vrot.lane.b32.xlu0 %v6311, 116
  %v6362 = vpop.permute.xlu0 %6361
  %6363 = vrot.lane.b32.xlu0 %v6312, 116
  %v6364 = vpop.permute.xlu0 %6363
  %6365 = vrot.lane.b32.xlu0 %v6313, 116
  %v6366 = vpop.permute.xlu0 %6365
  %6367 = vrot.lane.b32.xlu0 %v6314, 116
  %v6368 = vpop.permute.xlu0 %6367
  %vm6369 = vcmask 949248
  %v6370 = vsel %vm6369, %v6334, %v6336
  %v6371 = vsel %vm6369, %v6336, %v6338
  %v6372 = vsel %vm6369, %v6338, %v6340
  %v6373 = vsel %vm6369, %v6340, %v6342
  %v6374 = vsel %vm6369, %v6342, %v6344
  %v6375 = vsel %vm6369, %v6344, %v6346
  %v6376 = vsel %vm6369, %v6346, %v6348
  %v6377 = vsel %vm6369, %v6348, %v6350
  %v6378 = vsel %vm6369, %v6352, %v6354
  %v6379 = vsel %vm6369, %v6354, %v6356
  %v6380 = vsel %vm6369, %v6356, %v6358
  %v6381 = vsel %vm6369, %v6358, %v6360
  %v6382 = vsel %vm6369, %v6360, %v6362
  %v6383 = vsel %vm6369, %v6362, %v6364
  %v6384 = vsel %vm6369, %v6364, %v6366
  %v6385 = vsel %vm6369, %v6366, %v6368
  %6404 = vst [vmem:[#allocation4 + $0x1b0] sm:$0xff] %v6370
  %6405 = vst [vmem:[#allocation4 + $0x1b8] sm:$0xff] %v6371
  %6406 = vst [vmem:[#allocation4 + $0x1c0] sm:$0xff] %v6372
  %6407 = vst [vmem:[#allocation4 + $0x1c8] sm:$0xff] %v6373
  %6408 = vst [vmem:[#allocation4 + $0x1d0] sm:$0xff] %v6374
  %6409 = vst [vmem:[#allocation4 + $0x1d8] sm:$0xff] %v6375
  %6410 = vst [vmem:[#allocation4 + $0x1e0] sm:$0xff] %v6376
  %6411 = vst [vmem:[#allocation4 + $0x1e8] sm:$0xff] %v6377
  %6412 = vst.msk [vmem:[#allocation4 + $0x1f0] sm:$0xff] %vm6038, %v6350
  %6413 = vst [vmem:[#allocation4 + $0x1f8] sm:$0xff] %v6378
  %6414 = vst [vmem:[#allocation4 + $0x200] sm:$0xff] %v6379
  %6415 = vst [vmem:[#allocation4 + $0x208] sm:$0xff] %v6380
  %6416 = vst [vmem:[#allocation4 + $0x210] sm:$0xff] %v6381
  %6417 = vst [vmem:[#allocation4 + $0x218] sm:$0xff] %v6382
  %6418 = vst [vmem:[#allocation4 + $0x220] sm:$0xff] %v6383
  %6419 = vst [vmem:[#allocation4 + $0x228] sm:$0xff] %v6384
  %6420 = vst [vmem:[#allocation4 + $0x230] sm:$0xff] %v6385
  %6421 = vst.msk [vmem:[#allocation4 + $0x238] sm:$0xff] %vm6038, %v6368
  %v6422 = vld [vmem:[#allocation5] sm:$0xff]
  %v6423 = vld [vmem:[#allocation5 + $0x8] sm:$0xff]
  %v6424 = vld [vmem:[#allocation5 + $0x10] sm:$0xff]
  %v6425 = vld [vmem:[#allocation5 + $0x18] sm:$0xff]
  %v6426 = vld [vmem:[#allocation5 + $0x20] sm:$0xff]
  %v6427 = vld [vmem:[#allocation5 + $0x28] sm:$0xff]
  %v6428 = vld [vmem:[#allocation5 + $0x30] sm:$0xff]
  %v6429 = vld [vmem:[#allocation5 + $0x38] sm:$0xff]
  %v6430 = vld [vmem:[#allocation5 + $0x40] sm:$0xff]
  %v6431 = vld [vmem:[#allocation5 + $0x68] sm:$0xff]
  %v6432 = vld [vmem:[#allocation5 + $0x70] sm:$0xff]
  %v6433 = vld [vmem:[#allocation5 + $0x78] sm:$0xff]
  %v6434 = vld [vmem:[#allocation5 + $0x80] sm:$0xff]
  %v6435 = vld [vmem:[#allocation5 + $0x88] sm:$0xff]
  %v6436 = vld [vmem:[#allocation5 + $0x90] sm:$0xff]
  %v6437 = vld [vmem:[#allocation5 + $0x98] sm:$0xff]
  %v6438 = vld [vmem:[#allocation5 + $0xa0] sm:$0xff]
  %v6439 = vld [vmem:[#allocation5 + $0xa8] sm:$0xff]
  %6458 = vrot.lane.b32.xlu0 %v6422, 112
  %v6459 = vpop.permute.xlu0 %6458
  %6460 = vrot.lane.b32.xlu0 %v6423, 112
  %v6461 = vpop.permute.xlu0 %6460
  %6462 = vrot.lane.b32.xlu0 %v6424, 112
  %v6463 = vpop.permute.xlu0 %6462
  %6464 = vrot.lane.b32.xlu0 %v6425, 112
  %v6465 = vpop.permute.xlu0 %6464
  %6466 = vrot.lane.b32.xlu0 %v6426, 112
  %v6467 = vpop.permute.xlu0 %6466
  %6468 = vrot.lane.b32.xlu0 %v6427, 112
  %v6469 = vpop.permute.xlu0 %6468
  %6470 = vrot.lane.b32.xlu0 %v6428, 112
  %v6471 = vpop.permute.xlu0 %6470
  %6472 = vrot.lane.b32.xlu0 %v6429, 112
  %v6473 = vpop.permute.xlu0 %6472
  %6474 = vrot.lane.b32.xlu0 %v6430, 112
  %v6475 = vpop.permute.xlu0 %6474
  %6476 = vrot.lane.b32.xlu0 %v6431, 112
  %v6477 = vpop.permute.xlu0 %6476
  %6478 = vrot.lane.b32.xlu0 %v6432, 112
  %v6479 = vpop.permute.xlu0 %6478
  %6480 = vrot.lane.b32.xlu0 %v6433, 112
  %v6481 = vpop.permute.xlu0 %6480
  %6482 = vrot.lane.b32.xlu0 %v6434, 112
  %v6483 = vpop.permute.xlu0 %6482
  %6484 = vrot.lane.b32.xlu0 %v6435, 112
  %v6485 = vpop.permute.xlu0 %6484
  %6486 = vrot.lane.b32.xlu0 %v6436, 112
  %v6487 = vpop.permute.xlu0 %6486
  %6488 = vrot.lane.b32.xlu0 %v6437, 112
  %v6489 = vpop.permute.xlu0 %6488
  %6490 = vrot.lane.b32.xlu0 %v6438, 112
  %v6491 = vpop.permute.xlu0 %6490
  %6492 = vrot.lane.b32.xlu0 %v6439, 112
  %v6493 = vpop.permute.xlu0 %6492
  %vm6494 = vcmask 916480
  %v6495 = vsel %vm6494, %v6459, %v6461
  %v6496 = vsel %vm6494, %v6461, %v6463
  %v6497 = vsel %vm6494, %v6463, %v6465
  %v6498 = vsel %vm6494, %v6465, %v6467
  %v6499 = vsel %vm6494, %v6467, %v6469
  %v6500 = vsel %vm6494, %v6469, %v6471
  %v6501 = vsel %vm6494, %v6471, %v6473
  %v6502 = vsel %vm6494, %v6473, %v6475
  %v6503 = vsel %vm6494, %v6477, %v6479
  %v6504 = vsel %vm6494, %v6479, %v6481
  %v6505 = vsel %vm6494, %v6481, %v6483
  %v6506 = vsel %vm6494, %v6483, %v6485
  %v6507 = vsel %vm6494, %v6485, %v6487
  %v6508 = vsel %vm6494, %v6487, %v6489
  %v6509 = vsel %vm6494, %v6489, %v6491
  %v6510 = vsel %vm6494, %v6491, %v6493
  %6529 = vst [vmem:[#allocation4 + $0x240] sm:$0xff] %v6495
  %6530 = vst [vmem:[#allocation4 + $0x248] sm:$0xff] %v6496
  %6531 = vst [vmem:[#allocation4 + $0x250] sm:$0xff] %v6497
  %6532 = vst [vmem:[#allocation4 + $0x258] sm:$0xff] %v6498
  %6533 = vst [vmem:[#allocation4 + $0x260] sm:$0xff] %v6499
  %6534 = vst [vmem:[#allocation4 + $0x268] sm:$0xff] %v6500
  %6535 = vst [vmem:[#allocation4 + $0x270] sm:$0xff] %v6501
  %6536 = vst [vmem:[#allocation4 + $0x278] sm:$0xff] %v6502
  %6537 = vst.msk [vmem:[#allocation4 + $0x280] sm:$0xff] %vm6038, %v6475
  %6538 = vst [vmem:[#allocation4 + $0x288] sm:$0xff] %v6503
  %6539 = vst [vmem:[#allocation4 + $0x290] sm:$0xff] %v6504
  %6540 = vst [vmem:[#allocation4 + $0x298] sm:$0xff] %v6505
  %6541 = vst [vmem:[#allocation4 + $0x2a0] sm:$0xff] %v6506
  %6542 = vst [vmem:[#allocation4 + $0x2a8] sm:$0xff] %v6507
  %6543 = vst [vmem:[#allocation4 + $0x2b0] sm:$0xff] %v6508
  %6544 = vst [vmem:[#allocation4 + $0x2b8] sm:$0xff] %v6509
  %6545 = vst [vmem:[#allocation4 + $0x2c0] sm:$0xff] %v6510
  %6546 = vst.msk [vmem:[#allocation4 + $0x2c8] sm:$0xff] %vm6038, %v6493
  %v6547 = vld [vmem:[#allocation5 + $0x8] sm:$0xff]
  %v6548 = vld [vmem:[#allocation5 + $0x10] sm:$0xff]
  %v6549 = vld [vmem:[#allocation5 + $0x18] sm:$0xff]
  %v6550 = vld [vmem:[#allocation5 + $0x20] sm:$0xff]
  %v6551 = vld [vmem:[#allocation5 + $0x28] sm:$0xff]
  %v6552 = vld [vmem:[#allocation5 + $0x30] sm:$0xff]
  %v6553 = vld [vmem:[#allocation5 + $0x38] sm:$0xff]
  %v6554 = vld [vmem:[#allocation5 + $0x40] sm:$0xff]
  %v6555 = vld [vmem:[#allocation5 + $0x48] sm:$0xff]
  %v6556 = vld [vmem:[#allocation5 + $0x70] sm:$0xff]
  %v6557 = vld [vmem:[#allocation5 + $0x78] sm:$0xff]
  %v6558 = vld [vmem:[#allocation5 + $0x80] sm:$0xff]
  %v6559 = vld [vmem:[#allocation5 + $0x88] sm:$0xff]
  %v6560 = vld [vmem:[#allocation5 + $0x90] sm:$0xff]
  %v6561 = vld [vmem:[#allocation5 + $0x98] sm:$0xff]
  %v6562 = vld [vmem:[#allocation5 + $0xa0] sm:$0xff]
  %v6563 = vld [vmem:[#allocation5 + $0xa8] sm:$0xff]
  %v6564 = vld [vmem:[#allocation5 + $0xb0] sm:$0xff]
  %6565 = vst [vmem:[#allocation4 + $0x2d0] sm:$0xff] %v6547
  %6566 = vst [vmem:[#allocation4 + $0x2d8] sm:$0xff] %v6548
  %6567 = vst [vmem:[#allocation4 + $0x2e0] sm:$0xff] %v6549
  %6568 = vst [vmem:[#allocation4 + $0x2e8] sm:$0xff] %v6550
  %6569 = vst [vmem:[#allocation4 + $0x2f0] sm:$0xff] %v6551
  %6570 = vst [vmem:[#allocation4 + $0x2f8] sm:$0xff] %v6552
  %6571 = vst [vmem:[#allocation4 + $0x300] sm:$0xff] %v6553
  %6572 = vst [vmem:[#allocation4 + $0x308] sm:$0xff] %v6554
  %6573 = vst.msk [vmem:[#allocation4 + $0x310] sm:$0xff] %vm6038, %v6555
  %6574 = vst [vmem:[#allocation4 + $0x318] sm:$0xff] %v6556
  %6575 = vst [vmem:[#allocation4 + $0x320] sm:$0xff] %v6557
  %6576 = vst [vmem:[#allocation4 + $0x328] sm:$0xff] %v6558
  %6577 = vst [vmem:[#allocation4 + $0x330] sm:$0xff] %v6559
  %6578 = vst [vmem:[#allocation4 + $0x338] sm:$0xff] %v6560
  %6579 = vst [vmem:[#allocation4 + $0x340] sm:$0xff] %v6561
  %6580 = vst [vmem:[#allocation4 + $0x348] sm:$0xff] %v6562
  %6581 = vst [vmem:[#allocation4 + $0x350] sm:$0xff] %v6563
  %6582 = vst.msk [vmem:[#allocation4 + $0x358] sm:$0xff] %vm6038, %v6564
  %v6583 = vld [vmem:[#allocation5 + $0x8] sm:$0xff]
  %v6584 = vld [vmem:[#allocation5 + $0x10] sm:$0xff]
  %v6585 = vld [vmem:[#allocation5 + $0x18] sm:$0xff]
  %v6586 = vld [vmem:[#allocation5 + $0x20] sm:$0xff]
  %v6587 = vld [vmem:[#allocation5 + $0x28] sm:$0xff]
  %v6588 = vld [vmem:[#allocation5 + $0x30] sm:$0xff]
  %v6589 = vld [vmem:[#allocation5 + $0x38] sm:$0xff]
  %v6590 = vld [vmem:[#allocation5 + $0x40] sm:$0xff]
  %v6591 = vld [vmem:[#allocation5 + $0x48] sm:$0xff]
  %v6592 = vld [vmem:[#allocation5 + $0x70] sm:$0xff]
  %v6593 = vld [vmem:[#allocation5 + $0x78] sm:$0xff]
  %v6594 = vld [vmem:[#allocation5 + $0x80] sm:$0xff]
  %v6595 = vld [vmem:[#allocation5 + $0x88] sm:$0xff]
  %v6596 = vld [vmem:[#allocation5 + $0x90] sm:$0xff]
  %v6597 = vld [vmem:[#allocation5 + $0x98] sm:$0xff]
  %v6598 = vld [vmem:[#allocation5 + $0xa0] sm:$0xff]
  %v6599 = vld [vmem:[#allocation5 + $0xa8] sm:$0xff]
  %v6600 = vld [vmem:[#allocation5 + $0xb0] sm:$0xff]
  %6619 = vrot.lane.b32.xlu0 %v6583, 124
  %v6620 = vpop.permute.xlu0 %6619
  %6621 = vrot.lane.b32.xlu0 %v6584, 124
  %v6622 = vpop.permute.xlu0 %6621
  %6623 = vrot.lane.b32.xlu0 %v6585, 124
  %v6624 = vpop.permute.xlu0 %6623
  %6625 = vrot.lane.b32.xlu0 %v6586, 124
  %v6626 = vpop.permute.xlu0 %6625
  %6627 = vrot.lane.b32.xlu0 %v6587, 124
  %v6628 = vpop.permute.xlu0 %6627
  %6629 = vrot.lane.b32.xlu0 %v6588, 124
  %v6630 = vpop.permute.xlu0 %6629
  %6631 = vrot.lane.b32.xlu0 %v6589, 124
  %v6632 = vpop.permute.xlu0 %6631
  %6633 = vrot.lane.b32.xlu0 %v6590, 124
  %v6634 = vpop.permute.xlu0 %6633
  %6635 = vrot.lane.b32.xlu0 %v6591, 124
  %v6636 = vpop.permute.xlu0 %6635
  %6637 = vrot.lane.b32.xlu0 %v6592, 124
  %v6638 = vpop.permute.xlu0 %6637
  %6639 = vrot.lane.b32.xlu0 %v6593, 124
  %v6640 = vpop.permute.xlu0 %6639
  %6641 = vrot.lane.b32.xlu0 %v6594, 124
  %v6642 = vpop.permute.xlu0 %6641
  %6643 = vrot.lane.b32.xlu0 %v6595, 124
  %v6644 = vpop.permute.xlu0 %6643
  %6645 = vrot.lane.b32.xlu0 %v6596, 124
  %v6646 = vpop.permute.xlu0 %6645
  %6647 = vrot.lane.b32.xlu0 %v6597, 124
  %v6648 = vpop.permute.xlu0 %6647
  %6649 = vrot.lane.b32.xlu0 %v6598, 124
  %v6650 = vpop.permute.xlu0 %6649
  %6651 = vrot.lane.b32.xlu0 %v6599, 124
  %v6652 = vpop.permute.xlu0 %6651
  %6653 = vrot.lane.b32.xlu0 %v6600, 124
  %v6654 = vpop.permute.xlu0 %6653
  %v6655 = vsel %vm405, %v6620, %v6622
  %v6656 = vsel %vm405, %v6622, %v6624
  %v6657 = vsel %vm405, %v6624, %v6626
  %v6658 = vsel %vm405, %v6626, %v6628
  %v6659 = vsel %vm405, %v6628, %v6630
  %v6660 = vsel %vm405, %v6630, %v6632
  %v6661 = vsel %vm405, %v6632, %v6634
  %v6662 = vsel %vm405, %v6634, %v6636
  %v6663 = vsel %vm405, %v6638, %v6640
  %v6664 = vsel %vm405, %v6640, %v6642
  %v6665 = vsel %vm405, %v6642, %v6644
  %v6666 = vsel %vm405, %v6644, %v6646
  %v6667 = vsel %vm405, %v6646, %v6648
  %v6668 = vsel %vm405, %v6648, %v6650
  %v6669 = vsel %vm405, %v6650, %v6652
  %v6670 = vsel %vm405, %v6652, %v6654
  %6689 = vst [vmem:[#allocation4 + $0x360] sm:$0xff] %v6655
  %6690 = vst [vmem:[#allocation4 + $0x368] sm:$0xff] %v6656
  %6691 = vst [vmem:[#allocation4 + $0x370] sm:$0xff] %v6657
  %6692 = vst [vmem:[#allocation4 + $0x378] sm:$0xff] %v6658
  %6693 = vst [vmem:[#allocation4 + $0x380] sm:$0xff] %v6659
  %6694 = vst [vmem:[#allocation4 + $0x388] sm:$0xff] %v6660
  %6695 = vst [vmem:[#allocation4 + $0x390] sm:$0xff] %v6661
  %6696 = vst [vmem:[#allocation4 + $0x398] sm:$0xff] %v6662
  %6697 = vst.msk [vmem:[#allocation4 + $0x3a0] sm:$0xff] %vm6038, %v6636
  %6698 = vst [vmem:[#allocation4 + $0x3a8] sm:$0xff] %v6663
  %6699 = vst [vmem:[#allocation4 + $0x3b0] sm:$0xff] %v6664
  %6700 = vst [vmem:[#allocation4 + $0x3b8] sm:$0xff] %v6665
  %6701 = vst [vmem:[#allocation4 + $0x3c0] sm:$0xff] %v6666
  %6702 = vst [vmem:[#allocation4 + $0x3c8] sm:$0xff] %v6667
  %6703 = vst [vmem:[#allocation4 + $0x3d0] sm:$0xff] %v6668
  %6704 = vst [vmem:[#allocation4 + $0x3d8] sm:$0xff] %v6669
  %6705 = vst [vmem:[#allocation4 + $0x3e0] sm:$0xff] %v6670
  %6706 = vst.msk [vmem:[#allocation4 + $0x3e8] sm:$0xff] %vm6038, %v6654
  %v6707 = vld [vmem:[#allocation5 + $0x8] sm:$0xff]
  %v6708 = vld [vmem:[#allocation5 + $0x10] sm:$0xff]
  %v6709 = vld [vmem:[#allocation5 + $0x18] sm:$0xff]
  %v6710 = vld [vmem:[#allocation5 + $0x20] sm:$0xff]
  %v6711 = vld [vmem:[#allocation5 + $0x28] sm:$0xff]
  %v6712 = vld [vmem:[#allocation5 + $0x30] sm:$0xff]
  %v6713 = vld [vmem:[#allocation5 + $0x38] sm:$0xff]
  %v6714 = vld [vmem:[#allocation5 + $0x40] sm:$0xff]
  %v6715 = vld [vmem:[#allocation5 + $0x48] sm:$0xff]
  %v6716 = vld [vmem:[#allocation5 + $0x70] sm:$0xff]
  %v6717 = vld [vmem:[#allocation5 + $0x78] sm:$0xff]
  %v6718 = vld [vmem:[#allocation5 + $0x80] sm:$0xff]
  %v6719 = vld [vmem:[#allocation5 + $0x88] sm:$0xff]
  %v6720 = vld [vmem:[#allocation5 + $0x90] sm:$0xff]
  %v6721 = vld [vmem:[#allocation5 + $0x98] sm:$0xff]
  %v6722 = vld [vmem:[#allocation5 + $0xa0] sm:$0xff]
  %v6723 = vld [vmem:[#allocation5 + $0xa8] sm:$0xff]
  %v6724 = vld [vmem:[#allocation5 + $0xb0] sm:$0xff]
  %6743 = vrot.lane.b32.xlu0 %v6707, 120
  %v6744 = vpop.permute.xlu0 %6743
  %6745 = vrot.lane.b32.xlu0 %v6708, 120
  %v6746 = vpop.permute.xlu0 %6745
  %6747 = vrot.lane.b32.xlu0 %v6709, 120
  %v6748 = vpop.permute.xlu0 %6747
  %6749 = vrot.lane.b32.xlu0 %v6710, 120
  %v6750 = vpop.permute.xlu0 %6749
  %6751 = vrot.lane.b32.xlu0 %v6711, 120
  %v6752 = vpop.permute.xlu0 %6751
  %6753 = vrot.lane.b32.xlu0 %v6712, 120
  %v6754 = vpop.permute.xlu0 %6753
  %6755 = vrot.lane.b32.xlu0 %v6713, 120
  %v6756 = vpop.permute.xlu0 %6755
  %6757 = vrot.lane.b32.xlu0 %v6714, 120
  %v6758 = vpop.permute.xlu0 %6757
  %6759 = vrot.lane.b32.xlu0 %v6715, 120
  %v6760 = vpop.permute.xlu0 %6759
  %6761 = vrot.lane.b32.xlu0 %v6716, 120
  %v6762 = vpop.permute.xlu0 %6761
  %6763 = vrot.lane.b32.xlu0 %v6717, 120
  %v6764 = vpop.permute.xlu0 %6763
  %6765 = vrot.lane.b32.xlu0 %v6718, 120
  %v6766 = vpop.permute.xlu0 %6765
  %6767 = vrot.lane.b32.xlu0 %v6719, 120
  %v6768 = vpop.permute.xlu0 %6767
  %6769 = vrot.lane.b32.xlu0 %v6720, 120
  %v6770 = vpop.permute.xlu0 %6769
  %6771 = vrot.lane.b32.xlu0 %v6721, 120
  %v6772 = vpop.permute.xlu0 %6771
  %6773 = vrot.lane.b32.xlu0 %v6722, 120
  %v6774 = vpop.permute.xlu0 %6773
  %6775 = vrot.lane.b32.xlu0 %v6723, 120
  %v6776 = vpop.permute.xlu0 %6775
  %6777 = vrot.lane.b32.xlu0 %v6724, 120
  %v6778 = vpop.permute.xlu0 %6777
  %v6779 = vsel %vm3599, %v6744, %v6746
  %v6780 = vsel %vm3599, %v6746, %v6748
  %v6781 = vsel %vm3599, %v6748, %v6750
  %v6782 = vsel %vm3599, %v6750, %v6752
  %v6783 = vsel %vm3599, %v6752, %v6754
  %v6784 = vsel %vm3599, %v6754, %v6756
  %v6785 = vsel %vm3599, %v6756, %v6758
  %v6786 = vsel %vm3599, %v6758, %v6760
  %v6787 = vsel %vm3599, %v6762, %v6764
  %v6788 = vsel %vm3599, %v6764, %v6766
  %v6789 = vsel %vm3599, %v6766, %v6768
  %v6790 = vsel %vm3599, %v6768, %v6770
  %v6791 = vsel %vm3599, %v6770, %v6772
  %v6792 = vsel %vm3599, %v6772, %v6774
  %v6793 = vsel %vm3599, %v6774, %v6776
  %v6794 = vsel %vm3599, %v6776, %v6778
  %6813 = vst [vmem:[#allocation4 + $0x3f0] sm:$0xff] %v6779
  %6814 = vst [vmem:[#allocation4 + $0x3f8] sm:$0xff] %v6780
  %6815 = vst [vmem:[#allocation4 + $0x400] sm:$0xff] %v6781
  %6816 = vst [vmem:[#allocation4 + $0x408] sm:$0xff] %v6782
  %6817 = vst [vmem:[#allocation4 + $0x410] sm:$0xff] %v6783
  %6818 = vst [vmem:[#allocation4 + $0x418] sm:$0xff] %v6784
  %6819 = vst [vmem:[#allocation4 + $0x420] sm:$0xff] %v6785
  %6820 = vst [vmem:[#allocation4 + $0x428] sm:$0xff] %v6786
  %6821 = vst.msk [vmem:[#allocation4 + $0x430] sm:$0xff] %vm6038, %v6760
  %6822 = vst [vmem:[#allocation4 + $0x438] sm:$0xff] %v6787
  %6823 = vst [vmem:[#allocation4 + $0x440] sm:$0xff] %v6788
  %6824 = vst [vmem:[#allocation4 + $0x448] sm:$0xff] %v6789
  %6825 = vst [vmem:[#allocation4 + $0x450] sm:$0xff] %v6790
  %6826 = vst [vmem:[#allocation4 + $0x458] sm:$0xff] %v6791
  %6827 = vst [vmem:[#allocation4 + $0x460] sm:$0xff] %v6792
  %6828 = vst [vmem:[#allocation4 + $0x468] sm:$0xff] %v6793
  %6829 = vst [vmem:[#allocation4 + $0x470] sm:$0xff] %v6794
  %6830 = vst.msk [vmem:[#allocation4 + $0x478] sm:$0xff] %vm6038, %v6778
  %v6831 = vld [vmem:[#allocation5 + $0x8] sm:$0xff]
  %v6832 = vld [vmem:[#allocation5 + $0x10] sm:$0xff]
  %v6833 = vld [vmem:[#allocation5 + $0x18] sm:$0xff]
  %v6834 = vld [vmem:[#allocation5 + $0x20] sm:$0xff]
  %v6835 = vld [vmem:[#allocation5 + $0x28] sm:$0xff]
  %v6836 = vld [vmem:[#allocation5 + $0x30] sm:$0xff]
  %v6837 = vld [vmem:[#allocation5 + $0x38] sm:$0xff]
  %v6838 = vld [vmem:[#allocation5 + $0x40] sm:$0xff]
  %v6839 = vld [vmem:[#allocation5 + $0x48] sm:$0xff]
  %v6840 = vld [vmem:[#allocation5 + $0x70] sm:$0xff]
  %v6841 = vld [vmem:[#allocation5 + $0x78] sm:$0xff]
  %v6842 = vld [vmem:[#allocation5 + $0x80] sm:$0xff]
  %v6843 = vld [vmem:[#allocation5 + $0x88] sm:$0xff]
  %v6844 = vld [vmem:[#allocation5 + $0x90] sm:$0xff]
  %v6845 = vld [vmem:[#allocation5 + $0x98] sm:$0xff]
  %v6846 = vld [vmem:[#allocation5 + $0xa0] sm:$0xff]
  %v6847 = vld [vmem:[#allocation5 + $0xa8] sm:$0xff]
  %v6848 = vld [vmem:[#allocation5 + $0xb0] sm:$0xff]
  %6867 = vrot.lane.b32.xlu0 %v6831, 116
  %v6868 = vpop.permute.xlu0 %6867
  %6869 = vrot.lane.b32.xlu0 %v6832, 116
  %v6870 = vpop.permute.xlu0 %6869
  %6871 = vrot.lane.b32.xlu0 %v6833, 116
  %v6872 = vpop.permute.xlu0 %6871
  %6873 = vrot.lane.b32.xlu0 %v6834, 116
  %v6874 = vpop.permute.xlu0 %6873
  %6875 = vrot.lane.b32.xlu0 %v6835, 116
  %v6876 = vpop.permute.xlu0 %6875
  %6877 = vrot.lane.b32.xlu0 %v6836, 116
  %v6878 = vpop.permute.xlu0 %6877
  %6879 = vrot.lane.b32.xlu0 %v6837, 116
  %v6880 = vpop.permute.xlu0 %6879
  %6881 = vrot.lane.b32.xlu0 %v6838, 116
  %v6882 = vpop.permute.xlu0 %6881
  %6883 = vrot.lane.b32.xlu0 %v6839, 116
  %v6884 = vpop.permute.xlu0 %6883
  %6885 = vrot.lane.b32.xlu0 %v6840, 116
  %v6886 = vpop.permute.xlu0 %6885
  %6887 = vrot.lane.b32.xlu0 %v6841, 116
  %v6888 = vpop.permute.xlu0 %6887
  %6889 = vrot.lane.b32.xlu0 %v6842, 116
  %v6890 = vpop.permute.xlu0 %6889
  %6891 = vrot.lane.b32.xlu0 %v6843, 116
  %v6892 = vpop.permute.xlu0 %6891
  %6893 = vrot.lane.b32.xlu0 %v6844, 116
  %v6894 = vpop.permute.xlu0 %6893
  %6895 = vrot.lane.b32.xlu0 %v6845, 116
  %v6896 = vpop.permute.xlu0 %6895
  %6897 = vrot.lane.b32.xlu0 %v6846, 116
  %v6898 = vpop.permute.xlu0 %6897
  %6899 = vrot.lane.b32.xlu0 %v6847, 116
  %v6900 = vpop.permute.xlu0 %6899
  %6901 = vrot.lane.b32.xlu0 %v6848, 116
  %v6902 = vpop.permute.xlu0 %6901
  %v6903 = vsel %vm6369, %v6868, %v6870
  %v6904 = vsel %vm6369, %v6870, %v6872
  %v6905 = vsel %vm6369, %v6872, %v6874
  %v6906 = vsel %vm6369, %v6874, %v6876
  %v6907 = vsel %vm6369, %v6876, %v6878
  %v6908 = vsel %vm6369, %v6878, %v6880
  %v6909 = vsel %vm6369, %v6880, %v6882
  %v6910 = vsel %vm6369, %v6882, %v6884
  %v6911 = vsel %vm6369, %v6886, %v6888
  %v6912 = vsel %vm6369, %v6888, %v6890
  %v6913 = vsel %vm6369, %v6890, %v6892
  %v6914 = vsel %vm6369, %v6892, %v6894
  %v6915 = vsel %vm6369, %v6894, %v6896
  %v6916 = vsel %vm6369, %v6896, %v6898
  %v6917 = vsel %vm6369, %v6898, %v6900
  %v6918 = vsel %vm6369, %v6900, %v6902
  %6937 = vst [vmem:[#allocation4 + $0x480] sm:$0xff] %v6903
  %6938 = vst [vmem:[#allocation4 + $0x488] sm:$0xff] %v6904
  %6939 = vst [vmem:[#allocation4 + $0x490] sm:$0xff] %v6905
  %6940 = vst [vmem:[#allocation4 + $0x498] sm:$0xff] %v6906
  %6941 = vst [vmem:[#allocation4 + $0x4a0] sm:$0xff] %v6907
  %6942 = vst [vmem:[#allocation4 + $0x4a8] sm:$0xff] %v6908
  %6943 = vst [vmem:[#allocation4 + $0x4b0] sm:$0xff] %v6909
  %6944 = vst [vmem:[#allocation4 + $0x4b8] sm:$0xff] %v6910
  %6945 = vst.msk [vmem:[#allocation4 + $0x4c0] sm:$0xff] %vm6038, %v6884
  %6946 = vst [vmem:[#allocation4 + $0x4c8] sm:$0xff] %v6911
  %6947 = vst [vmem:[#allocation4 + $0x4d0] sm:$0xff] %v6912
  %6948 = vst [vmem:[#allocation4 + $0x4d8] sm:$0xff] %v6913
  %6949 = vst [vmem:[#allocation4 + $0x4e0] sm:$0xff] %v6914
  %6950 = vst [vmem:[#allocation4 + $0x4e8] sm:$0xff] %v6915
  %6951 = vst [vmem:[#allocation4 + $0x4f0] sm:$0xff] %v6916
  %6952 = vst [vmem:[#allocation4 + $0x4f8] sm:$0xff] %v6917
  %6953 = vst [vmem:[#allocation4 + $0x500] sm:$0xff] %v6918
  %6954 = vst.msk [vmem:[#allocation4 + $0x508] sm:$0xff] %vm6038, %v6902
  %v6955 = vld [vmem:[#allocation5 + $0x8] sm:$0xff]
  %v6956 = vld [vmem:[#allocation5 + $0x10] sm:$0xff]
  %v6957 = vld [vmem:[#allocation5 + $0x18] sm:$0xff]
  %v6958 = vld [vmem:[#allocation5 + $0x20] sm:$0xff]
  %v6959 = vld [vmem:[#allocation5 + $0x28] sm:$0xff]
  %v6960 = vld [vmem:[#allocation5 + $0x30] sm:$0xff]
  %v6961 = vld [vmem:[#allocation5 + $0x38] sm:$0xff]
  %v6962 = vld [vmem:[#allocation5 + $0x40] sm:$0xff]
  %v6963 = vld [vmem:[#allocation5 + $0x48] sm:$0xff]
  %v6964 = vld [vmem:[#allocation5 + $0x70] sm:$0xff]
  %v6965 = vld [vmem:[#allocation5 + $0x78] sm:$0xff]
  %v6966 = vld [vmem:[#allocation5 + $0x80] sm:$0xff]
  %v6967 = vld [vmem:[#allocation5 + $0x88] sm:$0xff]
  %v6968 = vld [vmem:[#allocation5 + $0x90] sm:$0xff]
  %v6969 = vld [vmem:[#allocation5 + $0x98] sm:$0xff]
  %v6970 = vld [vmem:[#allocation5 + $0xa0] sm:$0xff]
  %v6971 = vld [vmem:[#allocation5 + $0xa8] sm:$0xff]
  %v6972 = vld [vmem:[#allocation5 + $0xb0] sm:$0xff]
  %6991 = vrot.lane.b32.xlu0 %v6955, 112
  %v6992 = vpop.permute.xlu0 %6991
  %6993 = vrot.lane.b32.xlu0 %v6956, 112
  %v6994 = vpop.permute.xlu0 %6993
  %6995 = vrot.lane.b32.xlu0 %v6957, 112
  %v6996 = vpop.permute.xlu0 %6995
  %6997 = vrot.lane.b32.xlu0 %v6958, 112
  %v6998 = vpop.permute.xlu0 %6997
  %6999 = vrot.lane.b32.xlu0 %v6959, 112
  %v7000 = vpop.permute.xlu0 %6999
  %7001 = vrot.lane.b32.xlu0 %v6960, 112
  %v7002 = vpop.permute.xlu0 %7001
  %7003 = vrot.lane.b32.xlu0 %v6961, 112
  %v7004 = vpop.permute.xlu0 %7003
  %7005 = vrot.lane.b32.xlu0 %v6962, 112
  %v7006 = vpop.permute.xlu0 %7005
  %7007 = vrot.lane.b32.xlu0 %v6963, 112
  %v7008 = vpop.permute.xlu0 %7007
  %7009 = vrot.lane.b32.xlu0 %v6964, 112
  %v7010 = vpop.permute.xlu0 %7009
  %7011 = vrot.lane.b32.xlu0 %v6965, 112
  %v7012 = vpop.permute.xlu0 %7011
  %7013 = vrot.lane.b32.xlu0 %v6966, 112
  %v7014 = vpop.permute.xlu0 %7013
  %7015 = vrot.lane.b32.xlu0 %v6967, 112
  %v7016 = vpop.permute.xlu0 %7015
  %7017 = vrot.lane.b32.xlu0 %v6968, 112
  %v7018 = vpop.permute.xlu0 %7017
  %7019 = vrot.lane.b32.xlu0 %v6969, 112
  %v7020 = vpop.permute.xlu0 %7019
  %7021 = vrot.lane.b32.xlu0 %v6970, 112
  %v7022 = vpop.permute.xlu0 %7021
  %7023 = vrot.lane.b32.xlu0 %v6971, 112
  %v7024 = vpop.permute.xlu0 %7023
  %7025 = vrot.lane.b32.xlu0 %v6972, 112
  %v7026 = vpop.permute.xlu0 %7025
  %v7027 = vsel %vm6494, %v6992, %v6994
  %v7028 = vsel %vm6494, %v6994, %v6996
  %v7029 = vsel %vm6494, %v6996, %v6998
  %v7030 = vsel %vm6494, %v6998, %v7000
  %v7031 = vsel %vm6494, %v7000, %v7002
  %v7032 = vsel %vm6494, %v7002, %v7004
  %v7033 = vsel %vm6494, %v7004, %v7006
  %v7034 = vsel %vm6494, %v7006, %v7008
  %v7035 = vsel %vm6494, %v7010, %v7012
  %v7036 = vsel %vm6494, %v7012, %v7014
  %v7037 = vsel %vm6494, %v7014, %v7016
  %v7038 = vsel %vm6494, %v7016, %v7018
  %v7039 = vsel %vm6494, %v7018, %v7020
  %v7040 = vsel %vm6494, %v7020, %v7022
  %v7041 = vsel %vm6494, %v7022, %v7024
  %v7042 = vsel %vm6494, %v7024, %v7026
  %7061 = vst [vmem:[#allocation4 + $0x510] sm:$0xff] %v7027
  %7062 = vst [vmem:[#allocation4 + $0x518] sm:$0xff] %v7028
  %7063 = vst [vmem:[#allocation4 + $0x520] sm:$0xff] %v7029
  %7064 = vst [vmem:[#allocation4 + $0x528] sm:$0xff] %v7030
  %7065 = vst [vmem:[#allocation4 + $0x530] sm:$0xff] %v7031
  %7066 = vst [vmem:[#allocation4 + $0x538] sm:$0xff] %v7032
  %7067 = vst [vmem:[#allocation4 + $0x540] sm:$0xff] %v7033
  %7068 = vst [vmem:[#allocation4 + $0x548] sm:$0xff] %v7034
  %7069 = vst.msk [vmem:[#allocation4 + $0x550] sm:$0xff] %vm6038, %v7008
  %7070 = vst [vmem:[#allocation4 + $0x558] sm:$0xff] %v7035
  %7071 = vst [vmem:[#allocation4 + $0x560] sm:$0xff] %v7036
  %7072 = vst [vmem:[#allocation4 + $0x568] sm:$0xff] %v7037
  %7073 = vst [vmem:[#allocation4 + $0x570] sm:$0xff] %v7038
  %7074 = vst [vmem:[#allocation4 + $0x578] sm:$0xff] %v7039
  %7075 = vst [vmem:[#allocation4 + $0x580] sm:$0xff] %v7040
  %7076 = vst [vmem:[#allocation4 + $0x588] sm:$0xff] %v7041
  %7077 = vst [vmem:[#allocation4 + $0x590] sm:$0xff] %v7042
  %7078 = vst.msk [vmem:[#allocation4 + $0x598] sm:$0xff] %vm6038, %v7026
  %v7079 = vld [vmem:[#allocation5 + $0x10] sm:$0xff]
  %v7080 = vld [vmem:[#allocation5 + $0x18] sm:$0xff]
  %v7081 = vld [vmem:[#allocation5 + $0x20] sm:$0xff]
  %v7082 = vld [vmem:[#allocation5 + $0x28] sm:$0xff]
  %v7083 = vld [vmem:[#allocation5 + $0x30] sm:$0xff]
  %v7084 = vld [vmem:[#allocation5 + $0x38] sm:$0xff]
  %v7085 = vld [vmem:[#allocation5 + $0x40] sm:$0xff]
  %v7086 = vld [vmem:[#allocation5 + $0x48] sm:$0xff]
  %v7087 = vld [vmem:[#allocation5 + $0x50] sm:$0xff]
  %v7088 = vld [vmem:[#allocation5 + $0x78] sm:$0xff]
  %v7089 = vld [vmem:[#allocation5 + $0x80] sm:$0xff]
  %v7090 = vld [vmem:[#allocation5 + $0x88] sm:$0xff]
  %v7091 = vld [vmem:[#allocation5 + $0x90] sm:$0xff]
  %v7092 = vld [vmem:[#allocation5 + $0x98] sm:$0xff]
  %v7093 = vld [vmem:[#allocation5 + $0xa0] sm:$0xff]
  %v7094 = vld [vmem:[#allocation5 + $0xa8] sm:$0xff]
  %v7095 = vld [vmem:[#allocation5 + $0xb0] sm:$0xff]
  %v7096 = vld [vmem:[#allocation5 + $0xb8] sm:$0xff]
  %7097 = vst [vmem:[#allocation4 + $0x5a0] sm:$0xff] %v7079
  %7098 = vst [vmem:[#allocation4 + $0x5a8] sm:$0xff] %v7080
  %7099 = vst [vmem:[#allocation4 + $0x5b0] sm:$0xff] %v7081
  %7100 = vst [vmem:[#allocation4 + $0x5b8] sm:$0xff] %v7082
  %7101 = vst [vmem:[#allocation4 + $0x5c0] sm:$0xff] %v7083
  %7102 = vst [vmem:[#allocation4 + $0x5c8] sm:$0xff] %v7084
  %7103 = vst [vmem:[#allocation4 + $0x5d0] sm:$0xff] %v7085
  %7104 = vst [vmem:[#allocation4 + $0x5d8] sm:$0xff] %v7086
  %7105 = vst.msk [vmem:[#allocation4 + $0x5e0] sm:$0xff] %vm6038, %v7087
  %7106 = vst [vmem:[#allocation4 + $0x5e8] sm:$0xff] %v7088
  %7107 = vst [vmem:[#allocation4 + $0x5f0] sm:$0xff] %v7089
  %7108 = vst [vmem:[#allocation4 + $0x5f8] sm:$0xff] %v7090
  %7109 = vst [vmem:[#allocation4 + $0x600] sm:$0xff] %v7091
  %7110 = vst [vmem:[#allocation4 + $0x608] sm:$0xff] %v7092
  %7111 = vst [vmem:[#allocation4 + $0x610] sm:$0xff] %v7093
  %7112 = vst [vmem:[#allocation4 + $0x618] sm:$0xff] %v7094
  %7113 = vst [vmem:[#allocation4 + $0x620] sm:$0xff] %v7095
  %7114 = vst.msk [vmem:[#allocation4 + $0x628] sm:$0xff] %vm6038, %v7096
  %v7115 = vld [vmem:[#allocation5 + $0x10] sm:$0xff]
  %v7116 = vld [vmem:[#allocation5 + $0x18] sm:$0xff]
  %v7117 = vld [vmem:[#allocation5 + $0x20] sm:$0xff]
  %v7118 = vld [vmem:[#allocation5 + $0x28] sm:$0xff]
  %v7119 = vld [vmem:[#allocation5 + $0x30] sm:$0xff]
  %v7120 = vld [vmem:[#allocation5 + $0x38] sm:$0xff]
  %v7121 = vld [vmem:[#allocation5 + $0x40] sm:$0xff]
  %v7122 = vld [vmem:[#allocation5 + $0x48] sm:$0xff]
  %v7123 = vld [vmem:[#allocation5 + $0x50] sm:$0xff]
  %v7124 = vld [vmem:[#allocation5 + $0x78] sm:$0xff]
  %v7125 = vld [vmem:[#allocation5 + $0x80] sm:$0xff]
  %v7126 = vld [vmem:[#allocation5 + $0x88] sm:$0xff]
  %v7127 = vld [vmem:[#allocation5 + $0x90] sm:$0xff]
  %v7128 = vld [vmem:[#allocation5 + $0x98] sm:$0xff]
  %v7129 = vld [vmem:[#allocation5 + $0xa0] sm:$0xff]
  %v7130 = vld [vmem:[#allocation5 + $0xa8] sm:$0xff]
  %v7131 = vld [vmem:[#allocation5 + $0xb0] sm:$0xff]
  %v7132 = vld [vmem:[#allocation5 + $0xb8] sm:$0xff]
  %7151 = vrot.lane.b32.xlu0 %v7115, 124
  %v7152 = vpop.permute.xlu0 %7151
  %7153 = vrot.lane.b32.xlu0 %v7116, 124
  %v7154 = vpop.permute.xlu0 %7153
  %7155 = vrot.lane.b32.xlu0 %v7117, 124
  %v7156 = vpop.permute.xlu0 %7155
  %7157 = vrot.lane.b32.xlu0 %v7118, 124
  %v7158 = vpop.permute.xlu0 %7157
  %7159 = vrot.lane.b32.xlu0 %v7119, 124
  %v7160 = vpop.permute.xlu0 %7159
  %7161 = vrot.lane.b32.xlu0 %v7120, 124
  %v7162 = vpop.permute.xlu0 %7161
  %7163 = vrot.lane.b32.xlu0 %v7121, 124
  %v7164 = vpop.permute.xlu0 %7163
  %7165 = vrot.lane.b32.xlu0 %v7122, 124
  %v7166 = vpop.permute.xlu0 %7165
  %7167 = vrot.lane.b32.xlu0 %v7123, 124
  %v7168 = vpop.permute.xlu0 %7167
  %7169 = vrot.lane.b32.xlu0 %v7124, 124
  %v7170 = vpop.permute.xlu0 %7169
  %7171 = vrot.lane.b32.xlu0 %v7125, 124
  %v7172 = vpop.permute.xlu0 %7171
  %7173 = vrot.lane.b32.xlu0 %v7126, 124
  %v7174 = vpop.permute.xlu0 %7173
  %7175 = vrot.lane.b32.xlu0 %v7127, 124
  %v7176 = vpop.permute.xlu0 %7175
  %7177 = vrot.lane.b32.xlu0 %v7128, 124
  %v7178 = vpop.permute.xlu0 %7177
  %7179 = vrot.lane.b32.xlu0 %v7129, 124
  %v7180 = vpop.permute.xlu0 %7179
  %7181 = vrot.lane.b32.xlu0 %v7130, 124
  %v7182 = vpop.permute.xlu0 %7181
  %7183 = vrot.lane.b32.xlu0 %v7131, 124
  %v7184 = vpop.permute.xlu0 %7183
  %7185 = vrot.lane.b32.xlu0 %v7132, 124
  %v7186 = vpop.permute.xlu0 %7185
  %v7187 = vsel %vm405, %v7152, %v7154
  %v7188 = vsel %vm405, %v7154, %v7156
  %v7189 = vsel %vm405, %v7156, %v7158
  %v7190 = vsel %vm405, %v7158, %v7160
  %v7191 = vsel %vm405, %v7160, %v7162
  %v7192 = vsel %vm405, %v7162, %v7164
  %v7193 = vsel %vm405, %v7164, %v7166
  %v7194 = vsel %vm405, %v7166, %v7168
  %v7195 = vsel %vm405, %v7170, %v7172
  %v7196 = vsel %vm405, %v7172, %v7174
  %v7197 = vsel %vm405, %v7174, %v7176
  %v7198 = vsel %vm405, %v7176, %v7178
  %v7199 = vsel %vm405, %v7178, %v7180
  %v7200 = vsel %vm405, %v7180, %v7182
  %v7201 = vsel %vm405, %v7182, %v7184
  %v7202 = vsel %vm405, %v7184, %v7186
  %7221 = vst [vmem:[#allocation4 + $0x630] sm:$0xff] %v7187
  %7222 = vst [vmem:[#allocation4 + $0x638] sm:$0xff] %v7188
  %7223 = vst [vmem:[#allocation4 + $0x640] sm:$0xff] %v7189
  %7224 = vst [vmem:[#allocation4 + $0x648] sm:$0xff] %v7190
  %7225 = vst [vmem:[#allocation4 + $0x650] sm:$0xff] %v7191
  %7226 = vst [vmem:[#allocation4 + $0x658] sm:$0xff] %v7192
  %7227 = vst [vmem:[#allocation4 + $0x660] sm:$0xff] %v7193
  %7228 = vst [vmem:[#allocation4 + $0x668] sm:$0xff] %v7194
  %7229 = vst.msk [vmem:[#allocation4 + $0x670] sm:$0xff] %vm6038, %v7168
  %7230 = vst [vmem:[#allocation4 + $0x678] sm:$0xff] %v7195
  %7231 = vst [vmem:[#allocation4 + $0x680] sm:$0xff] %v7196
  %7232 = vst [vmem:[#allocation4 + $0x688] sm:$0xff] %v7197
  %7233 = vst [vmem:[#allocation4 + $0x690] sm:$0xff] %v7198
  %7234 = vst [vmem:[#allocation4 + $0x698] sm:$0xff] %v7199
  %7235 = vst [vmem:[#allocation4 + $0x6a0] sm:$0xff] %v7200
  %7236 = vst [vmem:[#allocation4 + $0x6a8] sm:$0xff] %v7201
  %7237 = vst [vmem:[#allocation4 + $0x6b0] sm:$0xff] %v7202
  %7238 = vst.msk [vmem:[#allocation4 + $0x6b8] sm:$0xff] %vm6038, %v7186
  %v7239 = vld [vmem:[#allocation5 + $0x10] sm:$0xff]
  %v7240 = vld [vmem:[#allocation5 + $0x18] sm:$0xff]
  %v7241 = vld [vmem:[#allocation5 + $0x20] sm:$0xff]
  %v7242 = vld [vmem:[#allocation5 + $0x28] sm:$0xff]
  %v7243 = vld [vmem:[#allocation5 + $0x30] sm:$0xff]
  %v7244 = vld [vmem:[#allocation5 + $0x38] sm:$0xff]
  %v7245 = vld [vmem:[#allocation5 + $0x40] sm:$0xff]
  %v7246 = vld [vmem:[#allocation5 + $0x48] sm:$0xff]
  %v7247 = vld [vmem:[#allocation5 + $0x50] sm:$0xff]
  %v7248 = vld [vmem:[#allocation5 + $0x78] sm:$0xff]
  %v7249 = vld [vmem:[#allocation5 + $0x80] sm:$0xff]
  %v7250 = vld [vmem:[#allocation5 + $0x88] sm:$0xff]
  %v7251 = vld [vmem:[#allocation5 + $0x90] sm:$0xff]
  %v7252 = vld [vmem:[#allocation5 + $0x98] sm:$0xff]
  %v7253 = vld [vmem:[#allocation5 + $0xa0] sm:$0xff]
  %v7254 = vld [vmem:[#allocation5 + $0xa8] sm:$0xff]
  %v7255 = vld [vmem:[#allocation5 + $0xb0] sm:$0xff]
  %v7256 = vld [vmem:[#allocation5 + $0xb8] sm:$0xff]
  %7275 = vrot.lane.b32.xlu0 %v7239, 120
  %v7276 = vpop.permute.xlu0 %7275
  %7277 = vrot.lane.b32.xlu0 %v7240, 120
  %v7278 = vpop.permute.xlu0 %7277
  %7279 = vrot.lane.b32.xlu0 %v7241, 120
  %v7280 = vpop.permute.xlu0 %7279
  %7281 = vrot.lane.b32.xlu0 %v7242, 120
  %v7282 = vpop.permute.xlu0 %7281
  %7283 = vrot.lane.b32.xlu0 %v7243, 120
  %v7284 = vpop.permute.xlu0 %7283
  %7285 = vrot.lane.b32.xlu0 %v7244, 120
  %v7286 = vpop.permute.xlu0 %7285
  %7287 = vrot.lane.b32.xlu0 %v7245, 120
  %v7288 = vpop.permute.xlu0 %7287
  %7289 = vrot.lane.b32.xlu0 %v7246, 120
  %v7290 = vpop.permute.xlu0 %7289
  %7291 = vrot.lane.b32.xlu0 %v7247, 120
  %v7292 = vpop.permute.xlu0 %7291
  %7293 = vrot.lane.b32.xlu0 %v7248, 120
  %v7294 = vpop.permute.xlu0 %7293
  %7295 = vrot.lane.b32.xlu0 %v7249, 120
  %v7296 = vpop.permute.xlu0 %7295
  %7297 = vrot.lane.b32.xlu0 %v7250, 120
  %v7298 = vpop.permute.xlu0 %7297
  %7299 = vrot.lane.b32.xlu0 %v7251, 120
  %v7300 = vpop.permute.xlu0 %7299
  %7301 = vrot.lane.b32.xlu0 %v7252, 120
  %v7302 = vpop.permute.xlu0 %7301
  %7303 = vrot.lane.b32.xlu0 %v7253, 120
  %v7304 = vpop.permute.xlu0 %7303
  %7305 = vrot.lane.b32.xlu0 %v7254, 120
  %v7306 = vpop.permute.xlu0 %7305
  %7307 = vrot.lane.b32.xlu0 %v7255, 120
  %v7308 = vpop.permute.xlu0 %7307
  %7309 = vrot.lane.b32.xlu0 %v7256, 120
  %v7310 = vpop.permute.xlu0 %7309
  %v7311 = vsel %vm3599, %v7276, %v7278
  %v7312 = vsel %vm3599, %v7278, %v7280
  %v7313 = vsel %vm3599, %v7280, %v7282
  %v7314 = vsel %vm3599, %v7282, %v7284
  %v7315 = vsel %vm3599, %v7284, %v7286
  %v7316 = vsel %vm3599, %v7286, %v7288
  %v7317 = vsel %vm3599, %v7288, %v7290
  %v7318 = vsel %vm3599, %v7290, %v7292
  %v7319 = vsel %vm3599, %v7294, %v7296
  %v7320 = vsel %vm3599, %v7296, %v7298
  %v7321 = vsel %vm3599, %v7298, %v7300
  %v7322 = vsel %vm3599, %v7300, %v7302
  %v7323 = vsel %vm3599, %v7302, %v7304
  %v7324 = vsel %vm3599, %v7304, %v7306
  %v7325 = vsel %vm3599, %v7306, %v7308
  %v7326 = vsel %vm3599, %v7308, %v7310
  %7345 = vst [vmem:[#allocation4 + $0x6c0] sm:$0xff] %v7311
  %7346 = vst [vmem:[#allocation4 + $0x6c8] sm:$0xff] %v7312
  %7347 = vst [vmem:[#allocation4 + $0x6d0] sm:$0xff] %v7313
  %7348 = vst [vmem:[#allocation4 + $0x6d8] sm:$0xff] %v7314
  %7349 = vst [vmem:[#allocation4 + $0x6e0] sm:$0xff] %v7315
  %7350 = vst [vmem:[#allocation4 + $0x6e8] sm:$0xff] %v7316
  %7351 = vst [vmem:[#allocation4 + $0x6f0] sm:$0xff] %v7317
  %7352 = vst [vmem:[#allocation4 + $0x6f8] sm:$0xff] %v7318
  %7353 = vst.msk [vmem:[#allocation4 + $0x700] sm:$0xff] %vm6038, %v7292
  %7354 = vst [vmem:[#allocation4 + $0x708] sm:$0xff] %v7319
  %7355 = vst [vmem:[#allocation4 + $0x710] sm:$0xff] %v7320
  %7356 = vst [vmem:[#allocation4 + $0x718] sm:$0xff] %v7321
  %7357 = vst [vmem:[#allocation4 + $0x720] sm:$0xff] %v7322
  %7358 = vst [vmem:[#allocation4 + $0x728] sm:$0xff] %v7323
  %7359 = vst [vmem:[#allocation4 + $0x730] sm:$0xff] %v7324
  %7360 = vst [vmem:[#allocation4 + $0x738] sm:$0xff] %v7325
  %7361 = vst [vmem:[#allocation4 + $0x740] sm:$0xff] %v7326
  %7362 = vst.msk [vmem:[#allocation4 + $0x748] sm:$0xff] %vm6038, %v7310
  %v7363 = vld [vmem:[#allocation5 + $0x10] sm:$0xff]
  %v7364 = vld [vmem:[#allocation5 + $0x18] sm:$0xff]
  %v7365 = vld [vmem:[#allocation5 + $0x20] sm:$0xff]
  %v7366 = vld [vmem:[#allocation5 + $0x28] sm:$0xff]
  %v7367 = vld [vmem:[#allocation5 + $0x30] sm:$0xff]
  %v7368 = vld [vmem:[#allocation5 + $0x38] sm:$0xff]
  %v7369 = vld [vmem:[#allocation5 + $0x40] sm:$0xff]
  %v7370 = vld [vmem:[#allocation5 + $0x48] sm:$0xff]
  %v7371 = vld [vmem:[#allocation5 + $0x50] sm:$0xff]
  %v7372 = vld [vmem:[#allocation5 + $0x78] sm:$0xff]
  %v7373 = vld [vmem:[#allocation5 + $0x80] sm:$0xff]
  %v7374 = vld [vmem:[#allocation5 + $0x88] sm:$0xff]
  %v7375 = vld [vmem:[#allocation5 + $0x90] sm:$0xff]
  %v7376 = vld [vmem:[#allocation5 + $0x98] sm:$0xff]
  %v7377 = vld [vmem:[#allocation5 + $0xa0] sm:$0xff]
  %v7378 = vld [vmem:[#allocation5 + $0xa8] sm:$0xff]
  %v7379 = vld [vmem:[#allocation5 + $0xb0] sm:$0xff]
  %v7380 = vld [vmem:[#allocation5 + $0xb8] sm:$0xff]
  %7399 = vrot.lane.b32.xlu0 %v7363, 116
  %v7400 = vpop.permute.xlu0 %7399
  %7401 = vrot.lane.b32.xlu0 %v7364, 116
  %v7402 = vpop.permute.xlu0 %7401
  %7403 = vrot.lane.b32.xlu0 %v7365, 116
  %v7404 = vpop.permute.xlu0 %7403
  %7405 = vrot.lane.b32.xlu0 %v7366, 116
  %v7406 = vpop.permute.xlu0 %7405
  %7407 = vrot.lane.b32.xlu0 %v7367, 116
  %v7408 = vpop.permute.xlu0 %7407
  %7409 = vrot.lane.b32.xlu0 %v7368, 116
  %v7410 = vpop.permute.xlu0 %7409
  %7411 = vrot.lane.b32.xlu0 %v7369, 116
  %v7412 = vpop.permute.xlu0 %7411
  %7413 = vrot.lane.b32.xlu0 %v7370, 116
  %v7414 = vpop.permute.xlu0 %7413
  %7415 = vrot.lane.b32.xlu0 %v7371, 116
  %v7416 = vpop.permute.xlu0 %7415
  %7417 = vrot.lane.b32.xlu0 %v7372, 116
  %v7418 = vpop.permute.xlu0 %7417
  %7419 = vrot.lane.b32.xlu0 %v7373, 116
  %v7420 = vpop.permute.xlu0 %7419
  %7421 = vrot.lane.b32.xlu0 %v7374, 116
  %v7422 = vpop.permute.xlu0 %7421
  %7423 = vrot.lane.b32.xlu0 %v7375, 116
  %v7424 = vpop.permute.xlu0 %7423
  %7425 = vrot.lane.b32.xlu0 %v7376, 116
  %v7426 = vpop.permute.xlu0 %7425
  %7427 = vrot.lane.b32.xlu0 %v7377, 116
  %v7428 = vpop.permute.xlu0 %7427
  %7429 = vrot.lane.b32.xlu0 %v7378, 116
  %v7430 = vpop.permute.xlu0 %7429
  %7431 = vrot.lane.b32.xlu0 %v7379, 116
  %v7432 = vpop.permute.xlu0 %7431
  %7433 = vrot.lane.b32.xlu0 %v7380, 116
  %v7434 = vpop.permute.xlu0 %7433
  %v7435 = vsel %vm6369, %v7400, %v7402
  %v7436 = vsel %vm6369, %v7402, %v7404
  %v7437 = vsel %vm6369, %v7404, %v7406
  %v7438 = vsel %vm6369, %v7406, %v7408
  %v7439 = vsel %vm6369, %v7408, %v7410
  %v7440 = vsel %vm6369, %v7410, %v7412
  %v7441 = vsel %vm6369, %v7412, %v7414
  %v7442 = vsel %vm6369, %v7414, %v7416
  %v7443 = vsel %vm6369, %v7418, %v7420
  %v7444 = vsel %vm6369, %v7420, %v7422
  %v7445 = vsel %vm6369, %v7422, %v7424
  %v7446 = vsel %vm6369, %v7424, %v7426
  %v7447 = vsel %vm6369, %v7426, %v7428
  %v7448 = vsel %vm6369, %v7428, %v7430
  %v7449 = vsel %vm6369, %v7430, %v7432
  %v7450 = vsel %vm6369, %v7432, %v7434
  %7469 = vst [vmem:[#allocation4 + $0x750] sm:$0xff] %v7435
  %7470 = vst [vmem:[#allocation4 + $0x758] sm:$0xff] %v7436
  %7471 = vst [vmem:[#allocation4 + $0x760] sm:$0xff] %v7437
  %7472 = vst [vmem:[#allocation4 + $0x768] sm:$0xff] %v7438
  %7473 = vst [vmem:[#allocation4 + $0x770] sm:$0xff] %v7439
  %7474 = vst [vmem:[#allocation4 + $0x778] sm:$0xff] %v7440
  %7475 = vst [vmem:[#allocation4 + $0x780] sm:$0xff] %v7441
  %7476 = vst [vmem:[#allocation4 + $0x788] sm:$0xff] %v7442
  %7477 = vst.msk [vmem:[#allocation4 + $0x790] sm:$0xff] %vm6038, %v7416
  %7478 = vst [vmem:[#allocation4 + $0x798] sm:$0xff] %v7443
  %7479 = vst [vmem:[#allocation4 + $0x7a0] sm:$0xff] %v7444
  %7480 = vst [vmem:[#allocation4 + $0x7a8] sm:$0xff] %v7445
  %7481 = vst [vmem:[#allocation4 + $0x7b0] sm:$0xff] %v7446
  %7482 = vst [vmem:[#allocation4 + $0x7b8] sm:$0xff] %v7447
  %7483 = vst [vmem:[#allocation4 + $0x7c0] sm:$0xff] %v7448
  %7484 = vst [vmem:[#allocation4 + $0x7c8] sm:$0xff] %v7449
  %7485 = vst [vmem:[#allocation4 + $0x7d0] sm:$0xff] %v7450
  %7486 = vst.msk [vmem:[#allocation4 + $0x7d8] sm:$0xff] %vm6038, %v7434
  %v7487 = vld [vmem:[#allocation5 + $0x10] sm:$0xff]
  %v7488 = vld [vmem:[#allocation5 + $0x18] sm:$0xff]
  %v7489 = vld [vmem:[#allocation5 + $0x20] sm:$0xff]
  %v7490 = vld [vmem:[#allocation5 + $0x28] sm:$0xff]
  %v7491 = vld [vmem:[#allocation5 + $0x30] sm:$0xff]
  %v7492 = vld [vmem:[#allocation5 + $0x38] sm:$0xff]
  %v7493 = vld [vmem:[#allocation5 + $0x40] sm:$0xff]
  %v7494 = vld [vmem:[#allocation5 + $0x48] sm:$0xff]
  %v7495 = vld [vmem:[#allocation5 + $0x50] sm:$0xff]
  %v7496 = vld [vmem:[#allocation5 + $0x78] sm:$0xff]
  %v7497 = vld [vmem:[#allocation5 + $0x80] sm:$0xff]
  %v7498 = vld [vmem:[#allocation5 + $0x88] sm:$0xff]
  %v7499 = vld [vmem:[#allocation5 + $0x90] sm:$0xff]
  %v7500 = vld [vmem:[#allocation5 + $0x98] sm:$0xff]
  %v7501 = vld [vmem:[#allocation5 + $0xa0] sm:$0xff]
  %v7502 = vld [vmem:[#allocation5 + $0xa8] sm:$0xff]
  %v7503 = vld [vmem:[#allocation5 + $0xb0] sm:$0xff]
  %v7504 = vld [vmem:[#allocation5 + $0xb8] sm:$0xff]
  %7523 = vrot.lane.b32.xlu0 %v7487, 112
  %v7524 = vpop.permute.xlu0 %7523
  %7525 = vrot.lane.b32.xlu0 %v7488, 112
  %v7526 = vpop.permute.xlu0 %7525
  %7527 = vrot.lane.b32.xlu0 %v7489, 112
  %v7528 = vpop.permute.xlu0 %7527
  %7529 = vrot.lane.b32.xlu0 %v7490, 112
  %v7530 = vpop.permute.xlu0 %7529
  %7531 = vrot.lane.b32.xlu0 %v7491, 112
  %v7532 = vpop.permute.xlu0 %7531
  %7533 = vrot.lane.b32.xlu0 %v7492, 112
  %v7534 = vpop.permute.xlu0 %7533
  %7535 = vrot.lane.b32.xlu0 %v7493, 112
  %v7536 = vpop.permute.xlu0 %7535
  %7537 = vrot.lane.b32.xlu0 %v7494, 112
  %v7538 = vpop.permute.xlu0 %7537
  %7539 = vrot.lane.b32.xlu0 %v7495, 112
  %v7540 = vpop.permute.xlu0 %7539
  %7541 = vrot.lane.b32.xlu0 %v7496, 112
  %v7542 = vpop.permute.xlu0 %7541
  %7543 = vrot.lane.b32.xlu0 %v7497, 112
  %v7544 = vpop.permute.xlu0 %7543
  %7545 = vrot.lane.b32.xlu0 %v7498, 112
  %v7546 = vpop.permute.xlu0 %7545
  %7547 = vrot.lane.b32.xlu0 %v7499, 112
  %v7548 = vpop.permute.xlu0 %7547
  %7549 = vrot.lane.b32.xlu0 %v7500, 112
  %v7550 = vpop.permute.xlu0 %7549
  %7551 = vrot.lane.b32.xlu0 %v7501, 112
  %v7552 = vpop.permute.xlu0 %7551
  %7553 = vrot.lane.b32.xlu0 %v7502, 112
  %v7554 = vpop.permute.xlu0 %7553
  %7555 = vrot.lane.b32.xlu0 %v7503, 112
  %v7556 = vpop.permute.xlu0 %7555
  %7557 = vrot.lane.b32.xlu0 %v7504, 112
  %v7558 = vpop.permute.xlu0 %7557
  %v7559 = vsel %vm6494, %v7524, %v7526
  %v7560 = vsel %vm6494, %v7526, %v7528
  %v7561 = vsel %vm6494, %v7528, %v7530
  %v7562 = vsel %vm6494, %v7530, %v7532
  %v7563 = vsel %vm6494, %v7532, %v7534
  %v7564 = vsel %vm6494, %v7534, %v7536
  %v7565 = vsel %vm6494, %v7536, %v7538
  %v7566 = vsel %vm6494, %v7538, %v7540
  %v7567 = vsel %vm6494, %v7542, %v7544
  %v7568 = vsel %vm6494, %v7544, %v7546
  %v7569 = vsel %vm6494, %v7546, %v7548
  %v7570 = vsel %vm6494, %v7548, %v7550
  %v7571 = vsel %vm6494, %v7550, %v7552
  %v7572 = vsel %vm6494, %v7552, %v7554
  %v7573 = vsel %vm6494, %v7554, %v7556
  %v7574 = vsel %vm6494, %v7556, %v7558
  %7593 = vst [vmem:[#allocation4 + $0x7e0] sm:$0xff] %v7559
  %7594 = vst [vmem:[#allocation4 + $0x7e8] sm:$0xff] %v7560
  %7595 = vst [vmem:[#allocation4 + $0x7f0] sm:$0xff] %v7561
  %7596 = vst [vmem:[#allocation4 + $0x7f8] sm:$0xff] %v7562
  %7597 = vst [vmem:[#allocation4 + $0x800] sm:$0xff] %v7563
  %7598 = vst [vmem:[#allocation4 + $0x808] sm:$0xff] %v7564
  %7599 = vst [vmem:[#allocation4 + $0x810] sm:$0xff] %v7565
  %7600 = vst [vmem:[#allocation4 + $0x818] sm:$0xff] %v7566
  %7601 = vst.msk [vmem:[#allocation4 + $0x820] sm:$0xff] %vm6038, %v7540
  %7602 = vst [vmem:[#allocation4 + $0x828] sm:$0xff] %v7567
  %7603 = vst [vmem:[#allocation4 + $0x830] sm:$0xff] %v7568
  %7604 = vst [vmem:[#allocation4 + $0x838] sm:$0xff] %v7569
  %7605 = vst [vmem:[#allocation4 + $0x840] sm:$0xff] %v7570
  %7606 = vst [vmem:[#allocation4 + $0x848] sm:$0xff] %v7571
  %7607 = vst [vmem:[#allocation4 + $0x850] sm:$0xff] %v7572
  %7608 = vst [vmem:[#allocation4 + $0x858] sm:$0xff] %v7573
  %7609 = vst [vmem:[#allocation4 + $0x860] sm:$0xff] %v7574
  %7610 = vst.msk [vmem:[#allocation4 + $0x868] sm:$0xff] %vm6038, %v7558
  %v7611 = vld [vmem:[#allocation5 + $0x18] sm:$0xff]
  %v7612 = vld [vmem:[#allocation5 + $0x20] sm:$0xff]
  %v7613 = vld [vmem:[#allocation5 + $0x28] sm:$0xff]
  %v7614 = vld [vmem:[#allocation5 + $0x30] sm:$0xff]
  %v7615 = vld [vmem:[#allocation5 + $0x38] sm:$0xff]
  %v7616 = vld [vmem:[#allocation5 + $0x40] sm:$0xff]
  %v7617 = vld [vmem:[#allocation5 + $0x48] sm:$0xff]
  %v7618 = vld [vmem:[#allocation5 + $0x50] sm:$0xff]
  %v7619 = vld [vmem:[#allocation5 + $0x58] sm:$0xff]
  %v7620 = vld [vmem:[#allocation5 + $0x80] sm:$0xff]
  %v7621 = vld [vmem:[#allocation5 + $0x88] sm:$0xff]
  %v7622 = vld [vmem:[#allocation5 + $0x90] sm:$0xff]
  %v7623 = vld [vmem:[#allocation5 + $0x98] sm:$0xff]
  %v7624 = vld [vmem:[#allocation5 + $0xa0] sm:$0xff]
  %v7625 = vld [vmem:[#allocation5 + $0xa8] sm:$0xff]
  %v7626 = vld [vmem:[#allocation5 + $0xb0] sm:$0xff]
  %v7627 = vld [vmem:[#allocation5 + $0xb8] sm:$0xff]
  %v7628 = vld [vmem:[#allocation5 + $0xc0] sm:$0xff]
  %7629 = vst [vmem:[#allocation4 + $0x870] sm:$0xff] %v7611
  %7630 = vst [vmem:[#allocation4 + $0x878] sm:$0xff] %v7612
  %7631 = vst [vmem:[#allocation4 + $0x880] sm:$0xff] %v7613
  %7632 = vst [vmem:[#allocation4 + $0x888] sm:$0xff] %v7614
  %7633 = vst [vmem:[#allocation4 + $0x890] sm:$0xff] %v7615
  %7634 = vst [vmem:[#allocation4 + $0x898] sm:$0xff] %v7616
  %7635 = vst [vmem:[#allocation4 + $0x8a0] sm:$0xff] %v7617
  %7636 = vst [vmem:[#allocation4 + $0x8a8] sm:$0xff] %v7618
  %7637 = vst.msk [vmem:[#allocation4 + $0x8b0] sm:$0xff] %vm6038, %v7619
  %7638 = vst [vmem:[#allocation4 + $0x8b8] sm:$0xff] %v7620
  %7639 = vst [vmem:[#allocation4 + $0x8c0] sm:$0xff] %v7621
  %7640 = vst [vmem:[#allocation4 + $0x8c8] sm:$0xff] %v7622
  %7641 = vst [vmem:[#allocation4 + $0x8d0] sm:$0xff] %v7623
  %7642 = vst [vmem:[#allocation4 + $0x8d8] sm:$0xff] %v7624
  %7643 = vst [vmem:[#allocation4 + $0x8e0] sm:$0xff] %v7625
  %7644 = vst [vmem:[#allocation4 + $0x8e8] sm:$0xff] %v7626
  %7645 = vst [vmem:[#allocation4 + $0x8f0] sm:$0xff] %v7627
  %7646 = vst.msk [vmem:[#allocation4 + $0x8f8] sm:$0xff] %vm6038, %v7628
  %v7647 = vld [vmem:[#allocation5 + $0x18] sm:$0xff]
  %v7648 = vld [vmem:[#allocation5 + $0x20] sm:$0xff]
  %v7649 = vld [vmem:[#allocation5 + $0x28] sm:$0xff]
  %v7650 = vld [vmem:[#allocation5 + $0x30] sm:$0xff]
  %v7651 = vld [vmem:[#allocation5 + $0x38] sm:$0xff]
  %v7652 = vld [vmem:[#allocation5 + $0x40] sm:$0xff]
  %v7653 = vld [vmem:[#allocation5 + $0x48] sm:$0xff]
  %v7654 = vld [vmem:[#allocation5 + $0x50] sm:$0xff]
  %v7655 = vld [vmem:[#allocation5 + $0x58] sm:$0xff]
  %v7656 = vld [vmem:[#allocation5 + $0x80] sm:$0xff]
  %v7657 = vld [vmem:[#allocation5 + $0x88] sm:$0xff]
  %v7658 = vld [vmem:[#allocation5 + $0x90] sm:$0xff]
  %v7659 = vld [vmem:[#allocation5 + $0x98] sm:$0xff]
  %v7660 = vld [vmem:[#allocation5 + $0xa0] sm:$0xff]
  %v7661 = vld [vmem:[#allocation5 + $0xa8] sm:$0xff]
  %v7662 = vld [vmem:[#allocation5 + $0xb0] sm:$0xff]
  %v7663 = vld [vmem:[#allocation5 + $0xb8] sm:$0xff]
  %v7664 = vld [vmem:[#allocation5 + $0xc0] sm:$0xff]
  %7683 = vrot.lane.b32.xlu0 %v7647, 124
  %v7684 = vpop.permute.xlu0 %7683
  %7685 = vrot.lane.b32.xlu0 %v7648, 124
  %v7686 = vpop.permute.xlu0 %7685
  %7687 = vrot.lane.b32.xlu0 %v7649, 124
  %v7688 = vpop.permute.xlu0 %7687
  %7689 = vrot.lane.b32.xlu0 %v7650, 124
  %v7690 = vpop.permute.xlu0 %7689
  %7691 = vrot.lane.b32.xlu0 %v7651, 124
  %v7692 = vpop.permute.xlu0 %7691
  %7693 = vrot.lane.b32.xlu0 %v7652, 124
  %v7694 = vpop.permute.xlu0 %7693
  %7695 = vrot.lane.b32.xlu0 %v7653, 124
  %v7696 = vpop.permute.xlu0 %7695
  %7697 = vrot.lane.b32.xlu0 %v7654, 124
  %v7698 = vpop.permute.xlu0 %7697
  %7699 = vrot.lane.b32.xlu0 %v7655, 124
  %v7700 = vpop.permute.xlu0 %7699
  %7701 = vrot.lane.b32.xlu0 %v7656, 124
  %v7702 = vpop.permute.xlu0 %7701
  %7703 = vrot.lane.b32.xlu0 %v7657, 124
  %v7704 = vpop.permute.xlu0 %7703
  %7705 = vrot.lane.b32.xlu0 %v7658, 124
  %v7706 = vpop.permute.xlu0 %7705
  %7707 = vrot.lane.b32.xlu0 %v7659, 124
  %v7708 = vpop.permute.xlu0 %7707
  %7709 = vrot.lane.b32.xlu0 %v7660, 124
  %v7710 = vpop.permute.xlu0 %7709
  %7711 = vrot.lane.b32.xlu0 %v7661, 124
  %v7712 = vpop.permute.xlu0 %7711
  %7713 = vrot.lane.b32.xlu0 %v7662, 124
  %v7714 = vpop.permute.xlu0 %7713
  %7715 = vrot.lane.b32.xlu0 %v7663, 124
  %v7716 = vpop.permute.xlu0 %7715
  %7717 = vrot.lane.b32.xlu0 %v7664, 124
  %v7718 = vpop.permute.xlu0 %7717
  %v7719 = vsel %vm405, %v7684, %v7686
  %v7720 = vsel %vm405, %v7686, %v7688
  %v7721 = vsel %vm405, %v7688, %v7690
  %v7722 = vsel %vm405, %v7690, %v7692
  %v7723 = vsel %vm405, %v7692, %v7694
  %v7724 = vsel %vm405, %v7694, %v7696
  %v7725 = vsel %vm405, %v7696, %v7698
  %v7726 = vsel %vm405, %v7698, %v7700
  %v7727 = vsel %vm405, %v7702, %v7704
  %v7728 = vsel %vm405, %v7704, %v7706
  %v7729 = vsel %vm405, %v7706, %v7708
  %v7730 = vsel %vm405, %v7708, %v7710
  %v7731 = vsel %vm405, %v7710, %v7712
  %v7732 = vsel %vm405, %v7712, %v7714
  %v7733 = vsel %vm405, %v7714, %v7716
  %v7734 = vsel %vm405, %v7716, %v7718
  %7753 = vst [vmem:[#allocation4 + $0x900] sm:$0xff] %v7719
  %7754 = vst [vmem:[#allocation4 + $0x908] sm:$0xff] %v7720
  %7755 = vst [vmem:[#allocation4 + $0x910] sm:$0xff] %v7721
  %7756 = vst [vmem:[#allocation4 + $0x918] sm:$0xff] %v7722
  %7757 = vst [vmem:[#allocation4 + $0x920] sm:$0xff] %v7723
  %7758 = vst [vmem:[#allocation4 + $0x928] sm:$0xff] %v7724
  %7759 = vst [vmem:[#allocation4 + $0x930] sm:$0xff] %v7725
  %7760 = vst [vmem:[#allocation4 + $0x938] sm:$0xff] %v7726
  %7761 = vst.msk [vmem:[#allocation4 + $0x940] sm:$0xff] %vm6038, %v7700
  %7762 = vst [vmem:[#allocation4 + $0x948] sm:$0xff] %v7727
  %7763 = vst [vmem:[#allocation4 + $0x950] sm:$0xff] %v7728
  %7764 = vst [vmem:[#allocation4 + $0x958] sm:$0xff] %v7729
  %7765 = vst [vmem:[#allocation4 + $0x960] sm:$0xff] %v7730
  %7766 = vst [vmem:[#allocation4 + $0x968] sm:$0xff] %v7731
  %7767 = vst [vmem:[#allocation4 + $0x970] sm:$0xff] %v7732
  %7768 = vst [vmem:[#allocation4 + $0x978] sm:$0xff] %v7733
  %7769 = vst [vmem:[#allocation4 + $0x980] sm:$0xff] %v7734
  %7770 = vst.msk [vmem:[#allocation4 + $0x988] sm:$0xff] %vm6038, %v7718
  %v7771 = vld [vmem:[#allocation5 + $0x18] sm:$0xff]
  %v7772 = vld [vmem:[#allocation5 + $0x20] sm:$0xff]
  %v7773 = vld [vmem:[#allocation5 + $0x28] sm:$0xff]
  %v7774 = vld [vmem:[#allocation5 + $0x30] sm:$0xff]
  %v7775 = vld [vmem:[#allocation5 + $0x38] sm:$0xff]
  %v7776 = vld [vmem:[#allocation5 + $0x40] sm:$0xff]
  %v7777 = vld [vmem:[#allocation5 + $0x48] sm:$0xff]
  %v7778 = vld [vmem:[#allocation5 + $0x50] sm:$0xff]
  %v7779 = vld [vmem:[#allocation5 + $0x58] sm:$0xff]
  %v7780 = vld [vmem:[#allocation5 + $0x80] sm:$0xff]
  %v7781 = vld [vmem:[#allocation5 + $0x88] sm:$0xff]
  %v7782 = vld [vmem:[#allocation5 + $0x90] sm:$0xff]
  %v7783 = vld [vmem:[#allocation5 + $0x98] sm:$0xff]
  %v7784 = vld [vmem:[#allocation5 + $0xa0] sm:$0xff]
  %v7785 = vld [vmem:[#allocation5 + $0xa8] sm:$0xff]
  %v7786 = vld [vmem:[#allocation5 + $0xb0] sm:$0xff]
  %v7787 = vld [vmem:[#allocation5 + $0xb8] sm:$0xff]
  %v7788 = vld [vmem:[#allocation5 + $0xc0] sm:$0xff]
  %7807 = vrot.lane.b32.xlu0 %v7771, 120
  %v7808 = vpop.permute.xlu0 %7807
  %7809 = vrot.lane.b32.xlu0 %v7772, 120
  %v7810 = vpop.permute.xlu0 %7809
  %7811 = vrot.lane.b32.xlu0 %v7773, 120
  %v7812 = vpop.permute.xlu0 %7811
  %7813 = vrot.lane.b32.xlu0 %v7774, 120
  %v7814 = vpop.permute.xlu0 %7813
  %7815 = vrot.lane.b32.xlu0 %v7775, 120
  %v7816 = vpop.permute.xlu0 %7815
  %7817 = vrot.lane.b32.xlu0 %v7776, 120
  %v7818 = vpop.permute.xlu0 %7817
  %7819 = vrot.lane.b32.xlu0 %v7777, 120
  %v7820 = vpop.permute.xlu0 %7819
  %7821 = vrot.lane.b32.xlu0 %v7778, 120
  %v7822 = vpop.permute.xlu0 %7821
  %7823 = vrot.lane.b32.xlu0 %v7779, 120
  %v7824 = vpop.permute.xlu0 %7823
  %7825 = vrot.lane.b32.xlu0 %v7780, 120
  %v7826 = vpop.permute.xlu0 %7825
  %7827 = vrot.lane.b32.xlu0 %v7781, 120
  %v7828 = vpop.permute.xlu0 %7827
  %7829 = vrot.lane.b32.xlu0 %v7782, 120
  %v7830 = vpop.permute.xlu0 %7829
  %7831 = vrot.lane.b32.xlu0 %v7783, 120
  %v7832 = vpop.permute.xlu0 %7831
  %7833 = vrot.lane.b32.xlu0 %v7784, 120
  %v7834 = vpop.permute.xlu0 %7833
  %7835 = vrot.lane.b32.xlu0 %v7785, 120
  %v7836 = vpop.permute.xlu0 %7835
  %7837 = vrot.lane.b32.xlu0 %v7786, 120
  %v7838 = vpop.permute.xlu0 %7837
  %7839 = vrot.lane.b32.xlu0 %v7787, 120
  %v7840 = vpop.permute.xlu0 %7839
  %7841 = vrot.lane.b32.xlu0 %v7788, 120
  %v7842 = vpop.permute.xlu0 %7841
  %v7843 = vsel %vm3599, %v7808, %v7810
  %v7844 = vsel %vm3599, %v7810, %v7812
  %v7845 = vsel %vm3599, %v7812, %v7814
  %v7846 = vsel %vm3599, %v7814, %v7816
  %v7847 = vsel %vm3599, %v7816, %v7818
  %v7848 = vsel %vm3599, %v7818, %v7820
  %v7849 = vsel %vm3599, %v7820, %v7822
  %v7850 = vsel %vm3599, %v7822, %v7824
  %v7851 = vsel %vm3599, %v7826, %v7828
  %v7852 = vsel %vm3599, %v7828, %v7830
  %v7853 = vsel %vm3599, %v7830, %v7832
  %v7854 = vsel %vm3599, %v7832, %v7834
  %v7855 = vsel %vm3599, %v7834, %v7836
  %v7856 = vsel %vm3599, %v7836, %v7838
  %v7857 = vsel %vm3599, %v7838, %v7840
  %v7858 = vsel %vm3599, %v7840, %v7842
  %7877 = vst [vmem:[#allocation4 + $0x990] sm:$0xff] %v7843
  %7878 = vst [vmem:[#allocation4 + $0x998] sm:$0xff] %v7844
  %7879 = vst [vmem:[#allocation4 + $0x9a0] sm:$0xff] %v7845
  %7880 = vst [vmem:[#allocation4 + $0x9a8] sm:$0xff] %v7846
  %7881 = vst [vmem:[#allocation4 + $0x9b0] sm:$0xff] %v7847
  %7882 = vst [vmem:[#allocation4 + $0x9b8] sm:$0xff] %v7848
  %7883 = vst [vmem:[#allocation4 + $0x9c0] sm:$0xff] %v7849
  %7884 = vst [vmem:[#allocation4 + $0x9c8] sm:$0xff] %v7850
  %7885 = vst.msk [vmem:[#allocation4 + $0x9d0] sm:$0xff] %vm6038, %v7824
  %7886 = vst [vmem:[#allocation4 + $0x9d8] sm:$0xff] %v7851
  %7887 = vst [vmem:[#allocation4 + $0x9e0] sm:$0xff] %v7852
  %7888 = vst [vmem:[#allocation4 + $0x9e8] sm:$0xff] %v7853
  %7889 = vst [vmem:[#allocation4 + $0x9f0] sm:$0xff] %v7854
  %7890 = vst [vmem:[#allocation4 + $0x9f8] sm:$0xff] %v7855
  %7891 = vst [vmem:[#allocation4 + $0xa00] sm:$0xff] %v7856
  %7892 = vst [vmem:[#allocation4 + $0xa08] sm:$0xff] %v7857
  %7893 = vst [vmem:[#allocation4 + $0xa10] sm:$0xff] %v7858
  %7894 = vst.msk [vmem:[#allocation4 + $0xa18] sm:$0xff] %vm6038, %v7842
  %v7895 = vld [vmem:[#allocation5 + $0x18] sm:$0xff]
  %v7896 = vld [vmem:[#allocation5 + $0x20] sm:$0xff]
  %v7897 = vld [vmem:[#allocation5 + $0x28] sm:$0xff]
  %v7898 = vld [vmem:[#allocation5 + $0x30] sm:$0xff]
  %v7899 = vld [vmem:[#allocation5 + $0x38] sm:$0xff]
  %v7900 = vld [vmem:[#allocation5 + $0x40] sm:$0xff]
  %v7901 = vld [vmem:[#allocation5 + $0x48] sm:$0xff]
  %v7902 = vld [vmem:[#allocation5 + $0x50] sm:$0xff]
  %v7903 = vld [vmem:[#allocation5 + $0x58] sm:$0xff]
  %v7904 = vld [vmem:[#allocation5 + $0x80] sm:$0xff]
  %v7905 = vld [vmem:[#allocation5 + $0x88] sm:$0xff]
  %v7906 = vld [vmem:[#allocation5 + $0x90] sm:$0xff]
  %v7907 = vld [vmem:[#allocation5 + $0x98] sm:$0xff]
  %v7908 = vld [vmem:[#allocation5 + $0xa0] sm:$0xff]
  %v7909 = vld [vmem:[#allocation5 + $0xa8] sm:$0xff]
  %v7910 = vld [vmem:[#allocation5 + $0xb0] sm:$0xff]
  %v7911 = vld [vmem:[#allocation5 + $0xb8] sm:$0xff]
  %v7912 = vld [vmem:[#allocation5 + $0xc0] sm:$0xff]
  %7931 = vrot.lane.b32.xlu0 %v7895, 116
  %v7932 = vpop.permute.xlu0 %7931
  %7933 = vrot.lane.b32.xlu0 %v7896, 116
  %v7934 = vpop.permute.xlu0 %7933
  %7935 = vrot.lane.b32.xlu0 %v7897, 116
  %v7936 = vpop.permute.xlu0 %7935
  %7937 = vrot.lane.b32.xlu0 %v7898, 116
  %v7938 = vpop.permute.xlu0 %7937
  %7939 = vrot.lane.b32.xlu0 %v7899, 116
  %v7940 = vpop.permute.xlu0 %7939
  %7941 = vrot.lane.b32.xlu0 %v7900, 116
  %v7942 = vpop.permute.xlu0 %7941
  %7943 = vrot.lane.b32.xlu0 %v7901, 116
  %v7944 = vpop.permute.xlu0 %7943
  %7945 = vrot.lane.b32.xlu0 %v7902, 116
  %v7946 = vpop.permute.xlu0 %7945
  %7947 = vrot.lane.b32.xlu0 %v7903, 116
  %v7948 = vpop.permute.xlu0 %7947
  %7949 = vrot.lane.b32.xlu0 %v7904, 116
  %v7950 = vpop.permute.xlu0 %7949
  %7951 = vrot.lane.b32.xlu0 %v7905, 116
  %v7952 = vpop.permute.xlu0 %7951
  %7953 = vrot.lane.b32.xlu0 %v7906, 116
  %v7954 = vpop.permute.xlu0 %7953
  %7955 = vrot.lane.b32.xlu0 %v7907, 116
  %v7956 = vpop.permute.xlu0 %7955
  %7957 = vrot.lane.b32.xlu0 %v7908, 116
  %v7958 = vpop.permute.xlu0 %7957
  %7959 = vrot.lane.b32.xlu0 %v7909, 116
  %v7960 = vpop.permute.xlu0 %7959
  %7961 = vrot.lane.b32.xlu0 %v7910, 116
  %v7962 = vpop.permute.xlu0 %7961
  %7963 = vrot.lane.b32.xlu0 %v7911, 116
  %v7964 = vpop.permute.xlu0 %7963
  %7965 = vrot.lane.b32.xlu0 %v7912, 116
  %v7966 = vpop.permute.xlu0 %7965
  %v7967 = vsel %vm6369, %v7932, %v7934
  %v7968 = vsel %vm6369, %v7934, %v7936
  %v7969 = vsel %vm6369, %v7936, %v7938
  %v7970 = vsel %vm6369, %v7938, %v7940
  %v7971 = vsel %vm6369, %v7940, %v7942
  %v7972 = vsel %vm6369, %v7942, %v7944
  %v7973 = vsel %vm6369, %v7944, %v7946
  %v7974 = vsel %vm6369, %v7946, %v7948
  %v7975 = vsel %vm6369, %v7950, %v7952
  %v7976 = vsel %vm6369, %v7952, %v7954
  %v7977 = vsel %vm6369, %v7954, %v7956
  %v7978 = vsel %vm6369, %v7956, %v7958
  %v7979 = vsel %vm6369, %v7958, %v7960
  %v7980 = vsel %vm6369, %v7960, %v7962
  %v7981 = vsel %vm6369, %v7962, %v7964
  %v7982 = vsel %vm6369, %v7964, %v7966
  %8001 = vst [vmem:[#allocation4 + $0xa20] sm:$0xff] %v7967
  %8002 = vst [vmem:[#allocation4 + $0xa28] sm:$0xff] %v7968
  %8003 = vst [vmem:[#allocation4 + $0xa30] sm:$0xff] %v7969
  %8004 = vst [vmem:[#allocation4 + $0xa38] sm:$0xff] %v7970
  %8005 = vst [vmem:[#allocation4 + $0xa40] sm:$0xff] %v7971
  %8006 = vst [vmem:[#allocation4 + $0xa48] sm:$0xff] %v7972
  %8007 = vst [vmem:[#allocation4 + $0xa50] sm:$0xff] %v7973
  %8008 = vst [vmem:[#allocation4 + $0xa58] sm:$0xff] %v7974
  %8009 = vst.msk [vmem:[#allocation4 + $0xa60] sm:$0xff] %vm6038, %v7948
  %8010 = vst [vmem:[#allocation4 + $0xa68] sm:$0xff] %v7975
  %8011 = vst [vmem:[#allocation4 + $0xa70] sm:$0xff] %v7976
  %8012 = vst [vmem:[#allocation4 + $0xa78] sm:$0xff] %v7977
  %8013 = vst [vmem:[#allocation4 + $0xa80] sm:$0xff] %v7978
  %8014 = vst [vmem:[#allocation4 + $0xa88] sm:$0xff] %v7979
  %8015 = vst [vmem:[#allocation4 + $0xa90] sm:$0xff] %v7980
  %8016 = vst [vmem:[#allocation4 + $0xa98] sm:$0xff] %v7981
  %8017 = vst [vmem:[#allocation4 + $0xaa0] sm:$0xff] %v7982
  %8018 = vst.msk [vmem:[#allocation4 + $0xaa8] sm:$0xff] %vm6038, %v7966
  %v8019 = vld [vmem:[#allocation5 + $0x18] sm:$0xff]
  %v8020 = vld [vmem:[#allocation5 + $0x20] sm:$0xff]
  %v8021 = vld [vmem:[#allocation5 + $0x28] sm:$0xff]
  %v8022 = vld [vmem:[#allocation5 + $0x30] sm:$0xff]
  %v8023 = vld [vmem:[#allocation5 + $0x38] sm:$0xff]
  %v8024 = vld [vmem:[#allocation5 + $0x40] sm:$0xff]
  %v8025 = vld [vmem:[#allocation5 + $0x48] sm:$0xff]
  %v8026 = vld [vmem:[#allocation5 + $0x50] sm:$0xff]
  %v8027 = vld [vmem:[#allocation5 + $0x58] sm:$0xff]
  %v8028 = vld [vmem:[#allocation5 + $0x80] sm:$0xff]
  %v8029 = vld [vmem:[#allocation5 + $0x88] sm:$0xff]
  %v8030 = vld [vmem:[#allocation5 + $0x90] sm:$0xff]
  %v8031 = vld [vmem:[#allocation5 + $0x98] sm:$0xff]
  %v8032 = vld [vmem:[#allocation5 + $0xa0] sm:$0xff]
  %v8033 = vld [vmem:[#allocation5 + $0xa8] sm:$0xff]
  %v8034 = vld [vmem:[#allocation5 + $0xb0] sm:$0xff]
  %v8035 = vld [vmem:[#allocation5 + $0xb8] sm:$0xff]
  %v8036 = vld [vmem:[#allocation5 + $0xc0] sm:$0xff]
  %8055 = vrot.lane.b32.xlu0 %v8019, 112
  %v8056 = vpop.permute.xlu0 %8055
  %8057 = vrot.lane.b32.xlu0 %v8020, 112
  %v8058 = vpop.permute.xlu0 %8057
  %8059 = vrot.lane.b32.xlu0 %v8021, 112
  %v8060 = vpop.permute.xlu0 %8059
  %8061 = vrot.lane.b32.xlu0 %v8022, 112
  %v8062 = vpop.permute.xlu0 %8061
  %8063 = vrot.lane.b32.xlu0 %v8023, 112
  %v8064 = vpop.permute.xlu0 %8063
  %8065 = vrot.lane.b32.xlu0 %v8024, 112
  %v8066 = vpop.permute.xlu0 %8065
  %8067 = vrot.lane.b32.xlu0 %v8025, 112
  %v8068 = vpop.permute.xlu0 %8067
  %8069 = vrot.lane.b32.xlu0 %v8026, 112
  %v8070 = vpop.permute.xlu0 %8069
  %8071 = vrot.lane.b32.xlu0 %v8027, 112
  %v8072 = vpop.permute.xlu0 %8071
  %8073 = vrot.lane.b32.xlu0 %v8028, 112
  %v8074 = vpop.permute.xlu0 %8073
  %8075 = vrot.lane.b32.xlu0 %v8029, 112
  %v8076 = vpop.permute.xlu0 %8075
  %8077 = vrot.lane.b32.xlu0 %v8030, 112
  %v8078 = vpop.permute.xlu0 %8077
  %8079 = vrot.lane.b32.xlu0 %v8031, 112
  %v8080 = vpop.permute.xlu0 %8079
  %8081 = vrot.lane.b32.xlu0 %v8032, 112
  %v8082 = vpop.permute.xlu0 %8081
  %8083 = vrot.lane.b32.xlu0 %v8033, 112
  %v8084 = vpop.permute.xlu0 %8083
  %8085 = vrot.lane.b32.xlu0 %v8034, 112
  %v8086 = vpop.permute.xlu0 %8085
  %8087 = vrot.lane.b32.xlu0 %v8035, 112
  %v8088 = vpop.permute.xlu0 %8087
  %8089 = vrot.lane.b32.xlu0 %v8036, 112
  %v8090 = vpop.permute.xlu0 %8089
  %v8091 = vsel %vm6494, %v8056, %v8058
  %v8092 = vsel %vm6494, %v8058, %v8060
  %v8093 = vsel %vm6494, %v8060, %v8062
  %v8094 = vsel %vm6494, %v8062, %v8064
  %v8095 = vsel %vm6494, %v8064, %v8066
  %v8096 = vsel %vm6494, %v8066, %v8068
  %v8097 = vsel %vm6494, %v8068, %v8070
  %v8098 = vsel %vm6494, %v8070, %v8072
  %v8099 = vsel %vm6494, %v8074, %v8076
  %v8100 = vsel %vm6494, %v8076, %v8078
  %v8101 = vsel %vm6494, %v8078, %v8080
  %v8102 = vsel %vm6494, %v8080, %v8082
  %v8103 = vsel %vm6494, %v8082, %v8084
  %v8104 = vsel %vm6494, %v8084, %v8086
  %v8105 = vsel %vm6494, %v8086, %v8088
  %v8106 = vsel %vm6494, %v8088, %v8090
  %8125 = vst [vmem:[#allocation4 + $0xab0] sm:$0xff] %v8091
  %8126 = vst [vmem:[#allocation4 + $0xab8] sm:$0xff] %v8092
  %8127 = vst [vmem:[#allocation4 + $0xac0] sm:$0xff] %v8093
  %8128 = vst [vmem:[#allocation4 + $0xac8] sm:$0xff] %v8094
  %8129 = vst [vmem:[#allocation4 + $0xad0] sm:$0xff] %v8095
  %8130 = vst [vmem:[#allocation4 + $0xad8] sm:$0xff] %v8096
  %8131 = vst [vmem:[#allocation4 + $0xae0] sm:$0xff] %v8097
  %8132 = vst [vmem:[#allocation4 + $0xae8] sm:$0xff] %v8098
  %8133 = vst.msk [vmem:[#allocation4 + $0xaf0] sm:$0xff] %vm6038, %v8072
  %8134 = vst [vmem:[#allocation4 + $0xaf8] sm:$0xff] %v8099
  %8135 = vst [vmem:[#allocation4 + $0xb00] sm:$0xff] %v8100
  %8136 = vst [vmem:[#allocation4 + $0xb08] sm:$0xff] %v8101
  %8137 = vst [vmem:[#allocation4 + $0xb10] sm:$0xff] %v8102
  %8138 = vst [vmem:[#allocation4 + $0xb18] sm:$0xff] %v8103
  %8139 = vst [vmem:[#allocation4 + $0xb20] sm:$0xff] %v8104
  %8140 = vst [vmem:[#allocation4 + $0xb28] sm:$0xff] %v8105
  %8141 = vst [vmem:[#allocation4 + $0xb30] sm:$0xff] %v8106
  %8142 = vst.msk [vmem:[#allocation4 + $0xb38] sm:$0xff] %vm6038, %v8090
  %v8143 = vld [vmem:[#allocation5 + $0x20] sm:$0xff]
  %v8144 = vld [vmem:[#allocation5 + $0x28] sm:$0xff]
  %v8145 = vld [vmem:[#allocation5 + $0x30] sm:$0xff]
  %v8146 = vld [vmem:[#allocation5 + $0x38] sm:$0xff]
  %v8147 = vld [vmem:[#allocation5 + $0x40] sm:$0xff]
  %v8148 = vld [vmem:[#allocation5 + $0x48] sm:$0xff]
  %v8149 = vld [vmem:[#allocation5 + $0x50] sm:$0xff]
  %v8150 = vld [vmem:[#allocation5 + $0x58] sm:$0xff]
  %v8151 = vld [vmem:[#allocation5 + $0x60] sm:$0xff]
  %v8152 = vld [vmem:[#allocation5 + $0x88] sm:$0xff]
  %v8153 = vld [vmem:[#allocation5 + $0x90] sm:$0xff]
  %v8154 = vld [vmem:[#allocation5 + $0x98] sm:$0xff]
  %v8155 = vld [vmem:[#allocation5 + $0xa0] sm:$0xff]
  %v8156 = vld [vmem:[#allocation5 + $0xa8] sm:$0xff]
  %v8157 = vld [vmem:[#allocation5 + $0xb0] sm:$0xff]
  %v8158 = vld [vmem:[#allocation5 + $0xb8] sm:$0xff]
  %v8159 = vld [vmem:[#allocation5 + $0xc0] sm:$0xff]
  %v8160 = vld [vmem:[#allocation5 + $0xc8] sm:$0xff]
  %8161 = vst [vmem:[#allocation4 + $0xb40] sm:$0xff] %v8143
  %8162 = vst [vmem:[#allocation4 + $0xb48] sm:$0xff] %v8144
  %8163 = vst [vmem:[#allocation4 + $0xb50] sm:$0xff] %v8145
  %8164 = vst [vmem:[#allocation4 + $0xb58] sm:$0xff] %v8146
  %8165 = vst [vmem:[#allocation4 + $0xb60] sm:$0xff] %v8147
  %8166 = vst [vmem:[#allocation4 + $0xb68] sm:$0xff] %v8148
  %8167 = vst [vmem:[#allocation4 + $0xb70] sm:$0xff] %v8149
  %8168 = vst [vmem:[#allocation4 + $0xb78] sm:$0xff] %v8150
  %8169 = vst.msk [vmem:[#allocation4 + $0xb80] sm:$0xff] %vm6038, %v8151
  %8170 = vst [vmem:[#allocation4 + $0xb88] sm:$0xff] %v8152
  %8171 = vst [vmem:[#allocation4 + $0xb90] sm:$0xff] %v8153
  %8172 = vst [vmem:[#allocation4 + $0xb98] sm:$0xff] %v8154
  %8173 = vst [vmem:[#allocation4 + $0xba0] sm:$0xff] %v8155
  %8174 = vst [vmem:[#allocation4 + $0xba8] sm:$0xff] %v8156
  %8175 = vst [vmem:[#allocation4 + $0xbb0] sm:$0xff] %v8157
  %8176 = vst [vmem:[#allocation4 + $0xbb8] sm:$0xff] %v8158
  %8177 = vst [vmem:[#allocation4 + $0xbc0] sm:$0xff] %v8159
  %8178 = vst.msk [vmem:[#allocation4 + $0xbc8] sm:$0xff] %vm6038, %v8160
  %v8179 = vld [vmem:[#allocation5 + $0x20] sm:$0xff]
  %v8180 = vld [vmem:[#allocation5 + $0x28] sm:$0xff]
  %v8181 = vld [vmem:[#allocation5 + $0x30] sm:$0xff]
  %v8182 = vld [vmem:[#allocation5 + $0x38] sm:$0xff]
  %v8183 = vld [vmem:[#allocation5 + $0x40] sm:$0xff]
  %v8184 = vld [vmem:[#allocation5 + $0x48] sm:$0xff]
  %v8185 = vld [vmem:[#allocation5 + $0x50] sm:$0xff]
  %v8186 = vld [vmem:[#allocation5 + $0x58] sm:$0xff]
  %v8187 = vld [vmem:[#allocation5 + $0x60] sm:$0xff]
  %v8188 = vld [vmem:[#allocation5 + $0x88] sm:$0xff]
  %v8189 = vld [vmem:[#allocation5 + $0x90] sm:$0xff]
  %v8190 = vld [vmem:[#allocation5 + $0x98] sm:$0xff]
  %v8191 = vld [vmem:[#allocation5 + $0xa0] sm:$0xff]
  %v8192 = vld [vmem:[#allocation5 + $0xa8] sm:$0xff]
  %v8193 = vld [vmem:[#allocation5 + $0xb0] sm:$0xff]
  %v8194 = vld [vmem:[#allocation5 + $0xb8] sm:$0xff]
  %v8195 = vld [vmem:[#allocation5 + $0xc0] sm:$0xff]
  %v8196 = vld [vmem:[#allocation5 + $0xc8] sm:$0xff]
  %8215 = vrot.lane.b32.xlu0 %v8179, 124
  %v8216 = vpop.permute.xlu0 %8215
  %8217 = vrot.lane.b32.xlu0 %v8180, 124
  %v8218 = vpop.permute.xlu0 %8217
  %8219 = vrot.lane.b32.xlu0 %v8181, 124
  %v8220 = vpop.permute.xlu0 %8219
  %8221 = vrot.lane.b32.xlu0 %v8182, 124
  %v8222 = vpop.permute.xlu0 %8221
  %8223 = vrot.lane.b32.xlu0 %v8183, 124
  %v8224 = vpop.permute.xlu0 %8223
  %8225 = vrot.lane.b32.xlu0 %v8184, 124
  %v8226 = vpop.permute.xlu0 %8225
  %8227 = vrot.lane.b32.xlu0 %v8185, 124
  %v8228 = vpop.permute.xlu0 %8227
  %8229 = vrot.lane.b32.xlu0 %v8186, 124
  %v8230 = vpop.permute.xlu0 %8229
  %8231 = vrot.lane.b32.xlu0 %v8187, 124
  %v8232 = vpop.permute.xlu0 %8231
  %8233 = vrot.lane.b32.xlu0 %v8188, 124
  %v8234 = vpop.permute.xlu0 %8233
  %8235 = vrot.lane.b32.xlu0 %v8189, 124
  %v8236 = vpop.permute.xlu0 %8235
  %8237 = vrot.lane.b32.xlu0 %v8190, 124
  %v8238 = vpop.permute.xlu0 %8237
  %8239 = vrot.lane.b32.xlu0 %v8191, 124
  %v8240 = vpop.permute.xlu0 %8239
  %8241 = vrot.lane.b32.xlu0 %v8192, 124
  %v8242 = vpop.permute.xlu0 %8241
  %8243 = vrot.lane.b32.xlu0 %v8193, 124
  %v8244 = vpop.permute.xlu0 %8243
  %8245 = vrot.lane.b32.xlu0 %v8194, 124
  %v8246 = vpop.permute.xlu0 %8245
  %8247 = vrot.lane.b32.xlu0 %v8195, 124
  %v8248 = vpop.permute.xlu0 %8247
  %8249 = vrot.lane.b32.xlu0 %v8196, 124
  %v8250 = vpop.permute.xlu0 %8249
  %v8251 = vsel %vm405, %v8216, %v8218
  %v8252 = vsel %vm405, %v8218, %v8220
  %v8253 = vsel %vm405, %v8220, %v8222
  %v8254 = vsel %vm405, %v8222, %v8224
  %v8255 = vsel %vm405, %v8224, %v8226
  %v8256 = vsel %vm405, %v8226, %v8228
  %v8257 = vsel %vm405, %v8228, %v8230
  %v8258 = vsel %vm405, %v8230, %v8232
  %v8259 = vsel %vm405, %v8234, %v8236
  %v8260 = vsel %vm405, %v8236, %v8238
  %v8261 = vsel %vm405, %v8238, %v8240
  %v8262 = vsel %vm405, %v8240, %v8242
  %v8263 = vsel %vm405, %v8242, %v8244
  %v8264 = vsel %vm405, %v8244, %v8246
  %v8265 = vsel %vm405, %v8246, %v8248
  %v8266 = vsel %vm405, %v8248, %v8250
  %8285 = vst [vmem:[#allocation4 + $0xbd0] sm:$0xff] %v8251
  %8286 = vst [vmem:[#allocation4 + $0xbd8] sm:$0xff] %v8252
  %8287 = vst [vmem:[#allocation4 + $0xbe0] sm:$0xff] %v8253
  %8288 = vst [vmem:[#allocation4 + $0xbe8] sm:$0xff] %v8254
  %8289 = vst [vmem:[#allocation4 + $0xbf0] sm:$0xff] %v8255
  %8290 = vst [vmem:[#allocation4 + $0xbf8] sm:$0xff] %v8256
  %8291 = vst [vmem:[#allocation4 + $0xc00] sm:$0xff] %v8257
  %8292 = vst [vmem:[#allocation4 + $0xc08] sm:$0xff] %v8258
  %8293 = vst.msk [vmem:[#allocation4 + $0xc10] sm:$0xff] %vm6038, %v8232
  %8294 = vst [vmem:[#allocation4 + $0xc18] sm:$0xff] %v8259
  %8295 = vst [vmem:[#allocation4 + $0xc20] sm:$0xff] %v8260
  %8296 = vst [vmem:[#allocation4 + $0xc28] sm:$0xff] %v8261
  %8297 = vst [vmem:[#allocation4 + $0xc30] sm:$0xff] %v8262
  %8298 = vst [vmem:[#allocation4 + $0xc38] sm:$0xff] %v8263
  %8299 = vst [vmem:[#allocation4 + $0xc40] sm:$0xff] %v8264
  %8300 = vst [vmem:[#allocation4 + $0xc48] sm:$0xff] %v8265
  %8301 = vst [vmem:[#allocation4 + $0xc50] sm:$0xff] %v8266
  %8302 = vst.msk [vmem:[#allocation4 + $0xc58] sm:$0xff] %vm6038, %v8250
  %v8303 = vld [vmem:[#allocation5 + $0x20] sm:$0xff]
  %v8304 = vld [vmem:[#allocation5 + $0x28] sm:$0xff]
  %v8305 = vld [vmem:[#allocation5 + $0x30] sm:$0xff]
  %v8306 = vld [vmem:[#allocation5 + $0x38] sm:$0xff]
  %v8307 = vld [vmem:[#allocation5 + $0x40] sm:$0xff]
  %v8308 = vld [vmem:[#allocation5 + $0x48] sm:$0xff]
  %v8309 = vld [vmem:[#allocation5 + $0x50] sm:$0xff]
  %v8310 = vld [vmem:[#allocation5 + $0x58] sm:$0xff]
  %v8311 = vld [vmem:[#allocation5 + $0x60] sm:$0xff]
  %v8312 = vld [vmem:[#allocation5 + $0x88] sm:$0xff]
  %v8313 = vld [vmem:[#allocation5 + $0x90] sm:$0xff]
  %v8314 = vld [vmem:[#allocation5 + $0x98] sm:$0xff]
  %v8315 = vld [vmem:[#allocation5 + $0xa0] sm:$0xff]
  %v8316 = vld [vmem:[#allocation5 + $0xa8] sm:$0xff]
  %v8317 = vld [vmem:[#allocation5 + $0xb0] sm:$0xff]
  %v8318 = vld [vmem:[#allocation5 + $0xb8] sm:$0xff]
  %v8319 = vld [vmem:[#allocation5 + $0xc0] sm:$0xff]
  %v8320 = vld [vmem:[#allocation5 + $0xc8] sm:$0xff]
  %8339 = vrot.lane.b32.xlu0 %v8303, 120
  %v8340 = vpop.permute.xlu0 %8339
  %8341 = vrot.lane.b32.xlu0 %v8304, 120
  %v8342 = vpop.permute.xlu0 %8341
  %8343 = vrot.lane.b32.xlu0 %v8305, 120
  %v8344 = vpop.permute.xlu0 %8343
  %8345 = vrot.lane.b32.xlu0 %v8306, 120
  %v8346 = vpop.permute.xlu0 %8345
  %8347 = vrot.lane.b32.xlu0 %v8307, 120
  %v8348 = vpop.permute.xlu0 %8347
  %8349 = vrot.lane.b32.xlu0 %v8308, 120
  %v8350 = vpop.permute.xlu0 %8349
  %8351 = vrot.lane.b32.xlu0 %v8309, 120
  %v8352 = vpop.permute.xlu0 %8351
  %8353 = vrot.lane.b32.xlu0 %v8310, 120
  %v8354 = vpop.permute.xlu0 %8353
  %8355 = vrot.lane.b32.xlu0 %v8311, 120
  %v8356 = vpop.permute.xlu0 %8355
  %8357 = vrot.lane.b32.xlu0 %v8312, 120
  %v8358 = vpop.permute.xlu0 %8357
  %8359 = vrot.lane.b32.xlu0 %v8313, 120
  %v8360 = vpop.permute.xlu0 %8359
  %8361 = vrot.lane.b32.xlu0 %v8314, 120
  %v8362 = vpop.permute.xlu0 %8361
  %8363 = vrot.lane.b32.xlu0 %v8315, 120
  %v8364 = vpop.permute.xlu0 %8363
  %8365 = vrot.lane.b32.xlu0 %v8316, 120
  %v8366 = vpop.permute.xlu0 %8365
  %8367 = vrot.lane.b32.xlu0 %v8317, 120
  %v8368 = vpop.permute.xlu0 %8367
  %8369 = vrot.lane.b32.xlu0 %v8318, 120
  %v8370 = vpop.permute.xlu0 %8369
  %8371 = vrot.lane.b32.xlu0 %v8319, 120
  %v8372 = vpop.permute.xlu0 %8371
  %8373 = vrot.lane.b32.xlu0 %v8320, 120
  %v8374 = vpop.permute.xlu0 %8373
  %v8375 = vsel %vm3599, %v8340, %v8342
  %v8376 = vsel %vm3599, %v8342, %v8344
  %v8377 = vsel %vm3599, %v8344, %v8346
  %v8378 = vsel %vm3599, %v8346, %v8348
  %v8379 = vsel %vm3599, %v8348, %v8350
  %v8380 = vsel %vm3599, %v8350, %v8352
  %v8381 = vsel %vm3599, %v8352, %v8354
  %v8382 = vsel %vm3599, %v8354, %v8356
  %v8383 = vsel %vm3599, %v8358, %v8360
  %v8384 = vsel %vm3599, %v8360, %v8362
  %v8385 = vsel %vm3599, %v8362, %v8364
  %v8386 = vsel %vm3599, %v8364, %v8366
  %v8387 = vsel %vm3599, %v8366, %v8368
  %v8388 = vsel %vm3599, %v8368, %v8370
  %v8389 = vsel %vm3599, %v8370, %v8372
  %v8390 = vsel %vm3599, %v8372, %v8374
  %8409 = vst [vmem:[#allocation4 + $0xc60] sm:$0xff] %v8375
  %8410 = vst [vmem:[#allocation4 + $0xc68] sm:$0xff] %v8376
  %8411 = vst [vmem:[#allocation4 + $0xc70] sm:$0xff] %v8377
  %8412 = vst [vmem:[#allocation4 + $0xc78] sm:$0xff] %v8378
  %8413 = vst [vmem:[#allocation4 + $0xc80] sm:$0xff] %v8379
  %8414 = vst [vmem:[#allocation4 + $0xc88] sm:$0xff] %v8380
  %8415 = vst [vmem:[#allocation4 + $0xc90] sm:$0xff] %v8381
  %8416 = vst [vmem:[#allocation4 + $0xc98] sm:$0xff] %v8382
  %8417 = vst.msk [vmem:[#allocation4 + $0xca0] sm:$0xff] %vm6038, %v8356
  %8418 = vst [vmem:[#allocation4 + $0xca8] sm:$0xff] %v8383
  %8419 = vst [vmem:[#allocation4 + $0xcb0] sm:$0xff] %v8384
  %8420 = vst [vmem:[#allocation4 + $0xcb8] sm:$0xff] %v8385
  %8421 = vst [vmem:[#allocation4 + $0xcc0] sm:$0xff] %v8386
  %8422 = vst [vmem:[#allocation4 + $0xcc8] sm:$0xff] %v8387
  %8423 = vst [vmem:[#allocation4 + $0xcd0] sm:$0xff] %v8388
  %8424 = vst [vmem:[#allocation4 + $0xcd8] sm:$0xff] %v8389
  %8425 = vst [vmem:[#allocation4 + $0xce0] sm:$0xff] %v8390
  %8426 = vst.msk [vmem:[#allocation4 + $0xce8] sm:$0xff] %vm6038, %v8374
  %v8427 = vld [vmem:[#allocation5 + $0x20] sm:$0xff]
  %v8428 = vld [vmem:[#allocation5 + $0x28] sm:$0xff]
  %v8429 = vld [vmem:[#allocation5 + $0x30] sm:$0xff]
  %v8430 = vld [vmem:[#allocation5 + $0x38] sm:$0xff]
  %v8431 = vld [vmem:[#allocation5 + $0x40] sm:$0xff]
  %v8432 = vld [vmem:[#allocation5 + $0x48] sm:$0xff]
  %v8433 = vld [vmem:[#allocation5 + $0x50] sm:$0xff]
  %v8434 = vld [vmem:[#allocation5 + $0x58] sm:$0xff]
  %v8435 = vld [vmem:[#allocation5 + $0x60] sm:$0xff]
  %v8436 = vld [vmem:[#allocation5 + $0x88] sm:$0xff]
  %v8437 = vld [vmem:[#allocation5 + $0x90] sm:$0xff]
  %v8438 = vld [vmem:[#allocation5 + $0x98] sm:$0xff]
  %v8439 = vld [vmem:[#allocation5 + $0xa0] sm:$0xff]
  %v8440 = vld [vmem:[#allocation5 + $0xa8] sm:$0xff]
  %v8441 = vld [vmem:[#allocation5 + $0xb0] sm:$0xff]
  %v8442 = vld [vmem:[#allocation5 + $0xb8] sm:$0xff]
  %v8443 = vld [vmem:[#allocation5 + $0xc0] sm:$0xff]
  %v8444 = vld [vmem:[#allocation5 + $0xc8] sm:$0xff]
  %8463 = vrot.lane.b32.xlu0 %v8427, 116
  %v8464 = vpop.permute.xlu0 %8463
  %8465 = vrot.lane.b32.xlu0 %v8428, 116
  %v8466 = vpop.permute.xlu0 %8465
  %8467 = vrot.lane.b32.xlu0 %v8429, 116
  %v8468 = vpop.permute.xlu0 %8467
  %8469 = vrot.lane.b32.xlu0 %v8430, 116
  %v8470 = vpop.permute.xlu0 %8469
  %8471 = vrot.lane.b32.xlu0 %v8431, 116
  %v8472 = vpop.permute.xlu0 %8471
  %8473 = vrot.lane.b32.xlu0 %v8432, 116
  %v8474 = vpop.permute.xlu0 %8473
  %8475 = vrot.lane.b32.xlu0 %v8433, 116
  %v8476 = vpop.permute.xlu0 %8475
  %8477 = vrot.lane.b32.xlu0 %v8434, 116
  %v8478 = vpop.permute.xlu0 %8477
  %8479 = vrot.lane.b32.xlu0 %v8435, 116
  %v8480 = vpop.permute.xlu0 %8479
  %8481 = vrot.lane.b32.xlu0 %v8436, 116
  %v8482 = vpop.permute.xlu0 %8481
  %8483 = vrot.lane.b32.xlu0 %v8437, 116
  %v8484 = vpop.permute.xlu0 %8483
  %8485 = vrot.lane.b32.xlu0 %v8438, 116
  %v8486 = vpop.permute.xlu0 %8485
  %8487 = vrot.lane.b32.xlu0 %v8439, 116
  %v8488 = vpop.permute.xlu0 %8487
  %8489 = vrot.lane.b32.xlu0 %v8440, 116
  %v8490 = vpop.permute.xlu0 %8489
  %8491 = vrot.lane.b32.xlu0 %v8441, 116
  %v8492 = vpop.permute.xlu0 %8491
  %8493 = vrot.lane.b32.xlu0 %v8442, 116
  %v8494 = vpop.permute.xlu0 %8493
  %8495 = vrot.lane.b32.xlu0 %v8443, 116
  %v8496 = vpop.permute.xlu0 %8495
  %8497 = vrot.lane.b32.xlu0 %v8444, 116
  %v8498 = vpop.permute.xlu0 %8497
  %v8499 = vsel %vm6369, %v8464, %v8466
  %v8500 = vsel %vm6369, %v8466, %v8468
  %v8501 = vsel %vm6369, %v8468, %v8470
  %v8502 = vsel %vm6369, %v8470, %v8472
  %v8503 = vsel %vm6369, %v8472, %v8474
  %v8504 = vsel %vm6369, %v8474, %v8476
  %v8505 = vsel %vm6369, %v8476, %v8478
  %v8506 = vsel %vm6369, %v8478, %v8480
  %v8507 = vsel %vm6369, %v8482, %v8484
  %v8508 = vsel %vm6369, %v8484, %v8486
  %v8509 = vsel %vm6369, %v8486, %v8488
  %v8510 = vsel %vm6369, %v8488, %v8490
  %v8511 = vsel %vm6369, %v8490, %v8492
  %v8512 = vsel %vm6369, %v8492, %v8494
  %v8513 = vsel %vm6369, %v8494, %v8496
  %v8514 = vsel %vm6369, %v8496, %v8498
  %8533 = vst [vmem:[#allocation4 + $0xcf0] sm:$0xff] %v8499
  %8534 = vst [vmem:[#allocation4 + $0xcf8] sm:$0xff] %v8500
  %8535 = vst [vmem:[#allocation4 + $0xd00] sm:$0xff] %v8501
  %8536 = vst [vmem:[#allocation4 + $0xd08] sm:$0xff] %v8502
  %8537 = vst [vmem:[#allocation4 + $0xd10] sm:$0xff] %v8503
  %8538 = vst [vmem:[#allocation4 + $0xd18] sm:$0xff] %v8504
  %8539 = vst [vmem:[#allocation4 + $0xd20] sm:$0xff] %v8505
  %8540 = vst [vmem:[#allocation4 + $0xd28] sm:$0xff] %v8506
  %8541 = vst.msk [vmem:[#allocation4 + $0xd30] sm:$0xff] %vm6038, %v8480
  %8542 = vst [vmem:[#allocation4 + $0xd38] sm:$0xff] %v8507
  %8543 = vst [vmem:[#allocation4 + $0xd40] sm:$0xff] %v8508
  %8544 = vst [vmem:[#allocation4 + $0xd48] sm:$0xff] %v8509
  %8545 = vst [vmem:[#allocation4 + $0xd50] sm:$0xff] %v8510
  %8546 = vst [vmem:[#allocation4 + $0xd58] sm:$0xff] %v8511
  %8547 = vst [vmem:[#allocation4 + $0xd60] sm:$0xff] %v8512
  %8548 = vst [vmem:[#allocation4 + $0xd68] sm:$0xff] %v8513
  %8549 = vst [vmem:[#allocation4 + $0xd70] sm:$0xff] %v8514
  %8550 = vst.msk [vmem:[#allocation4 + $0xd78] sm:$0xff] %vm6038, %v8498
  %v8551 = vld [vmem:[#allocation5 + $0x20] sm:$0xff]
  %v8552 = vld [vmem:[#allocation5 + $0x28] sm:$0xff]
  %v8553 = vld [vmem:[#allocation5 + $0x30] sm:$0xff]
  %v8554 = vld [vmem:[#allocation5 + $0x38] sm:$0xff]
  %v8555 = vld [vmem:[#allocation5 + $0x40] sm:$0xff]
  %v8556 = vld [vmem:[#allocation5 + $0x48] sm:$0xff]
  %v8557 = vld [vmem:[#allocation5 + $0x50] sm:$0xff]
  %v8558 = vld [vmem:[#allocation5 + $0x58] sm:$0xff]
  %v8559 = vld [vmem:[#allocation5 + $0x60] sm:$0xff]
  %v8560 = vld [vmem:[#allocation5 + $0x88] sm:$0xff]
  %v8561 = vld [vmem:[#allocation5 + $0x90] sm:$0xff]
  %v8562 = vld [vmem:[#allocation5 + $0x98] sm:$0xff]
  %v8563 = vld [vmem:[#allocation5 + $0xa0] sm:$0xff]
  %v8564 = vld [vmem:[#allocation5 + $0xa8] sm:$0xff]
  %v8565 = vld [vmem:[#allocation5 + $0xb0] sm:$0xff]
  %v8566 = vld [vmem:[#allocation5 + $0xb8] sm:$0xff]
  %v8567 = vld [vmem:[#allocation5 + $0xc0] sm:$0xff]
  %v8568 = vld [vmem:[#allocation5 + $0xc8] sm:$0xff]
  %8587 = vrot.lane.b32.xlu0 %v8551, 112
  %v8588 = vpop.permute.xlu0 %8587
  %8589 = vrot.lane.b32.xlu0 %v8552, 112
  %v8590 = vpop.permute.xlu0 %8589
  %8591 = vrot.lane.b32.xlu0 %v8553, 112
  %v8592 = vpop.permute.xlu0 %8591
  %8593 = vrot.lane.b32.xlu0 %v8554, 112
  %v8594 = vpop.permute.xlu0 %8593
  %8595 = vrot.lane.b32.xlu0 %v8555, 112
  %v8596 = vpop.permute.xlu0 %8595
  %8597 = vrot.lane.b32.xlu0 %v8556, 112
  %v8598 = vpop.permute.xlu0 %8597
  %8599 = vrot.lane.b32.xlu0 %v8557, 112
  %v8600 = vpop.permute.xlu0 %8599
  %8601 = vrot.lane.b32.xlu0 %v8558, 112
  %v8602 = vpop.permute.xlu0 %8601
  %8603 = vrot.lane.b32.xlu0 %v8559, 112
  %v8604 = vpop.permute.xlu0 %8603
  %8605 = vrot.lane.b32.xlu0 %v8560, 112
  %v8606 = vpop.permute.xlu0 %8605
  %8607 = vrot.lane.b32.xlu0 %v8561, 112
  %v8608 = vpop.permute.xlu0 %8607
  %8609 = vrot.lane.b32.xlu0 %v8562, 112
  %v8610 = vpop.permute.xlu0 %8609
  %8611 = vrot.lane.b32.xlu0 %v8563, 112
  %v8612 = vpop.permute.xlu0 %8611
  %8613 = vrot.lane.b32.xlu0 %v8564, 112
  %v8614 = vpop.permute.xlu0 %8613
  %8615 = vrot.lane.b32.xlu0 %v8565, 112
  %v8616 = vpop.permute.xlu0 %8615
  %8617 = vrot.lane.b32.xlu0 %v8566, 112
  %v8618 = vpop.permute.xlu0 %8617
  %8619 = vrot.lane.b32.xlu0 %v8567, 112
  %v8620 = vpop.permute.xlu0 %8619
  %8621 = vrot.lane.b32.xlu0 %v8568, 112
  %v8622 = vpop.permute.xlu0 %8621
  %v8623 = vsel %vm6494, %v8588, %v8590
  %v8624 = vsel %vm6494, %v8590, %v8592
  %v8625 = vsel %vm6494, %v8592, %v8594
  %v8626 = vsel %vm6494, %v8594, %v8596
  %v8627 = vsel %vm6494, %v8596, %v8598
  %v8628 = vsel %vm6494, %v8598, %v8600
  %v8629 = vsel %vm6494, %v8600, %v8602
  %v8630 = vsel %vm6494, %v8602, %v8604
  %v8631 = vsel %vm6494, %v8606, %v8608
  %v8632 = vsel %vm6494, %v8608, %v8610
  %v8633 = vsel %vm6494, %v8610, %v8612
  %v8634 = vsel %vm6494, %v8612, %v8614
  %v8635 = vsel %vm6494, %v8614, %v8616
  %v8636 = vsel %vm6494, %v8616, %v8618
  %v8637 = vsel %vm6494, %v8618, %v8620
  %v8638 = vsel %vm6494, %v8620, %v8622
  %8657 = vst [vmem:[#allocation4 + $0xd80] sm:$0xff] %v8623
  %8658 = vst [vmem:[#allocation4 + $0xd88] sm:$0xff] %v8624
  %8659 = vst [vmem:[#allocation4 + $0xd90] sm:$0xff] %v8625
  %8660 = vst [vmem:[#allocation4 + $0xd98] sm:$0xff] %v8626
  %8661 = vst [vmem:[#allocation4 + $0xda0] sm:$0xff] %v8627
  %8662 = vst [vmem:[#allocation4 + $0xda8] sm:$0xff] %v8628
  %8663 = vst [vmem:[#allocation4 + $0xdb0] sm:$0xff] %v8629
  %8664 = vst [vmem:[#allocation4 + $0xdb8] sm:$0xff] %v8630
  %8665 = vst.msk [vmem:[#allocation4 + $0xdc0] sm:$0xff] %vm6038, %v8604
  %8666 = vst [vmem:[#allocation4 + $0xdc8] sm:$0xff] %v8631
  %8667 = vst [vmem:[#allocation4 + $0xdd0] sm:$0xff] %v8632
  %8668 = vst [vmem:[#allocation4 + $0xdd8] sm:$0xff] %v8633
  %8669 = vst [vmem:[#allocation4 + $0xde0] sm:$0xff] %v8634
  %8670 = vst [vmem:[#allocation4 + $0xde8] sm:$0xff] %v8635
  %8671 = vst [vmem:[#allocation4 + $0xdf0] sm:$0xff] %v8636
  %8672 = vst [vmem:[#allocation4 + $0xdf8] sm:$0xff] %v8637
  %8673 = vst [vmem:[#allocation4 + $0xe00] sm:$0xff] %v8638
  %8674 = vst.msk [vmem:[#allocation4 + $0xe08] sm:$0xff] %vm6038, %v8622
  %v8675 = vld [vmem:[%s6] sm:$0xff]
  %v8676 = vld [vmem:[%s6 + $0x8] sm:$0xff]
  %v8677 = vld [vmem:[%s6 + $0x10] sm:$0xff]
  %v8678 = vld [vmem:[%s6 + $0x18] sm:$0xff]
  %v8679 = vld [vmem:[%s6 + $0x20] sm:$0x3]
  %v8680 = vld [vmem:[%s6 + $0x28] sm:$0x3]
  %v8681 = vld [vmem:[%s6 + $0x30] sm:$0x3]
  %v8682 = vld [vmem:[%s6 + $0x38] sm:$0x3]
  %v8683 = vld [vmem:[#allocation4] sm:$0xff]
  %v8684 = vld [vmem:[#allocation4 + $0x8] sm:$0xff]
  %v8685 = vld [vmem:[#allocation4 + $0x10] sm:$0xff]
  %v8686 = vld [vmem:[#allocation4 + $0x18] sm:$0xff]
  %v8687 = vld [vmem:[#allocation4 + $0x20] sm:$0xff]
  %v8688 = vld [vmem:[#allocation4 + $0x28] sm:$0xff]
  %v8689 = vld [vmem:[#allocation4 + $0x30] sm:$0xff]
  %v8690 = vld [vmem:[#allocation4 + $0x38] sm:$0xff]
  %v8691 = vld [vmem:[#allocation4 + $0x40] sm:$0xff]
  %v8692 = vld [vmem:[#allocation4 + $0x48] sm:$0xff]
  %v8693 = vld [vmem:[#allocation4 + $0x50] sm:$0xff]
  %v8694 = vld [vmem:[#allocation4 + $0x58] sm:$0xff]
  %v8695 = vld [vmem:[#allocation4 + $0x60] sm:$0xff]
  %v8696 = vld [vmem:[#allocation4 + $0x68] sm:$0xff]
  %v8697 = vld [vmem:[#allocation4 + $0x70] sm:$0xff]
  %v8698 = vld [vmem:[#allocation4 + $0x78] sm:$0xff]
  %v8699 = vld [vmem:[#allocation4 + $0x80] sm:$0xff]
  %v8700 = vld [vmem:[#allocation4 + $0x88] sm:$0xff]
  %v8701 = vld [vmem:[#allocation4 + $0x90] sm:$0xff]
  %v8702 = vld [vmem:[#allocation4 + $0x98] sm:$0xff]
  %v8703 = vld [vmem:[#allocation4 + $0xa0] sm:$0xff]
  %v8704 = vld [vmem:[#allocation4 + $0xa8] sm:$0xff]
  %v8705 = vld [vmem:[#allocation4 + $0xb0] sm:$0xff]
  %v8706 = vld [vmem:[#allocation4 + $0xb8] sm:$0xff]
  %v8707 = vld [vmem:[#allocation4 + $0xc0] sm:$0xff]
  %v8708 = vld [vmem:[#allocation4 + $0xc8] sm:$0xff]
  %v8709 = vld [vmem:[#allocation4 + $0xd0] sm:$0xff]
  %v8710 = vld [vmem:[#allocation4 + $0xd8] sm:$0xff]
  %v8711 = vld [vmem:[#allocation4 + $0xe0] sm:$0xff]
  %v8712 = vld [vmem:[#allocation4 + $0xe8] sm:$0xff]
  %v8713 = vld [vmem:[#allocation4 + $0xf0] sm:$0xff]
  %v8714 = vld [vmem:[#allocation4 + $0xf8] sm:$0xff]
  %v8715 = vld [vmem:[#allocation4 + $0x100] sm:$0xff]
  %v8716 = vld [vmem:[#allocation4 + $0x108] sm:$0xff]
  %v8717 = vld [vmem:[#allocation4 + $0x110] sm:$0xff]
  %v8718 = vld [vmem:[#allocation4 + $0x118] sm:$0xff]
  %v8719 = vld [vmem:[#allocation4 + $0x120] sm:$0xff]
  %v8720 = vld [vmem:[#allocation4 + $0x128] sm:$0xff]
  %v8721 = vld [vmem:[#allocation4 + $0x130] sm:$0xff]
  %v8722 = vld [vmem:[#allocation4 + $0x138] sm:$0xff]
  %v8723 = vld [vmem:[#allocation4 + $0x140] sm:$0xff]
  %v8724 = vld [vmem:[#allocation4 + $0x148] sm:$0xff]
  %v8725 = vld [vmem:[#allocation4 + $0x150] sm:$0xff]
  %v8726 = vld [vmem:[#allocation4 + $0x158] sm:$0xff]
  %v8727 = vld [vmem:[#allocation4 + $0x160] sm:$0xff]
  %v8728 = vld [vmem:[#allocation4 + $0x168] sm:$0xff]
  %v8729 = vld [vmem:[#allocation4 + $0x170] sm:$0xff]
  %v8730 = vld [vmem:[#allocation4 + $0x178] sm:$0xff]
  %v8731 = vld [vmem:[#allocation4 + $0x180] sm:$0xff]
  %v8732 = vld [vmem:[#allocation4 + $0x188] sm:$0xff]
  %v8733 = vld [vmem:[#allocation4 + $0x190] sm:$0xff]
  %v8734 = vld [vmem:[#allocation4 + $0x198] sm:$0xff]
  %v8735 = vld [vmem:[#allocation4 + $0x1a0] sm:$0xff]
  %v8736 = vld [vmem:[#allocation4 + $0x1a8] sm:$0xff]
  %v8737 = vld [vmem:[#allocation4 + $0x1b0] sm:$0xff]
  %v8738 = vld [vmem:[#allocation4 + $0x1b8] sm:$0xff]
  %v8739 = vld [vmem:[#allocation4 + $0x1c0] sm:$0xff]
  %v8740 = vld [vmem:[#allocation4 + $0x1c8] sm:$0xff]
  %v8741 = vld [vmem:[#allocation4 + $0x1d0] sm:$0xff]
  %v8742 = vld [vmem:[#allocation4 + $0x1d8] sm:$0xff]
  %v8743 = vld [vmem:[#allocation4 + $0x1e0] sm:$0xff]
  %v8744 = vld [vmem:[#allocation4 + $0x1e8] sm:$0xff]
  %v8745 = vld [vmem:[#allocation4 + $0x1f0] sm:$0xff]
  %v8746 = vld [vmem:[#allocation4 + $0x1f8] sm:$0xff]
  %v8747 = vld [vmem:[#allocation4 + $0x200] sm:$0xff]
  %v8748 = vld [vmem:[#allocation4 + $0x208] sm:$0xff]
  %v8749 = vld [vmem:[#allocation4 + $0x210] sm:$0xff]
  %v8750 = vld [vmem:[#allocation4 + $0x218] sm:$0xff]
  %v8751 = vld [vmem:[#allocation4 + $0x220] sm:$0xff]
  %v8752 = vld [vmem:[#allocation4 + $0x228] sm:$0xff]
  %v8753 = vld [vmem:[#allocation4 + $0x230] sm:$0xff]
  %v8754 = vld [vmem:[#allocation4 + $0x238] sm:$0xff]
  %v8755 = vld [vmem:[#allocation4 + $0x240] sm:$0xff]
  %v8756 = vld [vmem:[#allocation4 + $0x248] sm:$0xff]
  %v8757 = vld [vmem:[#allocation4 + $0x250] sm:$0xff]
  %v8758 = vld [vmem:[#allocation4 + $0x258] sm:$0xff]
  %v8759 = vld [vmem:[#allocation4 + $0x260] sm:$0xff]
  %v8760 = vld [vmem:[#allocation4 + $0x268] sm:$0xff]
  %v8761 = vld [vmem:[#allocation4 + $0x270] sm:$0xff]
  %v8762 = vld [vmem:[#allocation4 + $0x278] sm:$0xff]
  %v8763 = vld [vmem:[#allocation4 + $0x280] sm:$0xff]
  %v8764 = vld [vmem:[#allocation4 + $0x288] sm:$0xff]
  %v8765 = vld [vmem:[#allocation4 + $0x290] sm:$0xff]
  %v8766 = vld [vmem:[#allocation4 + $0x298] sm:$0xff]
  %v8767 = vld [vmem:[#allocation4 + $0x2a0] sm:$0xff]
  %v8768 = vld [vmem:[#allocation4 + $0x2a8] sm:$0xff]
  %v8769 = vld [vmem:[#allocation4 + $0x2b0] sm:$0xff]
  %v8770 = vld [vmem:[#allocation4 + $0x2b8] sm:$0xff]
  %v8771 = vld [vmem:[#allocation4 + $0x2c0] sm:$0xff]
  %v8772 = vld [vmem:[#allocation4 + $0x2c8] sm:$0xff]
  %v8773 = vld [vmem:[#allocation4 + $0x2d0] sm:$0xff]
  %v8774 = vld [vmem:[#allocation4 + $0x2d8] sm:$0xff]
  %v8775 = vld [vmem:[#allocation4 + $0x2e0] sm:$0xff]
  %v8776 = vld [vmem:[#allocation4 + $0x2e8] sm:$0xff]
  %v8777 = vld [vmem:[#allocation4 + $0x2f0] sm:$0xff]
  %v8778 = vld [vmem:[#allocation4 + $0x2f8] sm:$0xff]
  %v8779 = vld [vmem:[#allocation4 + $0x300] sm:$0xff]
  %v8780 = vld [vmem:[#allocation4 + $0x308] sm:$0xff]
  %v8781 = vld [vmem:[#allocation4 + $0x310] sm:$0xff]
  %v8782 = vld [vmem:[#allocation4 + $0x318] sm:$0xff]
  %v8783 = vld [vmem:[#allocation4 + $0x320] sm:$0xff]
  %v8784 = vld [vmem:[#allocation4 + $0x328] sm:$0xff]
  %v8785 = vld [vmem:[#allocation4 + $0x330] sm:$0xff]
  %v8786 = vld [vmem:[#allocation4 + $0x338] sm:$0xff]
  %v8787 = vld [vmem:[#allocation4 + $0x340] sm:$0xff]
  %v8788 = vld [vmem:[#allocation4 + $0x348] sm:$0xff]
  %v8789 = vld [vmem:[#allocation4 + $0x350] sm:$0xff]
  %v8790 = vld [vmem:[#allocation4 + $0x358] sm:$0xff]
  %v8791 = vld [vmem:[#allocation4 + $0x360] sm:$0xff]
  %v8792 = vld [vmem:[#allocation4 + $0x368] sm:$0xff]
  %v8793 = vld [vmem:[#allocation4 + $0x370] sm:$0xff]
  %v8794 = vld [vmem:[#allocation4 + $0x378] sm:$0xff]
  %v8795 = vld [vmem:[#allocation4 + $0x380] sm:$0xff]
  %v8796 = vld [vmem:[#allocation4 + $0x388] sm:$0xff]
  %v8797 = vld [vmem:[#allocation4 + $0x390] sm:$0xff]
  %v8798 = vld [vmem:[#allocation4 + $0x398] sm:$0xff]
  %v8799 = vld [vmem:[#allocation4 + $0x3a0] sm:$0xff]
  %v8800 = vld [vmem:[#allocation4 + $0x3a8] sm:$0xff]
  %v8801 = vld [vmem:[#allocation4 + $0x3b0] sm:$0xff]
  %v8802 = vld [vmem:[#allocation4 + $0x3b8] sm:$0xff]
  %v8803 = vld [vmem:[#allocation4 + $0x3c0] sm:$0xff]
  %v8804 = vld [vmem:[#allocation4 + $0x3c8] sm:$0xff]
  %v8805 = vld [vmem:[#allocation4 + $0x3d0] sm:$0xff]
  %v8806 = vld [vmem:[#allocation4 + $0x3d8] sm:$0xff]
  %v8807 = vld [vmem:[#allocation4 + $0x3e0] sm:$0xff]
  %v8808 = vld [vmem:[#allocation4 + $0x3e8] sm:$0xff]
  %v8809 = vld [vmem:[#allocation4 + $0x3f0] sm:$0xff]
  %v8810 = vld [vmem:[#allocation4 + $0x3f8] sm:$0xff]
  %v8811 = vld [vmem:[#allocation4 + $0x400] sm:$0xff]
  %v8812 = vld [vmem:[#allocation4 + $0x408] sm:$0xff]
  %v8813 = vld [vmem:[#allocation4 + $0x410] sm:$0xff]
  %v8814 = vld [vmem:[#allocation4 + $0x418] sm:$0xff]
  %v8815 = vld [vmem:[#allocation4 + $0x420] sm:$0xff]
  %v8816 = vld [vmem:[#allocation4 + $0x428] sm:$0xff]
  %v8817 = vld [vmem:[#allocation4 + $0x430] sm:$0xff]
  %v8818 = vld [vmem:[#allocation4 + $0x438] sm:$0xff]
  %v8819 = vld [vmem:[#allocation4 + $0x440] sm:$0xff]
  %v8820 = vld [vmem:[#allocation4 + $0x448] sm:$0xff]
  %v8821 = vld [vmem:[#allocation4 + $0x450] sm:$0xff]
  %v8822 = vld [vmem:[#allocation4 + $0x458] sm:$0xff]
  %v8823 = vld [vmem:[#allocation4 + $0x460] sm:$0xff]
  %v8824 = vld [vmem:[#allocation4 + $0x468] sm:$0xff]
  %v8825 = vld [vmem:[#allocation4 + $0x470] sm:$0xff]
  %v8826 = vld [vmem:[#allocation4 + $0x478] sm:$0xff]
  %v8827 = vld [vmem:[#allocation4 + $0x480] sm:$0xff]
  %v8828 = vld [vmem:[#allocation4 + $0x488] sm:$0xff]
  %v8829 = vld [vmem:[#allocation4 + $0x490] sm:$0xff]
  %v8830 = vld [vmem:[#allocation4 + $0x498] sm:$0xff]
  %v8831 = vld [vmem:[#allocation4 + $0x4a0] sm:$0xff]
  %v8832 = vld [vmem:[#allocation4 + $0x4a8] sm:$0xff]
  %v8833 = vld [vmem:[#allocation4 + $0x4b0] sm:$0xff]
  %v8834 = vld [vmem:[#allocation4 + $0x4b8] sm:$0xff]
  %v8835 = vld [vmem:[#allocation4 + $0x4c0] sm:$0xff]
  %v8836 = vld [vmem:[#allocation4 + $0x4c8] sm:$0xff]
  %v8837 = vld [vmem:[#allocation4 + $0x4d0] sm:$0xff]
  %v8838 = vld [vmem:[#allocation4 + $0x4d8] sm:$0xff]
  %v8839 = vld [vmem:[#allocation4 + $0x4e0] sm:$0xff]
  %v8840 = vld [vmem:[#allocation4 + $0x4e8] sm:$0xff]
  %v8841 = vld [vmem:[#allocation4 + $0x4f0] sm:$0xff]
  %v8842 = vld [vmem:[#allocation4 + $0x4f8] sm:$0xff]
  %v8843 = vld [vmem:[#allocation4 + $0x500] sm:$0xff]
  %v8844 = vld [vmem:[#allocation4 + $0x508] sm:$0xff]
  %v8845 = vld [vmem:[#allocation4 + $0x510] sm:$0xff]
  %v8846 = vld [vmem:[#allocation4 + $0x518] sm:$0xff]
  %v8847 = vld [vmem:[#allocation4 + $0x520] sm:$0xff]
  %v8848 = vld [vmem:[#allocation4 + $0x528] sm:$0xff]
  %v8849 = vld [vmem:[#allocation4 + $0x530] sm:$0xff]
  %v8850 = vld [vmem:[#allocation4 + $0x538] sm:$0xff]
  %v8851 = vld [vmem:[#allocation4 + $0x540] sm:$0xff]
  %v8852 = vld [vmem:[#allocation4 + $0x548] sm:$0xff]
  %v8853 = vld [vmem:[#allocation4 + $0x550] sm:$0xff]
  %v8854 = vld [vmem:[#allocation4 + $0x558] sm:$0xff]
  %v8855 = vld [vmem:[#allocation4 + $0x560] sm:$0xff]
  %v8856 = vld [vmem:[#allocation4 + $0x568] sm:$0xff]
  %v8857 = vld [vmem:[#allocation4 + $0x570] sm:$0xff]
  %v8858 = vld [vmem:[#allocation4 + $0x578] sm:$0xff]
  %v8859 = vld [vmem:[#allocation4 + $0x580] sm:$0xff]
  %v8860 = vld [vmem:[#allocation4 + $0x588] sm:$0xff]
  %v8861 = vld [vmem:[#allocation4 + $0x590] sm:$0xff]
  %v8862 = vld [vmem:[#allocation4 + $0x598] sm:$0xff]
  %v8863 = vld [vmem:[#allocation4 + $0x5a0] sm:$0xff]
  %v8864 = vld [vmem:[#allocation4 + $0x5a8] sm:$0xff]
  %v8865 = vld [vmem:[#allocation4 + $0x5b0] sm:$0xff]
  %v8866 = vld [vmem:[#allocation4 + $0x5b8] sm:$0xff]
  %v8867 = vld [vmem:[#allocation4 + $0x5c0] sm:$0xff]
  %v8868 = vld [vmem:[#allocation4 + $0x5c8] sm:$0xff]
  %v8869 = vld [vmem:[#allocation4 + $0x5d0] sm:$0xff]
  %v8870 = vld [vmem:[#allocation4 + $0x5d8] sm:$0xff]
  %v8871 = vld [vmem:[#allocation4 + $0x5e0] sm:$0xff]
  %v8872 = vld [vmem:[#allocation4 + $0x5e8] sm:$0xff]
  %v8873 = vld [vmem:[#allocation4 + $0x5f0] sm:$0xff]
  %v8874 = vld [vmem:[#allocation4 + $0x5f8] sm:$0xff]
  %v8875 = vld [vmem:[#allocation4 + $0x600] sm:$0xff]
  %v8876 = vld [vmem:[#allocation4 + $0x608] sm:$0xff]
  %v8877 = vld [vmem:[#allocation4 + $0x610] sm:$0xff]
  %v8878 = vld [vmem:[#allocation4 + $0x618] sm:$0xff]
  %v8879 = vld [vmem:[#allocation4 + $0x620] sm:$0xff]
  %v8880 = vld [vmem:[#allocation4 + $0x628] sm:$0xff]
  %v8881 = vld [vmem:[#allocation4 + $0x630] sm:$0xff]
  %v8882 = vld [vmem:[#allocation4 + $0x638] sm:$0xff]
  %v8883 = vld [vmem:[#allocation4 + $0x640] sm:$0xff]
  %v8884 = vld [vmem:[#allocation4 + $0x648] sm:$0xff]
  %v8885 = vld [vmem:[#allocation4 + $0x650] sm:$0xff]
  %v8886 = vld [vmem:[#allocation4 + $0x658] sm:$0xff]
  %v8887 = vld [vmem:[#allocation4 + $0x660] sm:$0xff]
  %v8888 = vld [vmem:[#allocation4 + $0x668] sm:$0xff]
  %v8889 = vld [vmem:[#allocation4 + $0x670] sm:$0xff]
  %v8890 = vld [vmem:[#allocation4 + $0x678] sm:$0xff]
  %v8891 = vld [vmem:[#allocation4 + $0x680] sm:$0xff]
  %v8892 = vld [vmem:[#allocation4 + $0x688] sm:$0xff]
  %v8893 = vld [vmem:[#allocation4 + $0x690] sm:$0xff]
  %v8894 = vld [vmem:[#allocation4 + $0x698] sm:$0xff]
  %v8895 = vld [vmem:[#allocation4 + $0x6a0] sm:$0xff]
  %v8896 = vld [vmem:[#allocation4 + $0x6a8] sm:$0xff]
  %v8897 = vld [vmem:[#allocation4 + $0x6b0] sm:$0xff]
  %v8898 = vld [vmem:[#allocation4 + $0x6b8] sm:$0xff]
  %v8899 = vld [vmem:[#allocation4 + $0x6c0] sm:$0xff]
  %v8900 = vld [vmem:[#allocation4 + $0x6c8] sm:$0xff]
  %v8901 = vld [vmem:[#allocation4 + $0x6d0] sm:$0xff]
  %v8902 = vld [vmem:[#allocation4 + $0x6d8] sm:$0xff]
  %v8903 = vld [vmem:[#allocation4 + $0x6e0] sm:$0xff]
  %v8904 = vld [vmem:[#allocation4 + $0x6e8] sm:$0xff]
  %v8905 = vld [vmem:[#allocation4 + $0x6f0] sm:$0xff]
  %v8906 = vld [vmem:[#allocation4 + $0x6f8] sm:$0xff]
  %v8907 = vld [vmem:[#allocation4 + $0x700] sm:$0xff]
  %v8908 = vld [vmem:[#allocation4 + $0x708] sm:$0xff]
  %v8909 = vld [vmem:[#allocation4 + $0x710] sm:$0xff]
  %v8910 = vld [vmem:[#allocation4 + $0x718] sm:$0xff]
  %v8911 = vld [vmem:[#allocation4 + $0x720] sm:$0xff]
  %v8912 = vld [vmem:[#allocation4 + $0x728] sm:$0xff]
  %v8913 = vld [vmem:[#allocation4 + $0x730] sm:$0xff]
  %v8914 = vld [vmem:[#allocation4 + $0x738] sm:$0xff]
  %v8915 = vld [vmem:[#allocation4 + $0x740] sm:$0xff]
  %v8916 = vld [vmem:[#allocation4 + $0x748] sm:$0xff]
  %v8917 = vld [vmem:[#allocation4 + $0x750] sm:$0xff]
  %v8918 = vld [vmem:[#allocation4 + $0x758] sm:$0xff]
  %v8919 = vld [vmem:[#allocation4 + $0x760] sm:$0xff]
  %v8920 = vld [vmem:[#allocation4 + $0x768] sm:$0xff]
  %v8921 = vld [vmem:[#allocation4 + $0x770] sm:$0xff]
  %v8922 = vld [vmem:[#allocation4 + $0x778] sm:$0xff]
  %v8923 = vld [vmem:[#allocation4 + $0x780] sm:$0xff]
  %v8924 = vld [vmem:[#allocation4 + $0x788] sm:$0xff]
  %v8925 = vld [vmem:[#allocation4 + $0x790] sm:$0xff]
  %v8926 = vld [vmem:[#allocation4 + $0x798] sm:$0xff]
  %v8927 = vld [vmem:[#allocation4 + $0x7a0] sm:$0xff]
  %v8928 = vld [vmem:[#allocation4 + $0x7a8] sm:$0xff]
  %v8929 = vld [vmem:[#allocation4 + $0x7b0] sm:$0xff]
  %v8930 = vld [vmem:[#allocation4 + $0x7b8] sm:$0xff]
  %v8931 = vld [vmem:[#allocation4 + $0x7c0] sm:$0xff]
  %v8932 = vld [vmem:[#allocation4 + $0x7c8] sm:$0xff]
  %v8933 = vld [vmem:[#allocation4 + $0x7d0] sm:$0xff]
  %v8934 = vld [vmem:[#allocation4 + $0x7d8] sm:$0xff]
  %v8935 = vld [vmem:[#allocation4 + $0x7e0] sm:$0xff]
  %v8936 = vld [vmem:[#allocation4 + $0x7e8] sm:$0xff]
  %v8937 = vld [vmem:[#allocation4 + $0x7f0] sm:$0xff]
  %v8938 = vld [vmem:[#allocation4 + $0x7f8] sm:$0xff]
  %v8939 = vld [vmem:[#allocation4 + $0x800] sm:$0xff]
  %v8940 = vld [vmem:[#allocation4 + $0x808] sm:$0xff]
  %v8941 = vld [vmem:[#allocation4 + $0x810] sm:$0xff]
  %v8942 = vld [vmem:[#allocation4 + $0x818] sm:$0xff]
  %v8943 = vld [vmem:[#allocation4 + $0x820] sm:$0xff]
  %v8944 = vld [vmem:[#allocation4 + $0x828] sm:$0xff]
  %v8945 = vld [vmem:[#allocation4 + $0x830] sm:$0xff]
  %v8946 = vld [vmem:[#allocation4 + $0x838] sm:$0xff]
  %v8947 = vld [vmem:[#allocation4 + $0x840] sm:$0xff]
  %v8948 = vld [vmem:[#allocation4 + $0x848] sm:$0xff]
  %v8949 = vld [vmem:[#allocation4 + $0x850] sm:$0xff]
  %v8950 = vld [vmem:[#allocation4 + $0x858] sm:$0xff]
  %v8951 = vld [vmem:[#allocation4 + $0x860] sm:$0xff]
  %v8952 = vld [vmem:[#allocation4 + $0x868] sm:$0xff]
  %v8953 = vld [vmem:[#allocation4 + $0x870] sm:$0xff]
  %v8954 = vld [vmem:[#allocation4 + $0x878] sm:$0xff]
  %v8955 = vld [vmem:[#allocation4 + $0x880] sm:$0xff]
  %v8956 = vld [vmem:[#allocation4 + $0x888] sm:$0xff]
  %v8957 = vld [vmem:[#allocation4 + $0x890] sm:$0xff]
  %v8958 = vld [vmem:[#allocation4 + $0x898] sm:$0xff]
  %v8959 = vld [vmem:[#allocation4 + $0x8a0] sm:$0xff]
  %v8960 = vld [vmem:[#allocation4 + $0x8a8] sm:$0xff]
  %v8961 = vld [vmem:[#allocation4 + $0x8b0] sm:$0xff]
  %v8962 = vld [vmem:[#allocation4 + $0x8b8] sm:$0xff]
  %v8963 = vld [vmem:[#allocation4 + $0x8c0] sm:$0xff]
  %v8964 = vld [vmem:[#allocation4 + $0x8c8] sm:$0xff]
  %v8965 = vld [vmem:[#allocation4 + $0x8d0] sm:$0xff]
  %v8966 = vld [vmem:[#allocation4 + $0x8d8] sm:$0xff]
  %v8967 = vld [vmem:[#allocation4 + $0x8e0] sm:$0xff]
  %v8968 = vld [vmem:[#allocation4 + $0x8e8] sm:$0xff]
  %v8969 = vld [vmem:[#allocation4 + $0x8f0] sm:$0xff]
  %v8970 = vld [vmem:[#allocation4 + $0x8f8] sm:$0xff]
  %v8971 = vld [vmem:[#allocation4 + $0x900] sm:$0xff]
  %v8972 = vld [vmem:[#allocation4 + $0x908] sm:$0xff]
  %v8973 = vld [vmem:[#allocation4 + $0x910] sm:$0xff]
  %v8974 = vld [vmem:[#allocation4 + $0x918] sm:$0xff]
  %v8975 = vld [vmem:[#allocation4 + $0x920] sm:$0xff]
  %v8976 = vld [vmem:[#allocation4 + $0x928] sm:$0xff]
  %v8977 = vld [vmem:[#allocation4 + $0x930] sm:$0xff]
  %v8978 = vld [vmem:[#allocation4 + $0x938] sm:$0xff]
  %v8979 = vld [vmem:[#allocation4 + $0x940] sm:$0xff]
  %v8980 = vld [vmem:[#allocation4 + $0x948] sm:$0xff]
  %v8981 = vld [vmem:[#allocation4 + $0x950] sm:$0xff]
  %v8982 = vld [vmem:[#allocation4 + $0x958] sm:$0xff]
  %v8983 = vld [vmem:[#allocation4 + $0x960] sm:$0xff]
  %v8984 = vld [vmem:[#allocation4 + $0x968] sm:$0xff]
  %v8985 = vld [vmem:[#allocation4 + $0x970] sm:$0xff]
  %v8986 = vld [vmem:[#allocation4 + $0x978] sm:$0xff]
  %v8987 = vld [vmem:[#allocation4 + $0x980] sm:$0xff]
  %v8988 = vld [vmem:[#allocation4 + $0x988] sm:$0xff]
  %v8989 = vld [vmem:[#allocation4 + $0x990] sm:$0xff]
  %v8990 = vld [vmem:[#allocation4 + $0x998] sm:$0xff]
  %v8991 = vld [vmem:[#allocation4 + $0x9a0] sm:$0xff]
  %v8992 = vld [vmem:[#allocation4 + $0x9a8] sm:$0xff]
  %v8993 = vld [vmem:[#allocation4 + $0x9b0] sm:$0xff]
  %v8994 = vld [vmem:[#allocation4 + $0x9b8] sm:$0xff]
  %v8995 = vld [vmem:[#allocation4 + $0x9c0] sm:$0xff]
  %v8996 = vld [vmem:[#allocation4 + $0x9c8] sm:$0xff]
  %v8997 = vld [vmem:[#allocation4 + $0x9d0] sm:$0xff]
  %v8998 = vld [vmem:[#allocation4 + $0x9d8] sm:$0xff]
  %v8999 = vld [vmem:[#allocation4 + $0x9e0] sm:$0xff]
  %v9000 = vld [vmem:[#allocation4 + $0x9e8] sm:$0xff]
  %v9001 = vld [vmem:[#allocation4 + $0x9f0] sm:$0xff]
  %v9002 = vld [vmem:[#allocation4 + $0x9f8] sm:$0xff]
  %v9003 = vld [vmem:[#allocation4 + $0xa00] sm:$0xff]
  %v9004 = vld [vmem:[#allocation4 + $0xa08] sm:$0xff]
  %v9005 = vld [vmem:[#allocation4 + $0xa10] sm:$0xff]
  %v9006 = vld [vmem:[#allocation4 + $0xa18] sm:$0xff]
  %v9007 = vld [vmem:[#allocation4 + $0xa20] sm:$0xff]
  %v9008 = vld [vmem:[#allocation4 + $0xa28] sm:$0xff]
  %v9009 = vld [vmem:[#allocation4 + $0xa30] sm:$0xff]
  %v9010 = vld [vmem:[#allocation4 + $0xa38] sm:$0xff]
  %v9011 = vld [vmem:[#allocation4 + $0xa40] sm:$0xff]
  %v9012 = vld [vmem:[#allocation4 + $0xa48] sm:$0xff]
  %v9013 = vld [vmem:[#allocation4 + $0xa50] sm:$0xff]
  %v9014 = vld [vmem:[#allocation4 + $0xa58] sm:$0xff]
  %v9015 = vld [vmem:[#allocation4 + $0xa60] sm:$0xff]
  %v9016 = vld [vmem:[#allocation4 + $0xa68] sm:$0xff]
  %v9017 = vld [vmem:[#allocation4 + $0xa70] sm:$0xff]
  %v9018 = vld [vmem:[#allocation4 + $0xa78] sm:$0xff]
  %v9019 = vld [vmem:[#allocation4 + $0xa80] sm:$0xff]
  %v9020 = vld [vmem:[#allocation4 + $0xa88] sm:$0xff]
  %v9021 = vld [vmem:[#allocation4 + $0xa90] sm:$0xff]
  %v9022 = vld [vmem:[#allocation4 + $0xa98] sm:$0xff]
  %v9023 = vld [vmem:[#allocation4 + $0xaa0] sm:$0xff]
  %v9024 = vld [vmem:[#allocation4 + $0xaa8] sm:$0xff]
  %v9025 = vld [vmem:[#allocation4 + $0xab0] sm:$0xff]
  %v9026 = vld [vmem:[#allocation4 + $0xab8] sm:$0xff]
  %v9027 = vld [vmem:[#allocation4 + $0xac0] sm:$0xff]
  %v9028 = vld [vmem:[#allocation4 + $0xac8] sm:$0xff]
  %v9029 = vld [vmem:[#allocation4 + $0xad0] sm:$0xff]
  %v9030 = vld [vmem:[#allocation4 + $0xad8] sm:$0xff]
  %v9031 = vld [vmem:[#allocation4 + $0xae0] sm:$0xff]
  %v9032 = vld [vmem:[#allocation4 + $0xae8] sm:$0xff]
  %v9033 = vld [vmem:[#allocation4 + $0xaf0] sm:$0xff]
  %v9034 = vld [vmem:[#allocation4 + $0xaf8] sm:$0xff]
  %v9035 = vld [vmem:[#allocation4 + $0xb00] sm:$0xff]
  %v9036 = vld [vmem:[#allocation4 + $0xb08] sm:$0xff]
  %v9037 = vld [vmem:[#allocation4 + $0xb10] sm:$0xff]
  %v9038 = vld [vmem:[#allocation4 + $0xb18] sm:$0xff]
  %v9039 = vld [vmem:[#allocation4 + $0xb20] sm:$0xff]
  %v9040 = vld [vmem:[#allocation4 + $0xb28] sm:$0xff]
  %v9041 = vld [vmem:[#allocation4 + $0xb30] sm:$0xff]
  %v9042 = vld [vmem:[#allocation4 + $0xb38] sm:$0xff]
  %v9043 = vld [vmem:[#allocation4 + $0xb40] sm:$0xff]
  %v9044 = vld [vmem:[#allocation4 + $0xb48] sm:$0xff]
  %v9045 = vld [vmem:[#allocation4 + $0xb50] sm:$0xff]
  %v9046 = vld [vmem:[#allocation4 + $0xb58] sm:$0xff]
  %v9047 = vld [vmem:[#allocation4 + $0xb60] sm:$0xff]
  %v9048 = vld [vmem:[#allocation4 + $0xb68] sm:$0xff]
  %v9049 = vld [vmem:[#allocation4 + $0xb70] sm:$0xff]
  %v9050 = vld [vmem:[#allocation4 + $0xb78] sm:$0xff]
  %v9051 = vld [vmem:[#allocation4 + $0xb80] sm:$0xff]
  %v9052 = vld [vmem:[#allocation4 + $0xb88] sm:$0xff]
  %v9053 = vld [vmem:[#allocation4 + $0xb90] sm:$0xff]
  %v9054 = vld [vmem:[#allocation4 + $0xb98] sm:$0xff]
  %v9055 = vld [vmem:[#allocation4 + $0xba0] sm:$0xff]
  %v9056 = vld [vmem:[#allocation4 + $0xba8] sm:$0xff]
  %v9057 = vld [vmem:[#allocation4 + $0xbb0] sm:$0xff]
  %v9058 = vld [vmem:[#allocation4 + $0xbb8] sm:$0xff]
  %v9059 = vld [vmem:[#allocation4 + $0xbc0] sm:$0xff]
  %v9060 = vld [vmem:[#allocation4 + $0xbc8] sm:$0xff]
  %v9061 = vld [vmem:[#allocation4 + $0xbd0] sm:$0xff]
  %v9062 = vld [vmem:[#allocation4 + $0xbd8] sm:$0xff]
  %v9063 = vld [vmem:[#allocation4 + $0xbe0] sm:$0xff]
  %v9064 = vld [vmem:[#allocation4 + $0xbe8] sm:$0xff]
  %v9065 = vld [vmem:[#allocation4 + $0xbf0] sm:$0xff]
  %v9066 = vld [vmem:[#allocation4 + $0xbf8] sm:$0xff]
  %v9067 = vld [vmem:[#allocation4 + $0xc00] sm:$0xff]
  %v9068 = vld [vmem:[#allocation4 + $0xc08] sm:$0xff]
  %v9069 = vld [vmem:[#allocation4 + $0xc10] sm:$0xff]
  %v9070 = vld [vmem:[#allocation4 + $0xc18] sm:$0xff]
  %v9071 = vld [vmem:[#allocation4 + $0xc20] sm:$0xff]
  %v9072 = vld [vmem:[#allocation4 + $0xc28] sm:$0xff]
  %v9073 = vld [vmem:[#allocation4 + $0xc30] sm:$0xff]
  %v9074 = vld [vmem:[#allocation4 + $0xc38] sm:$0xff]
  %v9075 = vld [vmem:[#allocation4 + $0xc40] sm:$0xff]
  %v9076 = vld [vmem:[#allocation4 + $0xc48] sm:$0xff]
  %v9077 = vld [vmem:[#allocation4 + $0xc50] sm:$0xff]
  %v9078 = vld [vmem:[#allocation4 + $0xc58] sm:$0xff]
  %v9079 = vld [vmem:[#allocation4 + $0xc60] sm:$0xff]
  %v9080 = vld [vmem:[#allocation4 + $0xc68] sm:$0xff]
  %v9081 = vld [vmem:[#allocation4 + $0xc70] sm:$0xff]
  %v9082 = vld [vmem:[#allocation4 + $0xc78] sm:$0xff]
  %v9083 = vld [vmem:[#allocation4 + $0xc80] sm:$0xff]
  %v9084 = vld [vmem:[#allocation4 + $0xc88] sm:$0xff]
  %v9085 = vld [vmem:[#allocation4 + $0xc90] sm:$0xff]
  %v9086 = vld [vmem:[#allocation4 + $0xc98] sm:$0xff]
  %v9087 = vld [vmem:[#allocation4 + $0xca0] sm:$0xff]
  %v9088 = vld [vmem:[#allocation4 + $0xca8] sm:$0xff]
  %v9089 = vld [vmem:[#allocation4 + $0xcb0] sm:$0xff]
  %v9090 = vld [vmem:[#allocation4 + $0xcb8] sm:$0xff]
  %v9091 = vld [vmem:[#allocation4 + $0xcc0] sm:$0xff]
  %v9092 = vld [vmem:[#allocation4 + $0xcc8] sm:$0xff]
  %v9093 = vld [vmem:[#allocation4 + $0xcd0] sm:$0xff]
  %v9094 = vld [vmem:[#allocation4 + $0xcd8] sm:$0xff]
  %v9095 = vld [vmem:[#allocation4 + $0xce0] sm:$0xff]
  %v9096 = vld [vmem:[#allocation4 + $0xce8] sm:$0xff]
  %v9097 = vld [vmem:[#allocation4 + $0xcf0] sm:$0xff]
  %v9098 = vld [vmem:[#allocation4 + $0xcf8] sm:$0xff]
  %v9099 = vld [vmem:[#allocation4 + $0xd00] sm:$0xff]
  %v9100 = vld [vmem:[#allocation4 + $0xd08] sm:$0xff]
  %v9101 = vld [vmem:[#allocation4 + $0xd10] sm:$0xff]
  %v9102 = vld [vmem:[#allocation4 + $0xd18] sm:$0xff]
  %v9103 = vld [vmem:[#allocation4 + $0xd20] sm:$0xff]
  %v9104 = vld [vmem:[#allocation4 + $0xd28] sm:$0xff]
  %v9105 = vld [vmem:[#allocation4 + $0xd30] sm:$0xff]
  %v9106 = vld [vmem:[#allocation4 + $0xd38] sm:$0xff]
  %v9107 = vld [vmem:[#allocation4 + $0xd40] sm:$0xff]
  %v9108 = vld [vmem:[#allocation4 + $0xd48] sm:$0xff]
  %v9109 = vld [vmem:[#allocation4 + $0xd50] sm:$0xff]
  %v9110 = vld [vmem:[#allocation4 + $0xd58] sm:$0xff]
  %v9111 = vld [vmem:[#allocation4 + $0xd60] sm:$0xff]
  %v9112 = vld [vmem:[#allocation4 + $0xd68] sm:$0xff]
  %v9113 = vld [vmem:[#allocation4 + $0xd70] sm:$0xff]
  %v9114 = vld [vmem:[#allocation4 + $0xd78] sm:$0xff]
  %v9115 = vld [vmem:[#allocation4 + $0xd80] sm:$0xff]
  %v9116 = vld [vmem:[#allocation4 + $0xd88] sm:$0xff]
  %v9117 = vld [vmem:[#allocation4 + $0xd90] sm:$0xff]
  %v9118 = vld [vmem:[#allocation4 + $0xd98] sm:$0xff]
  %v9119 = vld [vmem:[#allocation4 + $0xda0] sm:$0xff]
  %v9120 = vld [vmem:[#allocation4 + $0xda8] sm:$0xff]
  %v9121 = vld [vmem:[#allocation4 + $0xdb0] sm:$0xff]
  %v9122 = vld [vmem:[#allocation4 + $0xdb8] sm:$0xff]
  %v9123 = vld [vmem:[#allocation4 + $0xdc0] sm:$0xff]
  %v9124 = vld [vmem:[#allocation4 + $0xdc8] sm:$0xff]
  %v9125 = vld [vmem:[#allocation4 + $0xdd0] sm:$0xff]
  %v9126 = vld [vmem:[#allocation4 + $0xdd8] sm:$0xff]
  %v9127 = vld [vmem:[#allocation4 + $0xde0] sm:$0xff]
  %v9128 = vld [vmem:[#allocation4 + $0xde8] sm:$0xff]
  %v9129 = vld [vmem:[#allocation4 + $0xdf0] sm:$0xff]
  %v9130 = vld [vmem:[#allocation4 + $0xdf8] sm:$0xff]
  %v9131 = vld [vmem:[#allocation4 + $0xe00] sm:$0xff]
  %v9132 = vld [vmem:[#allocation4 + $0xe08] sm:$0xff]
  %v9133 = vld [vmem:[%s7] sm:$0xff]
  %v9134 = vld [vmem:[%s7 + $0x8] sm:$0x3]
  %9136 = vset.pattern.permute.xlu0 0
  %9137 = vperm.xlu0 %9136, %v9133
  %v9138 = vpop.permute.xlu0 %9137
  %9141 = vset.pattern.permute.xlu0 0
  %9142 = vperm.xlu0 %9141, %v9134
  %v9143 = vpop.permute.xlu0 %9142
  %vm9145 = vcmask 130048
  %v9147 = vsel %vm9145, %v8678, 0
  %v9150 = vsel %vm9145, %v8682, 0
  %9152 = vmatprep.subr.mxu0 %v8819
  %9153 = vmatpush1.msra.mxu0 %v8818
  %9154 = vmatprep.subr.mxu0 %v8810
  %9155 = vmatpush1.msra.mxu0 %v8809
  %9156 = vmatprep.subr.mxu0 %v8801
  %9157 = vmatpush1.msra.mxu0 %v8800
  %9158 = vmatprep.subr.mxu0 %v8792
  %9159 = vmatpush1.msra.mxu0 %v8791
  %9160 = vmatprep.subr.mxu0 %v8783
  %9161 = vmatpush1.msra.mxu0 %v8782
  %9162 = vmatprep.subr.mxu0 %v8774
  %9163 = vmatpush1.msra.mxu0 %v8773
  %9164 = vmatprep.subr.mxu0 %v8765
  %9165 = vmatpush1.msra.mxu0 %v8764
  %9166 = vmatprep.subr.mxu0 %v8756
  %9167 = vmatpush1.msra.mxu0 %v8755
  %9168 = vmatprep.subr.mxu0 %v8747
  %9169 = vmatpush1.msra.mxu0 %v8746
  %9170 = vmatprep.subr.mxu0 %v8738
  %9171 = vmatpush1.msra.mxu0 %v8737
  %9172 = vmatprep.subr.mxu0 %v8729
  %9173 = vmatpush1.msra.mxu0 %v8728
  %9174 = vmatprep.subr.mxu0 %v8720
  %9175 = vmatpush1.msra.mxu0 %v8719
  %9176 = vmatprep.subr.mxu0 %v8711
  %9177 = vmatpush1.msra.mxu0 %v8710
  %9178 = vmatprep.subr.mxu0 %v8702
  %9179 = vmatpush1.msra.mxu0 %v8701
  %9180 = vmatprep.subr.mxu0 %v8693
  %9181 = vmatpush1.msra.mxu0 %v8692
  %9182 = vmatprep.subr.mxu0 %v8684
  %9183 = vmatpush1.msra.mxu0 %v8683
  %9184 = vmatprep.subr.mxu0 %v8963
  %9185 = vmatpush2.msra.mxu0 %v8962
  %9186 = vmatprep.subr.mxu0 %v8954
  %9187 = vmatpush2.msra.mxu0 %v8953
  %9188 = vmatprep.subr.mxu0 %v8945
  %9189 = vmatpush2.msra.mxu0 %v8944
  %9190 = vmatprep.subr.mxu0 %v8936
  %9191 = vmatpush2.msra.mxu0 %v8935
  %9192 = vmatprep.subr.mxu0 %v8927
  %9193 = vmatpush2.msra.mxu0 %v8926
  %9194 = vmatprep.subr.mxu0 %v8918
  %9195 = vmatpush2.msra.mxu0 %v8917
  %9196 = vmatprep.subr.mxu0 %v8909
  %9197 = vmatpush2.msra.mxu0 %v8908
  %9198 = vmatprep.subr.mxu0 %v8900
  %9199 = vmatpush2.msra.mxu0 %v8899
  %9200 = vmatprep.subr.mxu0 %v8891
  %9201 = vmatpush2.msra.mxu0 %v8890
  %9202 = vmatprep.subr.mxu0 %v8882
  %9203 = vmatpush2.msra.mxu0 %v8881
  %9204 = vmatprep.subr.mxu0 %v8873
  %9205 = vmatpush2.msra.mxu0 %v8872
  %9206 = vmatprep.subr.mxu0 %v8864
  %9207 = vmatpush2.msra.mxu0 %v8863
  %9208 = vmatprep.subr.mxu0 %v8855
  %9209 = vmatpush2.msra.mxu0 %v8854
  %9210 = vmatprep.subr.mxu0 %v8846
  %9211 = vmatpush2.msra.mxu0 %v8845
  %9212 = vmatprep.subr.mxu0 %v8837
  %9213 = vmatpush2.msra.mxu0 %v8836
  %9214 = vmatprep.subr.mxu0 %v8828
  %9215 = vmatpush2.msra.mxu0 %v8827
  %9216 = vmatprep.mubr.f32.mxu0 %v8676
  %9217 = vmatmul.mubr.f32.gmra.mxu0 %v8675
  %v9218 = vpop.f32.mrf.mxu0
  %v9219 = vadd.f32 %v9138, %v9218
  %v9220 = vpop.f32.mrf.mxu0
  %v9221 = vadd.f32 %v9138, %v9220
  %9222 = vmatprep.mubr.f32.mxu0 %v8680
  %9223 = vmatmul.mubr.f32.gmra.mxu0 %v8679
  %v9224 = vpop.f32.mrf.mxu0
  %v9225 = vadd.f32 %v9143, %v9224
  %v9226 = vpop.f32.mrf.mxu0
  %v9227 = vadd.f32 %v9143, %v9226
  %9228 = vdwg.mxu0
  %9229 = vmatprep.subr.mxu0 %v9107
  %9230 = vmatpush1.msra.mxu0 %v9106
  %9231 = vmatprep.subr.mxu0 %v9098
  %9232 = vmatpush1.msra.mxu0 %v9097
  %9233 = vmatprep.subr.mxu0 %v9089
  %9234 = vmatpush1.msra.mxu0 %v9088
  %9235 = vmatprep.subr.mxu0 %v9080
  %9236 = vmatpush1.msra.mxu0 %v9079
  %9237 = vmatprep.subr.mxu0 %v9071
  %9238 = vmatpush1.msra.mxu0 %v9070
  %9239 = vmatprep.subr.mxu0 %v9062
  %9240 = vmatpush1.msra.mxu0 %v9061
  %9241 = vmatprep.subr.mxu0 %v9053
  %9242 = vmatpush1.msra.mxu0 %v9052
  %9243 = vmatprep.subr.mxu0 %v9044
  %9244 = vmatpush1.msra.mxu0 %v9043
  %9245 = vmatprep.subr.mxu0 %v9035
  %9246 = vmatpush1.msra.mxu0 %v9034
  %9247 = vmatprep.subr.mxu0 %v9026
  %9248 = vmatpush1.msra.mxu0 %v9025
  %9249 = vmatprep.subr.mxu0 %v9017
  %9250 = vmatpush1.msra.mxu0 %v9016
  %9251 = vmatprep.subr.mxu0 %v9008
  %9252 = vmatpush1.msra.mxu0 %v9007
  %9253 = vmatprep.subr.mxu0 %v8999
  %9254 = vmatpush1.msra.mxu0 %v8998
  %9255 = vmatprep.subr.mxu0 %v8990
  %9256 = vmatpush1.msra.mxu0 %v8989
  %9257 = vmatprep.subr.mxu0 %v8981
  %9258 = vmatpush1.msra.mxu0 %v8980
  %9259 = vmatprep.subr.mxu0 %v8972
  %9260 = vmatpush1.msra.mxu0 %v8971
  %9261 = vmatprep.subr.mxu0 0.0
  %9262 = vmatpush2.msra.mxu0 0.0
  %9263 = vmatprep.subr.mxu0 0.0
  %9264 = vmatpush2.msra.mxu0 0.0
  %9265 = vmatprep.subr.mxu0 0.0
  %9266 = vmatpush2.msra.mxu0 0.0
  %9267 = vmatprep.subr.mxu0 0.0
  %9268 = vmatpush2.msra.mxu0 0.0
  %9269 = vmatprep.subr.mxu0 0.0
  %9270 = vmatpush2.msra.mxu0 0.0
  %9271 = vmatprep.subr.mxu0 0.0
  %9272 = vmatpush2.msra.mxu0 0.0
  %9273 = vmatprep.subr.mxu0 0.0
  %9274 = vmatpush2.msra.mxu0 0.0
  %9275 = vmatprep.subr.mxu0 0.0
  %9276 = vmatpush2.msra.mxu0 0.0
  %9277 = vmatprep.subr.mxu0 0.0
  %9278 = vmatpush2.msra.mxu0 0.0
  %9279 = vmatprep.subr.mxu0 0.0
  %9280 = vmatpush2.msra.mxu0 0.0
  %9281 = vmatprep.subr.mxu0 0.0
  %9282 = vmatpush2.msra.mxu0 0.0
  %9283 = vmatprep.subr.mxu0 0.0
  %9284 = vmatpush2.msra.mxu0 0.0
  %9285 = vmatprep.subr.mxu0 0.0
  %9286 = vmatpush2.msra.mxu0 0.0
  %9287 = vmatprep.subr.mxu0 0.0
  %9288 = vmatpush2.msra.mxu0 0.0
  %9289 = vmatprep.subr.mxu0 %v9125
  %9290 = vmatpush2.msra.mxu0 %v9124
  %9291 = vmatprep.subr.mxu0 %v9116
  %9292 = vmatpush2.msra.mxu0 %v9115
  %9293 = vmatprep.mubr.f32.mxu0 %v9147
  %9294 = vmatmul.mubr.f32.gmra.mxu0 %v8677
  %v9295 = vpop.f32.mrf.mxu0
  %v9296 = vadd.f32 %v9219, %v9295
  %v9297 = vpop.f32.mrf.mxu0
  %v9298 = vadd.f32 %v9221, %v9297
  %9299 = vmatprep.mubr.f32.mxu0 %v9150
  %9300 = vmatmul.mubr.f32.gmra.mxu0 %v8681
  %v9301 = vpop.f32.mrf.mxu0
  %v9302 = vadd.f32 %v9225, %v9301
  %v9303 = vpop.f32.mrf.mxu0
  %v9304 = vadd.f32 %v9227, %v9303
  %9305 = vdwg.mxu0
  %9306 = vmatprep.subr.mxu0 %v8821
  %9307 = vmatpush1.msra.mxu0 %v8820
  %9308 = vmatprep.subr.mxu0 %v8812
  %9309 = vmatpush1.msra.mxu0 %v8811
  %9310 = vmatprep.subr.mxu0 %v8803
  %9311 = vmatpush1.msra.mxu0 %v8802
  %9312 = vmatprep.subr.mxu0 %v8794
  %9313 = vmatpush1.msra.mxu0 %v8793
  %9314 = vmatprep.subr.mxu0 %v8785
  %9315 = vmatpush1.msra.mxu0 %v8784
  %9316 = vmatprep.subr.mxu0 %v8776
  %9317 = vmatpush1.msra.mxu0 %v8775
  %9318 = vmatprep.subr.mxu0 %v8767
  %9319 = vmatpush1.msra.mxu0 %v8766
  %9320 = vmatprep.subr.mxu0 %v8758
  %9321 = vmatpush1.msra.mxu0 %v8757
  %9322 = vmatprep.subr.mxu0 %v8749
  %9323 = vmatpush1.msra.mxu0 %v8748
  %9324 = vmatprep.subr.mxu0 %v8740
  %9325 = vmatpush1.msra.mxu0 %v8739
  %9326 = vmatprep.subr.mxu0 %v8731
  %9327 = vmatpush1.msra.mxu0 %v8730
  %9328 = vmatprep.subr.mxu0 %v8722
  %9329 = vmatpush1.msra.mxu0 %v8721
  %9330 = vmatprep.subr.mxu0 %v8713
  %9331 = vmatpush1.msra.mxu0 %v8712
  %9332 = vmatprep.subr.mxu0 %v8704
  %9333 = vmatpush1.msra.mxu0 %v8703
  %9334 = vmatprep.subr.mxu0 %v8695
  %9335 = vmatpush1.msra.mxu0 %v8694
  %9336 = vmatprep.subr.mxu0 %v8686
  %9337 = vmatpush1.msra.mxu0 %v8685
  %9338 = vmatprep.subr.mxu0 %v8965
  %9339 = vmatpush2.msra.mxu0 %v8964
  %9340 = vmatprep.subr.mxu0 %v8956
  %9341 = vmatpush2.msra.mxu0 %v8955
  %9342 = vmatprep.subr.mxu0 %v8947
  %9343 = vmatpush2.msra.mxu0 %v8946
  %9344 = vmatprep.subr.mxu0 %v8938
  %9345 = vmatpush2.msra.mxu0 %v8937
  %9346 = vmatprep.subr.mxu0 %v8929
  %9347 = vmatpush2.msra.mxu0 %v8928
  %9348 = vmatprep.subr.mxu0 %v8920
  %9349 = vmatpush2.msra.mxu0 %v8919
  %9350 = vmatprep.subr.mxu0 %v8911
  %9351 = vmatpush2.msra.mxu0 %v8910
  %9352 = vmatprep.subr.mxu0 %v8902
  %9353 = vmatpush2.msra.mxu0 %v8901
  %9354 = vmatprep.subr.mxu0 %v8893
  %9355 = vmatpush2.msra.mxu0 %v8892
  %9356 = vmatprep.subr.mxu0 %v8884
  %9357 = vmatpush2.msra.mxu0 %v8883
  %9358 = vmatprep.subr.mxu0 %v8875
  %9359 = vmatpush2.msra.mxu0 %v8874
  %9360 = vmatprep.subr.mxu0 %v8866
  %9361 = vmatpush2.msra.mxu0 %v8865
  %9362 = vmatprep.subr.mxu0 %v8857
  %9363 = vmatpush2.msra.mxu0 %v8856
  %9364 = vmatprep.subr.mxu0 %v8848
  %9365 = vmatpush2.msra.mxu0 %v8847
  %9366 = vmatprep.subr.mxu0 %v8839
  %9367 = vmatpush2.msra.mxu0 %v8838
  %9368 = vmatprep.subr.mxu0 %v8830
  %9369 = vmatpush2.msra.mxu0 %v8829
  %9370 = vmatprep.mubr.f32.mxu0 %v8676
  %9371 = vmatmul.mubr.f32.gmra.mxu0 %v8675
  %v9372 = vpop.f32.mrf.mxu0
  %v9373 = vadd.f32 %v9138, %v9372
  %v9374 = vpop.f32.mrf.mxu0
  %v9375 = vadd.f32 %v9138, %v9374
  %9376 = vmatprep.mubr.f32.mxu0 %v8680
  %9377 = vmatmul.mubr.f32.gmra.mxu0 %v8679
  %v9378 = vpop.f32.mrf.mxu0
  %v9379 = vadd.f32 %v9143, %v9378
  %v9380 = vpop.f32.mrf.mxu0
  %v9381 = vadd.f32 %v9143, %v9380
  %9382 = vdwg.mxu0
  %9383 = vmatprep.subr.mxu0 %v9109
  %9384 = vmatpush1.msra.mxu0 %v9108
  %9385 = vmatprep.subr.mxu0 %v9100
  %9386 = vmatpush1.msra.mxu0 %v9099
  %9387 = vmatprep.subr.mxu0 %v9091
  %9388 = vmatpush1.msra.mxu0 %v9090
  %9389 = vmatprep.subr.mxu0 %v9082
  %9390 = vmatpush1.msra.mxu0 %v9081
  %9391 = vmatprep.subr.mxu0 %v9073
  %9392 = vmatpush1.msra.mxu0 %v9072
  %9393 = vmatprep.subr.mxu0 %v9064
  %9394 = vmatpush1.msra.mxu0 %v9063
  %9395 = vmatprep.subr.mxu0 %v9055
  %9396 = vmatpush1.msra.mxu0 %v9054
  %9397 = vmatprep.subr.mxu0 %v9046
  %9398 = vmatpush1.msra.mxu0 %v9045
  %9399 = vmatprep.subr.mxu0 %v9037
  %9400 = vmatpush1.msra.mxu0 %v9036
  %9401 = vmatprep.subr.mxu0 %v9028
  %9402 = vmatpush1.msra.mxu0 %v9027
  %9403 = vmatprep.subr.mxu0 %v9019
  %9404 = vmatpush1.msra.mxu0 %v9018
  %9405 = vmatprep.subr.mxu0 %v9010
  %9406 = vmatpush1.msra.mxu0 %v9009
  %9407 = vmatprep.subr.mxu0 %v9001
  %9408 = vmatpush1.msra.mxu0 %v9000
  %9409 = vmatprep.subr.mxu0 %v8992
  %9410 = vmatpush1.msra.mxu0 %v8991
  %9411 = vmatprep.subr.mxu0 %v8983
  %9412 = vmatpush1.msra.mxu0 %v8982
  %9413 = vmatprep.subr.mxu0 %v8974
  %9414 = vmatpush1.msra.mxu0 %v8973
  %9415 = vmatprep.subr.mxu0 0.0
  %9416 = vmatpush2.msra.mxu0 0.0
  %9417 = vmatprep.subr.mxu0 0.0
  %9418 = vmatpush2.msra.mxu0 0.0
  %9419 = vmatprep.subr.mxu0 0.0
  %9420 = vmatpush2.msra.mxu0 0.0
  %9421 = vmatprep.subr.mxu0 0.0
  %9422 = vmatpush2.msra.mxu0 0.0
  %9423 = vmatprep.subr.mxu0 0.0
  %9424 = vmatpush2.msra.mxu0 0.0
  %9425 = vmatprep.subr.mxu0 0.0
  %9426 = vmatpush2.msra.mxu0 0.0
  %9427 = vmatprep.subr.mxu0 0.0
  %9428 = vmatpush2.msra.mxu0 0.0
  %9429 = vmatprep.subr.mxu0 0.0
  %9430 = vmatpush2.msra.mxu0 0.0
  %9431 = vmatprep.subr.mxu0 0.0
  %9432 = vmatpush2.msra.mxu0 0.0
  %9433 = vmatprep.subr.mxu0 0.0
  %9434 = vmatpush2.msra.mxu0 0.0
  %9435 = vmatprep.subr.mxu0 0.0
  %9436 = vmatpush2.msra.mxu0 0.0
  %9437 = vmatprep.subr.mxu0 0.0
  %9438 = vmatpush2.msra.mxu0 0.0
  %9439 = vmatprep.subr.mxu0 0.0
  %9440 = vmatpush2.msra.mxu0 0.0
  %9441 = vmatprep.subr.mxu0 0.0
  %9442 = vmatpush2.msra.mxu0 0.0
  %9443 = vmatprep.subr.mxu0 %v9127
  %9444 = vmatpush2.msra.mxu0 %v9126
  %9445 = vmatprep.subr.mxu0 %v9118
  %9446 = vmatpush2.msra.mxu0 %v9117
  %9447 = vmatprep.mubr.f32.mxu0 %v9147
  %9448 = vmatmul.mubr.f32.gmra.mxu0 %v8677
  %v9449 = vpop.f32.mrf.mxu0
  %v9450 = vadd.f32 %v9373, %v9449
  %v9451 = vpop.f32.mrf.mxu0
  %v9452 = vadd.f32 %v9375, %v9451
  %9453 = vmatprep.mubr.f32.mxu0 %v9150
  %9454 = vmatmul.mubr.f32.gmra.mxu0 %v8681
  %v9455 = vpop.f32.mrf.mxu0
  %v9456 = vadd.f32 %v9379, %v9455
  %v9457 = vpop.f32.mrf.mxu0
  %v9458 = vadd.f32 %v9381, %v9457
  %9459 = vdwg.mxu0
  %9460 = vmatprep.subr.mxu0 %v8823
  %9461 = vmatpush1.msra.mxu0 %v8822
  %9462 = vmatprep.subr.mxu0 %v8814
  %9463 = vmatpush1.msra.mxu0 %v8813
  %9464 = vmatprep.subr.mxu0 %v8805
  %9465 = vmatpush1.msra.mxu0 %v8804
  %9466 = vmatprep.subr.mxu0 %v8796
  %9467 = vmatpush1.msra.mxu0 %v8795
  %9468 = vmatprep.subr.mxu0 %v8787
  %9469 = vmatpush1.msra.mxu0 %v8786
  %9470 = vmatprep.subr.mxu0 %v8778
  %9471 = vmatpush1.msra.mxu0 %v8777
  %9472 = vmatprep.subr.mxu0 %v8769
  %9473 = vmatpush1.msra.mxu0 %v8768
  %9474 = vmatprep.subr.mxu0 %v8760
  %9475 = vmatpush1.msra.mxu0 %v8759
  %9476 = vmatprep.subr.mxu0 %v8751
  %9477 = vmatpush1.msra.mxu0 %v8750
  %9478 = vmatprep.subr.mxu0 %v8742
  %9479 = vmatpush1.msra.mxu0 %v8741
  %9480 = vmatprep.subr.mxu0 %v8733
  %9481 = vmatpush1.msra.mxu0 %v8732
  %9482 = vmatprep.subr.mxu0 %v8724
  %9483 = vmatpush1.msra.mxu0 %v8723
  %9484 = vmatprep.subr.mxu0 %v8715
  %9485 = vmatpush1.msra.mxu0 %v8714
  %9486 = vmatprep.subr.mxu0 %v8706
  %9487 = vmatpush1.msra.mxu0 %v8705
  %9488 = vmatprep.subr.mxu0 %v8697
  %9489 = vmatpush1.msra.mxu0 %v8696
  %9490 = vmatprep.subr.mxu0 %v8688
  %9491 = vmatpush1.msra.mxu0 %v8687
  %9492 = vmatprep.subr.mxu0 %v8967
  %9493 = vmatpush2.msra.mxu0 %v8966
  %9494 = vmatprep.subr.mxu0 %v8958
  %9495 = vmatpush2.msra.mxu0 %v8957
  %9496 = vmatprep.subr.mxu0 %v8949
  %9497 = vmatpush2.msra.mxu0 %v8948
  %9498 = vmatprep.subr.mxu0 %v8940
  %9499 = vmatpush2.msra.mxu0 %v8939
  %9500 = vmatprep.subr.mxu0 %v8931
  %9501 = vmatpush2.msra.mxu0 %v8930
  %9502 = vmatprep.subr.mxu0 %v8922
  %9503 = vmatpush2.msra.mxu0 %v8921
  %9504 = vmatprep.subr.mxu0 %v8913
  %9505 = vmatpush2.msra.mxu0 %v8912
  %9506 = vmatprep.subr.mxu0 %v8904
  %9507 = vmatpush2.msra.mxu0 %v8903
  %9508 = vmatprep.subr.mxu0 %v8895
  %9509 = vmatpush2.msra.mxu0 %v8894
  %9510 = vmatprep.subr.mxu0 %v8886
  %9511 = vmatpush2.msra.mxu0 %v8885
  %9512 = vmatprep.subr.mxu0 %v8877
  %9513 = vmatpush2.msra.mxu0 %v8876
  %9514 = vmatprep.subr.mxu0 %v8868
  %9515 = vmatpush2.msra.mxu0 %v8867
  %9516 = vmatprep.subr.mxu0 %v8859
  %9517 = vmatpush2.msra.mxu0 %v8858
  %9518 = vmatprep.subr.mxu0 %v8850
  %9519 = vmatpush2.msra.mxu0 %v8849
  %9520 = vmatprep.subr.mxu0 %v8841
  %9521 = vmatpush2.msra.mxu0 %v8840
  %9522 = vmatprep.subr.mxu0 %v8832
  %9523 = vmatpush2.msra.mxu0 %v8831
  %9524 = vmatprep.mubr.f32.mxu0 %v8676
  %9525 = vmatmul.mubr.f32.gmra.mxu0 %v8675
  %v9526 = vpop.f32.mrf.mxu0
  %v9527 = vadd.f32 %v9138, %v9526
  %v9528 = vpop.f32.mrf.mxu0
  %v9529 = vadd.f32 %v9138, %v9528
  %9530 = vmatprep.mubr.f32.mxu0 %v8680
  %9531 = vmatmul.mubr.f32.gmra.mxu0 %v8679
  %v9532 = vpop.f32.mrf.mxu0
  %v9533 = vadd.f32 %v9143, %v9532
  %v9534 = vpop.f32.mrf.mxu0
  %v9535 = vadd.f32 %v9143, %v9534
  %9536 = vdwg.mxu0
  %9537 = vmatprep.subr.mxu0 %v9111
  %9538 = vmatpush1.msra.mxu0 %v9110
  %9539 = vmatprep.subr.mxu0 %v9102
  %9540 = vmatpush1.msra.mxu0 %v9101
  %9541 = vmatprep.subr.mxu0 %v9093
  %9542 = vmatpush1.msra.mxu0 %v9092
  %9543 = vmatprep.subr.mxu0 %v9084
  %9544 = vmatpush1.msra.mxu0 %v9083
  %9545 = vmatprep.subr.mxu0 %v9075
  %9546 = vmatpush1.msra.mxu0 %v9074
  %9547 = vmatprep.subr.mxu0 %v9066
  %9548 = vmatpush1.msra.mxu0 %v9065
  %9549 = vmatprep.subr.mxu0 %v9057
  %9550 = vmatpush1.msra.mxu0 %v9056
  %9551 = vmatprep.subr.mxu0 %v9048
  %9552 = vmatpush1.msra.mxu0 %v9047
  %9553 = vmatprep.subr.mxu0 %v9039
  %9554 = vmatpush1.msra.mxu0 %v9038
  %9555 = vmatprep.subr.mxu0 %v9030
  %9556 = vmatpush1.msra.mxu0 %v9029
  %9557 = vmatprep.subr.mxu0 %v9021
  %9558 = vmatpush1.msra.mxu0 %v9020
  %9559 = vmatprep.subr.mxu0 %v9012
  %9560 = vmatpush1.msra.mxu0 %v9011
  %9561 = vmatprep.subr.mxu0 %v9003
  %9562 = vmatpush1.msra.mxu0 %v9002
  %9563 = vmatprep.subr.mxu0 %v8994
  %9564 = vmatpush1.msra.mxu0 %v8993
  %9565 = vmatprep.subr.mxu0 %v8985
  %9566 = vmatpush1.msra.mxu0 %v8984
  %9567 = vmatprep.subr.mxu0 %v8976
  %9568 = vmatpush1.msra.mxu0 %v8975
  %9569 = vmatprep.subr.mxu0 0.0
  %9570 = vmatpush2.msra.mxu0 0.0
  %9571 = vmatprep.subr.mxu0 0.0
  %9572 = vmatpush2.msra.mxu0 0.0
  %9573 = vmatprep.subr.mxu0 0.0
  %9574 = vmatpush2.msra.mxu0 0.0
  %9575 = vmatprep.subr.mxu0 0.0
  %9576 = vmatpush2.msra.mxu0 0.0
  %9577 = vmatprep.subr.mxu0 0.0
  %9578 = vmatpush2.msra.mxu0 0.0
  %9579 = vmatprep.subr.mxu0 0.0
  %9580 = vmatpush2.msra.mxu0 0.0
  %9581 = vmatprep.subr.mxu0 0.0
  %9582 = vmatpush2.msra.mxu0 0.0
  %9583 = vmatprep.subr.mxu0 0.0
  %9584 = vmatpush2.msra.mxu0 0.0
  %9585 = vmatprep.subr.mxu0 0.0
  %9586 = vmatpush2.msra.mxu0 0.0
  %9587 = vmatprep.subr.mxu0 0.0
  %9588 = vmatpush2.msra.mxu0 0.0
  %9589 = vmatprep.subr.mxu0 0.0
  %9590 = vmatpush2.msra.mxu0 0.0
  %9591 = vmatprep.subr.mxu0 0.0
  %9592 = vmatpush2.msra.mxu0 0.0
  %9593 = vmatprep.subr.mxu0 0.0
  %9594 = vmatpush2.msra.mxu0 0.0
  %9595 = vmatprep.subr.mxu0 0.0
  %9596 = vmatpush2.msra.mxu0 0.0
  %9597 = vmatprep.subr.mxu0 %v9129
  %9598 = vmatpush2.msra.mxu0 %v9128
  %9599 = vmatprep.subr.mxu0 %v9120
  %9600 = vmatpush2.msra.mxu0 %v9119
  %9601 = vmatprep.mubr.f32.mxu0 %v9147
  %9602 = vmatmul.mubr.f32.gmra.mxu0 %v8677
  %v9603 = vpop.f32.mrf.mxu0
  %v9604 = vadd.f32 %v9527, %v9603
  %v9605 = vpop.f32.mrf.mxu0
  %v9606 = vadd.f32 %v9529, %v9605
  %9607 = vmatprep.mubr.f32.mxu0 %v9150
  %9608 = vmatmul.mubr.f32.gmra.mxu0 %v8681
  %v9609 = vpop.f32.mrf.mxu0
  %v9610 = vadd.f32 %v9533, %v9609
  %v9611 = vpop.f32.mrf.mxu0
  %v9612 = vadd.f32 %v9535, %v9611
  %9613 = vdwg.mxu0
  %9614 = vmatprep.subr.mxu0 %v8825
  %9615 = vmatpush1.msra.mxu0 %v8824
  %9616 = vmatprep.subr.mxu0 %v8816
  %9617 = vmatpush1.msra.mxu0 %v8815
  %9618 = vmatprep.subr.mxu0 %v8807
  %9619 = vmatpush1.msra.mxu0 %v8806
  %9620 = vmatprep.subr.mxu0 %v8798
  %9621 = vmatpush1.msra.mxu0 %v8797
  %9622 = vmatprep.subr.mxu0 %v8789
  %9623 = vmatpush1.msra.mxu0 %v8788
  %9624 = vmatprep.subr.mxu0 %v8780
  %9625 = vmatpush1.msra.mxu0 %v8779
  %9626 = vmatprep.subr.mxu0 %v8771
  %9627 = vmatpush1.msra.mxu0 %v8770
  %9628 = vmatprep.subr.mxu0 %v8762
  %9629 = vmatpush1.msra.mxu0 %v8761
  %9630 = vmatprep.subr.mxu0 %v8753
  %9631 = vmatpush1.msra.mxu0 %v8752
  %9632 = vmatprep.subr.mxu0 %v8744
  %9633 = vmatpush1.msra.mxu0 %v8743
  %9634 = vmatprep.subr.mxu0 %v8735
  %9635 = vmatpush1.msra.mxu0 %v8734
  %9636 = vmatprep.subr.mxu0 %v8726
  %9637 = vmatpush1.msra.mxu0 %v8725
  %9638 = vmatprep.subr.mxu0 %v8717
  %9639 = vmatpush1.msra.mxu0 %v8716
  %9640 = vmatprep.subr.mxu0 %v8708
  %9641 = vmatpush1.msra.mxu0 %v8707
  %9642 = vmatprep.subr.mxu0 %v8699
  %9643 = vmatpush1.msra.mxu0 %v8698
  %9644 = vmatprep.subr.mxu0 %v8690
  %9645 = vmatpush1.msra.mxu0 %v8689
  %9646 = vmatprep.subr.mxu0 %v8969
  %9647 = vmatpush2.msra.mxu0 %v8968
  %9648 = vmatprep.subr.mxu0 %v8960
  %9649 = vmatpush2.msra.mxu0 %v8959
  %9650 = vmatprep.subr.mxu0 %v8951
  %9651 = vmatpush2.msra.mxu0 %v8950
  %9652 = vmatprep.subr.mxu0 %v8942
  %9653 = vmatpush2.msra.mxu0 %v8941
  %9654 = vmatprep.subr.mxu0 %v8933
  %9655 = vmatpush2.msra.mxu0 %v8932
  %9656 = vmatprep.subr.mxu0 %v8924
  %9657 = vmatpush2.msra.mxu0 %v8923
  %9658 = vmatprep.subr.mxu0 %v8915
  %9659 = vmatpush2.msra.mxu0 %v8914
  %9660 = vmatprep.subr.mxu0 %v8906
  %9661 = vmatpush2.msra.mxu0 %v8905
  %9662 = vmatprep.subr.mxu0 %v8897
  %9663 = vmatpush2.msra.mxu0 %v8896
  %9664 = vmatprep.subr.mxu0 %v8888
  %9665 = vmatpush2.msra.mxu0 %v8887
  %9666 = vmatprep.subr.mxu0 %v8879
  %9667 = vmatpush2.msra.mxu0 %v8878
  %9668 = vmatprep.subr.mxu0 %v8870
  %9669 = vmatpush2.msra.mxu0 %v8869
  %9670 = vmatprep.subr.mxu0 %v8861
  %9671 = vmatpush2.msra.mxu0 %v8860
  %9672 = vmatprep.subr.mxu0 %v8852
  %9673 = vmatpush2.msra.mxu0 %v8851
  %9674 = vmatprep.subr.mxu0 %v8843
  %9675 = vmatpush2.msra.mxu0 %v8842
  %9676 = vmatprep.subr.mxu0 %v8834
  %9677 = vmatpush2.msra.mxu0 %v8833
  %9678 = vmatprep.mubr.f32.mxu0 %v8676
  %9679 = vmatmul.mubr.f32.gmra.mxu0 %v8675
  %v9680 = vpop.f32.mrf.mxu0
  %v9681 = vadd.f32 %v9138, %v9680
  %v9682 = vpop.f32.mrf.mxu0
  %v9683 = vadd.f32 %v9138, %v9682
  %9684 = vmatprep.mubr.f32.mxu0 %v8680
  %9685 = vmatmul.mubr.f32.gmra.mxu0 %v8679
  %v9686 = vpop.f32.mrf.mxu0
  %v9687 = vadd.f32 %v9143, %v9686
  %v9688 = vpop.f32.mrf.mxu0
  %v9689 = vadd.f32 %v9143, %v9688
  %9690 = vdwg.mxu0
  %9691 = vmatprep.subr.mxu0 %v9113
  %9692 = vmatpush1.msra.mxu0 %v9112
  %9693 = vmatprep.subr.mxu0 %v9104
  %9694 = vmatpush1.msra.mxu0 %v9103
  %9695 = vmatprep.subr.mxu0 %v9095
  %9696 = vmatpush1.msra.mxu0 %v9094
  %9697 = vmatprep.subr.mxu0 %v9086
  %9698 = vmatpush1.msra.mxu0 %v9085
  %9699 = vmatprep.subr.mxu0 %v9077
  %9700 = vmatpush1.msra.mxu0 %v9076
  %9701 = vmatprep.subr.mxu0 %v9068
  %9702 = vmatpush1.msra.mxu0 %v9067
  %9703 = vmatprep.subr.mxu0 %v9059
  %9704 = vmatpush1.msra.mxu0 %v9058
  %9705 = vmatprep.subr.mxu0 %v9050
  %9706 = vmatpush1.msra.mxu0 %v9049
  %9707 = vmatprep.subr.mxu0 %v9041
  %9708 = vmatpush1.msra.mxu0 %v9040
  %9709 = vmatprep.subr.mxu0 %v9032
  %9710 = vmatpush1.msra.mxu0 %v9031
  %9711 = vmatprep.subr.mxu0 %v9023
  %9712 = vmatpush1.msra.mxu0 %v9022
  %9713 = vmatprep.subr.mxu0 %v9014
  %9714 = vmatpush1.msra.mxu0 %v9013
  %9715 = vmatprep.subr.mxu0 %v9005
  %9716 = vmatpush1.msra.mxu0 %v9004
  %9717 = vmatprep.subr.mxu0 %v8996
  %9718 = vmatpush1.msra.mxu0 %v8995
  %9719 = vmatprep.subr.mxu0 %v8987
  %9720 = vmatpush1.msra.mxu0 %v8986
  %9721 = vmatprep.subr.mxu0 %v8978
  %9722 = vmatpush1.msra.mxu0 %v8977
  %9723 = vmatprep.subr.mxu0 0.0
  %9724 = vmatpush2.msra.mxu0 0.0
  %9725 = vmatprep.subr.mxu0 0.0
  %9726 = vmatpush2.msra.mxu0 0.0
  %9727 = vmatprep.subr.mxu0 0.0
  %9728 = vmatpush2.msra.mxu0 0.0
  %9729 = vmatprep.subr.mxu0 0.0
  %9730 = vmatpush2.msra.mxu0 0.0
  %9731 = vmatprep.subr.mxu0 0.0
  %9732 = vmatpush2.msra.mxu0 0.0
  %9733 = vmatprep.subr.mxu0 0.0
  %9734 = vmatpush2.msra.mxu0 0.0
  %9735 = vmatprep.subr.mxu0 0.0
  %9736 = vmatpush2.msra.mxu0 0.0
  %9737 = vmatprep.subr.mxu0 0.0
  %9738 = vmatpush2.msra.mxu0 0.0
  %9739 = vmatprep.subr.mxu0 0.0
  %9740 = vmatpush2.msra.mxu0 0.0
  %9741 = vmatprep.subr.mxu0 0.0
  %9742 = vmatpush2.msra.mxu0 0.0
  %9743 = vmatprep.subr.mxu0 0.0
  %9744 = vmatpush2.msra.mxu0 0.0
  %9745 = vmatprep.subr.mxu0 0.0
  %9746 = vmatpush2.msra.mxu0 0.0
  %9747 = vmatprep.subr.mxu0 0.0
  %9748 = vmatpush2.msra.mxu0 0.0
  %9749 = vmatprep.subr.mxu0 0.0
  %9750 = vmatpush2.msra.mxu0 0.0
  %9751 = vmatprep.subr.mxu0 %v9131
  %9752 = vmatpush2.msra.mxu0 %v9130
  %9753 = vmatprep.subr.mxu0 %v9122
  %9754 = vmatpush2.msra.mxu0 %v9121
  %9755 = vmatprep.mubr.f32.mxu0 %v9147
  %9756 = vmatmul.mubr.f32.gmra.mxu0 %v8677
  %v9757 = vpop.f32.mrf.mxu0
  %v9758 = vadd.f32 %v9681, %v9757
  %v9759 = vpop.f32.mrf.mxu0
  %v9760 = vadd.f32 %v9683, %v9759
  %9761 = vmatprep.mubr.f32.mxu0 %v9150
  %9762 = vmatmul.mubr.f32.gmra.mxu0 %v8681
  %v9763 = vpop.f32.mrf.mxu0
  %v9764 = vadd.f32 %v9687, %v9763
  %v9765 = vpop.f32.mrf.mxu0
  %v9766 = vadd.f32 %v9689, %v9765
  %9767 = vdwg.mxu0
  %9768 = vmatprep.subr.mxu0 0.0
  %9769 = vmatpush1.msra.mxu0 %v8826
  %9770 = vmatprep.subr.mxu0 0.0
  %9771 = vmatpush1.msra.mxu0 %v8817
  %9772 = vmatprep.subr.mxu0 0.0
  %9773 = vmatpush1.msra.mxu0 %v8808
  %9774 = vmatprep.subr.mxu0 0.0
  %9775 = vmatpush1.msra.mxu0 %v8799
  %9776 = vmatprep.subr.mxu0 0.0
  %9777 = vmatpush1.msra.mxu0 %v8790
  %9778 = vmatprep.subr.mxu0 0.0
  %9779 = vmatpush1.msra.mxu0 %v8781
  %9780 = vmatprep.subr.mxu0 0.0
  %9781 = vmatpush1.msra.mxu0 %v8772
  %9782 = vmatprep.subr.mxu0 0.0
  %9783 = vmatpush1.msra.mxu0 %v8763
  %9784 = vmatprep.subr.mxu0 0.0
  %9785 = vmatpush1.msra.mxu0 %v8754
  %9786 = vmatprep.subr.mxu0 0.0
  %9787 = vmatpush1.msra.mxu0 %v8745
  %9788 = vmatprep.subr.mxu0 0.0
  %9789 = vmatpush1.msra.mxu0 %v8736
  %9790 = vmatprep.subr.mxu0 0.0
  %9791 = vmatpush1.msra.mxu0 %v8727
  %9792 = vmatprep.subr.mxu0 0.0
  %9793 = vmatpush1.msra.mxu0 %v8718
  %9794 = vmatprep.subr.mxu0 0.0
  %9795 = vmatpush1.msra.mxu0 %v8709
  %9796 = vmatprep.subr.mxu0 0.0
  %9797 = vmatpush1.msra.mxu0 %v8700
  %9798 = vmatprep.subr.mxu0 0.0
  %9799 = vmatpush1.msra.mxu0 %v8691
  %9800 = vmatprep.subr.mxu0 0.0
  %9801 = vmatpush2.msra.mxu0 %v8970
  %9802 = vmatprep.subr.mxu0 0.0
  %9803 = vmatpush2.msra.mxu0 %v8961
  %9804 = vmatprep.subr.mxu0 0.0
  %9805 = vmatpush2.msra.mxu0 %v8952
  %9806 = vmatprep.subr.mxu0 0.0
  %9807 = vmatpush2.msra.mxu0 %v8943
  %9808 = vmatprep.subr.mxu0 0.0
  %9809 = vmatpush2.msra.mxu0 %v8934
  %9810 = vmatprep.subr.mxu0 0.0
  %9811 = vmatpush2.msra.mxu0 %v8925
  %9812 = vmatprep.subr.mxu0 0.0
  %9813 = vmatpush2.msra.mxu0 %v8916
  %9814 = vmatprep.subr.mxu0 0.0
  %9815 = vmatpush2.msra.mxu0 %v8907
  %9816 = vmatprep.subr.mxu0 0.0
  %9817 = vmatpush2.msra.mxu0 %v8898
  %9818 = vmatprep.subr.mxu0 0.0
  %9819 = vmatpush2.msra.mxu0 %v8889
  %9820 = vmatprep.subr.mxu0 0.0
  %9821 = vmatpush2.msra.mxu0 %v8880
  %9822 = vmatprep.subr.mxu0 0.0
  %9823 = vmatpush2.msra.mxu0 %v8871
  %9824 = vmatprep.subr.mxu0 0.0
  %9825 = vmatpush2.msra.mxu0 %v8862
  %9826 = vmatprep.subr.mxu0 0.0
  %9827 = vmatpush2.msra.mxu0 %v8853
  %9828 = vmatprep.subr.mxu0 0.0
  %9829 = vmatpush2.msra.mxu0 %v8844
  %9830 = vmatprep.subr.mxu0 0.0
  %9831 = vmatpush2.msra.mxu0 %v8835
  %9832 = vmatprep.mubr.f32.mxu0 %v8676
  %9833 = vmatmul.mubr.f32.gmra.mxu0 %v8675
  %v9834 = vpop.f32.mrf.mxu0
  %v9835 = vadd.f32 %v9138, %v9834
  %v9836 = vpop.f32.mrf.mxu0
  %9837 = vmatprep.mubr.f32.mxu0 %v8680
  %9838 = vmatmul.mubr.f32.gmra.mxu0 %v8679
  %v9839 = vpop.f32.mrf.mxu0
  %v9840 = vadd.f32 %v9143, %v9839
  %v9841 = vpop.f32.mrf.mxu0
  %9842 = vdwg.mxu0
  %9843 = vmatprep.subr.mxu0 0.0
  %9844 = vmatpush1.msra.mxu0 %v9114
  %9845 = vmatprep.subr.mxu0 0.0
  %9846 = vmatpush1.msra.mxu0 %v9105
  %9847 = vmatprep.subr.mxu0 0.0
  %9848 = vmatpush1.msra.mxu0 %v9096
  %9849 = vmatprep.subr.mxu0 0.0
  %9850 = vmatpush1.msra.mxu0 %v9087
  %9851 = vmatprep.subr.mxu0 0.0
  %9852 = vmatpush1.msra.mxu0 %v9078
  %9853 = vmatprep.subr.mxu0 0.0
  %9854 = vmatpush1.msra.mxu0 %v9069
  %9855 = vmatprep.subr.mxu0 0.0
  %9856 = vmatpush1.msra.mxu0 %v9060
  %9857 = vmatprep.subr.mxu0 0.0
  %9858 = vmatpush1.msra.mxu0 %v9051
  %9859 = vmatprep.subr.mxu0 0.0
  %9860 = vmatpush1.msra.mxu0 %v9042
  %9861 = vmatprep.subr.mxu0 0.0
  %9862 = vmatpush1.msra.mxu0 %v9033
  %9863 = vmatprep.subr.mxu0 0.0
  %9864 = vmatpush1.msra.mxu0 %v9024
  %9865 = vmatprep.subr.mxu0 0.0
  %9866 = vmatpush1.msra.mxu0 %v9015
  %9867 = vmatprep.subr.mxu0 0.0
  %9868 = vmatpush1.msra.mxu0 %v9006
  %9869 = vmatprep.subr.mxu0 0.0
  %9870 = vmatpush1.msra.mxu0 %v8997
  %9871 = vmatprep.subr.mxu0 0.0
  %9872 = vmatpush1.msra.mxu0 %v8988
  %9873 = vmatprep.subr.mxu0 0.0
  %9874 = vmatpush1.msra.mxu0 %v8979
  %9875 = vmatprep.subr.mxu0 0.0
  %9876 = vmatpush2.msra.mxu0 0.0
  %9877 = vmatprep.subr.mxu0 0.0
  %9878 = vmatpush2.msra.mxu0 0.0
  %9879 = vmatprep.subr.mxu0 0.0
  %9880 = vmatpush2.msra.mxu0 0.0
  %9881 = vmatprep.subr.mxu0 0.0
  %9882 = vmatpush2.msra.mxu0 0.0
  %9883 = vmatprep.subr.mxu0 0.0
  %9884 = vmatpush2.msra.mxu0 0.0
  %9885 = vmatprep.subr.mxu0 0.0
  %9886 = vmatpush2.msra.mxu0 0.0
  %9887 = vmatprep.subr.mxu0 0.0
  %9888 = vmatpush2.msra.mxu0 0.0
  %9889 = vmatprep.subr.mxu0 0.0
  %9890 = vmatpush2.msra.mxu0 0.0
  %9891 = vmatprep.subr.mxu0 0.0
  %9892 = vmatpush2.msra.mxu0 0.0
  %9893 = vmatprep.subr.mxu0 0.0
  %9894 = vmatpush2.msra.mxu0 0.0
  %9895 = vmatprep.subr.mxu0 0.0
  %9896 = vmatpush2.msra.mxu0 0.0
  %9897 = vmatprep.subr.mxu0 0.0
  %9898 = vmatpush2.msra.mxu0 0.0
  %9899 = vmatprep.subr.mxu0 0.0
  %9900 = vmatpush2.msra.mxu0 0.0
  %9901 = vmatprep.subr.mxu0 0.0
  %9902 = vmatpush2.msra.mxu0 0.0
  %9903 = vmatprep.subr.mxu0 0.0
  %9904 = vmatpush2.msra.mxu0 %v9132
  %9905 = vmatprep.subr.mxu0 0.0
  %9906 = vmatpush2.msra.mxu0 %v9123
  %9907 = vmatprep.mubr.f32.mxu0 %v9147
  %9908 = vmatmul.mubr.f32.gmra.mxu0 %v8677
  %v9909 = vpop.f32.mrf.mxu0
  %v9910 = vadd.f32 %v9835, %v9909
  %v9911 = vpop.f32.mrf.mxu0
  %9912 = vmatprep.mubr.f32.mxu0 %v9150
  %9913 = vmatmul.mubr.f32.gmra.mxu0 %v8681
  %v9914 = vpop.f32.mrf.mxu0
  %v9915 = vadd.f32 %v9840, %v9914
  %v9916 = vpop.f32.mrf.mxu0
  %9917 = vdwg.mxu0
  %9918 = vst [vmem:[%s9] sm:$0xff] %v9296
  %9919 = vst [vmem:[%s9 + $0x8] sm:$0xff] %v9298
  %9920 = vst [vmem:[%s9 + $0x10] sm:$0xff] %v9450
  %9921 = vst [vmem:[%s9 + $0x18] sm:$0xff] %v9452
  %9922 = vst [vmem:[%s9 + $0x20] sm:$0xff] %v9604
  %9923 = vst [vmem:[%s9 + $0x28] sm:$0xff] %v9606
  %9924 = vst [vmem:[%s9 + $0x30] sm:$0xff] %v9758
  %9925 = vst [vmem:[%s9 + $0x38] sm:$0xff] %v9760
  %9926 = vst.msk [vmem:[%s9 + $0x40] sm:$0xff] %vm6038, %v9910
  %9927 = vst [vmem:[%s9 + $0x48] sm:$0x3] %v9302
  %9928 = vst [vmem:[%s9 + $0x50] sm:$0x3] %v9304
  %9929 = vst [vmem:[%s9 + $0x58] sm:$0x3] %v9456
  %9930 = vst [vmem:[%s9 + $0x60] sm:$0x3] %v9458
  %9931 = vst [vmem:[%s9 + $0x68] sm:$0x3] %v9610
  %9932 = vst [vmem:[%s9 + $0x70] sm:$0x3] %v9612
  %9933 = vst [vmem:[%s9 + $0x78] sm:$0x3] %v9764
  %9934 = vst [vmem:[%s9 + $0x80] sm:$0x3] %v9766
  %vm9935 = vcmask 1024
  %9936 = vst.msk [vmem:[%s9 + $0x88] sm:$0x3] %vm9935, %v9915
  // Predicated region
  $region38: #{conv_net_forward.1} parent=0 // pred_check
    _
  $region39: #{conv_net_forward.1} parent=0 // pred_check_branch
    %9938 = sbr.rel (0) target = $region41
  $region40: #{conv_net_forward.1} parent=0 // pred_region
    _
  $region41: #{conv_net_forward.1} parent=0 // pred_fallthru
    _
  // Predicated region
  $region42: #{conv_net_forward.1} parent=0 // pred_check
    _
  $region43: #{conv_net_forward.1} parent=0 // pred_check_branch
    %9940 = sbr.rel (0) target = $region45
  $region44: #{conv_net_forward.1} parent=0 // pred_region
    _
  $region45: #{conv_net_forward.1} parent=0 // pred_fallthru
    _

</llo_original>
